<compile_context>
chip_gen: v6e
topology: v6e:2x2x1
jax: 0.10.0
libtpu: 0.0.40
codegen_flags: <defaults>
</compile_context>

<pallas_src>
import jax
import jax.numpy as jnp
from jax.experimental import pallas as pl
from jax.experimental.pallas import tpu as pltpu

# ---- hyperparameters (consistent with the module __init__) ----
BATCH = 2
VOCAB = 16              # action_space_size
ENC = 32                # encoding_size
L_THEORY = 8            # max_theory_length
L_DYN = 8               # dynamics_encode_length
DYN_C, DYN_T = 4, 16    # dynamics_shape = (channels, time)
N_LAYERS = 2            # trm_encoder_layers
N_HEADS = 4             # trm_attn_heads
FUSION = 32             # fusion_mlp_layers = [32]
HEAD_DIM = ENC // N_HEADS
C_MID, C_OUT = 16, 32   # ConvEncoderWithGN: out_channels//2, out_channels
G1, G2 = 8, 16          # GroupNorm groups
FF_DIM = 4 * ENC
N_ATTN = 2 * N_LAYERS   # attention slab index: theory layers 0..1, dynamics layers 2..3

assert L_THEORY == L_DYN        # shared rotary table below relies on this


# ----------------------------------------------------------------------
# Packed-slab layouts (used by BOTH init-time packing and the kernel)
# ----------------------------------------------------------------------
def _vec_layout():
    """Bias / gain / LN slab: one (<=128)-wide vector per sublane row."""
    names = []
    for l in range(N_LAYERS):
        names += [(f"t{l}_bqkv", 3 * ENC), (f"t{l}_bo", ENC),
                  (f"t{l}_bff1", FF_DIM), (f"t{l}_bff2", ENC)]
    names += [("d_bin", ENC), ("d_bout", ENC), ("d_lnf_g", ENC), ("d_lnf_b", ENC)]
    for l in range(N_LAYERS):
        names += [(f"d{l}_ln1g", ENC), (f"d{l}_ln1b", ENC),
                  (f"d{l}_ln2g", ENC), (f"d{l}_ln2b", ENC),
                  (f"d{l}_bqkv", 3 * ENC), (f"d{l}_bo", ENC),
                  (f"d{l}_bff1", FF_DIM), (f"d{l}_bff2", ENC)]
    names += [("c_b1", C_MID), ("c_g1", C_MID), ("c_bt1", C_MID),
              ("c_b2", C_OUT), ("c_g2", C_OUT), ("c_bt2", C_OUT),
              ("m_b1", FUSION), ("m_b2", ENC)]
    assert all(w <= 128 for _, w in names)
    return {nm: (i, w) for i, (nm, w) in enumerate(names)}, len(names)


VEC_ROWS, N_VEC_ROWS = _vec_layout()
VEC_GAIN_NAMES = tuple(
    ["d_lnf_g", "c_g1", "c_g2"]
    + [f"d{l}_ln{j}g" for l in range(N_LAYERS) for j in (1, 2)])


def _misc_layout():
    """Misc matrix slab (ENC=32 columns), every segment start sublane(8)-aligned."""
    specs = [("tok", VOCAB), ("win", C_OUT), ("wout", ENC),
             ("mlp_w1", 2 * ENC), ("mlp_w2", FUSION),
             ("rot", ENC), ("cos", L_THEORY), ("sin", L_THEORY),
             ("cw1", 3 * DYN_C), ("cw2", 3 * C_MID),
             ("a1", C_MID), ("a1t", G1), ("a2", C_OUT), ("a2t", G2),
             ("pool", L_DYN)]
    rows, off = {}, 0
    for nm, n in specs:
        rows[nm] = off
        off += (n + 7) // 8 * 8
    return rows, off


MISC_ROWS, N_MISC_ROWS = _misc_layout()


# ----------------------------------------------------------------------
# The fused kernel (one grid step == one batch element)
# ----------------------------------------------------------------------
def _repr_kernel(ids_ref, mask_ref, dyn_ref,
                 wqkv_ref, wo_ref, wff1_ref, wff2_ref, misc_ref, vec_ref,
                 out_ref):
    f32 = jnp.float32

    def matmul(a, b):
        return jnp.dot(a, b, preferred_element_type=f32)

    def misc(name, nrows, ncols=ENC):
        r = MISC_ROWS[name]
        return misc_ref[r:r + nrows, :ncols]

    def vec(name):
        r, w = VEC_ROWS[name]
        return vec_ref[r:r + 1, :w]                               # (1, w)

    def rmsnorm(x):                                               # SimpleRMSNorm
        return x * jax.lax.rsqrt(jnp.mean(x * x, axis=-1, keepdims=True) + 1e-8)

    def layernorm(x, g, b):
        mu = jnp.mean(x, axis=-1, keepdims=True)
        var = jnp.mean((x - mu) ** 2, axis=-1, keepdims=True)
        return (x - mu) * jax.lax.rsqrt(var + 1e-5) * g + b

    def elu(x):
        return jnp.where(x > 0, x, jnp.exp(jnp.minimum(x, 0.0)) - 1.0)

    # rotary constants shared by both encoders (L_THEORY == L_DYN)
    cos = misc("cos", L_THEORY)                                   # (L, ENC), tiled per head
    sin = misc("sin", L_THEORY)
    cos2 = jnp.concatenate([cos, cos], axis=0)                    # for stacked [q; k]
    sin2 = jnp.concatenate([sin, sin], axis=0)
    rot = misc("rot", ENC)                                        # block-diag rotate-half op
    scale = 1.0 / float(HEAD_DIM) ** 0.5

    def attention(x, idx, bqkv, bo, key_bias):                    # x: (L, ENC)
        L = x.shape[0]
        qkv = matmul(x, wqkv_ref[idx]) + vec(bqkv)                # fused QKV: (L, 3E)
        q, k, v = qkv[:, :ENC], qkv[:, ENC:2 * ENC], qkv[:, 2 * ENC:]
        qk = jnp.concatenate([q, k], axis=0)                      # one RoPE matmul for q & k
        qk = qk * cos2 + matmul(qk, rot) * sin2
        q, k = qk[:L], qk[L:]
        # heads -> leading batch dim, then ONE batched einsum pair + ONE softmax
        split = lambda t: jnp.stack(
            [t[:, h * HEAD_DIM:(h + 1) * HEAD_DIM] for h in range(N_HEADS)], axis=0)
        qh, kh, vh = split(q), split(k), split(v)                 # (H, L, Dh)
        s = jnp.einsum("hqd,hkd->hqk", qh, kh,
                       preferred_element_type=f32) * scale        # (H, L, L)
        if key_bias is not None:
            s = s + key_bias                                      # (1, L) broadcast over H, q
        mx = jnp.max(s, axis=-1, keepdims=True)
        e = jnp.exp(s - mx)
        p = e * pl.reciprocal(jnp.sum(e, axis=-1, keepdims=True), approx=True)
        o = jnp.einsum("hqk,hkd->hqd", p, vh, preferred_element_type=f32)
        o = jnp.concatenate([o[h] for h in range(N_HEADS)], axis=-1)   # (L, ENC)
        return matmul(o, wo_ref[idx]) + vec(bo)

    def ffn(x, idx, b1, b2):
        h = jax.nn.gelu(matmul(x, wff1_ref[idx]) + vec(b1), approximate=True)
        return matmul(h, wff2_ref[idx]) + vec(b2)

    # ---------------- theory encoder (one-hot embed, pre-norm SimpleRMSNorm) ----------------
    ids = ids_ref[0]                                              # (Lt, 1) int32
    onehot = (ids == jax.lax.broadcasted_iota(jnp.int32, (L_THEORY, VOCAB), 1)).astype(f32)
    xt = matmul(onehot, misc("tok", VOCAB))                       # (Lt, ENC)
    m = mask_ref[0]                                               # (1, Lt) float {0, 1}
    key_bias = (1.0 - m) * (-1e9)                                 # additive key-padding mask
    for l in range(N_LAYERS):
        xt = xt + attention(rmsnorm(xt), l, f"t{l}_bqkv", f"t{l}_bo", key_bias)
        xt = xt + ffn(rmsnorm(xt), l, f"t{l}_bff1", f"t{l}_bff2")
    xt = rmsnorm(xt)
    count = jnp.maximum(jnp.sum(m, axis=1, keepdims=True), 1.0)
    th_mean = matmul(m, xt) / count                               # (1, ENC), exact masked mean

    # ---------------- ConvEncoderWithGN (time-major: activations are (T, C)) ----------------
    x = dyn_ref[0]                                                # (T, C_in)

    def shift_prev(t):                                            # row i <- row i-1 (zero pad)
        return jnp.concatenate([jnp.zeros((1, t.shape[1]), f32), t[:-1]], axis=0)

    def shift_next(t):                                            # row i <- row i+1 (zero pad)
        return jnp.concatenate([t[1:], jnp.zeros((1, t.shape[1]), f32)], axis=0)

    def conv3(t, wname, c_in, c_out, bname):                      # kernel_size=3, padding=1
        r = MISC_ROWS[wname]
        w0 = misc_ref[r:r + c_in, :c_out]
        w1 = misc_ref[r + c_in:r + 2 * c_in, :c_out]
        w2 = misc_ref[r + 2 * c_in:r + 3 * c_in, :c_out]
        return (matmul(shift_prev(t), w0) + matmul(t, w1) + matmul(shift_next(t), w2)
                + vec(bname))

    def groupnorm(y, aname, atname, gname, btname, n_ch, n_grp):  # two-pass, matches PyTorch
        a = misc(aname, n_ch, n_grp)                              # (C, G) channel->group onehot
        at = misc(atname, n_grp, n_ch)                            # (G, C)
        inv_n = 1.0 / float(y.shape[0] * (n_ch // n_grp))
        mu_g = jnp.sum(matmul(y, a), axis=0, keepdims=True) * inv_n       # (1, G)
        d = y - matmul(mu_g, at)
        var_g = jnp.sum(matmul(d * d, a), axis=0, keepdims=True) * inv_n  # (1, G)
        inv_c = matmul(jax.lax.rsqrt(var_g + 1e-5), at)
        return d * inv_c * vec(gname) + vec(btname)

    h1 = elu(groupnorm(conv3(x, "cw1", DYN_C, C_MID, "c_b1"),
                       "a1", "a1t", "c_g1", "c_bt1", C_MID, G1))
    h2 = elu(groupnorm(conv3(h1, "cw2", C_MID, C_OUT, "c_b2"),
                       "a2", "a2t", "c_g2", "c_bt2", C_OUT, G2))
    dyn_feat = matmul(misc("pool", L_DYN, DYN_T), h2)             # adaptive avg pool 16 -> 8

    # ---------------- dynamics encoder (pre-norm LayerNorm, in/out projections) -------------
    xd = matmul(dyn_feat, misc("win", C_OUT)) + vec("d_bin")
    for l in range(N_LAYERS):
        idx = N_LAYERS + l
        xd = xd + attention(layernorm(xd, vec(f"d{l}_ln1g"), vec(f"d{l}_ln1b")),
                            idx, f"d{l}_bqkv", f"d{l}_bo", None)
        xd = xd + ffn(layernorm(xd, vec(f"d{l}_ln2g"), vec(f"d{l}_ln2b")),
                      idx, f"d{l}_bff1", f"d{l}_bff2")
    xd = layernorm(xd, vec("d_lnf_g"), vec("d_lnf_b"))
    xd = matmul(xd, misc("wout", ENC)) + vec("d_bout")
    dyn_mean = jnp.sum(xd, axis=0, keepdims=True) * (1.0 / L_DYN)          # exact mean

    # ---------------- fusion MLP ----------------
    enc = jnp.concatenate([th_mean, dyn_mean], axis=1)            # (1, 2*ENC)
    h = elu(matmul(enc, misc("mlp_w1", 2 * ENC, FUSION)) + vec("m_b1"))
    out_ref[0] = matmul(h, misc("mlp_w2", FUSION, ENC)) + vec("m_b2")


# ----------------------------------------------------------------------
# Wrapper: one pallas_call, grid over batch, 9 operands total
# ----------------------------------------------------------------------
def representation_forward(params, theory, mask, dynamics):
    B = theory.shape[0]
    ids = theory.astype(jnp.int32).reshape(B, L_THEORY, 1)
    maskf = mask.astype(jnp.float32).reshape(B, 1, L_THEORY)
    dyn_t = jnp.transpose(dynamics.astype(jnp.float32), (0, 2, 1))         # (B, T, C_in)

    def const_spec(shape):
        return pl.BlockSpec(shape, lambda b, _n=len(shape): (0,) * _n)

    out = pl.pallas_call(
        _repr_kernel,
        out_shape=jax.ShapeDtypeStruct((B, 1, ENC), jnp.float32),
        grid=(B,),
        in_specs=[
            pl.BlockSpec((1, L_THEORY, 1), lambda b: (b, 0, 0)),           # token ids
            pl.BlockSpec((1, 1, L_THEORY), lambda b: (b, 0, 0)),           # mask
            pl.BlockSpec((1, DYN_T, DYN_C), lambda b: (b, 0, 0)),          # dynamics (T, C)
            const_spec(params["wqkv"].shape),                              # weight slabs:
            const_spec(params["wo"].shape),                                #   constant index
            const_spec(params["wff1"].shape),                              #   => VMEM-resident
            const_spec(params["wff2"].shape),
            const_spec(params["misc"].shape),
            const_spec(params["vecs"].shape),
        ],
        out_specs=pl.BlockSpec((1, 1, ENC), lambda b: (b, 0, 0)),
        compiler_params=pltpu.CompilerParams(
            dimension_semantics=("parallel",),        # v7x: one batch element per TensorCore
            vmem_limit_bytes=32 * 1024 * 1024,
        ),
    )(ids, maskf, dyn_t, params["wqkv"], params["wo"], params["wff1"],
      params["wff2"], params["misc"], params["vecs"])
    return out.reshape(B, ENC)


# ----------------------------------------------------------------------
# Deterministic parameter initialization, packed ONCE into the slabs
# ----------------------------------------------------------------------
def init_params(key):
    keys = iter(jax.random.split(key, 32))

    def rnd(shape, scale=0.05):
        return jax.random.normal(next(keys), shape, jnp.float32) * scale

    wqkv = rnd((N_ATTN, ENC, 3 * ENC))
    wo = rnd((N_ATTN, ENC, ENC))
    wff1 = rnd((N_ATTN, ENC, FF_DIM))
    wff2 = rnd((N_ATTN, FF_DIM, ENC))

    misc = jnp.zeros((N_MISC_ROWS, ENC), jnp.float32)

    def put(slab, name, mat):
        r = MISC_ROWS[name]
        nr, nc = mat.shape
        return slab.at[r:r + nr, :nc].set(mat.astype(jnp.float32))

    misc = put(misc, "tok", rnd((VOCAB, ENC), 0.1))
    misc = put(misc, "win", rnd((C_OUT, ENC)))
    misc = put(misc, "wout", rnd((ENC, ENC)))
    misc = put(misc, "mlp_w1", rnd((2 * ENC, FUSION)))
    misc = put(misc, "mlp_w2", rnd((FUSION, ENC)))

    # per-head rotate-half operator: x @ R == concat([-x2, x1]) within each head block
    half = HEAD_DIM // 2
    r_head = jnp.block([[jnp.zeros((half, half)), jnp.eye(half)],
                        [-jnp.eye(half), jnp.zeros((half, half))]]).astype(jnp.float32)
    misc = put(misc, "rot", jnp.kron(jnp.eye(N_HEADS, dtype=jnp.float32), r_head))

    # rotary cos/sin tables (per-head pattern tiled across heads)
    inv_freq = 1.0 / (10000.0 ** (jnp.arange(half, dtype=jnp.float32) / half))
    ang = jnp.outer(jnp.arange(L_THEORY, dtype=jnp.float32), inv_freq)
    ang = jnp.concatenate([ang, ang], axis=-1)                             # (L, HEAD_DIM)
    misc = put(misc, "cos", jnp.tile(jnp.cos(ang), (1, N_HEADS)))
    misc = put(misc, "sin", jnp.tile(jnp.sin(ang), (1, N_HEADS)))

    # conv taps, time-major: rows [k*c_in:(k+1)*c_in] hold W_k mapping (C_in -> C_out)
    misc = put(misc, "cw1", rnd((3 * DYN_C, C_MID), 0.2))
    misc = put(misc, "cw2", rnd((3 * C_MID, C_OUT), 0.2))

    # GroupNorm channel<->group one-hot maps (contiguous channel blocks, as in PyTorch)
    a1 = jnp.repeat(jnp.eye(G1, dtype=jnp.float32), C_MID // G1, axis=0)   # (C_MID, G1)
    a2 = jnp.repeat(jnp.eye(G2, dtype=jnp.float32), C_OUT // G2, axis=0)   # (C_OUT, G2)
    misc = put(misc, "a1", a1)
    misc = put(misc, "a1t", a1.T)
    misc = put(misc, "a2", a2)
    misc = put(misc, "a2t", a2.T)

    # adaptive avg pool 16 -> 8 (mean over pairs)
    pool = jnp.repeat(jnp.eye(L_DYN, dtype=jnp.float32), DYN_T // L_DYN, axis=1)
    misc = put(misc, "pool", pool / float(DYN_T // L_DYN))

    # bias / gain vector slab: zeros for biases, ones for gains
    vecs = jnp.zeros((N_VEC_ROWS, 128), jnp.float32)
    for nm in VEC_GAIN_NAMES:
        r, w = VEC_ROWS[nm]
        vecs = vecs.at[r, :w].set(1.0)

    return dict(wqkv=wqkv, wo=wo, wff1=wff1, wff2=wff2, misc=misc, vecs=vecs)


if __name__ == "__main__":
    key = jax.random.PRNGKey(0)
    pk, tk, dk = jax.random.split(key, 3)
    params = init_params(pk)

    theory = jax.random.randint(tk, (BATCH, L_THEORY), 0, VOCAB, dtype=jnp.int32)
    lengths = jnp.array([L_THEORY, 5], dtype=jnp.int32)
    mask = jnp.arange(L_THEORY)[None, :] < lengths[:, None]                # (B, L) bool
    dynamics = jax.random.normal(dk, (BATCH, DYN_C, DYN_T), jnp.float32)

    fwd = jax.jit(representation_forward)
    out = jax.block_until_ready(fwd(params, theory, mask, dynamics))

    assert out.shape == (BATCH, ENC), out.shape
    assert bool(jnp.all(jnp.isfinite(out)))
    print("KERNEL_OK")
</pallas_src>

<mosaic_0001>
module attributes {stable_mosaic.version = 11 : i64} {
  func.func @_repr_kernel(%arg0: i32, %arg1: memref<1x8x1xi32, #tpu.memory_space<vmem>>, %arg2: memref<1x1x8xf32, #tpu.memory_space<vmem>>, %arg3: memref<1x16x4xf32, #tpu.memory_space<vmem>>, %arg4: memref<4x32x96xf32, #tpu.memory_space<vmem>>, %arg5: memref<4x32x32xf32, #tpu.memory_space<vmem>>, %arg6: memref<4x32x128xf32, #tpu.memory_space<vmem>>, %arg7: memref<4x128x32xf32, #tpu.memory_space<vmem>>, %arg8: memref<368x32xf32, #tpu.memory_space<vmem>>, %arg9: memref<36x128xf32, #tpu.memory_space<vmem>>, %arg10: memref<1x1x32xf32, #tpu.memory_space<vmem>>) attributes {dimension_semantics = [#tpu.dimension_semantics<parallel>], iteration_bounds = array<i64: 2>, scalar_prefetch = 0 : i64, scratch_operands = 0 : i64, tpu.core_type = #tpu.core_type<tc>, window_params = [{transform_indices = @transform_0, window_bounds = array<i64: 1, 8, 1>}, {transform_indices = @transform_1, window_bounds = array<i64: 1, 1, 8>}, {transform_indices = @transform_2, window_bounds = array<i64: 1, 16, 4>}, {pipeline_mode = #tpu.pipeline_mode<synchronous>, transform_indices = @transform_3, window_bounds = array<i64: 4, 32, 96>}, {pipeline_mode = #tpu.pipeline_mode<synchronous>, transform_indices = @transform_4, window_bounds = array<i64: 4, 32, 32>}, {pipeline_mode = #tpu.pipeline_mode<synchronous>, transform_indices = @transform_5, window_bounds = array<i64: 4, 32, 128>}, {pipeline_mode = #tpu.pipeline_mode<synchronous>, transform_indices = @transform_6, window_bounds = array<i64: 4, 128, 32>}, {pipeline_mode = #tpu.pipeline_mode<synchronous>, transform_indices = @transform_7, window_bounds = array<i64: 368, 32>}, {pipeline_mode = #tpu.pipeline_mode<synchronous>, transform_indices = @transform_8, window_bounds = array<i64: 36, 128>}, {transform_indices = @transform_9, window_bounds = array<i64: 1, 1, 32>}]} {
    %c208 = arith.constant 208 : index
    %c0 = arith.constant 0 : index
    %0 = vector.load %arg8[%c208, %c0] : memref<368x32xf32, #tpu.memory_space<vmem>>, vector<8x32xf32>
    %c216 = arith.constant 216 : index
    %c0_0 = arith.constant 0 : index
    %1 = vector.load %arg8[%c216, %c0_0] : memref<368x32xf32, #tpu.memory_space<vmem>>, vector<8x32xf32>
    %2 = tpu.concatenate %0, %0 in 0 : vector<8x32xf32>, vector<8x32xf32> -> vector<16x32xf32>
    %3 = tpu.concatenate %1, %1 in 0 : vector<8x32xf32>, vector<8x32xf32> -> vector<16x32xf32>
    %c176 = arith.constant 176 : index
    %c0_1 = arith.constant 0 : index
    %4 = vector.load %arg8[%c176, %c0_1] : memref<368x32xf32, #tpu.memory_space<vmem>>, vector<32x32xf32>
    %c0_2 = arith.constant 0 : index
    %c0_3 = arith.constant 0 : index
    %c0_4 = arith.constant 0 : index
    %5 = vector.load %arg1[%c0_2, %c0_3, %c0_4] : memref<1x8x1xi32, #tpu.memory_space<vmem>>, vector<1x8x1xi32>
    %6 = vector.shape_cast %5 : vector<1x8x1xi32> to vector<8x1xi32>
    %7 = tpu.iota {dimensions = array<i32: 1>} : vector<8x16xi32>
    %8 = vector.broadcast %6 : vector<8x1xi32> to vector<8x16xi32>
    %9 = arith.cmpi eq, %8, %7 : vector<8x16xi32>
    %10 = arith.extui %9 : vector<8x16xi1> to vector<8x16xi32>
    %11 = arith.sitofp %10 : vector<8x16xi32> to vector<8x16xf32>
    %c0_5 = arith.constant 0 : index
    %c0_6 = arith.constant 0 : index
    %12 = vector.load %arg8[%c0_5, %c0_6] : memref<368x32xf32, #tpu.memory_space<vmem>>, vector<16x32xf32>
    %cst = arith.constant dense<0.000000e+00> : vector<8x32xf32>
    %13 = tpu.matmul %11, %12, %cst {dimension_numbers = #tpu.dot_dimension_numbers<[1], [0], [0], [1], [0, 0, 1, 1], [], []>} : vector<8x16xf32>, vector<16x32xf32>, vector<8x32xf32> -> vector<8x32xf32>
    %c0_7 = arith.constant 0 : index
    %c0_8 = arith.constant 0 : index
    %c0_9 = arith.constant 0 : index
    %14 = vector.load %arg2[%c0_7, %c0_8, %c0_9] : memref<1x1x8xf32, #tpu.memory_space<vmem>>, vector<1x1x8xf32>
    %15 = vector.shape_cast %14 : vector<1x1x8xf32> to vector<1x8xf32>
    %cst_10 = arith.constant 1.000000e+00 : f32
    %16 = vector.broadcast %cst_10 : f32 to vector<1x8xf32>
    %17 = arith.subf %16, %15 : vector<1x8xf32>
    %cst_11 = arith.constant -1.000000e+09 : f32
    %18 = vector.broadcast %cst_11 : f32 to vector<1x8xf32>
    %19 = arith.mulf %17, %18 : vector<1x8xf32>
    %20 = arith.mulf %13, %13 : vector<8x32xf32>
    %cst_12 = arith.constant dense<0.000000e+00> : vector<8xf32>
    %21 = vector.multi_reduction <add>, %20, %cst_12 [1] : vector<8x32xf32> to vector<8xf32>
    %22 = vector.shape_cast %21 : vector<8xf32> to vector<8x1xf32>
    %cst_13 = arith.constant 3.200000e+01 : f32
    %23 = vector.broadcast %cst_13 : f32 to vector<8x1xf32>
    %24 = arith.divf %22, %23 : vector<8x1xf32>
    %cst_14 = arith.constant 9.99999993E-9 : f32
    %25 = vector.broadcast %cst_14 : f32 to vector<8x1xf32>
    %26 = arith.addf %24, %25 : vector<8x1xf32>
    %27 = math.rsqrt %26 : vector<8x1xf32>
    %28 = vector.broadcast %27 : vector<8x1xf32> to vector<8x32xf32>
    %29 = arith.mulf %13, %28 : vector<8x32xf32>
    %c0_15 = arith.constant 0 : index
    %c0_16 = arith.constant 0 : index
    %c0_17 = arith.constant 0 : index
    %30 = vector.load %arg4[%c0_15, %c0_16, %c0_17] : memref<4x32x96xf32, #tpu.memory_space<vmem>>, vector<1x32x96xf32>
    %31 = vector.shape_cast %30 : vector<1x32x96xf32> to vector<32x96xf32>
    %cst_18 = arith.constant dense<0.000000e+00> : vector<8x96xf32>
    %32 = tpu.matmul %29, %31, %cst_18 {dimension_numbers = #tpu.dot_dimension_numbers<[1], [0], [0], [1], [0, 0, 1, 1], [], []>} : vector<8x32xf32>, vector<32x96xf32>, vector<8x96xf32> -> vector<8x96xf32>
    %c0_19 = arith.constant 0 : index
    %c0_20 = arith.constant 0 : index
    %33 = vector.load %arg9[%c0_19, %c0_20] : memref<36x128xf32, #tpu.memory_space<vmem>>, vector<1x96xf32>
    %34 = vector.broadcast %33 : vector<1x96xf32> to vector<8x96xf32>
    %35 = arith.addf %32, %34 : vector<8x96xf32>
    %36 = vector.extract_strided_slice %35 {offsets = [0, 0], sizes = [8, 32], strides = [1, 1]} : vector<8x96xf32> to vector<8x32xf32>
    %37 = vector.extract_strided_slice %35 {offsets = [0, 32], sizes = [8, 32], strides = [1, 1]} : vector<8x96xf32> to vector<8x32xf32>
    %38 = vector.extract_strided_slice %35 {offsets = [0, 64], sizes = [8, 32], strides = [1, 1]} : vector<8x96xf32> to vector<8x32xf32>
    %39 = tpu.concatenate %36, %37 in 0 : vector<8x32xf32>, vector<8x32xf32> -> vector<16x32xf32>
    %40 = arith.mulf %39, %2 : vector<16x32xf32>
    %cst_21 = arith.constant dense<0.000000e+00> : vector<16x32xf32>
    %41 = tpu.matmul %39, %4, %cst_21 {dimension_numbers = #tpu.dot_dimension_numbers<[1], [0], [0], [1], [0, 0, 1, 1], [], []>} : vector<16x32xf32>, vector<32x32xf32>, vector<16x32xf32> -> vector<16x32xf32>
    %42 = arith.mulf %41, %3 : vector<16x32xf32>
    %43 = arith.addf %40, %42 : vector<16x32xf32>
    %44 = vector.extract_strided_slice %43 {offsets = [0, 0], sizes = [8, 32], strides = [1, 1]} : vector<16x32xf32> to vector<8x32xf32>
    %45 = vector.extract_strided_slice %43 {offsets = [8, 0], sizes = [8, 32], strides = [1, 1]} : vector<16x32xf32> to vector<8x32xf32>
    %46 = vector.extract_strided_slice %44 {offsets = [0, 0], sizes = [8, 8], strides = [1, 1]} : vector<8x32xf32> to vector<8x8xf32>
    %47 = vector.extract_strided_slice %44 {offsets = [0, 8], sizes = [8, 8], strides = [1, 1]} : vector<8x32xf32> to vector<8x8xf32>
    %48 = vector.extract_strided_slice %44 {offsets = [0, 16], sizes = [8, 8], strides = [1, 1]} : vector<8x32xf32> to vector<8x8xf32>
    %49 = vector.extract_strided_slice %44 {offsets = [0, 24], sizes = [8, 8], strides = [1, 1]} : vector<8x32xf32> to vector<8x8xf32>
    %50 = vector.shape_cast %46 : vector<8x8xf32> to vector<1x8x8xf32>
    %51 = vector.shape_cast %47 : vector<8x8xf32> to vector<1x8x8xf32>
    %52 = vector.shape_cast %48 : vector<8x8xf32> to vector<1x8x8xf32>
    %53 = vector.shape_cast %49 : vector<8x8xf32> to vector<1x8x8xf32>
    %54 = tpu.concatenate %50, %51, %52, %53 in 0 : vector<1x8x8xf32>, vector<1x8x8xf32>, vector<1x8x8xf32>, vector<1x8x8xf32> -> vector<4x8x8xf32>
    %55 = vector.extract_strided_slice %45 {offsets = [0, 0], sizes = [8, 8], strides = [1, 1]} : vector<8x32xf32> to vector<8x8xf32>
    %56 = vector.extract_strided_slice %45 {offsets = [0, 8], sizes = [8, 8], strides = [1, 1]} : vector<8x32xf32> to vector<8x8xf32>
    %57 = vector.extract_strided_slice %45 {offsets = [0, 16], sizes = [8, 8], strides = [1, 1]} : vector<8x32xf32> to vector<8x8xf32>
    %58 = vector.extract_strided_slice %45 {offsets = [0, 24], sizes = [8, 8], strides = [1, 1]} : vector<8x32xf32> to vector<8x8xf32>
    %59 = vector.shape_cast %55 : vector<8x8xf32> to vector<1x8x8xf32>
    %60 = vector.shape_cast %56 : vector<8x8xf32> to vector<1x8x8xf32>
    %61 = vector.shape_cast %57 : vector<8x8xf32> to vector<1x8x8xf32>
    %62 = vector.shape_cast %58 : vector<8x8xf32> to vector<1x8x8xf32>
    %63 = tpu.concatenate %59, %60, %61, %62 in 0 : vector<1x8x8xf32>, vector<1x8x8xf32>, vector<1x8x8xf32>, vector<1x8x8xf32> -> vector<4x8x8xf32>
    %64 = vector.extract_strided_slice %38 {offsets = [0, 0], sizes = [8, 8], strides = [1, 1]} : vector<8x32xf32> to vector<8x8xf32>
    %65 = vector.extract_strided_slice %38 {offsets = [0, 8], sizes = [8, 8], strides = [1, 1]} : vector<8x32xf32> to vector<8x8xf32>
    %66 = vector.extract_strided_slice %38 {offsets = [0, 16], sizes = [8, 8], strides = [1, 1]} : vector<8x32xf32> to vector<8x8xf32>
    %67 = vector.extract_strided_slice %38 {offsets = [0, 24], sizes = [8, 8], strides = [1, 1]} : vector<8x32xf32> to vector<8x8xf32>
    %68 = vector.shape_cast %64 : vector<8x8xf32> to vector<1x8x8xf32>
    %69 = vector.shape_cast %65 : vector<8x8xf32> to vector<1x8x8xf32>
    %70 = vector.shape_cast %66 : vector<8x8xf32> to vector<1x8x8xf32>
    %71 = vector.shape_cast %67 : vector<8x8xf32> to vector<1x8x8xf32>
    %72 = tpu.concatenate %68, %69, %70, %71 in 0 : vector<1x8x8xf32>, vector<1x8x8xf32>, vector<1x8x8xf32>, vector<1x8x8xf32> -> vector<4x8x8xf32>
    "tpu.trace_start"() <{level = 10 : i32, message = "hqd,hkd->hqk"}> : () -> ()
    %cst_22 = arith.constant dense<0.000000e+00> : vector<4x8x8xf32>
    %73 = tpu.matmul %54, %63, %cst_22 {dimension_numbers = #tpu.dot_dimension_numbers<[2], [2], [1], [1], [0, 0, 0, 1, 1, 1], [0], [0]>} : vector<4x8x8xf32>, vector<4x8x8xf32>, vector<4x8x8xf32> -> vector<4x8x8xf32>
    "tpu.trace_stop"() : () -> ()
    %cst_23 = arith.constant 0.353553385 : f32
    %74 = vector.broadcast %cst_23 : f32 to vector<4x8x8xf32>
    %75 = arith.mulf %73, %74 : vector<4x8x8xf32>
    %76 = vector.shape_cast %19 : vector<1x8xf32> to vector<1x1x8xf32>
    %77 = vector.broadcast %76 : vector<1x1x8xf32> to vector<4x8x8xf32>
    %78 = arith.addf %75, %77 : vector<4x8x8xf32>
    %cst_24 = arith.constant dense<0xFF800000> : vector<4x8xf32>
    %79 = vector.multi_reduction <maximumf>, %78, %cst_24 [2] : vector<4x8x8xf32> to vector<4x8xf32>
    %80 = vector.shape_cast %79 : vector<4x8xf32> to vector<4x8x1xf32>
    %81 = vector.broadcast %80 : vector<4x8x1xf32> to vector<4x8x8xf32>
    %82 = arith.subf %78, %81 : vector<4x8x8xf32>
    %83 = math.exp %82 : vector<4x8x8xf32>
    %cst_25 = arith.constant dense<0.000000e+00> : vector<4x8xf32>
    %84 = vector.multi_reduction <add>, %83, %cst_25 [2] : vector<4x8x8xf32> to vector<4x8xf32>
    %85 = vector.shape_cast %84 : vector<4x8xf32> to vector<4x8x1xf32>
    %86 = tpu.reciprocal %85 {approx = true} : vector<4x8x1xf32> -> vector<4x8x1xf32>
    %87 = vector.broadcast %86 : vector<4x8x1xf32> to vector<4x8x8xf32>
    %88 = arith.mulf %83, %87 : vector<4x8x8xf32>
    "tpu.trace_start"() <{level = 10 : i32, message = "hqk,hkd->hqd"}> : () -> ()
    %cst_26 = arith.constant dense<0.000000e+00> : vector<4x8x8xf32>
    %89 = tpu.matmul %88, %72, %cst_26 {dimension_numbers = #tpu.dot_dimension_numbers<[2], [1], [1], [2], [0, 0, 0, 1, 1, 2], [0], [0]>} : vector<4x8x8xf32>, vector<4x8x8xf32>, vector<4x8x8xf32> -> vector<4x8x8xf32>
    "tpu.trace_stop"() : () -> ()
    %90 = vector.extract_strided_slice %89 {offsets = [0, 0, 0], sizes = [1, 8, 8], strides = [1, 1, 1]} : vector<4x8x8xf32> to vector<1x8x8xf32>
    %91 = vector.shape_cast %90 : vector<1x8x8xf32> to vector<8x8xf32>
    %92 = vector.extract_strided_slice %89 {offsets = [1, 0, 0], sizes = [1, 8, 8], strides = [1, 1, 1]} : vector<4x8x8xf32> to vector<1x8x8xf32>
    %93 = vector.shape_cast %92 : vector<1x8x8xf32> to vector<8x8xf32>
    %94 = vector.extract_strided_slice %89 {offsets = [2, 0, 0], sizes = [1, 8, 8], strides = [1, 1, 1]} : vector<4x8x8xf32> to vector<1x8x8xf32>
    %95 = vector.shape_cast %94 : vector<1x8x8xf32> to vector<8x8xf32>
    %96 = vector.extract_strided_slice %89 {offsets = [3, 0, 0], sizes = [1, 8, 8], strides = [1, 1, 1]} : vector<4x8x8xf32> to vector<1x8x8xf32>
    %97 = vector.shape_cast %96 : vector<1x8x8xf32> to vector<8x8xf32>
    %98 = tpu.concatenate %91, %93, %95, %97 in 1 : vector<8x8xf32>, vector<8x8xf32>, vector<8x8xf32>, vector<8x8xf32> -> vector<8x32xf32>
    %c0_27 = arith.constant 0 : index
    %c0_28 = arith.constant 0 : index
    %c0_29 = arith.constant 0 : index
    %99 = vector.load %arg5[%c0_27, %c0_28, %c0_29] : memref<4x32x32xf32, #tpu.memory_space<vmem>>, vector<1x32x32xf32>
    %100 = vector.shape_cast %99 : vector<1x32x32xf32> to vector<32x32xf32>
    %cst_30 = arith.constant dense<0.000000e+00> : vector<8x32xf32>
    %101 = tpu.matmul %98, %100, %cst_30 {dimension_numbers = #tpu.dot_dimension_numbers<[1], [0], [0], [1], [0, 0, 1, 1], [], []>} : vector<8x32xf32>, vector<32x32xf32>, vector<8x32xf32> -> vector<8x32xf32>
    %c1 = arith.constant 1 : index
    %c0_31 = arith.constant 0 : index
    %102 = vector.load %arg9[%c1, %c0_31] : memref<36x128xf32, #tpu.memory_space<vmem>>, vector<1x32xf32>
    %103 = vector.broadcast %102 : vector<1x32xf32> to vector<8x32xf32>
    %104 = arith.addf %101, %103 : vector<8x32xf32>
    %105 = arith.addf %13, %104 : vector<8x32xf32>
    %106 = arith.mulf %105, %105 : vector<8x32xf32>
    %cst_32 = arith.constant dense<0.000000e+00> : vector<8xf32>
    %107 = vector.multi_reduction <add>, %106, %cst_32 [1] : vector<8x32xf32> to vector<8xf32>
    %108 = vector.shape_cast %107 : vector<8xf32> to vector<8x1xf32>
    %cst_33 = arith.constant 3.200000e+01 : f32
    %109 = vector.broadcast %cst_33 : f32 to vector<8x1xf32>
    %110 = arith.divf %108, %109 : vector<8x1xf32>
    %cst_34 = arith.constant 9.99999993E-9 : f32
    %111 = vector.broadcast %cst_34 : f32 to vector<8x1xf32>
    %112 = arith.addf %110, %111 : vector<8x1xf32>
    %113 = math.rsqrt %112 : vector<8x1xf32>
    %114 = vector.broadcast %113 : vector<8x1xf32> to vector<8x32xf32>
    %115 = arith.mulf %105, %114 : vector<8x32xf32>
    %c0_35 = arith.constant 0 : index
    %c0_36 = arith.constant 0 : index
    %c0_37 = arith.constant 0 : index
    %116 = vector.load %arg6[%c0_35, %c0_36, %c0_37] : memref<4x32x128xf32, #tpu.memory_space<vmem>>, vector<1x32x128xf32>
    %117 = vector.shape_cast %116 : vector<1x32x128xf32> to vector<32x128xf32>
    %cst_38 = arith.constant dense<0.000000e+00> : vector<8x128xf32>
    %118 = tpu.matmul %115, %117, %cst_38 {dimension_numbers = #tpu.dot_dimension_numbers<[1], [0], [0], [1], [0, 0, 1, 1], [], []>} : vector<8x32xf32>, vector<32x128xf32>, vector<8x128xf32> -> vector<8x128xf32>
    %c2 = arith.constant 2 : index
    %c0_39 = arith.constant 0 : index
    %119 = vector.load %arg9[%c2, %c0_39] : memref<36x128xf32, #tpu.memory_space<vmem>>, vector<1x128xf32>
    %120 = vector.broadcast %119 : vector<1x128xf32> to vector<8x128xf32>
    %121 = arith.addf %118, %120 : vector<8x128xf32>
    %122 = arith.mulf %121, %121 : vector<8x128xf32>
    %123 = arith.mulf %121, %122 : vector<8x128xf32>
    %cst_40 = arith.constant 4.471500e-02 : f32
    %124 = vector.broadcast %cst_40 : f32 to vector<8x128xf32>
    %125 = arith.mulf %124, %123 : vector<8x128xf32>
    %126 = arith.addf %121, %125 : vector<8x128xf32>
    %cst_41 = arith.constant 0.797884583 : f32
    %127 = vector.broadcast %cst_41 : f32 to vector<8x128xf32>
    %128 = arith.mulf %127, %126 : vector<8x128xf32>
    %129 = math.tanh %128 : vector<8x128xf32>
    %cst_42 = arith.constant 1.000000e+00 : f32
    %130 = vector.broadcast %cst_42 : f32 to vector<8x128xf32>
    %131 = arith.addf %130, %129 : vector<8x128xf32>
    %cst_43 = arith.constant 5.000000e-01 : f32
    %132 = vector.broadcast %cst_43 : f32 to vector<8x128xf32>
    %133 = arith.mulf %132, %131 : vector<8x128xf32>
    %134 = arith.mulf %121, %133 : vector<8x128xf32>
    %c0_44 = arith.constant 0 : index
    %c0_45 = arith.constant 0 : index
    %c0_46 = arith.constant 0 : index
    %135 = vector.load %arg7[%c0_44, %c0_45, %c0_46] : memref<4x128x32xf32, #tpu.memory_space<vmem>>, vector<1x128x32xf32>
    %136 = vector.shape_cast %135 : vector<1x128x32xf32> to vector<128x32xf32>
    %cst_47 = arith.constant dense<0.000000e+00> : vector<8x32xf32>
    %137 = tpu.matmul %134, %136, %cst_47 {dimension_numbers = #tpu.dot_dimension_numbers<[1], [0], [0], [1], [0, 0, 1, 1], [], []>} : vector<8x128xf32>, vector<128x32xf32>, vector<8x32xf32> -> vector<8x32xf32>
    %c3 = arith.constant 3 : index
    %c0_48 = arith.constant 0 : index
    %138 = vector.load %arg9[%c3, %c0_48] : memref<36x128xf32, #tpu.memory_space<vmem>>, vector<1x32xf32>
    %139 = vector.broadcast %138 : vector<1x32xf32> to vector<8x32xf32>
    %140 = arith.addf %137, %139 : vector<8x32xf32>
    %141 = arith.addf %105, %140 : vector<8x32xf32>
    %142 = arith.mulf %141, %141 : vector<8x32xf32>
    %cst_49 = arith.constant dense<0.000000e+00> : vector<8xf32>
    %143 = vector.multi_reduction <add>, %142, %cst_49 [1] : vector<8x32xf32> to vector<8xf32>
    %144 = vector.shape_cast %143 : vector<8xf32> to vector<8x1xf32>
    %cst_50 = arith.constant 3.200000e+01 : f32
    %145 = vector.broadcast %cst_50 : f32 to vector<8x1xf32>
    %146 = arith.divf %144, %145 : vector<8x1xf32>
    %cst_51 = arith.constant 9.99999993E-9 : f32
    %147 = vector.broadcast %cst_51 : f32 to vector<8x1xf32>
    %148 = arith.addf %146, %147 : vector<8x1xf32>
    %149 = math.rsqrt %148 : vector<8x1xf32>
    %150 = vector.broadcast %149 : vector<8x1xf32> to vector<8x32xf32>
    %151 = arith.mulf %141, %150 : vector<8x32xf32>
    %c1_52 = arith.constant 1 : index
    %c0_53 = arith.constant 0 : index
    %c0_54 = arith.constant 0 : index
    %152 = vector.load %arg4[%c1_52, %c0_53, %c0_54] : memref<4x32x96xf32, #tpu.memory_space<vmem>>, vector<1x32x96xf32>
    %153 = vector.shape_cast %152 : vector<1x32x96xf32> to vector<32x96xf32>
    %cst_55 = arith.constant dense<0.000000e+00> : vector<8x96xf32>
    %154 = tpu.matmul %151, %153, %cst_55 {dimension_numbers = #tpu.dot_dimension_numbers<[1], [0], [0], [1], [0, 0, 1, 1], [], []>} : vector<8x32xf32>, vector<32x96xf32>, vector<8x96xf32> -> vector<8x96xf32>
    %c4 = arith.constant 4 : index
    %c0_56 = arith.constant 0 : index
    %155 = vector.load %arg9[%c4, %c0_56] : memref<36x128xf32, #tpu.memory_space<vmem>>, vector<1x96xf32>
    %156 = vector.broadcast %155 : vector<1x96xf32> to vector<8x96xf32>
    %157 = arith.addf %154, %156 : vector<8x96xf32>
    %158 = vector.extract_strided_slice %157 {offsets = [0, 0], sizes = [8, 32], strides = [1, 1]} : vector<8x96xf32> to vector<8x32xf32>
    %159 = vector.extract_strided_slice %157 {offsets = [0, 32], sizes = [8, 32], strides = [1, 1]} : vector<8x96xf32> to vector<8x32xf32>
    %160 = vector.extract_strided_slice %157 {offsets = [0, 64], sizes = [8, 32], strides = [1, 1]} : vector<8x96xf32> to vector<8x32xf32>
    %161 = tpu.concatenate %158, %159 in 0 : vector<8x32xf32>, vector<8x32xf32> -> vector<16x32xf32>
    %162 = arith.mulf %161, %2 : vector<16x32xf32>
    %cst_57 = arith.constant dense<0.000000e+00> : vector<16x32xf32>
    %163 = tpu.matmul %161, %4, %cst_57 {dimension_numbers = #tpu.dot_dimension_numbers<[1], [0], [0], [1], [0, 0, 1, 1], [], []>} : vector<16x32xf32>, vector<32x32xf32>, vector<16x32xf32> -> vector<16x32xf32>
    %164 = arith.mulf %163, %3 : vector<16x32xf32>
    %165 = arith.addf %162, %164 : vector<16x32xf32>
    %166 = vector.extract_strided_slice %165 {offsets = [0, 0], sizes = [8, 32], strides = [1, 1]} : vector<16x32xf32> to vector<8x32xf32>
    %167 = vector.extract_strided_slice %165 {offsets = [8, 0], sizes = [8, 32], strides = [1, 1]} : vector<16x32xf32> to vector<8x32xf32>
    %168 = vector.extract_strided_slice %166 {offsets = [0, 0], sizes = [8, 8], strides = [1, 1]} : vector<8x32xf32> to vector<8x8xf32>
    %169 = vector.extract_strided_slice %166 {offsets = [0, 8], sizes = [8, 8], strides = [1, 1]} : vector<8x32xf32> to vector<8x8xf32>
    %170 = vector.extract_strided_slice %166 {offsets = [0, 16], sizes = [8, 8], strides = [1, 1]} : vector<8x32xf32> to vector<8x8xf32>
    %171 = vector.extract_strided_slice %166 {offsets = [0, 24], sizes = [8, 8], strides = [1, 1]} : vector<8x32xf32> to vector<8x8xf32>
    %172 = vector.shape_cast %168 : vector<8x8xf32> to vector<1x8x8xf32>
    %173 = vector.shape_cast %169 : vector<8x8xf32> to vector<1x8x8xf32>
    %174 = vector.shape_cast %170 : vector<8x8xf32> to vector<1x8x8xf32>
    %175 = vector.shape_cast %171 : vector<8x8xf32> to vector<1x8x8xf32>
    %176 = tpu.concatenate %172, %173, %174, %175 in 0 : vector<1x8x8xf32>, vector<1x8x8xf32>, vector<1x8x8xf32>, vector<1x8x8xf32> -> vector<4x8x8xf32>
    %177 = vector.extract_strided_slice %167 {offsets = [0, 0], sizes = [8, 8], strides = [1, 1]} : vector<8x32xf32> to vector<8x8xf32>
    %178 = vector.extract_strided_slice %167 {offsets = [0, 8], sizes = [8, 8], strides = [1, 1]} : vector<8x32xf32> to vector<8x8xf32>
    %179 = vector.extract_strided_slice %167 {offsets = [0, 16], sizes = [8, 8], strides = [1, 1]} : vector<8x32xf32> to vector<8x8xf32>
    %180 = vector.extract_strided_slice %167 {offsets = [0, 24], sizes = [8, 8], strides = [1, 1]} : vector<8x32xf32> to vector<8x8xf32>
    %181 = vector.shape_cast %177 : vector<8x8xf32> to vector<1x8x8xf32>
    %182 = vector.shape_cast %178 : vector<8x8xf32> to vector<1x8x8xf32>
    %183 = vector.shape_cast %179 : vector<8x8xf32> to vector<1x8x8xf32>
    %184 = vector.shape_cast %180 : vector<8x8xf32> to vector<1x8x8xf32>
    %185 = tpu.concatenate %181, %182, %183, %184 in 0 : vector<1x8x8xf32>, vector<1x8x8xf32>, vector<1x8x8xf32>, vector<1x8x8xf32> -> vector<4x8x8xf32>
    %186 = vector.extract_strided_slice %160 {offsets = [0, 0], sizes = [8, 8], strides = [1, 1]} : vector<8x32xf32> to vector<8x8xf32>
    %187 = vector.extract_strided_slice %160 {offsets = [0, 8], sizes = [8, 8], strides = [1, 1]} : vector<8x32xf32> to vector<8x8xf32>
    %188 = vector.extract_strided_slice %160 {offsets = [0, 16], sizes = [8, 8], strides = [1, 1]} : vector<8x32xf32> to vector<8x8xf32>
    %189 = vector.extract_strided_slice %160 {offsets = [0, 24], sizes = [8, 8], strides = [1, 1]} : vector<8x32xf32> to vector<8x8xf32>
    %190 = vector.shape_cast %186 : vector<8x8xf32> to vector<1x8x8xf32>
    %191 = vector.shape_cast %187 : vector<8x8xf32> to vector<1x8x8xf32>
    %192 = vector.shape_cast %188 : vector<8x8xf32> to vector<1x8x8xf32>
    %193 = vector.shape_cast %189 : vector<8x8xf32> to vector<1x8x8xf32>
    %194 = tpu.concatenate %190, %191, %192, %193 in 0 : vector<1x8x8xf32>, vector<1x8x8xf32>, vector<1x8x8xf32>, vector<1x8x8xf32> -> vector<4x8x8xf32>
    "tpu.trace_start"() <{level = 10 : i32, message = "hqd,hkd->hqk"}> : () -> ()
    %cst_58 = arith.constant dense<0.000000e+00> : vector<4x8x8xf32>
    %195 = tpu.matmul %176, %185, %cst_58 {dimension_numbers = #tpu.dot_dimension_numbers<[2], [2], [1], [1], [0, 0, 0, 1, 1, 1], [0], [0]>} : vector<4x8x8xf32>, vector<4x8x8xf32>, vector<4x8x8xf32> -> vector<4x8x8xf32>
    "tpu.trace_stop"() : () -> ()
    %cst_59 = arith.constant 0.353553385 : f32
    %196 = vector.broadcast %cst_59 : f32 to vector<4x8x8xf32>
    %197 = arith.mulf %195, %196 : vector<4x8x8xf32>
    %198 = vector.shape_cast %19 : vector<1x8xf32> to vector<1x1x8xf32>
    %199 = vector.broadcast %198 : vector<1x1x8xf32> to vector<4x8x8xf32>
    %200 = arith.addf %197, %199 : vector<4x8x8xf32>
    %cst_60 = arith.constant dense<0xFF800000> : vector<4x8xf32>
    %201 = vector.multi_reduction <maximumf>, %200, %cst_60 [2] : vector<4x8x8xf32> to vector<4x8xf32>
    %202 = vector.shape_cast %201 : vector<4x8xf32> to vector<4x8x1xf32>
    %203 = vector.broadcast %202 : vector<4x8x1xf32> to vector<4x8x8xf32>
    %204 = arith.subf %200, %203 : vector<4x8x8xf32>
    %205 = math.exp %204 : vector<4x8x8xf32>
    %cst_61 = arith.constant dense<0.000000e+00> : vector<4x8xf32>
    %206 = vector.multi_reduction <add>, %205, %cst_61 [2] : vector<4x8x8xf32> to vector<4x8xf32>
    %207 = vector.shape_cast %206 : vector<4x8xf32> to vector<4x8x1xf32>
    %208 = tpu.reciprocal %207 {approx = true} : vector<4x8x1xf32> -> vector<4x8x1xf32>
    %209 = vector.broadcast %208 : vector<4x8x1xf32> to vector<4x8x8xf32>
    %210 = arith.mulf %205, %209 : vector<4x8x8xf32>
    "tpu.trace_start"() <{level = 10 : i32, message = "hqk,hkd->hqd"}> : () -> ()
    %cst_62 = arith.constant dense<0.000000e+00> : vector<4x8x8xf32>
    %211 = tpu.matmul %210, %194, %cst_62 {dimension_numbers = #tpu.dot_dimension_numbers<[2], [1], [1], [2], [0, 0, 0, 1, 1, 2], [0], [0]>} : vector<4x8x8xf32>, vector<4x8x8xf32>, vector<4x8x8xf32> -> vector<4x8x8xf32>
    "tpu.trace_stop"() : () -> ()
    %212 = vector.extract_strided_slice %211 {offsets = [0, 0, 0], sizes = [1, 8, 8], strides = [1, 1, 1]} : vector<4x8x8xf32> to vector<1x8x8xf32>
    %213 = vector.shape_cast %212 : vector<1x8x8xf32> to vector<8x8xf32>
    %214 = vector.extract_strided_slice %211 {offsets = [1, 0, 0], sizes = [1, 8, 8], strides = [1, 1, 1]} : vector<4x8x8xf32> to vector<1x8x8xf32>
    %215 = vector.shape_cast %214 : vector<1x8x8xf32> to vector<8x8xf32>
    %216 = vector.extract_strided_slice %211 {offsets = [2, 0, 0], sizes = [1, 8, 8], strides = [1, 1, 1]} : vector<4x8x8xf32> to vector<1x8x8xf32>
    %217 = vector.shape_cast %216 : vector<1x8x8xf32> to vector<8x8xf32>
    %218 = vector.extract_strided_slice %211 {offsets = [3, 0, 0], sizes = [1, 8, 8], strides = [1, 1, 1]} : vector<4x8x8xf32> to vector<1x8x8xf32>
    %219 = vector.shape_cast %218 : vector<1x8x8xf32> to vector<8x8xf32>
    %220 = tpu.concatenate %213, %215, %217, %219 in 1 : vector<8x8xf32>, vector<8x8xf32>, vector<8x8xf32>, vector<8x8xf32> -> vector<8x32xf32>
    %c1_63 = arith.constant 1 : index
    %c0_64 = arith.constant 0 : index
    %c0_65 = arith.constant 0 : index
    %221 = vector.load %arg5[%c1_63, %c0_64, %c0_65] : memref<4x32x32xf32, #tpu.memory_space<vmem>>, vector<1x32x32xf32>
    %222 = vector.shape_cast %221 : vector<1x32x32xf32> to vector<32x32xf32>
    %cst_66 = arith.constant dense<0.000000e+00> : vector<8x32xf32>
    %223 = tpu.matmul %220, %222, %cst_66 {dimension_numbers = #tpu.dot_dimension_numbers<[1], [0], [0], [1], [0, 0, 1, 1], [], []>} : vector<8x32xf32>, vector<32x32xf32>, vector<8x32xf32> -> vector<8x32xf32>
    %c5 = arith.constant 5 : index
    %c0_67 = arith.constant 0 : index
    %224 = vector.load %arg9[%c5, %c0_67] : memref<36x128xf32, #tpu.memory_space<vmem>>, vector<1x32xf32>
    %225 = vector.broadcast %224 : vector<1x32xf32> to vector<8x32xf32>
    %226 = arith.addf %223, %225 : vector<8x32xf32>
    %227 = arith.addf %141, %226 : vector<8x32xf32>
    %228 = arith.mulf %227, %227 : vector<8x32xf32>
    %cst_68 = arith.constant dense<0.000000e+00> : vector<8xf32>
    %229 = vector.multi_reduction <add>, %228, %cst_68 [1] : vector<8x32xf32> to vector<8xf32>
    %230 = vector.shape_cast %229 : vector<8xf32> to vector<8x1xf32>
    %cst_69 = arith.constant 3.200000e+01 : f32
    %231 = vector.broadcast %cst_69 : f32 to vector<8x1xf32>
    %232 = arith.divf %230, %231 : vector<8x1xf32>
    %cst_70 = arith.constant 9.99999993E-9 : f32
    %233 = vector.broadcast %cst_70 : f32 to vector<8x1xf32>
    %234 = arith.addf %232, %233 : vector<8x1xf32>
    %235 = math.rsqrt %234 : vector<8x1xf32>
    %236 = vector.broadcast %235 : vector<8x1xf32> to vector<8x32xf32>
    %237 = arith.mulf %227, %236 : vector<8x32xf32>
    %c1_71 = arith.constant 1 : index
    %c0_72 = arith.constant 0 : index
    %c0_73 = arith.constant 0 : index
    %238 = vector.load %arg6[%c1_71, %c0_72, %c0_73] : memref<4x32x128xf32, #tpu.memory_space<vmem>>, vector<1x32x128xf32>
    %239 = vector.shape_cast %238 : vector<1x32x128xf32> to vector<32x128xf32>
    %cst_74 = arith.constant dense<0.000000e+00> : vector<8x128xf32>
    %240 = tpu.matmul %237, %239, %cst_74 {dimension_numbers = #tpu.dot_dimension_numbers<[1], [0], [0], [1], [0, 0, 1, 1], [], []>} : vector<8x32xf32>, vector<32x128xf32>, vector<8x128xf32> -> vector<8x128xf32>
    %c6 = arith.constant 6 : index
    %c0_75 = arith.constant 0 : index
    %241 = vector.load %arg9[%c6, %c0_75] : memref<36x128xf32, #tpu.memory_space<vmem>>, vector<1x128xf32>
    %242 = vector.broadcast %241 : vector<1x128xf32> to vector<8x128xf32>
    %243 = arith.addf %240, %242 : vector<8x128xf32>
    %244 = arith.mulf %243, %243 : vector<8x128xf32>
    %245 = arith.mulf %243, %244 : vector<8x128xf32>
    %cst_76 = arith.constant 4.471500e-02 : f32
    %246 = vector.broadcast %cst_76 : f32 to vector<8x128xf32>
    %247 = arith.mulf %246, %245 : vector<8x128xf32>
    %248 = arith.addf %243, %247 : vector<8x128xf32>
    %cst_77 = arith.constant 0.797884583 : f32
    %249 = vector.broadcast %cst_77 : f32 to vector<8x128xf32>
    %250 = arith.mulf %249, %248 : vector<8x128xf32>
    %251 = math.tanh %250 : vector<8x128xf32>
    %cst_78 = arith.constant 1.000000e+00 : f32
    %252 = vector.broadcast %cst_78 : f32 to vector<8x128xf32>
    %253 = arith.addf %252, %251 : vector<8x128xf32>
    %cst_79 = arith.constant 5.000000e-01 : f32
    %254 = vector.broadcast %cst_79 : f32 to vector<8x128xf32>
    %255 = arith.mulf %254, %253 : vector<8x128xf32>
    %256 = arith.mulf %243, %255 : vector<8x128xf32>
    %c1_80 = arith.constant 1 : index
    %c0_81 = arith.constant 0 : index
    %c0_82 = arith.constant 0 : index
    %257 = vector.load %arg7[%c1_80, %c0_81, %c0_82] : memref<4x128x32xf32, #tpu.memory_space<vmem>>, vector<1x128x32xf32>
    %258 = vector.shape_cast %257 : vector<1x128x32xf32> to vector<128x32xf32>
    %cst_83 = arith.constant dense<0.000000e+00> : vector<8x32xf32>
    %259 = tpu.matmul %256, %258, %cst_83 {dimension_numbers = #tpu.dot_dimension_numbers<[1], [0], [0], [1], [0, 0, 1, 1], [], []>} : vector<8x128xf32>, vector<128x32xf32>, vector<8x32xf32> -> vector<8x32xf32>
    %c7 = arith.constant 7 : index
    %c0_84 = arith.constant 0 : index
    %260 = vector.load %arg9[%c7, %c0_84] : memref<36x128xf32, #tpu.memory_space<vmem>>, vector<1x32xf32>
    %261 = vector.broadcast %260 : vector<1x32xf32> to vector<8x32xf32>
    %262 = arith.addf %259, %261 : vector<8x32xf32>
    %263 = arith.addf %227, %262 : vector<8x32xf32>
    %264 = arith.mulf %263, %263 : vector<8x32xf32>
    %cst_85 = arith.constant dense<0.000000e+00> : vector<8xf32>
    %265 = vector.multi_reduction <add>, %264, %cst_85 [1] : vector<8x32xf32> to vector<8xf32>
    %266 = vector.shape_cast %265 : vector<8xf32> to vector<8x1xf32>
    %cst_86 = arith.constant 3.200000e+01 : f32
    %267 = vector.broadcast %cst_86 : f32 to vector<8x1xf32>
    %268 = arith.divf %266, %267 : vector<8x1xf32>
    %cst_87 = arith.constant 9.99999993E-9 : f32
    %269 = vector.broadcast %cst_87 : f32 to vector<8x1xf32>
    %270 = arith.addf %268, %269 : vector<8x1xf32>
    %271 = math.rsqrt %270 : vector<8x1xf32>
    %272 = vector.broadcast %271 : vector<8x1xf32> to vector<8x32xf32>
    %273 = arith.mulf %263, %272 : vector<8x32xf32>
    %cst_88 = arith.constant dense<0.000000e+00> : vector<1xf32>
    %274 = vector.multi_reduction <add>, %15, %cst_88 [1] : vector<1x8xf32> to vector<1xf32>
    %275 = vector.shape_cast %274 : vector<1xf32> to vector<1x1xf32>
    %cst_89 = arith.constant 1.000000e+00 : f32
    %276 = vector.broadcast %cst_89 : f32 to vector<1x1xf32>
    %277 = arith.maximumf %275, %276 : vector<1x1xf32>
    %cst_90 = arith.constant dense<0.000000e+00> : vector<1x32xf32>
    %278 = tpu.matmul %15, %273, %cst_90 {dimension_numbers = #tpu.dot_dimension_numbers<[1], [0], [0], [1], [0, 0, 1, 1], [], []>} : vector<1x8xf32>, vector<8x32xf32>, vector<1x32xf32> -> vector<1x32xf32>
    %279 = vector.broadcast %277 : vector<1x1xf32> to vector<1x32xf32>
    %280 = arith.divf %278, %279 : vector<1x32xf32>
    %c0_91 = arith.constant 0 : index
    %c0_92 = arith.constant 0 : index
    %c0_93 = arith.constant 0 : index
    %281 = vector.load %arg3[%c0_91, %c0_92, %c0_93] : memref<1x16x4xf32, #tpu.memory_space<vmem>>, vector<1x16x4xf32>
    %282 = vector.shape_cast %281 : vector<1x16x4xf32> to vector<16x4xf32>
    %c224 = arith.constant 224 : index
    %c0_94 = arith.constant 0 : index
    %283 = vector.load %arg8[%c224, %c0_94] : memref<368x32xf32, #tpu.memory_space<vmem>>, vector<4x16xf32>
    %c228 = arith.constant 228 : index
    %c0_95 = arith.constant 0 : index
    %284 = vector.load %arg8[%c228, %c0_95] : memref<368x32xf32, #tpu.memory_space<vmem>>, vector<4x16xf32>
    %c232 = arith.constant 232 : index
    %c0_96 = arith.constant 0 : index
    %285 = vector.load %arg8[%c232, %c0_96] : memref<368x32xf32, #tpu.memory_space<vmem>>, vector<4x16xf32>
    %cst_97 = arith.constant 0.000000e+00 : f32
    %286 = vector.broadcast %cst_97 : f32 to vector<1x4xf32>
    %287 = vector.extract_strided_slice %282 {offsets = [0, 0], sizes = [15, 4], strides = [1, 1]} : vector<16x4xf32> to vector<15x4xf32>
    %288 = tpu.concatenate %286, %287 in 0 : vector<1x4xf32>, vector<15x4xf32> -> vector<16x4xf32>
    %cst_98 = arith.constant dense<0.000000e+00> : vector<16x16xf32>
    %289 = tpu.matmul %288, %283, %cst_98 {dimension_numbers = #tpu.dot_dimension_numbers<[1], [0], [0], [1], [0, 0, 1, 1], [], []>} : vector<16x4xf32>, vector<4x16xf32>, vector<16x16xf32> -> vector<16x16xf32>
    %cst_99 = arith.constant dense<0.000000e+00> : vector<16x16xf32>
    %290 = tpu.matmul %282, %284, %cst_99 {dimension_numbers = #tpu.dot_dimension_numbers<[1], [0], [0], [1], [0, 0, 1, 1], [], []>} : vector<16x4xf32>, vector<4x16xf32>, vector<16x16xf32> -> vector<16x16xf32>
    %291 = arith.addf %289, %290 : vector<16x16xf32>
    %292 = vector.extract_strided_slice %282 {offsets = [1, 0], sizes = [15, 4], strides = [1, 1]} : vector<16x4xf32> to vector<15x4xf32>
    %cst_100 = arith.constant 0.000000e+00 : f32
    %293 = vector.broadcast %cst_100 : f32 to vector<1x4xf32>
    %294 = tpu.concatenate %292, %293 in 0 : vector<15x4xf32>, vector<1x4xf32> -> vector<16x4xf32>
    %cst_101 = arith.constant dense<0.000000e+00> : vector<16x16xf32>
    %295 = tpu.matmul %294, %285, %cst_101 {dimension_numbers = #tpu.dot_dimension_numbers<[1], [0], [0], [1], [0, 0, 1, 1], [], []>} : vector<16x4xf32>, vector<4x16xf32>, vector<16x16xf32> -> vector<16x16xf32>
    %296 = arith.addf %291, %295 : vector<16x16xf32>
    %c28 = arith.constant 28 : index
    %c0_102 = arith.constant 0 : index
    %297 = vector.load %arg9[%c28, %c0_102] : memref<36x128xf32, #tpu.memory_space<vmem>>, vector<1x16xf32>
    %298 = vector.broadcast %297 : vector<1x16xf32> to vector<16x16xf32>
    %299 = arith.addf %296, %298 : vector<16x16xf32>
    %c288 = arith.constant 288 : index
    %c0_103 = arith.constant 0 : index
    %300 = vector.load %arg8[%c288, %c0_103] : memref<368x32xf32, #tpu.memory_space<vmem>>, vector<16x8xf32>
    %c304 = arith.constant 304 : index
    %c0_104 = arith.constant 0 : index
    %301 = vector.load %arg8[%c304, %c0_104] : memref<368x32xf32, #tpu.memory_space<vmem>>, vector<8x16xf32>
    %cst_105 = arith.constant dense<0.000000e+00> : vector<16x8xf32>
    %302 = tpu.matmul %299, %300, %cst_105 {dimension_numbers = #tpu.dot_dimension_numbers<[1], [0], [0], [1], [0, 0, 1, 1], [], []>} : vector<16x16xf32>, vector<16x8xf32>, vector<16x8xf32> -> vector<16x8xf32>
    %cst_106 = arith.constant dense<0.000000e+00> : vector<8xf32>
    %303 = vector.multi_reduction <add>, %302, %cst_106 [0] : vector<16x8xf32> to vector<8xf32>
    %304 = vector.shape_cast %303 : vector<8xf32> to vector<1x8xf32>
    %cst_107 = arith.constant 3.125000e-02 : f32
    %305 = vector.broadcast %cst_107 : f32 to vector<1x8xf32>
    %306 = arith.mulf %304, %305 : vector<1x8xf32>
    %cst_108 = arith.constant dense<0.000000e+00> : vector<1x16xf32>
    %307 = tpu.matmul %306, %301, %cst_108 {dimension_numbers = #tpu.dot_dimension_numbers<[1], [0], [0], [1], [0, 0, 1, 1], [], []>} : vector<1x8xf32>, vector<8x16xf32>, vector<1x16xf32> -> vector<1x16xf32>
    %308 = vector.broadcast %307 : vector<1x16xf32> to vector<16x16xf32>
    %309 = arith.subf %299, %308 : vector<16x16xf32>
    %310 = arith.mulf %309, %309 : vector<16x16xf32>
    %cst_109 = arith.constant dense<0.000000e+00> : vector<16x8xf32>
    %311 = tpu.matmul %310, %300, %cst_109 {dimension_numbers = #tpu.dot_dimension_numbers<[1], [0], [0], [1], [0, 0, 1, 1], [], []>} : vector<16x16xf32>, vector<16x8xf32>, vector<16x8xf32> -> vector<16x8xf32>
    %cst_110 = arith.constant dense<0.000000e+00> : vector<8xf32>
    %312 = vector.multi_reduction <add>, %311, %cst_110 [0] : vector<16x8xf32> to vector<8xf32>
    %313 = vector.shape_cast %312 : vector<8xf32> to vector<1x8xf32>
    %cst_111 = arith.constant 3.125000e-02 : f32
    %314 = vector.broadcast %cst_111 : f32 to vector<1x8xf32>
    %315 = arith.mulf %313, %314 : vector<1x8xf32>
    %cst_112 = arith.constant 9.99999974E-6 : f32
    %316 = vector.broadcast %cst_112 : f32 to vector<1x8xf32>
    %317 = arith.addf %315, %316 : vector<1x8xf32>
    %318 = math.rsqrt %317 : vector<1x8xf32>
    %cst_113 = arith.constant dense<0.000000e+00> : vector<1x16xf32>
    %319 = tpu.matmul %318, %301, %cst_113 {dimension_numbers = #tpu.dot_dimension_numbers<[1], [0], [0], [1], [0, 0, 1, 1], [], []>} : vector<1x8xf32>, vector<8x16xf32>, vector<1x16xf32> -> vector<1x16xf32>
    %320 = vector.broadcast %319 : vector<1x16xf32> to vector<16x16xf32>
    %321 = arith.mulf %309, %320 : vector<16x16xf32>
    %c29 = arith.constant 29 : index
    %c0_114 = arith.constant 0 : index
    %322 = vector.load %arg9[%c29, %c0_114] : memref<36x128xf32, #tpu.memory_space<vmem>>, vector<1x16xf32>
    %323 = vector.broadcast %322 : vector<1x16xf32> to vector<16x16xf32>
    %324 = arith.mulf %321, %323 : vector<16x16xf32>
    %c30 = arith.constant 30 : index
    %c0_115 = arith.constant 0 : index
    %325 = vector.load %arg9[%c30, %c0_115] : memref<36x128xf32, #tpu.memory_space<vmem>>, vector<1x16xf32>
    %326 = vector.broadcast %325 : vector<1x16xf32> to vector<16x16xf32>
    %327 = arith.addf %324, %326 : vector<16x16xf32>
    %cst_116 = arith.constant 0.000000e+00 : f32
    %328 = vector.broadcast %cst_116 : f32 to vector<16x16xf32>
    %329 = arith.cmpf ogt, %327, %328 : vector<16x16xf32>
    %cst_117 = arith.constant 0.000000e+00 : f32
    %330 = vector.broadcast %cst_117 : f32 to vector<16x16xf32>
    %331 = arith.minimumf %327, %330 : vector<16x16xf32>
    %332 = math.exp %331 : vector<16x16xf32>
    %cst_118 = arith.constant 1.000000e+00 : f32
    %333 = vector.broadcast %cst_118 : f32 to vector<16x16xf32>
    %334 = arith.subf %332, %333 : vector<16x16xf32>
    %335 = arith.select %329, %327, %334 : vector<16x16xi1>, vector<16x16xf32>
    %c240 = arith.constant 240 : index
    %c0_119 = arith.constant 0 : index
    %336 = vector.load %arg8[%c240, %c0_119] : memref<368x32xf32, #tpu.memory_space<vmem>>, vector<16x32xf32>
    %c256 = arith.constant 256 : index
    %c0_120 = arith.constant 0 : index
    %337 = vector.load %arg8[%c256, %c0_120] : memref<368x32xf32, #tpu.memory_space<vmem>>, vector<16x32xf32>
    %c272 = arith.constant 272 : index
    %c0_121 = arith.constant 0 : index
    %338 = vector.load %arg8[%c272, %c0_121] : memref<368x32xf32, #tpu.memory_space<vmem>>, vector<16x32xf32>
    %cst_122 = arith.constant 0.000000e+00 : f32
    %339 = vector.broadcast %cst_122 : f32 to vector<1x16xf32>
    %340 = vector.extract_strided_slice %335 {offsets = [0, 0], sizes = [15, 16], strides = [1, 1]} : vector<16x16xf32> to vector<15x16xf32>
    %341 = tpu.concatenate %339, %340 in 0 : vector<1x16xf32>, vector<15x16xf32> -> vector<16x16xf32>
    %cst_123 = arith.constant dense<0.000000e+00> : vector<16x32xf32>
    %342 = tpu.matmul %341, %336, %cst_123 {dimension_numbers = #tpu.dot_dimension_numbers<[1], [0], [0], [1], [0, 0, 1, 1], [], []>} : vector<16x16xf32>, vector<16x32xf32>, vector<16x32xf32> -> vector<16x32xf32>
    %cst_124 = arith.constant dense<0.000000e+00> : vector<16x32xf32>
    %343 = tpu.matmul %335, %337, %cst_124 {dimension_numbers = #tpu.dot_dimension_numbers<[1], [0], [0], [1], [0, 0, 1, 1], [], []>} : vector<16x16xf32>, vector<16x32xf32>, vector<16x32xf32> -> vector<16x32xf32>
    %344 = arith.addf %342, %343 : vector<16x32xf32>
    %345 = vector.extract_strided_slice %335 {offsets = [1, 0], sizes = [15, 16], strides = [1, 1]} : vector<16x16xf32> to vector<15x16xf32>
    %cst_125 = arith.constant 0.000000e+00 : f32
    %346 = vector.broadcast %cst_125 : f32 to vector<1x16xf32>
    %347 = tpu.concatenate %345, %346 in 0 : vector<15x16xf32>, vector<1x16xf32> -> vector<16x16xf32>
    %cst_126 = arith.constant dense<0.000000e+00> : vector<16x32xf32>
    %348 = tpu.matmul %347, %338, %cst_126 {dimension_numbers = #tpu.dot_dimension_numbers<[1], [0], [0], [1], [0, 0, 1, 1], [], []>} : vector<16x16xf32>, vector<16x32xf32>, vector<16x32xf32> -> vector<16x32xf32>
    %349 = arith.addf %344, %348 : vector<16x32xf32>
    %c31 = arith.constant 31 : index
    %c0_127 = arith.constant 0 : index
    %350 = vector.load %arg9[%c31, %c0_127] : memref<36x128xf32, #tpu.memory_space<vmem>>, vector<1x32xf32>
    %351 = vector.broadcast %350 : vector<1x32xf32> to vector<16x32xf32>
    %352 = arith.addf %349, %351 : vector<16x32xf32>
    %c312 = arith.constant 312 : index
    %c0_128 = arith.constant 0 : index
    %353 = vector.load %arg8[%c312, %c0_128] : memref<368x32xf32, #tpu.memory_space<vmem>>, vector<32x16xf32>
    %c344 = arith.constant 344 : index
    %c0_129 = arith.constant 0 : index
    %354 = vector.load %arg8[%c344, %c0_129] : memref<368x32xf32, #tpu.memory_space<vmem>>, vector<16x32xf32>
    %cst_130 = arith.constant dense<0.000000e+00> : vector<16x16xf32>
    %355 = tpu.matmul %352, %353, %cst_130 {dimension_numbers = #tpu.dot_dimension_numbers<[1], [0], [0], [1], [0, 0, 1, 1], [], []>} : vector<16x32xf32>, vector<32x16xf32>, vector<16x16xf32> -> vector<16x16xf32>
    %cst_131 = arith.constant dense<0.000000e+00> : vector<16xf32>
    %356 = vector.multi_reduction <add>, %355, %cst_131 [0] : vector<16x16xf32> to vector<16xf32>
    %357 = vector.shape_cast %356 : vector<16xf32> to vector<1x16xf32>
    %cst_132 = arith.constant 3.125000e-02 : f32
    %358 = vector.broadcast %cst_132 : f32 to vector<1x16xf32>
    %359 = arith.mulf %357, %358 : vector<1x16xf32>
    %cst_133 = arith.constant dense<0.000000e+00> : vector<1x32xf32>
    %360 = tpu.matmul %359, %354, %cst_133 {dimension_numbers = #tpu.dot_dimension_numbers<[1], [0], [0], [1], [0, 0, 1, 1], [], []>} : vector<1x16xf32>, vector<16x32xf32>, vector<1x32xf32> -> vector<1x32xf32>
    %361 = vector.broadcast %360 : vector<1x32xf32> to vector<16x32xf32>
    %362 = arith.subf %352, %361 : vector<16x32xf32>
    %363 = arith.mulf %362, %362 : vector<16x32xf32>
    %cst_134 = arith.constant dense<0.000000e+00> : vector<16x16xf32>
    %364 = tpu.matmul %363, %353, %cst_134 {dimension_numbers = #tpu.dot_dimension_numbers<[1], [0], [0], [1], [0, 0, 1, 1], [], []>} : vector<16x32xf32>, vector<32x16xf32>, vector<16x16xf32> -> vector<16x16xf32>
    %cst_135 = arith.constant dense<0.000000e+00> : vector<16xf32>
    %365 = vector.multi_reduction <add>, %364, %cst_135 [0] : vector<16x16xf32> to vector<16xf32>
    %366 = vector.shape_cast %365 : vector<16xf32> to vector<1x16xf32>
    %cst_136 = arith.constant 3.125000e-02 : f32
    %367 = vector.broadcast %cst_136 : f32 to vector<1x16xf32>
    %368 = arith.mulf %366, %367 : vector<1x16xf32>
    %cst_137 = arith.constant 9.99999974E-6 : f32
    %369 = vector.broadcast %cst_137 : f32 to vector<1x16xf32>
    %370 = arith.addf %368, %369 : vector<1x16xf32>
    %371 = math.rsqrt %370 : vector<1x16xf32>
    %cst_138 = arith.constant dense<0.000000e+00> : vector<1x32xf32>
    %372 = tpu.matmul %371, %354, %cst_138 {dimension_numbers = #tpu.dot_dimension_numbers<[1], [0], [0], [1], [0, 0, 1, 1], [], []>} : vector<1x16xf32>, vector<16x32xf32>, vector<1x32xf32> -> vector<1x32xf32>
    %373 = vector.broadcast %372 : vector<1x32xf32> to vector<16x32xf32>
    %374 = arith.mulf %362, %373 : vector<16x32xf32>
    %c32 = arith.constant 32 : index
    %c0_139 = arith.constant 0 : index
    %375 = vector.load %arg9[%c32, %c0_139] : memref<36x128xf32, #tpu.memory_space<vmem>>, vector<1x32xf32>
    %376 = vector.broadcast %375 : vector<1x32xf32> to vector<16x32xf32>
    %377 = arith.mulf %374, %376 : vector<16x32xf32>
    %c33 = arith.constant 33 : index
    %c0_140 = arith.constant 0 : index
    %378 = vector.load %arg9[%c33, %c0_140] : memref<36x128xf32, #tpu.memory_space<vmem>>, vector<1x32xf32>
    %379 = vector.broadcast %378 : vector<1x32xf32> to vector<16x32xf32>
    %380 = arith.addf %377, %379 : vector<16x32xf32>
    %cst_141 = arith.constant 0.000000e+00 : f32
    %381 = vector.broadcast %cst_141 : f32 to vector<16x32xf32>
    %382 = arith.cmpf ogt, %380, %381 : vector<16x32xf32>
    %cst_142 = arith.constant 0.000000e+00 : f32
    %383 = vector.broadcast %cst_142 : f32 to vector<16x32xf32>
    %384 = arith.minimumf %380, %383 : vector<16x32xf32>
    %385 = math.exp %384 : vector<16x32xf32>
    %cst_143 = arith.constant 1.000000e+00 : f32
    %386 = vector.broadcast %cst_143 : f32 to vector<16x32xf32>
    %387 = arith.subf %385, %386 : vector<16x32xf32>
    %388 = arith.select %382, %380, %387 : vector<16x32xi1>, vector<16x32xf32>
    %c360 = arith.constant 360 : index
    %c0_144 = arith.constant 0 : index
    %389 = vector.load %arg8[%c360, %c0_144] : memref<368x32xf32, #tpu.memory_space<vmem>>, vector<8x16xf32>
    %cst_145 = arith.constant dense<0.000000e+00> : vector<8x32xf32>
    %390 = tpu.matmul %389, %388, %cst_145 {dimension_numbers = #tpu.dot_dimension_numbers<[1], [0], [0], [1], [0, 0, 1, 1], [], []>} : vector<8x16xf32>, vector<16x32xf32>, vector<8x32xf32> -> vector<8x32xf32>
    %c16 = arith.constant 16 : index
    %c0_146 = arith.constant 0 : index
    %391 = vector.load %arg8[%c16, %c0_146] : memref<368x32xf32, #tpu.memory_space<vmem>>, vector<32x32xf32>
    %cst_147 = arith.constant dense<0.000000e+00> : vector<8x32xf32>
    %392 = tpu.matmul %390, %391, %cst_147 {dimension_numbers = #tpu.dot_dimension_numbers<[1], [0], [0], [1], [0, 0, 1, 1], [], []>} : vector<8x32xf32>, vector<32x32xf32>, vector<8x32xf32> -> vector<8x32xf32>
    %c8 = arith.constant 8 : index
    %c0_148 = arith.constant 0 : index
    %393 = vector.load %arg9[%c8, %c0_148] : memref<36x128xf32, #tpu.memory_space<vmem>>, vector<1x32xf32>
    %394 = vector.broadcast %393 : vector<1x32xf32> to vector<8x32xf32>
    %395 = arith.addf %392, %394 : vector<8x32xf32>
    %c12 = arith.constant 12 : index
    %c0_149 = arith.constant 0 : index
    %396 = vector.load %arg9[%c12, %c0_149] : memref<36x128xf32, #tpu.memory_space<vmem>>, vector<1x32xf32>
    %c13 = arith.constant 13 : index
    %c0_150 = arith.constant 0 : index
    %397 = vector.load %arg9[%c13, %c0_150] : memref<36x128xf32, #tpu.memory_space<vmem>>, vector<1x32xf32>
    %cst_151 = arith.constant dense<0.000000e+00> : vector<8xf32>
    %398 = vector.multi_reduction <add>, %395, %cst_151 [1] : vector<8x32xf32> to vector<8xf32>
    %399 = vector.shape_cast %398 : vector<8xf32> to vector<8x1xf32>
    %cst_152 = arith.constant 3.200000e+01 : f32
    %400 = vector.broadcast %cst_152 : f32 to vector<8x1xf32>
    %401 = arith.divf %399, %400 : vector<8x1xf32>
    %402 = vector.broadcast %401 : vector<8x1xf32> to vector<8x32xf32>
    %403 = arith.subf %395, %402 : vector<8x32xf32>
    %404 = arith.mulf %403, %403 : vector<8x32xf32>
    %cst_153 = arith.constant dense<0.000000e+00> : vector<8xf32>
    %405 = vector.multi_reduction <add>, %404, %cst_153 [1] : vector<8x32xf32> to vector<8xf32>
    %406 = vector.shape_cast %405 : vector<8xf32> to vector<8x1xf32>
    %cst_154 = arith.constant 3.200000e+01 : f32
    %407 = vector.broadcast %cst_154 : f32 to vector<8x1xf32>
    %408 = arith.divf %406, %407 : vector<8x1xf32>
    %409 = vector.broadcast %401 : vector<8x1xf32> to vector<8x32xf32>
    %410 = arith.subf %395, %409 : vector<8x32xf32>
    %cst_155 = arith.constant 9.99999974E-6 : f32
    %411 = vector.broadcast %cst_155 : f32 to vector<8x1xf32>
    %412 = arith.addf %408, %411 : vector<8x1xf32>
    %413 = math.rsqrt %412 : vector<8x1xf32>
    %414 = vector.broadcast %413 : vector<8x1xf32> to vector<8x32xf32>
    %415 = arith.mulf %410, %414 : vector<8x32xf32>
    %416 = vector.broadcast %396 : vector<1x32xf32> to vector<8x32xf32>
    %417 = arith.mulf %415, %416 : vector<8x32xf32>
    %418 = vector.broadcast %397 : vector<1x32xf32> to vector<8x32xf32>
    %419 = arith.addf %417, %418 : vector<8x32xf32>
    %c2_156 = arith.constant 2 : index
    %c0_157 = arith.constant 0 : index
    %c0_158 = arith.constant 0 : index
    %420 = vector.load %arg4[%c2_156, %c0_157, %c0_158] : memref<4x32x96xf32, #tpu.memory_space<vmem>>, vector<1x32x96xf32>
    %421 = vector.shape_cast %420 : vector<1x32x96xf32> to vector<32x96xf32>
    %cst_159 = arith.constant dense<0.000000e+00> : vector<8x96xf32>
    %422 = tpu.matmul %419, %421, %cst_159 {dimension_numbers = #tpu.dot_dimension_numbers<[1], [0], [0], [1], [0, 0, 1, 1], [], []>} : vector<8x32xf32>, vector<32x96xf32>, vector<8x96xf32> -> vector<8x96xf32>
    %c16_160 = arith.constant 16 : index
    %c0_161 = arith.constant 0 : index
    %423 = vector.load %arg9[%c16_160, %c0_161] : memref<36x128xf32, #tpu.memory_space<vmem>>, vector<1x96xf32>
    %424 = vector.broadcast %423 : vector<1x96xf32> to vector<8x96xf32>
    %425 = arith.addf %422, %424 : vector<8x96xf32>
    %426 = vector.extract_strided_slice %425 {offsets = [0, 0], sizes = [8, 32], strides = [1, 1]} : vector<8x96xf32> to vector<8x32xf32>
    %427 = vector.extract_strided_slice %425 {offsets = [0, 32], sizes = [8, 32], strides = [1, 1]} : vector<8x96xf32> to vector<8x32xf32>
    %428 = vector.extract_strided_slice %425 {offsets = [0, 64], sizes = [8, 32], strides = [1, 1]} : vector<8x96xf32> to vector<8x32xf32>
    %429 = tpu.concatenate %426, %427 in 0 : vector<8x32xf32>, vector<8x32xf32> -> vector<16x32xf32>
    %430 = arith.mulf %429, %2 : vector<16x32xf32>
    %cst_162 = arith.constant dense<0.000000e+00> : vector<16x32xf32>
    %431 = tpu.matmul %429, %4, %cst_162 {dimension_numbers = #tpu.dot_dimension_numbers<[1], [0], [0], [1], [0, 0, 1, 1], [], []>} : vector<16x32xf32>, vector<32x32xf32>, vector<16x32xf32> -> vector<16x32xf32>
    %432 = arith.mulf %431, %3 : vector<16x32xf32>
    %433 = arith.addf %430, %432 : vector<16x32xf32>
    %434 = vector.extract_strided_slice %433 {offsets = [0, 0], sizes = [8, 32], strides = [1, 1]} : vector<16x32xf32> to vector<8x32xf32>
    %435 = vector.extract_strided_slice %433 {offsets = [8, 0], sizes = [8, 32], strides = [1, 1]} : vector<16x32xf32> to vector<8x32xf32>
    %436 = vector.extract_strided_slice %434 {offsets = [0, 0], sizes = [8, 8], strides = [1, 1]} : vector<8x32xf32> to vector<8x8xf32>
    %437 = vector.extract_strided_slice %434 {offsets = [0, 8], sizes = [8, 8], strides = [1, 1]} : vector<8x32xf32> to vector<8x8xf32>
    %438 = vector.extract_strided_slice %434 {offsets = [0, 16], sizes = [8, 8], strides = [1, 1]} : vector<8x32xf32> to vector<8x8xf32>
    %439 = vector.extract_strided_slice %434 {offsets = [0, 24], sizes = [8, 8], strides = [1, 1]} : vector<8x32xf32> to vector<8x8xf32>
    %440 = vector.shape_cast %436 : vector<8x8xf32> to vector<1x8x8xf32>
    %441 = vector.shape_cast %437 : vector<8x8xf32> to vector<1x8x8xf32>
    %442 = vector.shape_cast %438 : vector<8x8xf32> to vector<1x8x8xf32>
    %443 = vector.shape_cast %439 : vector<8x8xf32> to vector<1x8x8xf32>
    %444 = tpu.concatenate %440, %441, %442, %443 in 0 : vector<1x8x8xf32>, vector<1x8x8xf32>, vector<1x8x8xf32>, vector<1x8x8xf32> -> vector<4x8x8xf32>
    %445 = vector.extract_strided_slice %435 {offsets = [0, 0], sizes = [8, 8], strides = [1, 1]} : vector<8x32xf32> to vector<8x8xf32>
    %446 = vector.extract_strided_slice %435 {offsets = [0, 8], sizes = [8, 8], strides = [1, 1]} : vector<8x32xf32> to vector<8x8xf32>
    %447 = vector.extract_strided_slice %435 {offsets = [0, 16], sizes = [8, 8], strides = [1, 1]} : vector<8x32xf32> to vector<8x8xf32>
    %448 = vector.extract_strided_slice %435 {offsets = [0, 24], sizes = [8, 8], strides = [1, 1]} : vector<8x32xf32> to vector<8x8xf32>
    %449 = vector.shape_cast %445 : vector<8x8xf32> to vector<1x8x8xf32>
    %450 = vector.shape_cast %446 : vector<8x8xf32> to vector<1x8x8xf32>
    %451 = vector.shape_cast %447 : vector<8x8xf32> to vector<1x8x8xf32>
    %452 = vector.shape_cast %448 : vector<8x8xf32> to vector<1x8x8xf32>
    %453 = tpu.concatenate %449, %450, %451, %452 in 0 : vector<1x8x8xf32>, vector<1x8x8xf32>, vector<1x8x8xf32>, vector<1x8x8xf32> -> vector<4x8x8xf32>
    %454 = vector.extract_strided_slice %428 {offsets = [0, 0], sizes = [8, 8], strides = [1, 1]} : vector<8x32xf32> to vector<8x8xf32>
    %455 = vector.extract_strided_slice %428 {offsets = [0, 8], sizes = [8, 8], strides = [1, 1]} : vector<8x32xf32> to vector<8x8xf32>
    %456 = vector.extract_strided_slice %428 {offsets = [0, 16], sizes = [8, 8], strides = [1, 1]} : vector<8x32xf32> to vector<8x8xf32>
    %457 = vector.extract_strided_slice %428 {offsets = [0, 24], sizes = [8, 8], strides = [1, 1]} : vector<8x32xf32> to vector<8x8xf32>
    %458 = vector.shape_cast %454 : vector<8x8xf32> to vector<1x8x8xf32>
    %459 = vector.shape_cast %455 : vector<8x8xf32> to vector<1x8x8xf32>
    %460 = vector.shape_cast %456 : vector<8x8xf32> to vector<1x8x8xf32>
    %461 = vector.shape_cast %457 : vector<8x8xf32> to vector<1x8x8xf32>
    %462 = tpu.concatenate %458, %459, %460, %461 in 0 : vector<1x8x8xf32>, vector<1x8x8xf32>, vector<1x8x8xf32>, vector<1x8x8xf32> -> vector<4x8x8xf32>
    "tpu.trace_start"() <{level = 10 : i32, message = "hqd,hkd->hqk"}> : () -> ()
    %cst_163 = arith.constant dense<0.000000e+00> : vector<4x8x8xf32>
    %463 = tpu.matmul %444, %453, %cst_163 {dimension_numbers = #tpu.dot_dimension_numbers<[2], [2], [1], [1], [0, 0, 0, 1, 1, 1], [0], [0]>} : vector<4x8x8xf32>, vector<4x8x8xf32>, vector<4x8x8xf32> -> vector<4x8x8xf32>
    "tpu.trace_stop"() : () -> ()
    %cst_164 = arith.constant 0.353553385 : f32
    %464 = vector.broadcast %cst_164 : f32 to vector<4x8x8xf32>
    %465 = arith.mulf %463, %464 : vector<4x8x8xf32>
    %cst_165 = arith.constant dense<0xFF800000> : vector<4x8xf32>
    %466 = vector.multi_reduction <maximumf>, %465, %cst_165 [2] : vector<4x8x8xf32> to vector<4x8xf32>
    %467 = vector.shape_cast %466 : vector<4x8xf32> to vector<4x8x1xf32>
    %468 = vector.broadcast %467 : vector<4x8x1xf32> to vector<4x8x8xf32>
    %469 = arith.subf %465, %468 : vector<4x8x8xf32>
    %470 = math.exp %469 : vector<4x8x8xf32>
    %cst_166 = arith.constant dense<0.000000e+00> : vector<4x8xf32>
    %471 = vector.multi_reduction <add>, %470, %cst_166 [2] : vector<4x8x8xf32> to vector<4x8xf32>
    %472 = vector.shape_cast %471 : vector<4x8xf32> to vector<4x8x1xf32>
    %473 = tpu.reciprocal %472 {approx = true} : vector<4x8x1xf32> -> vector<4x8x1xf32>
    %474 = vector.broadcast %473 : vector<4x8x1xf32> to vector<4x8x8xf32>
    %475 = arith.mulf %470, %474 : vector<4x8x8xf32>
    "tpu.trace_start"() <{level = 10 : i32, message = "hqk,hkd->hqd"}> : () -> ()
    %cst_167 = arith.constant dense<0.000000e+00> : vector<4x8x8xf32>
    %476 = tpu.matmul %475, %462, %cst_167 {dimension_numbers = #tpu.dot_dimension_numbers<[2], [1], [1], [2], [0, 0, 0, 1, 1, 2], [0], [0]>} : vector<4x8x8xf32>, vector<4x8x8xf32>, vector<4x8x8xf32> -> vector<4x8x8xf32>
    "tpu.trace_stop"() : () -> ()
    %477 = vector.extract_strided_slice %476 {offsets = [0, 0, 0], sizes = [1, 8, 8], strides = [1, 1, 1]} : vector<4x8x8xf32> to vector<1x8x8xf32>
    %478 = vector.shape_cast %477 : vector<1x8x8xf32> to vector<8x8xf32>
    %479 = vector.extract_strided_slice %476 {offsets = [1, 0, 0], sizes = [1, 8, 8], strides = [1, 1, 1]} : vector<4x8x8xf32> to vector<1x8x8xf32>
    %480 = vector.shape_cast %479 : vector<1x8x8xf32> to vector<8x8xf32>
    %481 = vector.extract_strided_slice %476 {offsets = [2, 0, 0], sizes = [1, 8, 8], strides = [1, 1, 1]} : vector<4x8x8xf32> to vector<1x8x8xf32>
    %482 = vector.shape_cast %481 : vector<1x8x8xf32> to vector<8x8xf32>
    %483 = vector.extract_strided_slice %476 {offsets = [3, 0, 0], sizes = [1, 8, 8], strides = [1, 1, 1]} : vector<4x8x8xf32> to vector<1x8x8xf32>
    %484 = vector.shape_cast %483 : vector<1x8x8xf32> to vector<8x8xf32>
    %485 = tpu.concatenate %478, %480, %482, %484 in 1 : vector<8x8xf32>, vector<8x8xf32>, vector<8x8xf32>, vector<8x8xf32> -> vector<8x32xf32>
    %c2_168 = arith.constant 2 : index
    %c0_169 = arith.constant 0 : index
    %c0_170 = arith.constant 0 : index
    %486 = vector.load %arg5[%c2_168, %c0_169, %c0_170] : memref<4x32x32xf32, #tpu.memory_space<vmem>>, vector<1x32x32xf32>
    %487 = vector.shape_cast %486 : vector<1x32x32xf32> to vector<32x32xf32>
    %cst_171 = arith.constant dense<0.000000e+00> : vector<8x32xf32>
    %488 = tpu.matmul %485, %487, %cst_171 {dimension_numbers = #tpu.dot_dimension_numbers<[1], [0], [0], [1], [0, 0, 1, 1], [], []>} : vector<8x32xf32>, vector<32x32xf32>, vector<8x32xf32> -> vector<8x32xf32>
    %c17 = arith.constant 17 : index
    %c0_172 = arith.constant 0 : index
    %489 = vector.load %arg9[%c17, %c0_172] : memref<36x128xf32, #tpu.memory_space<vmem>>, vector<1x32xf32>
    %490 = vector.broadcast %489 : vector<1x32xf32> to vector<8x32xf32>
    %491 = arith.addf %488, %490 : vector<8x32xf32>
    %492 = arith.addf %395, %491 : vector<8x32xf32>
    %c14 = arith.constant 14 : index
    %c0_173 = arith.constant 0 : index
    %493 = vector.load %arg9[%c14, %c0_173] : memref<36x128xf32, #tpu.memory_space<vmem>>, vector<1x32xf32>
    %c15 = arith.constant 15 : index
    %c0_174 = arith.constant 0 : index
    %494 = vector.load %arg9[%c15, %c0_174] : memref<36x128xf32, #tpu.memory_space<vmem>>, vector<1x32xf32>
    %cst_175 = arith.constant dense<0.000000e+00> : vector<8xf32>
    %495 = vector.multi_reduction <add>, %492, %cst_175 [1] : vector<8x32xf32> to vector<8xf32>
    %496 = vector.shape_cast %495 : vector<8xf32> to vector<8x1xf32>
    %cst_176 = arith.constant 3.200000e+01 : f32
    %497 = vector.broadcast %cst_176 : f32 to vector<8x1xf32>
    %498 = arith.divf %496, %497 : vector<8x1xf32>
    %499 = vector.broadcast %498 : vector<8x1xf32> to vector<8x32xf32>
    %500 = arith.subf %492, %499 : vector<8x32xf32>
    %501 = arith.mulf %500, %500 : vector<8x32xf32>
    %cst_177 = arith.constant dense<0.000000e+00> : vector<8xf32>
    %502 = vector.multi_reduction <add>, %501, %cst_177 [1] : vector<8x32xf32> to vector<8xf32>
    %503 = vector.shape_cast %502 : vector<8xf32> to vector<8x1xf32>
    %cst_178 = arith.constant 3.200000e+01 : f32
    %504 = vector.broadcast %cst_178 : f32 to vector<8x1xf32>
    %505 = arith.divf %503, %504 : vector<8x1xf32>
    %506 = vector.broadcast %498 : vector<8x1xf32> to vector<8x32xf32>
    %507 = arith.subf %492, %506 : vector<8x32xf32>
    %cst_179 = arith.constant 9.99999974E-6 : f32
    %508 = vector.broadcast %cst_179 : f32 to vector<8x1xf32>
    %509 = arith.addf %505, %508 : vector<8x1xf32>
    %510 = math.rsqrt %509 : vector<8x1xf32>
    %511 = vector.broadcast %510 : vector<8x1xf32> to vector<8x32xf32>
    %512 = arith.mulf %507, %511 : vector<8x32xf32>
    %513 = vector.broadcast %493 : vector<1x32xf32> to vector<8x32xf32>
    %514 = arith.mulf %512, %513 : vector<8x32xf32>
    %515 = vector.broadcast %494 : vector<1x32xf32> to vector<8x32xf32>
    %516 = arith.addf %514, %515 : vector<8x32xf32>
    %c2_180 = arith.constant 2 : index
    %c0_181 = arith.constant 0 : index
    %c0_182 = arith.constant 0 : index
    %517 = vector.load %arg6[%c2_180, %c0_181, %c0_182] : memref<4x32x128xf32, #tpu.memory_space<vmem>>, vector<1x32x128xf32>
    %518 = vector.shape_cast %517 : vector<1x32x128xf32> to vector<32x128xf32>
    %cst_183 = arith.constant dense<0.000000e+00> : vector<8x128xf32>
    %519 = tpu.matmul %516, %518, %cst_183 {dimension_numbers = #tpu.dot_dimension_numbers<[1], [0], [0], [1], [0, 0, 1, 1], [], []>} : vector<8x32xf32>, vector<32x128xf32>, vector<8x128xf32> -> vector<8x128xf32>
    %c18 = arith.constant 18 : index
    %c0_184 = arith.constant 0 : index
    %520 = vector.load %arg9[%c18, %c0_184] : memref<36x128xf32, #tpu.memory_space<vmem>>, vector<1x128xf32>
    %521 = vector.broadcast %520 : vector<1x128xf32> to vector<8x128xf32>
    %522 = arith.addf %519, %521 : vector<8x128xf32>
    %523 = arith.mulf %522, %522 : vector<8x128xf32>
    %524 = arith.mulf %522, %523 : vector<8x128xf32>
    %cst_185 = arith.constant 4.471500e-02 : f32
    %525 = vector.broadcast %cst_185 : f32 to vector<8x128xf32>
    %526 = arith.mulf %525, %524 : vector<8x128xf32>
    %527 = arith.addf %522, %526 : vector<8x128xf32>
    %cst_186 = arith.constant 0.797884583 : f32
    %528 = vector.broadcast %cst_186 : f32 to vector<8x128xf32>
    %529 = arith.mulf %528, %527 : vector<8x128xf32>
    %530 = math.tanh %529 : vector<8x128xf32>
    %cst_187 = arith.constant 1.000000e+00 : f32
    %531 = vector.broadcast %cst_187 : f32 to vector<8x128xf32>
    %532 = arith.addf %531, %530 : vector<8x128xf32>
    %cst_188 = arith.constant 5.000000e-01 : f32
    %533 = vector.broadcast %cst_188 : f32 to vector<8x128xf32>
    %534 = arith.mulf %533, %532 : vector<8x128xf32>
    %535 = arith.mulf %522, %534 : vector<8x128xf32>
    %c2_189 = arith.constant 2 : index
    %c0_190 = arith.constant 0 : index
    %c0_191 = arith.constant 0 : index
    %536 = vector.load %arg7[%c2_189, %c0_190, %c0_191] : memref<4x128x32xf32, #tpu.memory_space<vmem>>, vector<1x128x32xf32>
    %537 = vector.shape_cast %536 : vector<1x128x32xf32> to vector<128x32xf32>
    %cst_192 = arith.constant dense<0.000000e+00> : vector<8x32xf32>
    %538 = tpu.matmul %535, %537, %cst_192 {dimension_numbers = #tpu.dot_dimension_numbers<[1], [0], [0], [1], [0, 0, 1, 1], [], []>} : vector<8x128xf32>, vector<128x32xf32>, vector<8x32xf32> -> vector<8x32xf32>
    %c19 = arith.constant 19 : index
    %c0_193 = arith.constant 0 : index
    %539 = vector.load %arg9[%c19, %c0_193] : memref<36x128xf32, #tpu.memory_space<vmem>>, vector<1x32xf32>
    %540 = vector.broadcast %539 : vector<1x32xf32> to vector<8x32xf32>
    %541 = arith.addf %538, %540 : vector<8x32xf32>
    %542 = arith.addf %492, %541 : vector<8x32xf32>
    %c20 = arith.constant 20 : index
    %c0_194 = arith.constant 0 : index
    %543 = vector.load %arg9[%c20, %c0_194] : memref<36x128xf32, #tpu.memory_space<vmem>>, vector<1x32xf32>
    %c21 = arith.constant 21 : index
    %c0_195 = arith.constant 0 : index
    %544 = vector.load %arg9[%c21, %c0_195] : memref<36x128xf32, #tpu.memory_space<vmem>>, vector<1x32xf32>
    %cst_196 = arith.constant dense<0.000000e+00> : vector<8xf32>
    %545 = vector.multi_reduction <add>, %542, %cst_196 [1] : vector<8x32xf32> to vector<8xf32>
    %546 = vector.shape_cast %545 : vector<8xf32> to vector<8x1xf32>
    %cst_197 = arith.constant 3.200000e+01 : f32
    %547 = vector.broadcast %cst_197 : f32 to vector<8x1xf32>
    %548 = arith.divf %546, %547 : vector<8x1xf32>
    %549 = vector.broadcast %548 : vector<8x1xf32> to vector<8x32xf32>
    %550 = arith.subf %542, %549 : vector<8x32xf32>
    %551 = arith.mulf %550, %550 : vector<8x32xf32>
    %cst_198 = arith.constant dense<0.000000e+00> : vector<8xf32>
    %552 = vector.multi_reduction <add>, %551, %cst_198 [1] : vector<8x32xf32> to vector<8xf32>
    %553 = vector.shape_cast %552 : vector<8xf32> to vector<8x1xf32>
    %cst_199 = arith.constant 3.200000e+01 : f32
    %554 = vector.broadcast %cst_199 : f32 to vector<8x1xf32>
    %555 = arith.divf %553, %554 : vector<8x1xf32>
    %556 = vector.broadcast %548 : vector<8x1xf32> to vector<8x32xf32>
    %557 = arith.subf %542, %556 : vector<8x32xf32>
    %cst_200 = arith.constant 9.99999974E-6 : f32
    %558 = vector.broadcast %cst_200 : f32 to vector<8x1xf32>
    %559 = arith.addf %555, %558 : vector<8x1xf32>
    %560 = math.rsqrt %559 : vector<8x1xf32>
    %561 = vector.broadcast %560 : vector<8x1xf32> to vector<8x32xf32>
    %562 = arith.mulf %557, %561 : vector<8x32xf32>
    %563 = vector.broadcast %543 : vector<1x32xf32> to vector<8x32xf32>
    %564 = arith.mulf %562, %563 : vector<8x32xf32>
    %565 = vector.broadcast %544 : vector<1x32xf32> to vector<8x32xf32>
    %566 = arith.addf %564, %565 : vector<8x32xf32>
    %c3_201 = arith.constant 3 : index
    %c0_202 = arith.constant 0 : index
    %c0_203 = arith.constant 0 : index
    %567 = vector.load %arg4[%c3_201, %c0_202, %c0_203] : memref<4x32x96xf32, #tpu.memory_space<vmem>>, vector<1x32x96xf32>
    %568 = vector.shape_cast %567 : vector<1x32x96xf32> to vector<32x96xf32>
    %cst_204 = arith.constant dense<0.000000e+00> : vector<8x96xf32>
    %569 = tpu.matmul %566, %568, %cst_204 {dimension_numbers = #tpu.dot_dimension_numbers<[1], [0], [0], [1], [0, 0, 1, 1], [], []>} : vector<8x32xf32>, vector<32x96xf32>, vector<8x96xf32> -> vector<8x96xf32>
    %c24 = arith.constant 24 : index
    %c0_205 = arith.constant 0 : index
    %570 = vector.load %arg9[%c24, %c0_205] : memref<36x128xf32, #tpu.memory_space<vmem>>, vector<1x96xf32>
    %571 = vector.broadcast %570 : vector<1x96xf32> to vector<8x96xf32>
    %572 = arith.addf %569, %571 : vector<8x96xf32>
    %573 = vector.extract_strided_slice %572 {offsets = [0, 0], sizes = [8, 32], strides = [1, 1]} : vector<8x96xf32> to vector<8x32xf32>
    %574 = vector.extract_strided_slice %572 {offsets = [0, 32], sizes = [8, 32], strides = [1, 1]} : vector<8x96xf32> to vector<8x32xf32>
    %575 = vector.extract_strided_slice %572 {offsets = [0, 64], sizes = [8, 32], strides = [1, 1]} : vector<8x96xf32> to vector<8x32xf32>
    %576 = tpu.concatenate %573, %574 in 0 : vector<8x32xf32>, vector<8x32xf32> -> vector<16x32xf32>
    %577 = arith.mulf %576, %2 : vector<16x32xf32>
    %cst_206 = arith.constant dense<0.000000e+00> : vector<16x32xf32>
    %578 = tpu.matmul %576, %4, %cst_206 {dimension_numbers = #tpu.dot_dimension_numbers<[1], [0], [0], [1], [0, 0, 1, 1], [], []>} : vector<16x32xf32>, vector<32x32xf32>, vector<16x32xf32> -> vector<16x32xf32>
    %579 = arith.mulf %578, %3 : vector<16x32xf32>
    %580 = arith.addf %577, %579 : vector<16x32xf32>
    %581 = vector.extract_strided_slice %580 {offsets = [0, 0], sizes = [8, 32], strides = [1, 1]} : vector<16x32xf32> to vector<8x32xf32>
    %582 = vector.extract_strided_slice %580 {offsets = [8, 0], sizes = [8, 32], strides = [1, 1]} : vector<16x32xf32> to vector<8x32xf32>
    %583 = vector.extract_strided_slice %581 {offsets = [0, 0], sizes = [8, 8], strides = [1, 1]} : vector<8x32xf32> to vector<8x8xf32>
    %584 = vector.extract_strided_slice %581 {offsets = [0, 8], sizes = [8, 8], strides = [1, 1]} : vector<8x32xf32> to vector<8x8xf32>
    %585 = vector.extract_strided_slice %581 {offsets = [0, 16], sizes = [8, 8], strides = [1, 1]} : vector<8x32xf32> to vector<8x8xf32>
    %586 = vector.extract_strided_slice %581 {offsets = [0, 24], sizes = [8, 8], strides = [1, 1]} : vector<8x32xf32> to vector<8x8xf32>
    %587 = vector.shape_cast %583 : vector<8x8xf32> to vector<1x8x8xf32>
    %588 = vector.shape_cast %584 : vector<8x8xf32> to vector<1x8x8xf32>
    %589 = vector.shape_cast %585 : vector<8x8xf32> to vector<1x8x8xf32>
    %590 = vector.shape_cast %586 : vector<8x8xf32> to vector<1x8x8xf32>
    %591 = tpu.concatenate %587, %588, %589, %590 in 0 : vector<1x8x8xf32>, vector<1x8x8xf32>, vector<1x8x8xf32>, vector<1x8x8xf32> -> vector<4x8x8xf32>
    %592 = vector.extract_strided_slice %582 {offsets = [0, 0], sizes = [8, 8], strides = [1, 1]} : vector<8x32xf32> to vector<8x8xf32>
    %593 = vector.extract_strided_slice %582 {offsets = [0, 8], sizes = [8, 8], strides = [1, 1]} : vector<8x32xf32> to vector<8x8xf32>
    %594 = vector.extract_strided_slice %582 {offsets = [0, 16], sizes = [8, 8], strides = [1, 1]} : vector<8x32xf32> to vector<8x8xf32>
    %595 = vector.extract_strided_slice %582 {offsets = [0, 24], sizes = [8, 8], strides = [1, 1]} : vector<8x32xf32> to vector<8x8xf32>
    %596 = vector.shape_cast %592 : vector<8x8xf32> to vector<1x8x8xf32>
    %597 = vector.shape_cast %593 : vector<8x8xf32> to vector<1x8x8xf32>
    %598 = vector.shape_cast %594 : vector<8x8xf32> to vector<1x8x8xf32>
    %599 = vector.shape_cast %595 : vector<8x8xf32> to vector<1x8x8xf32>
    %600 = tpu.concatenate %596, %597, %598, %599 in 0 : vector<1x8x8xf32>, vector<1x8x8xf32>, vector<1x8x8xf32>, vector<1x8x8xf32> -> vector<4x8x8xf32>
    %601 = vector.extract_strided_slice %575 {offsets = [0, 0], sizes = [8, 8], strides = [1, 1]} : vector<8x32xf32> to vector<8x8xf32>
    %602 = vector.extract_strided_slice %575 {offsets = [0, 8], sizes = [8, 8], strides = [1, 1]} : vector<8x32xf32> to vector<8x8xf32>
    %603 = vector.extract_strided_slice %575 {offsets = [0, 16], sizes = [8, 8], strides = [1, 1]} : vector<8x32xf32> to vector<8x8xf32>
    %604 = vector.extract_strided_slice %575 {offsets = [0, 24], sizes = [8, 8], strides = [1, 1]} : vector<8x32xf32> to vector<8x8xf32>
    %605 = vector.shape_cast %601 : vector<8x8xf32> to vector<1x8x8xf32>
    %606 = vector.shape_cast %602 : vector<8x8xf32> to vector<1x8x8xf32>
    %607 = vector.shape_cast %603 : vector<8x8xf32> to vector<1x8x8xf32>
    %608 = vector.shape_cast %604 : vector<8x8xf32> to vector<1x8x8xf32>
    %609 = tpu.concatenate %605, %606, %607, %608 in 0 : vector<1x8x8xf32>, vector<1x8x8xf32>, vector<1x8x8xf32>, vector<1x8x8xf32> -> vector<4x8x8xf32>
    "tpu.trace_start"() <{level = 10 : i32, message = "hqd,hkd->hqk"}> : () -> ()
    %cst_207 = arith.constant dense<0.000000e+00> : vector<4x8x8xf32>
    %610 = tpu.matmul %591, %600, %cst_207 {dimension_numbers = #tpu.dot_dimension_numbers<[2], [2], [1], [1], [0, 0, 0, 1, 1, 1], [0], [0]>} : vector<4x8x8xf32>, vector<4x8x8xf32>, vector<4x8x8xf32> -> vector<4x8x8xf32>
    "tpu.trace_stop"() : () -> ()
    %cst_208 = arith.constant 0.353553385 : f32
    %611 = vector.broadcast %cst_208 : f32 to vector<4x8x8xf32>
    %612 = arith.mulf %610, %611 : vector<4x8x8xf32>
    %cst_209 = arith.constant dense<0xFF800000> : vector<4x8xf32>
    %613 = vector.multi_reduction <maximumf>, %612, %cst_209 [2] : vector<4x8x8xf32> to vector<4x8xf32>
    %614 = vector.shape_cast %613 : vector<4x8xf32> to vector<4x8x1xf32>
    %615 = vector.broadcast %614 : vector<4x8x1xf32> to vector<4x8x8xf32>
    %616 = arith.subf %612, %615 : vector<4x8x8xf32>
    %617 = math.exp %616 : vector<4x8x8xf32>
    %cst_210 = arith.constant dense<0.000000e+00> : vector<4x8xf32>
    %618 = vector.multi_reduction <add>, %617, %cst_210 [2] : vector<4x8x8xf32> to vector<4x8xf32>
    %619 = vector.shape_cast %618 : vector<4x8xf32> to vector<4x8x1xf32>
    %620 = tpu.reciprocal %619 {approx = true} : vector<4x8x1xf32> -> vector<4x8x1xf32>
    %621 = vector.broadcast %620 : vector<4x8x1xf32> to vector<4x8x8xf32>
    %622 = arith.mulf %617, %621 : vector<4x8x8xf32>
    "tpu.trace_start"() <{level = 10 : i32, message = "hqk,hkd->hqd"}> : () -> ()
    %cst_211 = arith.constant dense<0.000000e+00> : vector<4x8x8xf32>
    %623 = tpu.matmul %622, %609, %cst_211 {dimension_numbers = #tpu.dot_dimension_numbers<[2], [1], [1], [2], [0, 0, 0, 1, 1, 2], [0], [0]>} : vector<4x8x8xf32>, vector<4x8x8xf32>, vector<4x8x8xf32> -> vector<4x8x8xf32>
    "tpu.trace_stop"() : () -> ()
    %624 = vector.extract_strided_slice %623 {offsets = [0, 0, 0], sizes = [1, 8, 8], strides = [1, 1, 1]} : vector<4x8x8xf32> to vector<1x8x8xf32>
    %625 = vector.shape_cast %624 : vector<1x8x8xf32> to vector<8x8xf32>
    %626 = vector.extract_strided_slice %623 {offsets = [1, 0, 0], sizes = [1, 8, 8], strides = [1, 1, 1]} : vector<4x8x8xf32> to vector<1x8x8xf32>
    %627 = vector.shape_cast %626 : vector<1x8x8xf32> to vector<8x8xf32>
    %628 = vector.extract_strided_slice %623 {offsets = [2, 0, 0], sizes = [1, 8, 8], strides = [1, 1, 1]} : vector<4x8x8xf32> to vector<1x8x8xf32>
    %629 = vector.shape_cast %628 : vector<1x8x8xf32> to vector<8x8xf32>
    %630 = vector.extract_strided_slice %623 {offsets = [3, 0, 0], sizes = [1, 8, 8], strides = [1, 1, 1]} : vector<4x8x8xf32> to vector<1x8x8xf32>
    %631 = vector.shape_cast %630 : vector<1x8x8xf32> to vector<8x8xf32>
    %632 = tpu.concatenate %625, %627, %629, %631 in 1 : vector<8x8xf32>, vector<8x8xf32>, vector<8x8xf32>, vector<8x8xf32> -> vector<8x32xf32>
    %c3_212 = arith.constant 3 : index
    %c0_213 = arith.constant 0 : index
    %c0_214 = arith.constant 0 : index
    %633 = vector.load %arg5[%c3_212, %c0_213, %c0_214] : memref<4x32x32xf32, #tpu.memory_space<vmem>>, vector<1x32x32xf32>
    %634 = vector.shape_cast %633 : vector<1x32x32xf32> to vector<32x32xf32>
    %cst_215 = arith.constant dense<0.000000e+00> : vector<8x32xf32>
    %635 = tpu.matmul %632, %634, %cst_215 {dimension_numbers = #tpu.dot_dimension_numbers<[1], [0], [0], [1], [0, 0, 1, 1], [], []>} : vector<8x32xf32>, vector<32x32xf32>, vector<8x32xf32> -> vector<8x32xf32>
    %c25 = arith.constant 25 : index
    %c0_216 = arith.constant 0 : index
    %636 = vector.load %arg9[%c25, %c0_216] : memref<36x128xf32, #tpu.memory_space<vmem>>, vector<1x32xf32>
    %637 = vector.broadcast %636 : vector<1x32xf32> to vector<8x32xf32>
    %638 = arith.addf %635, %637 : vector<8x32xf32>
    %639 = arith.addf %542, %638 : vector<8x32xf32>
    %c22 = arith.constant 22 : index
    %c0_217 = arith.constant 0 : index
    %640 = vector.load %arg9[%c22, %c0_217] : memref<36x128xf32, #tpu.memory_space<vmem>>, vector<1x32xf32>
    %c23 = arith.constant 23 : index
    %c0_218 = arith.constant 0 : index
    %641 = vector.load %arg9[%c23, %c0_218] : memref<36x128xf32, #tpu.memory_space<vmem>>, vector<1x32xf32>
    %cst_219 = arith.constant dense<0.000000e+00> : vector<8xf32>
    %642 = vector.multi_reduction <add>, %639, %cst_219 [1] : vector<8x32xf32> to vector<8xf32>
    %643 = vector.shape_cast %642 : vector<8xf32> to vector<8x1xf32>
    %cst_220 = arith.constant 3.200000e+01 : f32
    %644 = vector.broadcast %cst_220 : f32 to vector<8x1xf32>
    %645 = arith.divf %643, %644 : vector<8x1xf32>
    %646 = vector.broadcast %645 : vector<8x1xf32> to vector<8x32xf32>
    %647 = arith.subf %639, %646 : vector<8x32xf32>
    %648 = arith.mulf %647, %647 : vector<8x32xf32>
    %cst_221 = arith.constant dense<0.000000e+00> : vector<8xf32>
    %649 = vector.multi_reduction <add>, %648, %cst_221 [1] : vector<8x32xf32> to vector<8xf32>
    %650 = vector.shape_cast %649 : vector<8xf32> to vector<8x1xf32>
    %cst_222 = arith.constant 3.200000e+01 : f32
    %651 = vector.broadcast %cst_222 : f32 to vector<8x1xf32>
    %652 = arith.divf %650, %651 : vector<8x1xf32>
    %653 = vector.broadcast %645 : vector<8x1xf32> to vector<8x32xf32>
    %654 = arith.subf %639, %653 : vector<8x32xf32>
    %cst_223 = arith.constant 9.99999974E-6 : f32
    %655 = vector.broadcast %cst_223 : f32 to vector<8x1xf32>
    %656 = arith.addf %652, %655 : vector<8x1xf32>
    %657 = math.rsqrt %656 : vector<8x1xf32>
    %658 = vector.broadcast %657 : vector<8x1xf32> to vector<8x32xf32>
    %659 = arith.mulf %654, %658 : vector<8x32xf32>
    %660 = vector.broadcast %640 : vector<1x32xf32> to vector<8x32xf32>
    %661 = arith.mulf %659, %660 : vector<8x32xf32>
    %662 = vector.broadcast %641 : vector<1x32xf32> to vector<8x32xf32>
    %663 = arith.addf %661, %662 : vector<8x32xf32>
    %c3_224 = arith.constant 3 : index
    %c0_225 = arith.constant 0 : index
    %c0_226 = arith.constant 0 : index
    %664 = vector.load %arg6[%c3_224, %c0_225, %c0_226] : memref<4x32x128xf32, #tpu.memory_space<vmem>>, vector<1x32x128xf32>
    %665 = vector.shape_cast %664 : vector<1x32x128xf32> to vector<32x128xf32>
    %cst_227 = arith.constant dense<0.000000e+00> : vector<8x128xf32>
    %666 = tpu.matmul %663, %665, %cst_227 {dimension_numbers = #tpu.dot_dimension_numbers<[1], [0], [0], [1], [0, 0, 1, 1], [], []>} : vector<8x32xf32>, vector<32x128xf32>, vector<8x128xf32> -> vector<8x128xf32>
    %c26 = arith.constant 26 : index
    %c0_228 = arith.constant 0 : index
    %667 = vector.load %arg9[%c26, %c0_228] : memref<36x128xf32, #tpu.memory_space<vmem>>, vector<1x128xf32>
    %668 = vector.broadcast %667 : vector<1x128xf32> to vector<8x128xf32>
    %669 = arith.addf %666, %668 : vector<8x128xf32>
    %670 = arith.mulf %669, %669 : vector<8x128xf32>
    %671 = arith.mulf %669, %670 : vector<8x128xf32>
    %cst_229 = arith.constant 4.471500e-02 : f32
    %672 = vector.broadcast %cst_229 : f32 to vector<8x128xf32>
    %673 = arith.mulf %672, %671 : vector<8x128xf32>
    %674 = arith.addf %669, %673 : vector<8x128xf32>
    %cst_230 = arith.constant 0.797884583 : f32
    %675 = vector.broadcast %cst_230 : f32 to vector<8x128xf32>
    %676 = arith.mulf %675, %674 : vector<8x128xf32>
    %677 = math.tanh %676 : vector<8x128xf32>
    %cst_231 = arith.constant 1.000000e+00 : f32
    %678 = vector.broadcast %cst_231 : f32 to vector<8x128xf32>
    %679 = arith.addf %678, %677 : vector<8x128xf32>
    %cst_232 = arith.constant 5.000000e-01 : f32
    %680 = vector.broadcast %cst_232 : f32 to vector<8x128xf32>
    %681 = arith.mulf %680, %679 : vector<8x128xf32>
    %682 = arith.mulf %669, %681 : vector<8x128xf32>
    %c3_233 = arith.constant 3 : index
    %c0_234 = arith.constant 0 : index
    %c0_235 = arith.constant 0 : index
    %683 = vector.load %arg7[%c3_233, %c0_234, %c0_235] : memref<4x128x32xf32, #tpu.memory_space<vmem>>, vector<1x128x32xf32>
    %684 = vector.shape_cast %683 : vector<1x128x32xf32> to vector<128x32xf32>
    %cst_236 = arith.constant dense<0.000000e+00> : vector<8x32xf32>
    %685 = tpu.matmul %682, %684, %cst_236 {dimension_numbers = #tpu.dot_dimension_numbers<[1], [0], [0], [1], [0, 0, 1, 1], [], []>} : vector<8x128xf32>, vector<128x32xf32>, vector<8x32xf32> -> vector<8x32xf32>
    %c27 = arith.constant 27 : index
    %c0_237 = arith.constant 0 : index
    %686 = vector.load %arg9[%c27, %c0_237] : memref<36x128xf32, #tpu.memory_space<vmem>>, vector<1x32xf32>
    %687 = vector.broadcast %686 : vector<1x32xf32> to vector<8x32xf32>
    %688 = arith.addf %685, %687 : vector<8x32xf32>
    %689 = arith.addf %639, %688 : vector<8x32xf32>
    %c10 = arith.constant 10 : index
    %c0_238 = arith.constant 0 : index
    %690 = vector.load %arg9[%c10, %c0_238] : memref<36x128xf32, #tpu.memory_space<vmem>>, vector<1x32xf32>
    %c11 = arith.constant 11 : index
    %c0_239 = arith.constant 0 : index
    %691 = vector.load %arg9[%c11, %c0_239] : memref<36x128xf32, #tpu.memory_space<vmem>>, vector<1x32xf32>
    %cst_240 = arith.constant dense<0.000000e+00> : vector<8xf32>
    %692 = vector.multi_reduction <add>, %689, %cst_240 [1] : vector<8x32xf32> to vector<8xf32>
    %693 = vector.shape_cast %692 : vector<8xf32> to vector<8x1xf32>
    %cst_241 = arith.constant 3.200000e+01 : f32
    %694 = vector.broadcast %cst_241 : f32 to vector<8x1xf32>
    %695 = arith.divf %693, %694 : vector<8x1xf32>
    %696 = vector.broadcast %695 : vector<8x1xf32> to vector<8x32xf32>
    %697 = arith.subf %689, %696 : vector<8x32xf32>
    %698 = arith.mulf %697, %697 : vector<8x32xf32>
    %cst_242 = arith.constant dense<0.000000e+00> : vector<8xf32>
    %699 = vector.multi_reduction <add>, %698, %cst_242 [1] : vector<8x32xf32> to vector<8xf32>
    %700 = vector.shape_cast %699 : vector<8xf32> to vector<8x1xf32>
    %cst_243 = arith.constant 3.200000e+01 : f32
    %701 = vector.broadcast %cst_243 : f32 to vector<8x1xf32>
    %702 = arith.divf %700, %701 : vector<8x1xf32>
    %703 = vector.broadcast %695 : vector<8x1xf32> to vector<8x32xf32>
    %704 = arith.subf %689, %703 : vector<8x32xf32>
    %cst_244 = arith.constant 9.99999974E-6 : f32
    %705 = vector.broadcast %cst_244 : f32 to vector<8x1xf32>
    %706 = arith.addf %702, %705 : vector<8x1xf32>
    %707 = math.rsqrt %706 : vector<8x1xf32>
    %708 = vector.broadcast %707 : vector<8x1xf32> to vector<8x32xf32>
    %709 = arith.mulf %704, %708 : vector<8x32xf32>
    %710 = vector.broadcast %690 : vector<1x32xf32> to vector<8x32xf32>
    %711 = arith.mulf %709, %710 : vector<8x32xf32>
    %712 = vector.broadcast %691 : vector<1x32xf32> to vector<8x32xf32>
    %713 = arith.addf %711, %712 : vector<8x32xf32>
    %c48 = arith.constant 48 : index
    %c0_245 = arith.constant 0 : index
    %714 = vector.load %arg8[%c48, %c0_245] : memref<368x32xf32, #tpu.memory_space<vmem>>, vector<32x32xf32>
    %cst_246 = arith.constant dense<0.000000e+00> : vector<8x32xf32>
    %715 = tpu.matmul %713, %714, %cst_246 {dimension_numbers = #tpu.dot_dimension_numbers<[1], [0], [0], [1], [0, 0, 1, 1], [], []>} : vector<8x32xf32>, vector<32x32xf32>, vector<8x32xf32> -> vector<8x32xf32>
    %c9 = arith.constant 9 : index
    %c0_247 = arith.constant 0 : index
    %716 = vector.load %arg9[%c9, %c0_247] : memref<36x128xf32, #tpu.memory_space<vmem>>, vector<1x32xf32>
    %717 = vector.broadcast %716 : vector<1x32xf32> to vector<8x32xf32>
    %718 = arith.addf %715, %717 : vector<8x32xf32>
    %cst_248 = arith.constant dense<0.000000e+00> : vector<32xf32>
    %719 = vector.multi_reduction <add>, %718, %cst_248 [0] : vector<8x32xf32> to vector<32xf32>
    %720 = vector.shape_cast %719 : vector<32xf32> to vector<1x32xf32>
    %cst_249 = arith.constant 1.250000e-01 : f32
    %721 = vector.broadcast %cst_249 : f32 to vector<1x32xf32>
    %722 = arith.mulf %720, %721 : vector<1x32xf32>
    %723 = tpu.concatenate %280, %722 in 1 : vector<1x32xf32>, vector<1x32xf32> -> vector<1x64xf32>
    %c80 = arith.constant 80 : index
    %c0_250 = arith.constant 0 : index
    %724 = vector.load %arg8[%c80, %c0_250] : memref<368x32xf32, #tpu.memory_space<vmem>>, vector<64x32xf32>
    %cst_251 = arith.constant dense<0.000000e+00> : vector<1x32xf32>
    %725 = tpu.matmul %723, %724, %cst_251 {dimension_numbers = #tpu.dot_dimension_numbers<[1], [0], [0], [1], [0, 0, 1, 1], [], []>} : vector<1x64xf32>, vector<64x32xf32>, vector<1x32xf32> -> vector<1x32xf32>
    %c34 = arith.constant 34 : index
    %c0_252 = arith.constant 0 : index
    %726 = vector.load %arg9[%c34, %c0_252] : memref<36x128xf32, #tpu.memory_space<vmem>>, vector<1x32xf32>
    %727 = arith.addf %725, %726 : vector<1x32xf32>
    %cst_253 = arith.constant 0.000000e+00 : f32
    %728 = vector.broadcast %cst_253 : f32 to vector<1x32xf32>
    %729 = arith.cmpf ogt, %727, %728 : vector<1x32xf32>
    %cst_254 = arith.constant 0.000000e+00 : f32
    %730 = vector.broadcast %cst_254 : f32 to vector<1x32xf32>
    %731 = arith.minimumf %727, %730 : vector<1x32xf32>
    %732 = math.exp %731 : vector<1x32xf32>
    %cst_255 = arith.constant 1.000000e+00 : f32
    %733 = vector.broadcast %cst_255 : f32 to vector<1x32xf32>
    %734 = arith.subf %732, %733 : vector<1x32xf32>
    %735 = arith.select %729, %727, %734 : vector<1x32xi1>, vector<1x32xf32>
    %c144 = arith.constant 144 : index
    %c0_256 = arith.constant 0 : index
    %736 = vector.load %arg8[%c144, %c0_256] : memref<368x32xf32, #tpu.memory_space<vmem>>, vector<32x32xf32>
    %cst_257 = arith.constant dense<0.000000e+00> : vector<1x32xf32>
    %737 = tpu.matmul %735, %736, %cst_257 {dimension_numbers = #tpu.dot_dimension_numbers<[1], [0], [0], [1], [0, 0, 1, 1], [], []>} : vector<1x32xf32>, vector<32x32xf32>, vector<1x32xf32> -> vector<1x32xf32>
    %c35 = arith.constant 35 : index
    %c0_258 = arith.constant 0 : index
    %738 = vector.load %arg9[%c35, %c0_258] : memref<36x128xf32, #tpu.memory_space<vmem>>, vector<1x32xf32>
    %739 = arith.addf %737, %738 : vector<1x32xf32>
    %c0_259 = arith.constant 0 : index
    %c0_260 = arith.constant 0 : index
    %c0_261 = arith.constant 0 : index
    %740 = vector.load %arg10[%c0_259, %c0_260, %c0_261] : memref<1x1x32xf32, #tpu.memory_space<vmem>>, vector<1x1x32xf32>
    %741 = vector.shape_cast %740 : vector<1x1x32xf32> to vector<1x32xf32>
    %742 = vector.shape_cast %739 : vector<1x32xf32> to vector<1x1x32xf32>
    tpu.vector_store %arg10[%c0_259, %c0_260, %c0_261], %742 {strides = array<i32>} : memref<1x1x32xf32, #tpu.memory_space<vmem>>, vector<1x1x32xf32>,
    return
  }
  func.func @transform_0(%arg0: i32) -> (i32, i32, i32) {
    %c0_i32 = arith.constant 0 : i32
    %c0_i32_0 = arith.constant 0 : i32
    %c0_i32_1 = arith.constant 0 : i32
    return %arg0, %c0_i32, %c0_i32_0 : i32, i32, i32
  }
  func.func @transform_1(%arg0: i32) -> (i32, i32, i32) {
    %c0_i32 = arith.constant 0 : i32
    %c0_i32_0 = arith.constant 0 : i32
    %c0_i32_1 = arith.constant 0 : i32
    return %arg0, %c0_i32, %c0_i32_0 : i32, i32, i32
  }
  func.func @transform_2(%arg0: i32) -> (i32, i32, i32) {
    %c0_i32 = arith.constant 0 : i32
    %c0_i32_0 = arith.constant 0 : i32
    %c0_i32_1 = arith.constant 0 : i32
    return %arg0, %c0_i32, %c0_i32_0 : i32, i32, i32
  }
  func.func @transform_3(%arg0: i32) -> (i32, i32, i32) {
    %c0_i32 = arith.constant 0 : i32
    %c0_i32_0 = arith.constant 0 : i32
    %c0_i32_1 = arith.constant 0 : i32
    %c0_i32_2 = arith.constant 0 : i32
    return %c0_i32, %c0_i32_0, %c0_i32_1 : i32, i32, i32
  }
  func.func @transform_4(%arg0: i32) -> (i32, i32, i32) {
    %c0_i32 = arith.constant 0 : i32
    %c0_i32_0 = arith.constant 0 : i32
    %c0_i32_1 = arith.constant 0 : i32
    %c0_i32_2 = arith.constant 0 : i32
    return %c0_i32, %c0_i32_0, %c0_i32_1 : i32, i32, i32
  }
  func.func @transform_5(%arg0: i32) -> (i32, i32, i32) {
    %c0_i32 = arith.constant 0 : i32
    %c0_i32_0 = arith.constant 0 : i32
    %c0_i32_1 = arith.constant 0 : i32
    %c0_i32_2 = arith.constant 0 : i32
    return %c0_i32, %c0_i32_0, %c0_i32_1 : i32, i32, i32
  }
  func.func @transform_6(%arg0: i32) -> (i32, i32, i32) {
    %c0_i32 = arith.constant 0 : i32
    %c0_i32_0 = arith.constant 0 : i32
    %c0_i32_1 = arith.constant 0 : i32
    %c0_i32_2 = arith.constant 0 : i32
    return %c0_i32, %c0_i32_0, %c0_i32_1 : i32, i32, i32
  }
  func.func @transform_7(%arg0: i32) -> (i32, i32) {
    %c0_i32 = arith.constant 0 : i32
    %c0_i32_0 = arith.constant 0 : i32
    %c0_i32_1 = arith.constant 0 : i32
    return %c0_i32, %c0_i32_0 : i32, i32
  }
  func.func @transform_8(%arg0: i32) -> (i32, i32) {
    %c0_i32 = arith.constant 0 : i32
    %c0_i32_0 = arith.constant 0 : i32
    %c0_i32_1 = arith.constant 0 : i32
    return %c0_i32, %c0_i32_0 : i32, i32
  }
  func.func @transform_9(%arg0: i32) -> (i32, i32, i32) {
    %c0_i32 = arith.constant 0 : i32
    %c0_i32_0 = arith.constant 0 : i32
    %c0_i32_1 = arith.constant 0 : i32
    return %arg0, %c0_i32, %c0_i32_0 : i32, i32, i32
  }
}

</mosaic_0001>

<llo_original>
// kernel: representation_forward.1
$region0: #{representation_forward.1}
  #allocation0 [shape = 'u32[]', space=smem, size = 0x4, offset = 0x4, fixed_abs, tag = 'smem constant byte address 0x4 - core index']
  #allocation1 [shape = 'u32[144,128]{1,0:T(1,128)}', space=vmem, size = 0x12000, scoped, tag = 'internal scratch']
  %s0 = inlined_call_operand.vmem [shape: s32[2,8,1], index: 0, kind: input, shape index: {}]
  %s1 = inlined_call_operand.vmem [shape: f32[2,1,8], index: 1, kind: input, shape index: {}]
  %s2 = inlined_call_operand.vmem [shape: f32[2,16,4], index: 2, kind: input, shape index: {}]
  %s3 = inlined_call_operand.vmem [shape: f32[4,32,96], index: 3, kind: input, shape index: {}]
  %s4 = inlined_call_operand.vmem [shape: f32[4,32,32], index: 4, kind: input, shape index: {}]
  %s5 = inlined_call_operand.vmem [shape: f32[4,32,128], index: 5, kind: input, shape index: {}]
  %s6 = inlined_call_operand.vmem [shape: f32[4,128,32], index: 6, kind: input, shape index: {}]
  %s7 = inlined_call_operand.vmem [shape: f32[368,32], index: 7, kind: input, shape index: {}]
  %s8 = inlined_call_operand.vmem [shape: f32[36,128], index: 8, kind: input, shape index: {}]
  %s9 = inlined_call_operand.hbm [shape: f32[2,1,32], index: 9, kind: output, shape index: {}]
  %s10 = sld [smem:[#allocation0]]
  $region69: #{representation_forward.1} parent=0
    _
  %s12 = ssub.s32 1, %s10
  %s13 = scalar_select 0, %s12, %s10
  $region1: #{representation_forward.1} parent=0
    #allocation2 [shape = 'u8[1024]{0}', space=vmem, size = 0x400, scoped, tag = 'output window, operand 0']
    #allocation3 [shape = 's32[2]{0}', space=sflag, size = 0x8, scoped, tag = 'scoped memory for representation_forward.1']
    %14 = vsyncpa [#allocation3], 0
    %s15 = scalar_lea.sflag [#allocation3], 1
    %16 = vsyncpa %s15, 0
    loop: start=0, step=1, limit=4
    $region2: #{representation_forward.1} parent=1 // loop_pre_header
      _
    $region3: #{representation_forward.1} parent=1 // loop_header
      %s18 = sphi 0, %s22
      %p19 = scmp.ge.s32.totalorder %s18, 4
      %s28 = sphi 0, %s30
      %s31 = sphi 0, %s28
      %s32 = sphi 0, %s31
      %s48 = sphi 0, %s32
      %s54 = sphi 0, %s56
      %s57 = sphi 0, %s54
      %s58 = sphi 0, %s57
      %s74 = sphi 0, %s58
      %s80 = sphi 0, %s82
      %s83 = sphi 0, %s80
      %s84 = sphi 0, %s83
      %s100 = sphi 0, %s84
      %s104 = sphi 0, %s104
      %s106 = sphi 0, %s104
      %s107 = sphi 0, %s106
      %s121 = sphi 0, %s107
      %s125 = sphi 0, %s125
      %s127 = sphi 0, %s125
      %s128 = sphi 0, %s127
      %s142 = sphi 0, %s128
      %s146 = sphi 0, %s146
      %s148 = sphi 0, %s146
      %s149 = sphi 0, %s148
      %s163 = sphi 0, %s149
      %s167 = sphi 0, %s167
      %s169 = sphi 0, %s167
      %s170 = sphi 0, %s169
      %s184 = sphi 0, %s170
      %s188 = sphi 0, %s188
      %s190 = sphi 0, %s188
      %s191 = sphi 0, %s190
      %s205 = sphi 0, %s191
      %s209 = sphi 0, %s209
      %s211 = sphi 0, %s209
      %s212 = sphi 0, %s211
      %s226 = sphi 0, %s212
      %s232 = sphi 0, %s234
      %s235 = sphi 0, %s232
      %s236 = sphi 0, %s235
      %s252 = sphi 0, %s236
    $region4: #{representation_forward.1} parent=1 // loop_header_branch
      %21 = sbr.rel (%p19) target = $region8
    $region5: #{representation_forward.1} parent=1 // loop_body
      %s23 = ssub.s32 %s18, 1
      %s24 = ssub.s32 %s18, 2
      %s25 = sadd.s32 %s18, 1
      %s26 = ssub.s32 %s18, %s25
      %p27 = scmp.eq.s32.totalorder %s26, 0
      %s29 = sadd.s32 %s28, 1
      %s30 = scalar_select %p27, %s28, %s29
      %p33 = pneg %p27
      %p34 = scmp.eq.s32.totalorder %s18, 1
      %p35 = por %p33, %p34
      %p36 = scmp.ne.s32.totalorder %s28, %s31
      %p37 = scmp.eq.s32.totalorder %s18, 0
      %p38 = por %p36, %p37
      %p39 = scmp.ne.s32.totalorder %s28, %s31
      %p40 = scmp.eq.s32.totalorder %s23, 1
      %p41 = por %p39, %p40
      %p42 = scmp.ne.s32.totalorder %s31, %s32
      %p43 = scmp.eq.s32.totalorder %s23, 0
      %p44 = por %p42, %p43
      %p45 = scmp.ne.s32.totalorder %s31, %s32
      %p46 = scmp.eq.s32.totalorder %s24, 1
      %p47 = por %p45, %p46
      %p49 = scmp.ne.s32.totalorder %s32, %s48
      %p50 = scmp.eq.s32.totalorder %s24, 0
      %p51 = por %p49, %p50
      %s52 = ssub.s32 %s18, %s25
      %p53 = scmp.eq.s32.totalorder %s52, 0
      %s55 = sadd.s32 %s54, 1
      %s56 = scalar_select %p53, %s54, %s55
      %p59 = pneg %p53
      %p60 = scmp.eq.s32.totalorder %s18, 1
      %p61 = por %p59, %p60
      %p62 = scmp.ne.s32.totalorder %s54, %s57
      %p63 = scmp.eq.s32.totalorder %s18, 0
      %p64 = por %p62, %p63
      %p65 = scmp.ne.s32.totalorder %s54, %s57
      %p66 = scmp.eq.s32.totalorder %s23, 1
      %p67 = por %p65, %p66
      %p68 = scmp.ne.s32.totalorder %s57, %s58
      %p69 = scmp.eq.s32.totalorder %s23, 0
      %p70 = por %p68, %p69
      %p71 = scmp.ne.s32.totalorder %s57, %s58
      %p72 = scmp.eq.s32.totalorder %s24, 1
      %p73 = por %p71, %p72
      %p75 = scmp.ne.s32.totalorder %s58, %s74
      %p76 = scmp.eq.s32.totalorder %s24, 0
      %p77 = por %p75, %p76
      %s78 = ssub.s32 %s18, %s25
      %p79 = scmp.eq.s32.totalorder %s78, 0
      %s81 = sadd.s32 %s80, 1
      %s82 = scalar_select %p79, %s80, %s81
      %p85 = pneg %p79
      %p86 = scmp.eq.s32.totalorder %s18, 1
      %p87 = por %p85, %p86
      %p88 = scmp.ne.s32.totalorder %s80, %s83
      %p89 = scmp.eq.s32.totalorder %s18, 0
      %p90 = por %p88, %p89
      %p91 = scmp.ne.s32.totalorder %s80, %s83
      %p92 = scmp.eq.s32.totalorder %s23, 1
      %p93 = por %p91, %p92
      %p94 = scmp.ne.s32.totalorder %s83, %s84
      %p95 = scmp.eq.s32.totalorder %s23, 0
      %p96 = por %p94, %p95
      %p97 = scmp.ne.s32.totalorder %s83, %s84
      %p98 = scmp.eq.s32.totalorder %s24, 1
      %p99 = por %p97, %p98
      %p101 = scmp.ne.s32.totalorder %s84, %s100
      %p102 = scmp.eq.s32.totalorder %s24, 0
      %p103 = por %p101, %p102
      %s105 = sadd.s32 %s104, 1
      %p108 = scmp.eq.s32.totalorder %s18, 1
      %p109 = scmp.ne.s32.totalorder %s104, %s106
      %p110 = scmp.eq.s32.totalorder %s18, 0
      %p111 = por %p109, %p110
      %p112 = scmp.ne.s32.totalorder %s104, %s106
      %p113 = scmp.eq.s32.totalorder %s23, 1
      %p114 = por %p112, %p113
      %p115 = scmp.ne.s32.totalorder %s106, %s107
      %p116 = scmp.eq.s32.totalorder %s23, 0
      %p117 = por %p115, %p116
      %p118 = scmp.ne.s32.totalorder %s106, %s107
      %p119 = scmp.eq.s32.totalorder %s24, 1
      %p120 = por %p118, %p119
      %p122 = scmp.ne.s32.totalorder %s107, %s121
      %p123 = scmp.eq.s32.totalorder %s24, 0
      %p124 = por %p122, %p123
      %s126 = sadd.s32 %s125, 1
      %p129 = scmp.eq.s32.totalorder %s18, 1
      %p130 = scmp.ne.s32.totalorder %s125, %s127
      %p131 = scmp.eq.s32.totalorder %s18, 0
      %p132 = por %p130, %p131
      %p133 = scmp.ne.s32.totalorder %s125, %s127
      %p134 = scmp.eq.s32.totalorder %s23, 1
      %p135 = por %p133, %p134
      %p136 = scmp.ne.s32.totalorder %s127, %s128
      %p137 = scmp.eq.s32.totalorder %s23, 0
      %p138 = por %p136, %p137
      %p139 = scmp.ne.s32.totalorder %s127, %s128
      %p140 = scmp.eq.s32.totalorder %s24, 1
      %p141 = por %p139, %p140
      %p143 = scmp.ne.s32.totalorder %s128, %s142
      %p144 = scmp.eq.s32.totalorder %s24, 0
      %p145 = por %p143, %p144
      %s147 = sadd.s32 %s146, 1
      %p150 = scmp.eq.s32.totalorder %s18, 1
      %p151 = scmp.ne.s32.totalorder %s146, %s148
      %p152 = scmp.eq.s32.totalorder %s18, 0
      %p153 = por %p151, %p152
      %p154 = scmp.ne.s32.totalorder %s146, %s148
      %p155 = scmp.eq.s32.totalorder %s23, 1
      %p156 = por %p154, %p155
      %p157 = scmp.ne.s32.totalorder %s148, %s149
      %p158 = scmp.eq.s32.totalorder %s23, 0
      %p159 = por %p157, %p158
      %p160 = scmp.ne.s32.totalorder %s148, %s149
      %p161 = scmp.eq.s32.totalorder %s24, 1
      %p162 = por %p160, %p161
      %p164 = scmp.ne.s32.totalorder %s149, %s163
      %p165 = scmp.eq.s32.totalorder %s24, 0
      %p166 = por %p164, %p165
      %s168 = sadd.s32 %s167, 1
      %p171 = scmp.eq.s32.totalorder %s18, 1
      %p172 = scmp.ne.s32.totalorder %s167, %s169
      %p173 = scmp.eq.s32.totalorder %s18, 0
      %p174 = por %p172, %p173
      %p175 = scmp.ne.s32.totalorder %s167, %s169
      %p176 = scmp.eq.s32.totalorder %s23, 1
      %p177 = por %p175, %p176
      %p178 = scmp.ne.s32.totalorder %s169, %s170
      %p179 = scmp.eq.s32.totalorder %s23, 0
      %p180 = por %p178, %p179
      %p181 = scmp.ne.s32.totalorder %s169, %s170
      %p182 = scmp.eq.s32.totalorder %s24, 1
      %p183 = por %p181, %p182
      %p185 = scmp.ne.s32.totalorder %s170, %s184
      %p186 = scmp.eq.s32.totalorder %s24, 0
      %p187 = por %p185, %p186
      %s189 = sadd.s32 %s188, 1
      %p192 = scmp.eq.s32.totalorder %s18, 1
      %p193 = scmp.ne.s32.totalorder %s188, %s190
      %p194 = scmp.eq.s32.totalorder %s18, 0
      %p195 = por %p193, %p194
      %p196 = scmp.ne.s32.totalorder %s188, %s190
      %p197 = scmp.eq.s32.totalorder %s23, 1
      %p198 = por %p196, %p197
      %p199 = scmp.ne.s32.totalorder %s190, %s191
      %p200 = scmp.eq.s32.totalorder %s23, 0
      %p201 = por %p199, %p200
      %p202 = scmp.ne.s32.totalorder %s190, %s191
      %p203 = scmp.eq.s32.totalorder %s24, 1
      %p204 = por %p202, %p203
      %p206 = scmp.ne.s32.totalorder %s191, %s205
      %p207 = scmp.eq.s32.totalorder %s24, 0
      %p208 = por %p206, %p207
      %s210 = sadd.s32 %s209, 1
      %p213 = scmp.eq.s32.totalorder %s18, 1
      %p214 = scmp.ne.s32.totalorder %s209, %s211
      %p215 = scmp.eq.s32.totalorder %s18, 0
      %p216 = por %p214, %p215
      %p217 = scmp.ne.s32.totalorder %s209, %s211
      %p218 = scmp.eq.s32.totalorder %s23, 1
      %p219 = por %p217, %p218
      %p220 = scmp.ne.s32.totalorder %s211, %s212
      %p221 = scmp.eq.s32.totalorder %s23, 0
      %p222 = por %p220, %p221
      %p223 = scmp.ne.s32.totalorder %s211, %s212
      %p224 = scmp.eq.s32.totalorder %s24, 1
      %p225 = por %p223, %p224
      %p227 = scmp.ne.s32.totalorder %s212, %s226
      %p228 = scmp.eq.s32.totalorder %s24, 0
      %p229 = por %p227, %p228
      %s230 = ssub.s32 %s18, %s25
      %p231 = scmp.eq.s32.totalorder %s230, 0
      %s233 = sadd.s32 %s232, 1
      %s234 = scalar_select %p231, %s232, %s233
      %p237 = pneg %p231
      %p238 = scmp.eq.s32.totalorder %s18, 1
      %p239 = por %p237, %p238
      %p240 = scmp.ne.s32.totalorder %s232, %s235
      %p241 = scmp.eq.s32.totalorder %s18, 0
      %p242 = por %p240, %p241
      %p243 = scmp.ne.s32.totalorder %s232, %s235
      %p244 = scmp.eq.s32.totalorder %s23, 1
      %p245 = por %p243, %p244
      %p246 = scmp.ne.s32.totalorder %s235, %s236
      %p247 = scmp.eq.s32.totalorder %s23, 0
      %p248 = por %p246, %p247
      %p249 = scmp.ne.s32.totalorder %s235, %s236
      %p250 = scmp.eq.s32.totalorder %s24, 1
      %p251 = por %p249, %p250
      %p253 = scmp.ne.s32.totalorder %s236, %s252
      %p254 = scmp.eq.s32.totalorder %s24, 0
      %p255 = por %p253, %p254
      %p256 = scmp.le.s32.totalorder 1, %s18
      %p257 = scmp.lt.s32.totalorder %s18, 3
      %p258 = pnand %p256, %p257
      %p259 = pneg %p258
      // Predicated region
      $region9: #{representation_forward.1} parent=5 // pred_check
        _
      $region10: #{representation_forward.1} parent=5 // pred_check_branch
        %261 = sbr.rel (%p258) target = $region12
      $region11: #{representation_forward.1} parent=5 // pred_region
        %s262 = ssub.s32 %s18, 1
        // Predicated region
        $region13: #{representation_forward.1} parent=11 // pred_check
          %p263 = pneg %p117
        $region14: #{representation_forward.1} parent=11 // pred_check_branch
          %265 = sbr.rel (%p263) target = $region16
        $region15: #{representation_forward.1} parent=11 // pred_region
          _
        $region16: #{representation_forward.1} parent=11 // pred_fallthru
          _
        // Predicated region
        $region17: #{representation_forward.1} parent=11 // pred_check
          %p266 = pneg %p138
        $region18: #{representation_forward.1} parent=11 // pred_check_branch
          %268 = sbr.rel (%p266) target = $region20
        $region19: #{representation_forward.1} parent=11 // pred_region
          _
        $region20: #{representation_forward.1} parent=11 // pred_fallthru
          _
        // Predicated region
        $region21: #{representation_forward.1} parent=11 // pred_check
          %p269 = pneg %p159
        $region22: #{representation_forward.1} parent=11 // pred_check_branch
          %271 = sbr.rel (%p269) target = $region24
        $region23: #{representation_forward.1} parent=11 // pred_region
          _
        $region24: #{representation_forward.1} parent=11 // pred_fallthru
          _
        // Predicated region
        $region25: #{representation_forward.1} parent=11 // pred_check
          %p272 = pneg %p180
        $region26: #{representation_forward.1} parent=11 // pred_check_branch
          %274 = sbr.rel (%p272) target = $region28
        $region27: #{representation_forward.1} parent=11 // pred_region
          _
        $region28: #{representation_forward.1} parent=11 // pred_fallthru
          _
        // Predicated region
        $region29: #{representation_forward.1} parent=11 // pred_check
          %p275 = pneg %p201
        $region30: #{representation_forward.1} parent=11 // pred_check_branch
          %277 = sbr.rel (%p275) target = $region32
        $region31: #{representation_forward.1} parent=11 // pred_region
          _
        $region32: #{representation_forward.1} parent=11 // pred_fallthru
          _
        // Predicated region
        $region33: #{representation_forward.1} parent=11 // pred_check
          %p278 = pneg %p222
        $region34: #{representation_forward.1} parent=11 // pred_check_branch
          %280 = sbr.rel (%p278) target = $region36
        $region35: #{representation_forward.1} parent=11 // pred_region
          _
        $region36: #{representation_forward.1} parent=11 // pred_fallthru
          _
      $region12: #{representation_forward.1} parent=5 // pred_fallthru
        _
      %p281 = scmp.lt.s32.totalorder %s18, 2
      // Predicated region
      $region37: #{representation_forward.1} parent=5 // pred_check
        %p282 = pneg %p281
      $region38: #{representation_forward.1} parent=5 // pred_check_branch
        %284 = sbr.rel (%p282) target = $region40
      $region39: #{representation_forward.1} parent=5 // pred_region
        // Predicated region
        $region41: #{representation_forward.1} parent=39 // pred_check
          %p285 = pneg %p38
        $region42: #{representation_forward.1} parent=39 // pred_check_branch
          %287 = sbr.rel (%p285) target = $region44
        $region43: #{representation_forward.1} parent=39 // pred_region
          %p288 = scmp.lt.s32.totalorder %s18, 1
          %s289 = scalar_select %p288, %s18, 1
          %s290 = smul.addr %s289, 8
          %s291 = scalar_lea.vmem %s0, %s290
        $region44: #{representation_forward.1} parent=39 // pred_fallthru
          _
        // Predicated region
        $region45: #{representation_forward.1} parent=39 // pred_check
          %p292 = pneg %p64
        $region46: #{representation_forward.1} parent=39 // pred_check_branch
          %294 = sbr.rel (%p292) target = $region48
        $region47: #{representation_forward.1} parent=39 // pred_region
          %p295 = scmp.lt.s32.totalorder %s18, 1
          %s296 = scalar_select %p295, %s18, 1
          %s297 = scalar_lea.vmem %s1, %s296
        $region48: #{representation_forward.1} parent=39 // pred_fallthru
          _
        // Predicated region
        $region49: #{representation_forward.1} parent=39 // pred_check
          %p298 = pneg %p90
        $region50: #{representation_forward.1} parent=39 // pred_check_branch
          %300 = sbr.rel (%p298) target = $region52
        $region51: #{representation_forward.1} parent=39 // pred_region
          %p301 = scmp.lt.s32.totalorder %s18, 1
          %s302 = scalar_select %p301, %s18, 1
          %s303 = smul.addr %s302, 2
          %s304 = smul.addr %s303, 8
          %s305 = scalar_lea.vmem %s2, %s304
        $region52: #{representation_forward.1} parent=39 // pred_fallthru
          _
      $region40: #{representation_forward.1} parent=5 // pred_fallthru
        _
      %p306 = scmp.le.s32.totalorder 1, %s18
      %p307 = scmp.lt.s32.totalorder %s18, 3
      %p308 = pnand %p306, %p307
      %p309 = pneg %p308
      // Predicated region
      $region53: #{representation_forward.1} parent=5 // pred_check
        _
      $region54: #{representation_forward.1} parent=5 // pred_check_branch
        %311 = sbr.rel (%p308) target = $region56
      $region55: #{representation_forward.1} parent=5 // pred_region
        %s312 = ssub.s32 %s18, 1
        %p313 = scmp.lt.s32.totalorder %s23, 1
        %s314 = scalar_select %p313, %s23, 1
        %s315 = smul.addr %s314, 8
        %s316 = scalar_lea.vmem %s0, %s315
        %p317 = pneg %p44
        %p318 = pneg %p41
        %p319 = scmp.lt.s32.totalorder %s23, 1
        %s320 = scalar_select %p319, %s23, 1
        %s321 = scalar_lea.vmem %s1, %s320
        %p322 = pneg %p70
        %p323 = pneg %p67
        %p324 = scmp.lt.s32.totalorder %s23, 1
        %s325 = scalar_select %p324, %s23, 1
        %s326 = smul.addr %s325, 2
        %s327 = smul.addr %s326, 8
        %s328 = scalar_lea.vmem %s2, %s327
        %p329 = pneg %p96
        %p330 = pneg %p93
        %p331 = pneg %p117
        %p332 = pneg %p114
        %p333 = pneg %p138
        %p334 = pneg %p135
        %p335 = pneg %p159
        %p336 = pneg %p156
        %p337 = pneg %p180
        %p338 = pneg %p177
        %p339 = pneg %p201
        %p340 = pneg %p198
        %p341 = pneg %p222
        %p342 = pneg %p219
        %p343 = pneg %p248
        %p344 = pneg %p245
        %s345 = sand.u32 %s235, 1
        %s346 = scalar_lea.sflag [#allocation3], %s345
        %s347 = sand.u32 %s235, 1
        %s348 = scalar_lea.vmem [#allocation2], %s347
        %p349 = scmp.lt.s32.totalorder %s23, 1
        %s350 = scalar_select %p349, %s23, 1
        %s351 = smul.addr %s350, 8
        %s352 = scalar_lea.vmem %s0, %s351
        %p353 = scmp.lt.s32.totalorder %s23, 1
        %s354 = scalar_select %p353, %s23, 1
        %s355 = scalar_lea.vmem %s1, %s354
        %p356 = scmp.lt.s32.totalorder %s23, 1
        %s357 = scalar_select %p356, %s23, 1
        %s358 = smul.addr %s357, 2
        %s359 = smul.addr %s358, 8
        %s360 = scalar_lea.vmem %s2, %s359
        %v361 = vld [vmem:[%s7 + $0xd0] sm:$0xff]
        %v362 = vld [vmem:[%s7 + $0xd8] sm:$0xff]
        %v363 = vld [vmem:[%s7 + $0xb0] sm:$0xff]
        %v364 = vld [vmem:[%s7 + $0xb8] sm:$0xff]
        %v365 = vld [vmem:[%s7 + $0xc0] sm:$0xff]
        %v366 = vld [vmem:[%s7 + $0xc8] sm:$0xff]
        %v367 = vld [vmem:[%s352] sm:$0xff]
        %v368 = vlaneseq
        %v369 = vand.u32 %v368, 127
        %370 = vset.pattern.permute.xlu0 0
        %371 = vperm.xlu0 %370, %v367
        %v372 = vpop.permute.xlu0 %371
        %vm373 = vcmp.eq.s32.totalorder %v372, %v369
        %v374 = vsel %vm373, 1, 0
        %v375 = vcvt.s32.f32 %v374
        %v376 = vld [vmem:[%s7] sm:$0xff]
        %v377 = vld [vmem:[%s7 + $0x8] sm:$0xff]
        %vm378 = vcmask 130048
        %v380 = vsel %vm378, %v375, 0
        %382 = vmatprep.subr.mxu0 0.0
        %383 = vmatpush1.msra.mxu0 0.0
        %384 = vmatprep.subr.mxu0 0.0
        %385 = vmatpush1.msra.mxu0 0.0
        %386 = vmatprep.subr.mxu0 0.0
        %387 = vmatpush1.msra.mxu0 0.0
        %388 = vmatprep.subr.mxu0 0.0
        %389 = vmatpush1.msra.mxu0 0.0
        %390 = vmatprep.subr.mxu0 0.0
        %391 = vmatpush1.msra.mxu0 0.0
        %392 = vmatprep.subr.mxu0 0.0
        %393 = vmatpush1.msra.mxu0 0.0
        %394 = vmatprep.subr.mxu0 0.0
        %395 = vmatpush1.msra.mxu0 0.0
        %396 = vmatprep.subr.mxu0 0.0
        %397 = vmatpush1.msra.mxu0 0.0
        %398 = vmatprep.subr.mxu0 0.0
        %399 = vmatpush1.msra.mxu0 0.0
        %400 = vmatprep.subr.mxu0 0.0
        %401 = vmatpush1.msra.mxu0 0.0
        %402 = vmatprep.subr.mxu0 0.0
        %403 = vmatpush1.msra.mxu0 0.0
        %404 = vmatprep.subr.mxu0 0.0
        %405 = vmatpush1.msra.mxu0 0.0
        %406 = vmatprep.subr.mxu0 0.0
        %407 = vmatpush1.msra.mxu0 0.0
        %408 = vmatprep.subr.mxu0 0.0
        %409 = vmatpush1.msra.mxu0 0.0
        %410 = vmatprep.subr.mxu0 0.0
        %411 = vmatpush1.msra.mxu0 %v377
        %412 = vmatprep.subr.mxu0 0.0
        %413 = vmatpush1.msra.mxu0 %v376
        %414 = vmatprep.subr.mxu0 0.0
        %415 = vmatpush2.msra.mxu0 0.0
        %416 = vmatprep.subr.mxu0 0.0
        %417 = vmatpush2.msra.mxu0 0.0
        %418 = vmatprep.subr.mxu0 0.0
        %419 = vmatpush2.msra.mxu0 0.0
        %420 = vmatprep.subr.mxu0 0.0
        %421 = vmatpush2.msra.mxu0 0.0
        %422 = vmatprep.subr.mxu0 0.0
        %423 = vmatpush2.msra.mxu0 0.0
        %424 = vmatprep.subr.mxu0 0.0
        %425 = vmatpush2.msra.mxu0 0.0
        %426 = vmatprep.subr.mxu0 0.0
        %427 = vmatpush2.msra.mxu0 0.0
        %428 = vmatprep.subr.mxu0 0.0
        %429 = vmatpush2.msra.mxu0 0.0
        %430 = vmatprep.subr.mxu0 0.0
        %431 = vmatpush2.msra.mxu0 0.0
        %432 = vmatprep.subr.mxu0 0.0
        %433 = vmatpush2.msra.mxu0 0.0
        %434 = vmatprep.subr.mxu0 0.0
        %435 = vmatpush2.msra.mxu0 0.0
        %436 = vmatprep.subr.mxu0 0.0
        %437 = vmatpush2.msra.mxu0 0.0
        %438 = vmatprep.subr.mxu0 0.0
        %439 = vmatpush2.msra.mxu0 0.0
        %440 = vmatprep.subr.mxu0 0.0
        %441 = vmatpush2.msra.mxu0 0.0
        %442 = vmatprep.subr.mxu0 0.0
        %443 = vmatpush2.msra.mxu0 0.0
        %444 = vmatprep.subr.mxu0 0.0
        %445 = vmatpush2.msra.mxu0 0.0
        %446 = vmatprep.mubr.f32.mxu0 0.0
        %447 = vmatmul.mubr.f32.gmra.mxu0 %v380
        %v448 = vpop.f32.mrf.mxu0
        %v449 = vadd.f32 0.0, %v448
        %v450 = vpop.f32.mrf.mxu0
        %451 = vdwg.mxu0
        %v452 = vld [vmem:[%s355] sm:$0x1]
        %v453 = vsub.f32 1.0, %v452
        %v454 = vmul.f32 %v453, -1e+09
        %v455 = vmul.f32 %v449, %v449
        %vm456 = vcmask 261120
        %v457 = vsel %vm456, %v455, 0.0
        %458 = vadd.xlane.f32.xlu0 %v457
        %v459 = vpop.xlane.xlu0 %458
        %v460 = vrcp.pop 32.0
        %v461 = vmul.f32 %v459, %v460
        %v462 = vadd.f32 %v461, 1e-08
        %v463 = vrsqrt.pop %v462
        %v464 = vmul.f32 %v449, %v463
        %v465 = vld [vmem:[%s3] sm:$0xff]
        %v466 = vld [vmem:[%s3 + $0x8] sm:$0xff]
        %v467 = vld [vmem:[%s3 + $0x10] sm:$0xff]
        %v468 = vld [vmem:[%s3 + $0x18] sm:$0xff]
        %v469 = vld [vmem:[%s8] sm:$0x1]
        %v470 = vlaneseq
        %v471 = vshrl.u32 %v470, 7
        %v472 = vsub.s32 0, %v471
        %v473 = vrot.slane %v469, %v472
        %v475 = vsel %vm456, %v464, 0
        %477 = vmatprep.subr.mxu0 0.0
        %478 = vmatpush1.msra.mxu0 0.0
        %479 = vmatprep.subr.mxu0 0.0
        %480 = vmatpush1.msra.mxu0 0.0
        %481 = vmatprep.subr.mxu0 0.0
        %482 = vmatpush1.msra.mxu0 0.0
        %483 = vmatprep.subr.mxu0 0.0
        %484 = vmatpush1.msra.mxu0 0.0
        %485 = vmatprep.subr.mxu0 0.0
        %486 = vmatpush1.msra.mxu0 0.0
        %487 = vmatprep.subr.mxu0 0.0
        %488 = vmatpush1.msra.mxu0 0.0
        %489 = vmatprep.subr.mxu0 0.0
        %490 = vmatpush1.msra.mxu0 0.0
        %491 = vmatprep.subr.mxu0 0.0
        %492 = vmatpush1.msra.mxu0 0.0
        %493 = vmatprep.subr.mxu0 0.0
        %494 = vmatpush1.msra.mxu0 0.0
        %495 = vmatprep.subr.mxu0 0.0
        %496 = vmatpush1.msra.mxu0 0.0
        %497 = vmatprep.subr.mxu0 0.0
        %498 = vmatpush1.msra.mxu0 0.0
        %499 = vmatprep.subr.mxu0 0.0
        %500 = vmatpush1.msra.mxu0 0.0
        %501 = vmatprep.subr.mxu0 0.0
        %502 = vmatpush1.msra.mxu0 %v468
        %503 = vmatprep.subr.mxu0 0.0
        %504 = vmatpush1.msra.mxu0 %v467
        %505 = vmatprep.subr.mxu0 0.0
        %506 = vmatpush1.msra.mxu0 %v466
        %507 = vmatprep.subr.mxu0 0.0
        %508 = vmatpush1.msra.mxu0 %v465
        %509 = vmatprep.subr.mxu0 0.0
        %510 = vmatpush2.msra.mxu0 0.0
        %511 = vmatprep.subr.mxu0 0.0
        %512 = vmatpush2.msra.mxu0 0.0
        %513 = vmatprep.subr.mxu0 0.0
        %514 = vmatpush2.msra.mxu0 0.0
        %515 = vmatprep.subr.mxu0 0.0
        %516 = vmatpush2.msra.mxu0 0.0
        %517 = vmatprep.subr.mxu0 0.0
        %518 = vmatpush2.msra.mxu0 0.0
        %519 = vmatprep.subr.mxu0 0.0
        %520 = vmatpush2.msra.mxu0 0.0
        %521 = vmatprep.subr.mxu0 0.0
        %522 = vmatpush2.msra.mxu0 0.0
        %523 = vmatprep.subr.mxu0 0.0
        %524 = vmatpush2.msra.mxu0 0.0
        %525 = vmatprep.subr.mxu0 0.0
        %526 = vmatpush2.msra.mxu0 0.0
        %527 = vmatprep.subr.mxu0 0.0
        %528 = vmatpush2.msra.mxu0 0.0
        %529 = vmatprep.subr.mxu0 0.0
        %530 = vmatpush2.msra.mxu0 0.0
        %531 = vmatprep.subr.mxu0 0.0
        %532 = vmatpush2.msra.mxu0 0.0
        %533 = vmatprep.subr.mxu0 0.0
        %534 = vmatpush2.msra.mxu0 0.0
        %535 = vmatprep.subr.mxu0 0.0
        %536 = vmatpush2.msra.mxu0 0.0
        %537 = vmatprep.subr.mxu0 0.0
        %538 = vmatpush2.msra.mxu0 0.0
        %539 = vmatprep.subr.mxu0 0.0
        %540 = vmatpush2.msra.mxu0 0.0
        %541 = vmatprep.mubr.f32.mxu0 0.0
        %542 = vmatmul.mubr.f32.gmra.mxu0 %v475
        %v543 = vpop.f32.mrf.mxu0
        %v544 = vadd.f32 %v473, %v543
        %v545 = vpop.f32.mrf.mxu0
        %546 = vdwg.mxu0
        %548 = vrot.lane.b32.xlu0 %v544, 96
        %v549 = vpop.permute.xlu0 %548
        %v551 = vmul.f32 %v544, %v361
        %v552 = vmul.f32 %v549, %v361
        %v553 = vsel %vm456, %v544, 0
        %v555 = vsel %vm456, %v549, 0
        %557 = vmatprep.subr.mxu0 0.0
        %558 = vmatpush1.msra.mxu0 0.0
        %559 = vmatprep.subr.mxu0 0.0
        %560 = vmatpush1.msra.mxu0 0.0
        %561 = vmatprep.subr.mxu0 0.0
        %562 = vmatpush1.msra.mxu0 0.0
        %563 = vmatprep.subr.mxu0 0.0
        %564 = vmatpush1.msra.mxu0 0.0
        %565 = vmatprep.subr.mxu0 0.0
        %566 = vmatpush1.msra.mxu0 0.0
        %567 = vmatprep.subr.mxu0 0.0
        %568 = vmatpush1.msra.mxu0 0.0
        %569 = vmatprep.subr.mxu0 0.0
        %570 = vmatpush1.msra.mxu0 0.0
        %571 = vmatprep.subr.mxu0 0.0
        %572 = vmatpush1.msra.mxu0 0.0
        %573 = vmatprep.subr.mxu0 0.0
        %574 = vmatpush1.msra.mxu0 0.0
        %575 = vmatprep.subr.mxu0 0.0
        %576 = vmatpush1.msra.mxu0 0.0
        %577 = vmatprep.subr.mxu0 0.0
        %578 = vmatpush1.msra.mxu0 0.0
        %579 = vmatprep.subr.mxu0 0.0
        %580 = vmatpush1.msra.mxu0 0.0
        %581 = vmatprep.subr.mxu0 0.0
        %582 = vmatpush1.msra.mxu0 %v366
        %583 = vmatprep.subr.mxu0 0.0
        %584 = vmatpush1.msra.mxu0 %v365
        %585 = vmatprep.subr.mxu0 0.0
        %586 = vmatpush1.msra.mxu0 %v364
        %587 = vmatprep.subr.mxu0 0.0
        %588 = vmatpush1.msra.mxu0 %v363
        %589 = vmatprep.subr.mxu0 0.0
        %590 = vmatpush2.msra.mxu0 0.0
        %591 = vmatprep.subr.mxu0 0.0
        %592 = vmatpush2.msra.mxu0 0.0
        %593 = vmatprep.subr.mxu0 0.0
        %594 = vmatpush2.msra.mxu0 0.0
        %595 = vmatprep.subr.mxu0 0.0
        %596 = vmatpush2.msra.mxu0 0.0
        %597 = vmatprep.subr.mxu0 0.0
        %598 = vmatpush2.msra.mxu0 0.0
        %599 = vmatprep.subr.mxu0 0.0
        %600 = vmatpush2.msra.mxu0 0.0
        %601 = vmatprep.subr.mxu0 0.0
        %602 = vmatpush2.msra.mxu0 0.0
        %603 = vmatprep.subr.mxu0 0.0
        %604 = vmatpush2.msra.mxu0 0.0
        %605 = vmatprep.subr.mxu0 0.0
        %606 = vmatpush2.msra.mxu0 0.0
        %607 = vmatprep.subr.mxu0 0.0
        %608 = vmatpush2.msra.mxu0 0.0
        %609 = vmatprep.subr.mxu0 0.0
        %610 = vmatpush2.msra.mxu0 0.0
        %611 = vmatprep.subr.mxu0 0.0
        %612 = vmatpush2.msra.mxu0 0.0
        %613 = vmatprep.subr.mxu0 0.0
        %614 = vmatpush2.msra.mxu0 0.0
        %615 = vmatprep.subr.mxu0 0.0
        %616 = vmatpush2.msra.mxu0 0.0
        %617 = vmatprep.subr.mxu0 0.0
        %618 = vmatpush2.msra.mxu0 0.0
        %619 = vmatprep.subr.mxu0 0.0
        %620 = vmatpush2.msra.mxu0 0.0
        %621 = vmatprep.mubr.f32.mxu0 0.0
        %622 = vmatmul.mubr.f32.gmra.mxu0 %v553
        %v623 = vpop.f32.mrf.mxu0
        %v624 = vadd.f32 0.0, %v623
        %v625 = vpop.f32.mrf.mxu0
        %626 = vmatprep.mubr.f32.mxu0 0.0
        %627 = vmatmul.mubr.f32.gmra.mxu0 %v555
        %v628 = vpop.f32.mrf.mxu0
        %v629 = vadd.f32 0.0, %v628
        %v630 = vpop.f32.mrf.mxu0
        %631 = vdwg.mxu0
        %v632 = vmul.f32 %v624, %v362
        %v633 = vmul.f32 %v629, %v362
        %v634 = vadd.f32 %v551, %v632
        %v635 = vadd.f32 %v552, %v633
        %637 = vrot.lane.b32.xlu0 %v634, 120
        %v638 = vpop.permute.xlu0 %637
        %639 = vrot.lane.b32.xlu0 %v634, 112
        %v640 = vpop.permute.xlu0 %639
        %641 = vrot.lane.b32.xlu0 %v634, 104
        %v642 = vpop.permute.xlu0 %641
        %644 = vrot.lane.b32.xlu0 %v635, 120
        %v645 = vpop.permute.xlu0 %644
        %646 = vrot.lane.b32.xlu0 %v635, 112
        %v647 = vpop.permute.xlu0 %646
        %648 = vrot.lane.b32.xlu0 %v635, 104
        %v649 = vpop.permute.xlu0 %648
        %650 = vrot.lane.b32.xlu0 %v544, 120
        %v651 = vpop.permute.xlu0 %650
        %652 = vrot.lane.b32.xlu0 %v544, 112
        %v653 = vpop.permute.xlu0 %652
        %654 = vrot.lane.b32.xlu0 %v544, 104
        %v655 = vpop.permute.xlu0 %654
        %vm656 = vcmask 64512
        %v657 = vsel %vm656, %v634, 0
        %v659 = vsel %vm656, %v635, 0
        %661 = vmatprep.subr.mxu0 0.0
        %662 = vmatpush1.xpose.msra.mxu0 0.0
        %663 = vmatprep.subr.mxu0 0.0
        %664 = vmatpush1.xpose.msra.mxu0 0.0
        %665 = vmatprep.subr.mxu0 0.0
        %666 = vmatpush1.xpose.msra.mxu0 0.0
        %667 = vmatprep.subr.mxu0 0.0
        %668 = vmatpush1.xpose.msra.mxu0 0.0
        %669 = vmatprep.subr.mxu0 0.0
        %670 = vmatpush1.xpose.msra.mxu0 0.0
        %671 = vmatprep.subr.mxu0 0.0
        %672 = vmatpush1.xpose.msra.mxu0 0.0
        %673 = vmatprep.subr.mxu0 0.0
        %674 = vmatpush1.xpose.msra.mxu0 0.0
        %675 = vmatprep.subr.mxu0 0.0
        %676 = vmatpush1.xpose.msra.mxu0 0.0
        %677 = vmatprep.subr.mxu0 0.0
        %678 = vmatpush1.xpose.msra.mxu0 0.0
        %679 = vmatprep.subr.mxu0 0.0
        %680 = vmatpush1.xpose.msra.mxu0 0.0
        %681 = vmatprep.subr.mxu0 0.0
        %682 = vmatpush1.xpose.msra.mxu0 0.0
        %683 = vmatprep.subr.mxu0 0.0
        %684 = vmatpush1.xpose.msra.mxu0 0.0
        %685 = vmatprep.subr.mxu0 0.0
        %686 = vmatpush1.xpose.msra.mxu0 0.0
        %687 = vmatprep.subr.mxu0 0.0
        %688 = vmatpush1.xpose.msra.mxu0 0.0
        %689 = vmatprep.subr.mxu0 0.0
        %690 = vmatpush1.xpose.msra.mxu0 0.0
        %691 = vmatprep.subr.mxu0 0.0
        %692 = vmatpush1.xpose.msra.mxu0 %v659
        %693 = vmatprep.subr.mxu0 0.0
        %694 = vmatpush2.xpose.msra.mxu0 0.0
        %695 = vmatprep.subr.mxu0 0.0
        %696 = vmatpush2.xpose.msra.mxu0 0.0
        %697 = vmatprep.subr.mxu0 0.0
        %698 = vmatpush2.xpose.msra.mxu0 0.0
        %699 = vmatprep.subr.mxu0 0.0
        %700 = vmatpush2.xpose.msra.mxu0 0.0
        %701 = vmatprep.subr.mxu0 0.0
        %702 = vmatpush2.xpose.msra.mxu0 0.0
        %703 = vmatprep.subr.mxu0 0.0
        %704 = vmatpush2.xpose.msra.mxu0 0.0
        %705 = vmatprep.subr.mxu0 0.0
        %706 = vmatpush2.xpose.msra.mxu0 0.0
        %707 = vmatprep.subr.mxu0 0.0
        %708 = vmatpush2.xpose.msra.mxu0 0.0
        %709 = vmatprep.subr.mxu0 0.0
        %710 = vmatpush2.xpose.msra.mxu0 0.0
        %711 = vmatprep.subr.mxu0 0.0
        %712 = vmatpush2.xpose.msra.mxu0 0.0
        %713 = vmatprep.subr.mxu0 0.0
        %714 = vmatpush2.xpose.msra.mxu0 0.0
        %715 = vmatprep.subr.mxu0 0.0
        %716 = vmatpush2.xpose.msra.mxu0 0.0
        %717 = vmatprep.subr.mxu0 0.0
        %718 = vmatpush2.xpose.msra.mxu0 0.0
        %719 = vmatprep.subr.mxu0 0.0
        %720 = vmatpush2.xpose.msra.mxu0 0.0
        %721 = vmatprep.subr.mxu0 0.0
        %722 = vmatpush2.xpose.msra.mxu0 0.0
        %723 = vmatprep.subr.mxu0 0.0
        %724 = vmatpush2.xpose.msra.mxu0 0.0
        %725 = vmatprep.mubr.f32.mxu0 0.0
        %726 = vmatmul.mubr.f32.gmra.mxu0 %v657
        %v727 = vpop.f32.mrf.mxu0
        %v728 = vadd.f32 0.0, %v727
        %v729 = vpop.f32.mrf.mxu0
        %730 = vdwg.mxu0
        %v731 = vsel %vm656, %v638, 0
        %v733 = vsel %vm656, %v645, 0
        %735 = vmatprep.subr.mxu0 0.0
        %736 = vmatpush1.xpose.msra.mxu0 0.0
        %737 = vmatprep.subr.mxu0 0.0
        %738 = vmatpush1.xpose.msra.mxu0 0.0
        %739 = vmatprep.subr.mxu0 0.0
        %740 = vmatpush1.xpose.msra.mxu0 0.0
        %741 = vmatprep.subr.mxu0 0.0
        %742 = vmatpush1.xpose.msra.mxu0 0.0
        %743 = vmatprep.subr.mxu0 0.0
        %744 = vmatpush1.xpose.msra.mxu0 0.0
        %745 = vmatprep.subr.mxu0 0.0
        %746 = vmatpush1.xpose.msra.mxu0 0.0
        %747 = vmatprep.subr.mxu0 0.0
        %748 = vmatpush1.xpose.msra.mxu0 0.0
        %749 = vmatprep.subr.mxu0 0.0
        %750 = vmatpush1.xpose.msra.mxu0 0.0
        %751 = vmatprep.subr.mxu0 0.0
        %752 = vmatpush1.xpose.msra.mxu0 0.0
        %753 = vmatprep.subr.mxu0 0.0
        %754 = vmatpush1.xpose.msra.mxu0 0.0
        %755 = vmatprep.subr.mxu0 0.0
        %756 = vmatpush1.xpose.msra.mxu0 0.0
        %757 = vmatprep.subr.mxu0 0.0
        %758 = vmatpush1.xpose.msra.mxu0 0.0
        %759 = vmatprep.subr.mxu0 0.0
        %760 = vmatpush1.xpose.msra.mxu0 0.0
        %761 = vmatprep.subr.mxu0 0.0
        %762 = vmatpush1.xpose.msra.mxu0 0.0
        %763 = vmatprep.subr.mxu0 0.0
        %764 = vmatpush1.xpose.msra.mxu0 0.0
        %765 = vmatprep.subr.mxu0 0.0
        %766 = vmatpush1.xpose.msra.mxu0 %v733
        %767 = vmatprep.subr.mxu0 0.0
        %768 = vmatpush2.xpose.msra.mxu0 0.0
        %769 = vmatprep.subr.mxu0 0.0
        %770 = vmatpush2.xpose.msra.mxu0 0.0
        %771 = vmatprep.subr.mxu0 0.0
        %772 = vmatpush2.xpose.msra.mxu0 0.0
        %773 = vmatprep.subr.mxu0 0.0
        %774 = vmatpush2.xpose.msra.mxu0 0.0
        %775 = vmatprep.subr.mxu0 0.0
        %776 = vmatpush2.xpose.msra.mxu0 0.0
        %777 = vmatprep.subr.mxu0 0.0
        %778 = vmatpush2.xpose.msra.mxu0 0.0
        %779 = vmatprep.subr.mxu0 0.0
        %780 = vmatpush2.xpose.msra.mxu0 0.0
        %781 = vmatprep.subr.mxu0 0.0
        %782 = vmatpush2.xpose.msra.mxu0 0.0
        %783 = vmatprep.subr.mxu0 0.0
        %784 = vmatpush2.xpose.msra.mxu0 0.0
        %785 = vmatprep.subr.mxu0 0.0
        %786 = vmatpush2.xpose.msra.mxu0 0.0
        %787 = vmatprep.subr.mxu0 0.0
        %788 = vmatpush2.xpose.msra.mxu0 0.0
        %789 = vmatprep.subr.mxu0 0.0
        %790 = vmatpush2.xpose.msra.mxu0 0.0
        %791 = vmatprep.subr.mxu0 0.0
        %792 = vmatpush2.xpose.msra.mxu0 0.0
        %793 = vmatprep.subr.mxu0 0.0
        %794 = vmatpush2.xpose.msra.mxu0 0.0
        %795 = vmatprep.subr.mxu0 0.0
        %796 = vmatpush2.xpose.msra.mxu0 0.0
        %797 = vmatprep.subr.mxu0 0.0
        %798 = vmatpush2.xpose.msra.mxu0 0.0
        %799 = vmatprep.mubr.f32.mxu0 0.0
        %800 = vmatmul.mubr.f32.gmra.mxu0 %v731
        %v801 = vpop.f32.mrf.mxu0
        %v802 = vadd.f32 0.0, %v801
        %v803 = vpop.f32.mrf.mxu0
        %804 = vdwg.mxu0
        %v805 = vsel %vm656, %v640, 0
        %v807 = vsel %vm656, %v647, 0
        %809 = vmatprep.subr.mxu0 0.0
        %810 = vmatpush1.xpose.msra.mxu0 0.0
        %811 = vmatprep.subr.mxu0 0.0
        %812 = vmatpush1.xpose.msra.mxu0 0.0
        %813 = vmatprep.subr.mxu0 0.0
        %814 = vmatpush1.xpose.msra.mxu0 0.0
        %815 = vmatprep.subr.mxu0 0.0
        %816 = vmatpush1.xpose.msra.mxu0 0.0
        %817 = vmatprep.subr.mxu0 0.0
        %818 = vmatpush1.xpose.msra.mxu0 0.0
        %819 = vmatprep.subr.mxu0 0.0
        %820 = vmatpush1.xpose.msra.mxu0 0.0
        %821 = vmatprep.subr.mxu0 0.0
        %822 = vmatpush1.xpose.msra.mxu0 0.0
        %823 = vmatprep.subr.mxu0 0.0
        %824 = vmatpush1.xpose.msra.mxu0 0.0
        %825 = vmatprep.subr.mxu0 0.0
        %826 = vmatpush1.xpose.msra.mxu0 0.0
        %827 = vmatprep.subr.mxu0 0.0
        %828 = vmatpush1.xpose.msra.mxu0 0.0
        %829 = vmatprep.subr.mxu0 0.0
        %830 = vmatpush1.xpose.msra.mxu0 0.0
        %831 = vmatprep.subr.mxu0 0.0
        %832 = vmatpush1.xpose.msra.mxu0 0.0
        %833 = vmatprep.subr.mxu0 0.0
        %834 = vmatpush1.xpose.msra.mxu0 0.0
        %835 = vmatprep.subr.mxu0 0.0
        %836 = vmatpush1.xpose.msra.mxu0 0.0
        %837 = vmatprep.subr.mxu0 0.0
        %838 = vmatpush1.xpose.msra.mxu0 0.0
        %839 = vmatprep.subr.mxu0 0.0
        %840 = vmatpush1.xpose.msra.mxu0 %v807
        %841 = vmatprep.subr.mxu0 0.0
        %842 = vmatpush2.xpose.msra.mxu0 0.0
        %843 = vmatprep.subr.mxu0 0.0
        %844 = vmatpush2.xpose.msra.mxu0 0.0
        %845 = vmatprep.subr.mxu0 0.0
        %846 = vmatpush2.xpose.msra.mxu0 0.0
        %847 = vmatprep.subr.mxu0 0.0
        %848 = vmatpush2.xpose.msra.mxu0 0.0
        %849 = vmatprep.subr.mxu0 0.0
        %850 = vmatpush2.xpose.msra.mxu0 0.0
        %851 = vmatprep.subr.mxu0 0.0
        %852 = vmatpush2.xpose.msra.mxu0 0.0
        %853 = vmatprep.subr.mxu0 0.0
        %854 = vmatpush2.xpose.msra.mxu0 0.0
        %855 = vmatprep.subr.mxu0 0.0
        %856 = vmatpush2.xpose.msra.mxu0 0.0
        %857 = vmatprep.subr.mxu0 0.0
        %858 = vmatpush2.xpose.msra.mxu0 0.0
        %859 = vmatprep.subr.mxu0 0.0
        %860 = vmatpush2.xpose.msra.mxu0 0.0
        %861 = vmatprep.subr.mxu0 0.0
        %862 = vmatpush2.xpose.msra.mxu0 0.0
        %863 = vmatprep.subr.mxu0 0.0
        %864 = vmatpush2.xpose.msra.mxu0 0.0
        %865 = vmatprep.subr.mxu0 0.0
        %866 = vmatpush2.xpose.msra.mxu0 0.0
        %867 = vmatprep.subr.mxu0 0.0
        %868 = vmatpush2.xpose.msra.mxu0 0.0
        %869 = vmatprep.subr.mxu0 0.0
        %870 = vmatpush2.xpose.msra.mxu0 0.0
        %871 = vmatprep.subr.mxu0 0.0
        %872 = vmatpush2.xpose.msra.mxu0 0.0
        %873 = vmatprep.mubr.f32.mxu0 0.0
        %874 = vmatmul.mubr.f32.gmra.mxu0 %v805
        %v875 = vpop.f32.mrf.mxu0
        %v876 = vadd.f32 0.0, %v875
        %v877 = vpop.f32.mrf.mxu0
        %878 = vdwg.mxu0
        %v879 = vsel %vm656, %v642, 0
        %v881 = vsel %vm656, %v649, 0
        %883 = vmatprep.subr.mxu0 0.0
        %884 = vmatpush1.xpose.msra.mxu0 0.0
        %885 = vmatprep.subr.mxu0 0.0
        %886 = vmatpush1.xpose.msra.mxu0 0.0
        %887 = vmatprep.subr.mxu0 0.0
        %888 = vmatpush1.xpose.msra.mxu0 0.0
        %889 = vmatprep.subr.mxu0 0.0
        %890 = vmatpush1.xpose.msra.mxu0 0.0
        %891 = vmatprep.subr.mxu0 0.0
        %892 = vmatpush1.xpose.msra.mxu0 0.0
        %893 = vmatprep.subr.mxu0 0.0
        %894 = vmatpush1.xpose.msra.mxu0 0.0
        %895 = vmatprep.subr.mxu0 0.0
        %896 = vmatpush1.xpose.msra.mxu0 0.0
        %897 = vmatprep.subr.mxu0 0.0
        %898 = vmatpush1.xpose.msra.mxu0 0.0
        %899 = vmatprep.subr.mxu0 0.0
        %900 = vmatpush1.xpose.msra.mxu0 0.0
        %901 = vmatprep.subr.mxu0 0.0
        %902 = vmatpush1.xpose.msra.mxu0 0.0
        %903 = vmatprep.subr.mxu0 0.0
        %904 = vmatpush1.xpose.msra.mxu0 0.0
        %905 = vmatprep.subr.mxu0 0.0
        %906 = vmatpush1.xpose.msra.mxu0 0.0
        %907 = vmatprep.subr.mxu0 0.0
        %908 = vmatpush1.xpose.msra.mxu0 0.0
        %909 = vmatprep.subr.mxu0 0.0
        %910 = vmatpush1.xpose.msra.mxu0 0.0
        %911 = vmatprep.subr.mxu0 0.0
        %912 = vmatpush1.xpose.msra.mxu0 0.0
        %913 = vmatprep.subr.mxu0 0.0
        %914 = vmatpush1.xpose.msra.mxu0 %v881
        %915 = vmatprep.subr.mxu0 0.0
        %916 = vmatpush2.xpose.msra.mxu0 0.0
        %917 = vmatprep.subr.mxu0 0.0
        %918 = vmatpush2.xpose.msra.mxu0 0.0
        %919 = vmatprep.subr.mxu0 0.0
        %920 = vmatpush2.xpose.msra.mxu0 0.0
        %921 = vmatprep.subr.mxu0 0.0
        %922 = vmatpush2.xpose.msra.mxu0 0.0
        %923 = vmatprep.subr.mxu0 0.0
        %924 = vmatpush2.xpose.msra.mxu0 0.0
        %925 = vmatprep.subr.mxu0 0.0
        %926 = vmatpush2.xpose.msra.mxu0 0.0
        %927 = vmatprep.subr.mxu0 0.0
        %928 = vmatpush2.xpose.msra.mxu0 0.0
        %929 = vmatprep.subr.mxu0 0.0
        %930 = vmatpush2.xpose.msra.mxu0 0.0
        %931 = vmatprep.subr.mxu0 0.0
        %932 = vmatpush2.xpose.msra.mxu0 0.0
        %933 = vmatprep.subr.mxu0 0.0
        %934 = vmatpush2.xpose.msra.mxu0 0.0
        %935 = vmatprep.subr.mxu0 0.0
        %936 = vmatpush2.xpose.msra.mxu0 0.0
        %937 = vmatprep.subr.mxu0 0.0
        %938 = vmatpush2.xpose.msra.mxu0 0.0
        %939 = vmatprep.subr.mxu0 0.0
        %940 = vmatpush2.xpose.msra.mxu0 0.0
        %941 = vmatprep.subr.mxu0 0.0
        %942 = vmatpush2.xpose.msra.mxu0 0.0
        %943 = vmatprep.subr.mxu0 0.0
        %944 = vmatpush2.xpose.msra.mxu0 0.0
        %945 = vmatprep.subr.mxu0 0.0
        %946 = vmatpush2.xpose.msra.mxu0 0.0
        %947 = vmatprep.mubr.f32.mxu0 0.0
        %948 = vmatmul.mubr.f32.gmra.mxu0 %v879
        %v949 = vpop.f32.mrf.mxu0
        %v950 = vadd.f32 0.0, %v949
        %v951 = vpop.f32.mrf.mxu0
        %952 = vdwg.mxu0
        %v953 = vmul.f32 %v728, 0.35355338
        %v954 = vmul.f32 %v802, 0.35355338
        %v955 = vmul.f32 %v876, 0.35355338
        %v956 = vmul.f32 %v950, 0.35355338
        %v958 = vlaneseq
        %v959 = vshrl.u32 %v958, 7
        %v960 = vsub.s32 0, %v959
        %v961 = vrot.slane %v454, %v960
        %v963 = vadd.f32 %v953, %v961
        %v964 = vadd.f32 %v954, %v961
        %v965 = vadd.f32 %v955, %v961
        %v966 = vadd.f32 %v956, %v961
        %v967 = vsel %vm656, %v963, -inf
        %968 = vmax.xlane.f32.xlu0 %v967
        %v969 = vpop.xlane.xlu0 %968
        %v970 = vsel %vm656, %v964, -inf
        %971 = vmax.xlane.f32.xlu0 %v970
        %v972 = vpop.xlane.xlu0 %971
        %v973 = vsel %vm656, %v965, -inf
        %974 = vmax.xlane.f32.xlu0 %v973
        %v975 = vpop.xlane.xlu0 %974
        %v976 = vsel %vm656, %v966, -inf
        %977 = vmax.xlane.f32.xlu0 %v976
        %v978 = vpop.xlane.xlu0 %977
        %v979 = vsub.f32 %v963, %v969
        %v980 = vsub.f32 %v964, %v972
        %v981 = vsub.f32 %v965, %v975
        %v982 = vsub.f32 %v966, %v978
        %v983 = vmul.f32 %v979, 1.442695
        %v984 = vpow.pop %v983
        %v985 = vmul.f32 %v980, 1.442695
        %v986 = vpow.pop %v985
        %v987 = vmul.f32 %v981, 1.442695
        %v988 = vpow.pop %v987
        %v989 = vmul.f32 %v982, 1.442695
        %v990 = vpow.pop %v989
        %v991 = vsel %vm656, %v984, 0.0
        %992 = vadd.xlane.f32.xlu0 %v991
        %v993 = vpop.xlane.xlu0 %992
        %v994 = vsel %vm656, %v986, 0.0
        %995 = vadd.xlane.f32.xlu0 %v994
        %v996 = vpop.xlane.xlu0 %995
        %v997 = vsel %vm656, %v988, 0.0
        %998 = vadd.xlane.f32.xlu0 %v997
        %v999 = vpop.xlane.xlu0 %998
        %v1000 = vsel %vm656, %v990, 0.0
        %1001 = vadd.xlane.f32.xlu0 %v1000
        %v1002 = vpop.xlane.xlu0 %1001
        %v1003 = vrcp.pop %v993
        %v1004 = vrcp.pop %v996
        %v1005 = vrcp.pop %v999
        %v1006 = vrcp.pop %v1002
        %v1007 = vmul.f32 %v984, %v1003
        %v1008 = vmul.f32 %v986, %v1004
        %v1009 = vmul.f32 %v988, %v1005
        %v1010 = vmul.f32 %v990, %v1006
        %1011 = vrot.lane.b32.xlu0 %v544, 64
        %v1012 = vpop.permute.xlu0 %1011
        %v1015 = vsel %vm656, %v1007, 0
        %1017 = vmatprep.subr.mxu0 0.0
        %1018 = vmatpush1.msra.mxu0 0.0
        %1019 = vmatprep.subr.mxu0 0.0
        %1020 = vmatpush1.msra.mxu0 0.0
        %1021 = vmatprep.subr.mxu0 0.0
        %1022 = vmatpush1.msra.mxu0 0.0
        %1023 = vmatprep.subr.mxu0 0.0
        %1024 = vmatpush1.msra.mxu0 0.0
        %1025 = vmatprep.subr.mxu0 0.0
        %1026 = vmatpush1.msra.mxu0 0.0
        %1027 = vmatprep.subr.mxu0 0.0
        %1028 = vmatpush1.msra.mxu0 0.0
        %1029 = vmatprep.subr.mxu0 0.0
        %1030 = vmatpush1.msra.mxu0 0.0
        %1031 = vmatprep.subr.mxu0 0.0
        %1032 = vmatpush1.msra.mxu0 0.0
        %1033 = vmatprep.subr.mxu0 0.0
        %1034 = vmatpush1.msra.mxu0 0.0
        %1035 = vmatprep.subr.mxu0 0.0
        %1036 = vmatpush1.msra.mxu0 0.0
        %1037 = vmatprep.subr.mxu0 0.0
        %1038 = vmatpush1.msra.mxu0 0.0
        %1039 = vmatprep.subr.mxu0 0.0
        %1040 = vmatpush1.msra.mxu0 0.0
        %1041 = vmatprep.subr.mxu0 0.0
        %1042 = vmatpush1.msra.mxu0 0.0
        %1043 = vmatprep.subr.mxu0 0.0
        %1044 = vmatpush1.msra.mxu0 0.0
        %1045 = vmatprep.subr.mxu0 0.0
        %1046 = vmatpush1.msra.mxu0 0.0
        %1047 = vmatprep.subr.mxu0 0.0
        %1048 = vmatpush1.msra.mxu0 %v1012
        %1049 = vmatprep.subr.mxu0 0.0
        %1050 = vmatpush2.msra.mxu0 0.0
        %1051 = vmatprep.subr.mxu0 0.0
        %1052 = vmatpush2.msra.mxu0 0.0
        %1053 = vmatprep.subr.mxu0 0.0
        %1054 = vmatpush2.msra.mxu0 0.0
        %1055 = vmatprep.subr.mxu0 0.0
        %1056 = vmatpush2.msra.mxu0 0.0
        %1057 = vmatprep.subr.mxu0 0.0
        %1058 = vmatpush2.msra.mxu0 0.0
        %1059 = vmatprep.subr.mxu0 0.0
        %1060 = vmatpush2.msra.mxu0 0.0
        %1061 = vmatprep.subr.mxu0 0.0
        %1062 = vmatpush2.msra.mxu0 0.0
        %1063 = vmatprep.subr.mxu0 0.0
        %1064 = vmatpush2.msra.mxu0 0.0
        %1065 = vmatprep.subr.mxu0 0.0
        %1066 = vmatpush2.msra.mxu0 0.0
        %1067 = vmatprep.subr.mxu0 0.0
        %1068 = vmatpush2.msra.mxu0 0.0
        %1069 = vmatprep.subr.mxu0 0.0
        %1070 = vmatpush2.msra.mxu0 0.0
        %1071 = vmatprep.subr.mxu0 0.0
        %1072 = vmatpush2.msra.mxu0 0.0
        %1073 = vmatprep.subr.mxu0 0.0
        %1074 = vmatpush2.msra.mxu0 0.0
        %1075 = vmatprep.subr.mxu0 0.0
        %1076 = vmatpush2.msra.mxu0 0.0
        %1077 = vmatprep.subr.mxu0 0.0
        %1078 = vmatpush2.msra.mxu0 0.0
        %1079 = vmatprep.subr.mxu0 0.0
        %1080 = vmatpush2.msra.mxu0 0.0
        %1081 = vmatprep.mubr.f32.mxu0 0.0
        %1082 = vmatmul.mubr.f32.gmra.mxu0 %v1015
        %v1083 = vpop.f32.mrf.mxu0
        %v1084 = vadd.f32 0.0, %v1083
        %v1085 = vpop.f32.mrf.mxu0
        %1086 = vdwg.mxu0
        %1087 = vrot.lane.b32.xlu0 %v651, 64
        %v1088 = vpop.permute.xlu0 %1087
        %v1091 = vsel %vm656, %v1008, 0
        %1093 = vmatprep.subr.mxu0 0.0
        %1094 = vmatpush1.msra.mxu0 0.0
        %1095 = vmatprep.subr.mxu0 0.0
        %1096 = vmatpush1.msra.mxu0 0.0
        %1097 = vmatprep.subr.mxu0 0.0
        %1098 = vmatpush1.msra.mxu0 0.0
        %1099 = vmatprep.subr.mxu0 0.0
        %1100 = vmatpush1.msra.mxu0 0.0
        %1101 = vmatprep.subr.mxu0 0.0
        %1102 = vmatpush1.msra.mxu0 0.0
        %1103 = vmatprep.subr.mxu0 0.0
        %1104 = vmatpush1.msra.mxu0 0.0
        %1105 = vmatprep.subr.mxu0 0.0
        %1106 = vmatpush1.msra.mxu0 0.0
        %1107 = vmatprep.subr.mxu0 0.0
        %1108 = vmatpush1.msra.mxu0 0.0
        %1109 = vmatprep.subr.mxu0 0.0
        %1110 = vmatpush1.msra.mxu0 0.0
        %1111 = vmatprep.subr.mxu0 0.0
        %1112 = vmatpush1.msra.mxu0 0.0
        %1113 = vmatprep.subr.mxu0 0.0
        %1114 = vmatpush1.msra.mxu0 0.0
        %1115 = vmatprep.subr.mxu0 0.0
        %1116 = vmatpush1.msra.mxu0 0.0
        %1117 = vmatprep.subr.mxu0 0.0
        %1118 = vmatpush1.msra.mxu0 0.0
        %1119 = vmatprep.subr.mxu0 0.0
        %1120 = vmatpush1.msra.mxu0 0.0
        %1121 = vmatprep.subr.mxu0 0.0
        %1122 = vmatpush1.msra.mxu0 0.0
        %1123 = vmatprep.subr.mxu0 0.0
        %1124 = vmatpush1.msra.mxu0 %v1088
        %1125 = vmatprep.subr.mxu0 0.0
        %1126 = vmatpush2.msra.mxu0 0.0
        %1127 = vmatprep.subr.mxu0 0.0
        %1128 = vmatpush2.msra.mxu0 0.0
        %1129 = vmatprep.subr.mxu0 0.0
        %1130 = vmatpush2.msra.mxu0 0.0
        %1131 = vmatprep.subr.mxu0 0.0
        %1132 = vmatpush2.msra.mxu0 0.0
        %1133 = vmatprep.subr.mxu0 0.0
        %1134 = vmatpush2.msra.mxu0 0.0
        %1135 = vmatprep.subr.mxu0 0.0
        %1136 = vmatpush2.msra.mxu0 0.0
        %1137 = vmatprep.subr.mxu0 0.0
        %1138 = vmatpush2.msra.mxu0 0.0
        %1139 = vmatprep.subr.mxu0 0.0
        %1140 = vmatpush2.msra.mxu0 0.0
        %1141 = vmatprep.subr.mxu0 0.0
        %1142 = vmatpush2.msra.mxu0 0.0
        %1143 = vmatprep.subr.mxu0 0.0
        %1144 = vmatpush2.msra.mxu0 0.0
        %1145 = vmatprep.subr.mxu0 0.0
        %1146 = vmatpush2.msra.mxu0 0.0
        %1147 = vmatprep.subr.mxu0 0.0
        %1148 = vmatpush2.msra.mxu0 0.0
        %1149 = vmatprep.subr.mxu0 0.0
        %1150 = vmatpush2.msra.mxu0 0.0
        %1151 = vmatprep.subr.mxu0 0.0
        %1152 = vmatpush2.msra.mxu0 0.0
        %1153 = vmatprep.subr.mxu0 0.0
        %1154 = vmatpush2.msra.mxu0 0.0
        %1155 = vmatprep.subr.mxu0 0.0
        %1156 = vmatpush2.msra.mxu0 0.0
        %1157 = vmatprep.mubr.f32.mxu0 0.0
        %1158 = vmatmul.mubr.f32.gmra.mxu0 %v1091
        %v1159 = vpop.f32.mrf.mxu0
        %v1160 = vadd.f32 0.0, %v1159
        %v1161 = vpop.f32.mrf.mxu0
        %1162 = vdwg.mxu0
        %1163 = vrot.lane.b32.xlu0 %v653, 64
        %v1164 = vpop.permute.xlu0 %1163
        %v1167 = vsel %vm656, %v1009, 0
        %1169 = vmatprep.subr.mxu0 0.0
        %1170 = vmatpush1.msra.mxu0 0.0
        %1171 = vmatprep.subr.mxu0 0.0
        %1172 = vmatpush1.msra.mxu0 0.0
        %1173 = vmatprep.subr.mxu0 0.0
        %1174 = vmatpush1.msra.mxu0 0.0
        %1175 = vmatprep.subr.mxu0 0.0
        %1176 = vmatpush1.msra.mxu0 0.0
        %1177 = vmatprep.subr.mxu0 0.0
        %1178 = vmatpush1.msra.mxu0 0.0
        %1179 = vmatprep.subr.mxu0 0.0
        %1180 = vmatpush1.msra.mxu0 0.0
        %1181 = vmatprep.subr.mxu0 0.0
        %1182 = vmatpush1.msra.mxu0 0.0
        %1183 = vmatprep.subr.mxu0 0.0
        %1184 = vmatpush1.msra.mxu0 0.0
        %1185 = vmatprep.subr.mxu0 0.0
        %1186 = vmatpush1.msra.mxu0 0.0
        %1187 = vmatprep.subr.mxu0 0.0
        %1188 = vmatpush1.msra.mxu0 0.0
        %1189 = vmatprep.subr.mxu0 0.0
        %1190 = vmatpush1.msra.mxu0 0.0
        %1191 = vmatprep.subr.mxu0 0.0
        %1192 = vmatpush1.msra.mxu0 0.0
        %1193 = vmatprep.subr.mxu0 0.0
        %1194 = vmatpush1.msra.mxu0 0.0
        %1195 = vmatprep.subr.mxu0 0.0
        %1196 = vmatpush1.msra.mxu0 0.0
        %1197 = vmatprep.subr.mxu0 0.0
        %1198 = vmatpush1.msra.mxu0 0.0
        %1199 = vmatprep.subr.mxu0 0.0
        %1200 = vmatpush1.msra.mxu0 %v1164
        %1201 = vmatprep.subr.mxu0 0.0
        %1202 = vmatpush2.msra.mxu0 0.0
        %1203 = vmatprep.subr.mxu0 0.0
        %1204 = vmatpush2.msra.mxu0 0.0
        %1205 = vmatprep.subr.mxu0 0.0
        %1206 = vmatpush2.msra.mxu0 0.0
        %1207 = vmatprep.subr.mxu0 0.0
        %1208 = vmatpush2.msra.mxu0 0.0
        %1209 = vmatprep.subr.mxu0 0.0
        %1210 = vmatpush2.msra.mxu0 0.0
        %1211 = vmatprep.subr.mxu0 0.0
        %1212 = vmatpush2.msra.mxu0 0.0
        %1213 = vmatprep.subr.mxu0 0.0
        %1214 = vmatpush2.msra.mxu0 0.0
        %1215 = vmatprep.subr.mxu0 0.0
        %1216 = vmatpush2.msra.mxu0 0.0
        %1217 = vmatprep.subr.mxu0 0.0
        %1218 = vmatpush2.msra.mxu0 0.0
        %1219 = vmatprep.subr.mxu0 0.0
        %1220 = vmatpush2.msra.mxu0 0.0
        %1221 = vmatprep.subr.mxu0 0.0
        %1222 = vmatpush2.msra.mxu0 0.0
        %1223 = vmatprep.subr.mxu0 0.0
        %1224 = vmatpush2.msra.mxu0 0.0
        %1225 = vmatprep.subr.mxu0 0.0
        %1226 = vmatpush2.msra.mxu0 0.0
        %1227 = vmatprep.subr.mxu0 0.0
        %1228 = vmatpush2.msra.mxu0 0.0
        %1229 = vmatprep.subr.mxu0 0.0
        %1230 = vmatpush2.msra.mxu0 0.0
        %1231 = vmatprep.subr.mxu0 0.0
        %1232 = vmatpush2.msra.mxu0 0.0
        %1233 = vmatprep.mubr.f32.mxu0 0.0
        %1234 = vmatmul.mubr.f32.gmra.mxu0 %v1167
        %v1235 = vpop.f32.mrf.mxu0
        %v1236 = vadd.f32 0.0, %v1235
        %v1237 = vpop.f32.mrf.mxu0
        %1238 = vdwg.mxu0
        %1239 = vrot.lane.b32.xlu0 %v655, 64
        %v1240 = vpop.permute.xlu0 %1239
        %v1243 = vsel %vm656, %v1010, 0
        %1245 = vmatprep.subr.mxu0 0.0
        %1246 = vmatpush1.msra.mxu0 0.0
        %1247 = vmatprep.subr.mxu0 0.0
        %1248 = vmatpush1.msra.mxu0 0.0
        %1249 = vmatprep.subr.mxu0 0.0
        %1250 = vmatpush1.msra.mxu0 0.0
        %1251 = vmatprep.subr.mxu0 0.0
        %1252 = vmatpush1.msra.mxu0 0.0
        %1253 = vmatprep.subr.mxu0 0.0
        %1254 = vmatpush1.msra.mxu0 0.0
        %1255 = vmatprep.subr.mxu0 0.0
        %1256 = vmatpush1.msra.mxu0 0.0
        %1257 = vmatprep.subr.mxu0 0.0
        %1258 = vmatpush1.msra.mxu0 0.0
        %1259 = vmatprep.subr.mxu0 0.0
        %1260 = vmatpush1.msra.mxu0 0.0
        %1261 = vmatprep.subr.mxu0 0.0
        %1262 = vmatpush1.msra.mxu0 0.0
        %1263 = vmatprep.subr.mxu0 0.0
        %1264 = vmatpush1.msra.mxu0 0.0
        %1265 = vmatprep.subr.mxu0 0.0
        %1266 = vmatpush1.msra.mxu0 0.0
        %1267 = vmatprep.subr.mxu0 0.0
        %1268 = vmatpush1.msra.mxu0 0.0
        %1269 = vmatprep.subr.mxu0 0.0
        %1270 = vmatpush1.msra.mxu0 0.0
        %1271 = vmatprep.subr.mxu0 0.0
        %1272 = vmatpush1.msra.mxu0 0.0
        %1273 = vmatprep.subr.mxu0 0.0
        %1274 = vmatpush1.msra.mxu0 0.0
        %1275 = vmatprep.subr.mxu0 0.0
        %1276 = vmatpush1.msra.mxu0 %v1240
        %1277 = vmatprep.subr.mxu0 0.0
        %1278 = vmatpush2.msra.mxu0 0.0
        %1279 = vmatprep.subr.mxu0 0.0
        %1280 = vmatpush2.msra.mxu0 0.0
        %1281 = vmatprep.subr.mxu0 0.0
        %1282 = vmatpush2.msra.mxu0 0.0
        %1283 = vmatprep.subr.mxu0 0.0
        %1284 = vmatpush2.msra.mxu0 0.0
        %1285 = vmatprep.subr.mxu0 0.0
        %1286 = vmatpush2.msra.mxu0 0.0
        %1287 = vmatprep.subr.mxu0 0.0
        %1288 = vmatpush2.msra.mxu0 0.0
        %1289 = vmatprep.subr.mxu0 0.0
        %1290 = vmatpush2.msra.mxu0 0.0
        %1291 = vmatprep.subr.mxu0 0.0
        %1292 = vmatpush2.msra.mxu0 0.0
        %1293 = vmatprep.subr.mxu0 0.0
        %1294 = vmatpush2.msra.mxu0 0.0
        %1295 = vmatprep.subr.mxu0 0.0
        %1296 = vmatpush2.msra.mxu0 0.0
        %1297 = vmatprep.subr.mxu0 0.0
        %1298 = vmatpush2.msra.mxu0 0.0
        %1299 = vmatprep.subr.mxu0 0.0
        %1300 = vmatpush2.msra.mxu0 0.0
        %1301 = vmatprep.subr.mxu0 0.0
        %1302 = vmatpush2.msra.mxu0 0.0
        %1303 = vmatprep.subr.mxu0 0.0
        %1304 = vmatpush2.msra.mxu0 0.0
        %1305 = vmatprep.subr.mxu0 0.0
        %1306 = vmatpush2.msra.mxu0 0.0
        %1307 = vmatprep.subr.mxu0 0.0
        %1308 = vmatpush2.msra.mxu0 0.0
        %1309 = vmatprep.mubr.f32.mxu0 0.0
        %1310 = vmatmul.mubr.f32.gmra.mxu0 %v1243
        %v1311 = vpop.f32.mrf.mxu0
        %v1312 = vadd.f32 0.0, %v1311
        %v1313 = vpop.f32.mrf.mxu0
        %1314 = vdwg.mxu0
        %1316 = vrot.lane.b32.xlu0 %v1160, 8
        %v1317 = vpop.permute.xlu0 %1316
        %1320 = vrot.lane.b32.xlu0 %v1236, 16
        %v1321 = vpop.permute.xlu0 %1320
        %1324 = vrot.lane.b32.xlu0 %v1312, 24
        %v1325 = vpop.permute.xlu0 %1324
        %v1327 = vsel %vm656, %v1084, %v1317
        %v1328 = vsel %vm378, %v1327, %v1321
        %vm1329 = vcmask 195584
        %v1330 = vsel %vm1329, %v1328, %v1325
        %v1331 = vld [vmem:[%s4] sm:$0xff]
        %v1332 = vld [vmem:[%s4 + $0x8] sm:$0xff]
        %v1333 = vld [vmem:[%s4 + $0x10] sm:$0xff]
        %v1334 = vld [vmem:[%s4 + $0x18] sm:$0xff]
        %v1335 = vld [vmem:[%s8 + $0x1] sm:$0x1]
        %v1336 = vlaneseq
        %v1337 = vshrl.u32 %v1336, 7
        %v1338 = vsub.s32 0, %v1337
        %v1339 = vrot.slane %v1335, %v1338
        %v1341 = vsel %vm456, %v1330, 0
        %1343 = vmatprep.subr.mxu0 0.0
        %1344 = vmatpush1.msra.mxu0 0.0
        %1345 = vmatprep.subr.mxu0 0.0
        %1346 = vmatpush1.msra.mxu0 0.0
        %1347 = vmatprep.subr.mxu0 0.0
        %1348 = vmatpush1.msra.mxu0 0.0
        %1349 = vmatprep.subr.mxu0 0.0
        %1350 = vmatpush1.msra.mxu0 0.0
        %1351 = vmatprep.subr.mxu0 0.0
        %1352 = vmatpush1.msra.mxu0 0.0
        %1353 = vmatprep.subr.mxu0 0.0
        %1354 = vmatpush1.msra.mxu0 0.0
        %1355 = vmatprep.subr.mxu0 0.0
        %1356 = vmatpush1.msra.mxu0 0.0
        %1357 = vmatprep.subr.mxu0 0.0
        %1358 = vmatpush1.msra.mxu0 0.0
        %1359 = vmatprep.subr.mxu0 0.0
        %1360 = vmatpush1.msra.mxu0 0.0
        %1361 = vmatprep.subr.mxu0 0.0
        %1362 = vmatpush1.msra.mxu0 0.0
        %1363 = vmatprep.subr.mxu0 0.0
        %1364 = vmatpush1.msra.mxu0 0.0
        %1365 = vmatprep.subr.mxu0 0.0
        %1366 = vmatpush1.msra.mxu0 0.0
        %1367 = vmatprep.subr.mxu0 0.0
        %1368 = vmatpush1.msra.mxu0 %v1334
        %1369 = vmatprep.subr.mxu0 0.0
        %1370 = vmatpush1.msra.mxu0 %v1333
        %1371 = vmatprep.subr.mxu0 0.0
        %1372 = vmatpush1.msra.mxu0 %v1332
        %1373 = vmatprep.subr.mxu0 0.0
        %1374 = vmatpush1.msra.mxu0 %v1331
        %1375 = vmatprep.subr.mxu0 0.0
        %1376 = vmatpush2.msra.mxu0 0.0
        %1377 = vmatprep.subr.mxu0 0.0
        %1378 = vmatpush2.msra.mxu0 0.0
        %1379 = vmatprep.subr.mxu0 0.0
        %1380 = vmatpush2.msra.mxu0 0.0
        %1381 = vmatprep.subr.mxu0 0.0
        %1382 = vmatpush2.msra.mxu0 0.0
        %1383 = vmatprep.subr.mxu0 0.0
        %1384 = vmatpush2.msra.mxu0 0.0
        %1385 = vmatprep.subr.mxu0 0.0
        %1386 = vmatpush2.msra.mxu0 0.0
        %1387 = vmatprep.subr.mxu0 0.0
        %1388 = vmatpush2.msra.mxu0 0.0
        %1389 = vmatprep.subr.mxu0 0.0
        %1390 = vmatpush2.msra.mxu0 0.0
        %1391 = vmatprep.subr.mxu0 0.0
        %1392 = vmatpush2.msra.mxu0 0.0
        %1393 = vmatprep.subr.mxu0 0.0
        %1394 = vmatpush2.msra.mxu0 0.0
        %1395 = vmatprep.subr.mxu0 0.0
        %1396 = vmatpush2.msra.mxu0 0.0
        %1397 = vmatprep.subr.mxu0 0.0
        %1398 = vmatpush2.msra.mxu0 0.0
        %1399 = vmatprep.subr.mxu0 0.0
        %1400 = vmatpush2.msra.mxu0 0.0
        %1401 = vmatprep.subr.mxu0 0.0
        %1402 = vmatpush2.msra.mxu0 0.0
        %1403 = vmatprep.subr.mxu0 0.0
        %1404 = vmatpush2.msra.mxu0 0.0
        %1405 = vmatprep.subr.mxu0 0.0
        %1406 = vmatpush2.msra.mxu0 0.0
        %1407 = vmatprep.mubr.f32.mxu0 0.0
        %1408 = vmatmul.mubr.f32.gmra.mxu0 %v1341
        %v1409 = vpop.f32.mrf.mxu0
        %v1410 = vadd.f32 %v1339, %v1409
        %v1411 = vpop.f32.mrf.mxu0
        %1412 = vdwg.mxu0
        %v1413 = vadd.f32 %v449, %v1410
        %v1414 = vmul.f32 %v1413, %v1413
        %v1415 = vsel %vm456, %v1414, 0.0
        %1416 = vadd.xlane.f32.xlu0 %v1415
        %v1417 = vpop.xlane.xlu0 %1416
        %v1418 = vmul.f32 %v1417, %v460
        %v1419 = vadd.f32 %v1418, 1e-08
        %v1420 = vrsqrt.pop %v1419
        %v1421 = vmul.f32 %v1413, %v1420
        %v1422 = vld [vmem:[%s5] sm:$0xff]
        %v1423 = vld [vmem:[%s5 + $0x8] sm:$0xff]
        %v1424 = vld [vmem:[%s5 + $0x10] sm:$0xff]
        %v1425 = vld [vmem:[%s5 + $0x18] sm:$0xff]
        %v1426 = vld [vmem:[%s8 + $0x2] sm:$0x1]
        %v1427 = vlaneseq
        %v1428 = vshrl.u32 %v1427, 7
        %v1429 = vsub.s32 0, %v1428
        %v1430 = vrot.slane %v1426, %v1429
        %v1432 = vsel %vm456, %v1421, 0
        %1434 = vmatprep.subr.mxu0 0.0
        %1435 = vmatpush1.msra.mxu0 0.0
        %1436 = vmatprep.subr.mxu0 0.0
        %1437 = vmatpush1.msra.mxu0 0.0
        %1438 = vmatprep.subr.mxu0 0.0
        %1439 = vmatpush1.msra.mxu0 0.0
        %1440 = vmatprep.subr.mxu0 0.0
        %1441 = vmatpush1.msra.mxu0 0.0
        %1442 = vmatprep.subr.mxu0 0.0
        %1443 = vmatpush1.msra.mxu0 0.0
        %1444 = vmatprep.subr.mxu0 0.0
        %1445 = vmatpush1.msra.mxu0 0.0
        %1446 = vmatprep.subr.mxu0 0.0
        %1447 = vmatpush1.msra.mxu0 0.0
        %1448 = vmatprep.subr.mxu0 0.0
        %1449 = vmatpush1.msra.mxu0 0.0
        %1450 = vmatprep.subr.mxu0 0.0
        %1451 = vmatpush1.msra.mxu0 0.0
        %1452 = vmatprep.subr.mxu0 0.0
        %1453 = vmatpush1.msra.mxu0 0.0
        %1454 = vmatprep.subr.mxu0 0.0
        %1455 = vmatpush1.msra.mxu0 0.0
        %1456 = vmatprep.subr.mxu0 0.0
        %1457 = vmatpush1.msra.mxu0 0.0
        %1458 = vmatprep.subr.mxu0 0.0
        %1459 = vmatpush1.msra.mxu0 %v1425
        %1460 = vmatprep.subr.mxu0 0.0
        %1461 = vmatpush1.msra.mxu0 %v1424
        %1462 = vmatprep.subr.mxu0 0.0
        %1463 = vmatpush1.msra.mxu0 %v1423
        %1464 = vmatprep.subr.mxu0 0.0
        %1465 = vmatpush1.msra.mxu0 %v1422
        %1466 = vmatprep.subr.mxu0 0.0
        %1467 = vmatpush2.msra.mxu0 0.0
        %1468 = vmatprep.subr.mxu0 0.0
        %1469 = vmatpush2.msra.mxu0 0.0
        %1470 = vmatprep.subr.mxu0 0.0
        %1471 = vmatpush2.msra.mxu0 0.0
        %1472 = vmatprep.subr.mxu0 0.0
        %1473 = vmatpush2.msra.mxu0 0.0
        %1474 = vmatprep.subr.mxu0 0.0
        %1475 = vmatpush2.msra.mxu0 0.0
        %1476 = vmatprep.subr.mxu0 0.0
        %1477 = vmatpush2.msra.mxu0 0.0
        %1478 = vmatprep.subr.mxu0 0.0
        %1479 = vmatpush2.msra.mxu0 0.0
        %1480 = vmatprep.subr.mxu0 0.0
        %1481 = vmatpush2.msra.mxu0 0.0
        %1482 = vmatprep.subr.mxu0 0.0
        %1483 = vmatpush2.msra.mxu0 0.0
        %1484 = vmatprep.subr.mxu0 0.0
        %1485 = vmatpush2.msra.mxu0 0.0
        %1486 = vmatprep.subr.mxu0 0.0
        %1487 = vmatpush2.msra.mxu0 0.0
        %1488 = vmatprep.subr.mxu0 0.0
        %1489 = vmatpush2.msra.mxu0 0.0
        %1490 = vmatprep.subr.mxu0 0.0
        %1491 = vmatpush2.msra.mxu0 0.0
        %1492 = vmatprep.subr.mxu0 0.0
        %1493 = vmatpush2.msra.mxu0 0.0
        %1494 = vmatprep.subr.mxu0 0.0
        %1495 = vmatpush2.msra.mxu0 0.0
        %1496 = vmatprep.subr.mxu0 0.0
        %1497 = vmatpush2.msra.mxu0 0.0
        %1498 = vmatprep.mubr.f32.mxu0 0.0
        %1499 = vmatmul.mubr.f32.gmra.mxu0 %v1432
        %v1500 = vpop.f32.mrf.mxu0
        %v1501 = vadd.f32 %v1430, %v1500
        %v1502 = vpop.f32.mrf.mxu0
        %1503 = vdwg.mxu0
        %v1504 = vmul.f32 %v1501, %v1501
        %v1505 = vmul.f32 %v1501, %v1504
        %v1506 = vmul.f32 %v1505, 0.044715
        %v1507 = vadd.f32 %v1501, %v1506
        %v1508 = vmul.f32 %v1507, 0.7978846
        %v1509 = vtanh.pop %v1508
        %v1510 = vadd.f32 %v1509, 1.0
        %v1511 = vmul.f32 %v1510, 0.5
        %v1512 = vmul.f32 %v1501, %v1511
        %v1513 = vld [vmem:[%s6] sm:$0xff]
        %v1514 = vld [vmem:[%s6 + $0x8] sm:$0xff]
        %v1515 = vld [vmem:[%s6 + $0x10] sm:$0xff]
        %v1516 = vld [vmem:[%s6 + $0x18] sm:$0xff]
        %v1517 = vld [vmem:[%s6 + $0x20] sm:$0xff]
        %v1518 = vld [vmem:[%s6 + $0x28] sm:$0xff]
        %v1519 = vld [vmem:[%s6 + $0x30] sm:$0xff]
        %v1520 = vld [vmem:[%s6 + $0x38] sm:$0xff]
        %v1521 = vld [vmem:[%s6 + $0x40] sm:$0xff]
        %v1522 = vld [vmem:[%s6 + $0x48] sm:$0xff]
        %v1523 = vld [vmem:[%s6 + $0x50] sm:$0xff]
        %v1524 = vld [vmem:[%s6 + $0x58] sm:$0xff]
        %v1525 = vld [vmem:[%s6 + $0x60] sm:$0xff]
        %v1526 = vld [vmem:[%s6 + $0x68] sm:$0xff]
        %v1527 = vld [vmem:[%s6 + $0x70] sm:$0xff]
        %v1528 = vld [vmem:[%s6 + $0x78] sm:$0xff]
        %v1529 = vld [vmem:[%s8 + $0x3] sm:$0x1]
        %v1530 = vlaneseq
        %v1531 = vshrl.u32 %v1530, 7
        %v1532 = vsub.s32 0, %v1531
        %v1533 = vrot.slane %v1529, %v1532
        %1534 = vmatprep.subr.mxu0 0.0
        %1535 = vmatpush1.msra.mxu0 %v1528
        %1536 = vmatprep.subr.mxu0 0.0
        %1537 = vmatpush1.msra.mxu0 %v1527
        %1538 = vmatprep.subr.mxu0 0.0
        %1539 = vmatpush1.msra.mxu0 %v1526
        %1540 = vmatprep.subr.mxu0 0.0
        %1541 = vmatpush1.msra.mxu0 %v1525
        %1542 = vmatprep.subr.mxu0 0.0
        %1543 = vmatpush1.msra.mxu0 %v1524
        %1544 = vmatprep.subr.mxu0 0.0
        %1545 = vmatpush1.msra.mxu0 %v1523
        %1546 = vmatprep.subr.mxu0 0.0
        %1547 = vmatpush1.msra.mxu0 %v1522
        %1548 = vmatprep.subr.mxu0 0.0
        %1549 = vmatpush1.msra.mxu0 %v1521
        %1550 = vmatprep.subr.mxu0 0.0
        %1551 = vmatpush1.msra.mxu0 %v1520
        %1552 = vmatprep.subr.mxu0 0.0
        %1553 = vmatpush1.msra.mxu0 %v1519
        %1554 = vmatprep.subr.mxu0 0.0
        %1555 = vmatpush1.msra.mxu0 %v1518
        %1556 = vmatprep.subr.mxu0 0.0
        %1557 = vmatpush1.msra.mxu0 %v1517
        %1558 = vmatprep.subr.mxu0 0.0
        %1559 = vmatpush1.msra.mxu0 %v1516
        %1560 = vmatprep.subr.mxu0 0.0
        %1561 = vmatpush1.msra.mxu0 %v1515
        %1562 = vmatprep.subr.mxu0 0.0
        %1563 = vmatpush1.msra.mxu0 %v1514
        %1564 = vmatprep.subr.mxu0 0.0
        %1565 = vmatpush1.msra.mxu0 %v1513
        %1566 = vmatprep.subr.mxu0 0.0
        %1567 = vmatpush2.msra.mxu0 0.0
        %1568 = vmatprep.subr.mxu0 0.0
        %1569 = vmatpush2.msra.mxu0 0.0
        %1570 = vmatprep.subr.mxu0 0.0
        %1571 = vmatpush2.msra.mxu0 0.0
        %1572 = vmatprep.subr.mxu0 0.0
        %1573 = vmatpush2.msra.mxu0 0.0
        %1574 = vmatprep.subr.mxu0 0.0
        %1575 = vmatpush2.msra.mxu0 0.0
        %1576 = vmatprep.subr.mxu0 0.0
        %1577 = vmatpush2.msra.mxu0 0.0
        %1578 = vmatprep.subr.mxu0 0.0
        %1579 = vmatpush2.msra.mxu0 0.0
        %1580 = vmatprep.subr.mxu0 0.0
        %1581 = vmatpush2.msra.mxu0 0.0
        %1582 = vmatprep.subr.mxu0 0.0
        %1583 = vmatpush2.msra.mxu0 0.0
        %1584 = vmatprep.subr.mxu0 0.0
        %1585 = vmatpush2.msra.mxu0 0.0
        %1586 = vmatprep.subr.mxu0 0.0
        %1587 = vmatpush2.msra.mxu0 0.0
        %1588 = vmatprep.subr.mxu0 0.0
        %1589 = vmatpush2.msra.mxu0 0.0
        %1590 = vmatprep.subr.mxu0 0.0
        %1591 = vmatpush2.msra.mxu0 0.0
        %1592 = vmatprep.subr.mxu0 0.0
        %1593 = vmatpush2.msra.mxu0 0.0
        %1594 = vmatprep.subr.mxu0 0.0
        %1595 = vmatpush2.msra.mxu0 0.0
        %1596 = vmatprep.subr.mxu0 0.0
        %1597 = vmatpush2.msra.mxu0 0.0
        %1598 = vmatprep.mubr.f32.mxu0 0.0
        %1599 = vmatmul.mubr.f32.gmra.mxu0 %v1512
        %v1600 = vpop.f32.mrf.mxu0
        %v1601 = vadd.f32 %v1533, %v1600
        %v1602 = vpop.f32.mrf.mxu0
        %1603 = vdwg.mxu0
        %v1604 = vadd.f32 %v1413, %v1601
        %v1605 = vmul.f32 %v1604, %v1604
        %v1606 = vsel %vm456, %v1605, 0.0
        %1607 = vadd.xlane.f32.xlu0 %v1606
        %v1608 = vpop.xlane.xlu0 %1607
        %v1609 = vmul.f32 %v1608, %v460
        %v1610 = vadd.f32 %v1609, 1e-08
        %v1611 = vrsqrt.pop %v1610
        %v1612 = vmul.f32 %v1604, %v1611
        %s1613 = scalar_lea.vmem %s3, 32
        %v1614 = vld [vmem:[%s1613] sm:$0xff]
        %v1615 = vld [vmem:[%s1613 + $0x8] sm:$0xff]
        %v1616 = vld [vmem:[%s1613 + $0x10] sm:$0xff]
        %v1617 = vld [vmem:[%s1613 + $0x18] sm:$0xff]
        %v1618 = vld [vmem:[%s8 + $0x4] sm:$0x1]
        %v1619 = vlaneseq
        %v1620 = vshrl.u32 %v1619, 7
        %v1621 = vsub.s32 0, %v1620
        %v1622 = vrot.slane %v1618, %v1621
        %v1624 = vsel %vm456, %v1612, 0
        %1626 = vmatprep.subr.mxu0 0.0
        %1627 = vmatpush1.msra.mxu0 0.0
        %1628 = vmatprep.subr.mxu0 0.0
        %1629 = vmatpush1.msra.mxu0 0.0
        %1630 = vmatprep.subr.mxu0 0.0
        %1631 = vmatpush1.msra.mxu0 0.0
        %1632 = vmatprep.subr.mxu0 0.0
        %1633 = vmatpush1.msra.mxu0 0.0
        %1634 = vmatprep.subr.mxu0 0.0
        %1635 = vmatpush1.msra.mxu0 0.0
        %1636 = vmatprep.subr.mxu0 0.0
        %1637 = vmatpush1.msra.mxu0 0.0
        %1638 = vmatprep.subr.mxu0 0.0
        %1639 = vmatpush1.msra.mxu0 0.0
        %1640 = vmatprep.subr.mxu0 0.0
        %1641 = vmatpush1.msra.mxu0 0.0
        %1642 = vmatprep.subr.mxu0 0.0
        %1643 = vmatpush1.msra.mxu0 0.0
        %1644 = vmatprep.subr.mxu0 0.0
        %1645 = vmatpush1.msra.mxu0 0.0
        %1646 = vmatprep.subr.mxu0 0.0
        %1647 = vmatpush1.msra.mxu0 0.0
        %1648 = vmatprep.subr.mxu0 0.0
        %1649 = vmatpush1.msra.mxu0 0.0
        %1650 = vmatprep.subr.mxu0 0.0
        %1651 = vmatpush1.msra.mxu0 %v1617
        %1652 = vmatprep.subr.mxu0 0.0
        %1653 = vmatpush1.msra.mxu0 %v1616
        %1654 = vmatprep.subr.mxu0 0.0
        %1655 = vmatpush1.msra.mxu0 %v1615
        %1656 = vmatprep.subr.mxu0 0.0
        %1657 = vmatpush1.msra.mxu0 %v1614
        %1658 = vmatprep.subr.mxu0 0.0
        %1659 = vmatpush2.msra.mxu0 0.0
        %1660 = vmatprep.subr.mxu0 0.0
        %1661 = vmatpush2.msra.mxu0 0.0
        %1662 = vmatprep.subr.mxu0 0.0
        %1663 = vmatpush2.msra.mxu0 0.0
        %1664 = vmatprep.subr.mxu0 0.0
        %1665 = vmatpush2.msra.mxu0 0.0
        %1666 = vmatprep.subr.mxu0 0.0
        %1667 = vmatpush2.msra.mxu0 0.0
        %1668 = vmatprep.subr.mxu0 0.0
        %1669 = vmatpush2.msra.mxu0 0.0
        %1670 = vmatprep.subr.mxu0 0.0
        %1671 = vmatpush2.msra.mxu0 0.0
        %1672 = vmatprep.subr.mxu0 0.0
        %1673 = vmatpush2.msra.mxu0 0.0
        %1674 = vmatprep.subr.mxu0 0.0
        %1675 = vmatpush2.msra.mxu0 0.0
        %1676 = vmatprep.subr.mxu0 0.0
        %1677 = vmatpush2.msra.mxu0 0.0
        %1678 = vmatprep.subr.mxu0 0.0
        %1679 = vmatpush2.msra.mxu0 0.0
        %1680 = vmatprep.subr.mxu0 0.0
        %1681 = vmatpush2.msra.mxu0 0.0
        %1682 = vmatprep.subr.mxu0 0.0
        %1683 = vmatpush2.msra.mxu0 0.0
        %1684 = vmatprep.subr.mxu0 0.0
        %1685 = vmatpush2.msra.mxu0 0.0
        %1686 = vmatprep.subr.mxu0 0.0
        %1687 = vmatpush2.msra.mxu0 0.0
        %1688 = vmatprep.subr.mxu0 0.0
        %1689 = vmatpush2.msra.mxu0 0.0
        %1690 = vmatprep.mubr.f32.mxu0 0.0
        %1691 = vmatmul.mubr.f32.gmra.mxu0 %v1624
        %v1692 = vpop.f32.mrf.mxu0
        %v1693 = vadd.f32 %v1622, %v1692
        %v1694 = vpop.f32.mrf.mxu0
        %1695 = vdwg.mxu0
        %1697 = vrot.lane.b32.xlu0 %v1693, 96
        %v1698 = vpop.permute.xlu0 %1697
        %v1700 = vmul.f32 %v1693, %v361
        %v1701 = vmul.f32 %v1698, %v361
        %v1702 = vsel %vm456, %v1693, 0
        %v1704 = vsel %vm456, %v1698, 0
        %1706 = vmatprep.subr.mxu0 0.0
        %1707 = vmatpush1.msra.mxu0 0.0
        %1708 = vmatprep.subr.mxu0 0.0
        %1709 = vmatpush1.msra.mxu0 0.0
        %1710 = vmatprep.subr.mxu0 0.0
        %1711 = vmatpush1.msra.mxu0 0.0
        %1712 = vmatprep.subr.mxu0 0.0
        %1713 = vmatpush1.msra.mxu0 0.0
        %1714 = vmatprep.subr.mxu0 0.0
        %1715 = vmatpush1.msra.mxu0 0.0
        %1716 = vmatprep.subr.mxu0 0.0
        %1717 = vmatpush1.msra.mxu0 0.0
        %1718 = vmatprep.subr.mxu0 0.0
        %1719 = vmatpush1.msra.mxu0 0.0
        %1720 = vmatprep.subr.mxu0 0.0
        %1721 = vmatpush1.msra.mxu0 0.0
        %1722 = vmatprep.subr.mxu0 0.0
        %1723 = vmatpush1.msra.mxu0 0.0
        %1724 = vmatprep.subr.mxu0 0.0
        %1725 = vmatpush1.msra.mxu0 0.0
        %1726 = vmatprep.subr.mxu0 0.0
        %1727 = vmatpush1.msra.mxu0 0.0
        %1728 = vmatprep.subr.mxu0 0.0
        %1729 = vmatpush1.msra.mxu0 0.0
        %1730 = vmatprep.subr.mxu0 0.0
        %1731 = vmatpush1.msra.mxu0 %v366
        %1732 = vmatprep.subr.mxu0 0.0
        %1733 = vmatpush1.msra.mxu0 %v365
        %1734 = vmatprep.subr.mxu0 0.0
        %1735 = vmatpush1.msra.mxu0 %v364
        %1736 = vmatprep.subr.mxu0 0.0
        %1737 = vmatpush1.msra.mxu0 %v363
        %1738 = vmatprep.subr.mxu0 0.0
        %1739 = vmatpush2.msra.mxu0 0.0
        %1740 = vmatprep.subr.mxu0 0.0
        %1741 = vmatpush2.msra.mxu0 0.0
        %1742 = vmatprep.subr.mxu0 0.0
        %1743 = vmatpush2.msra.mxu0 0.0
        %1744 = vmatprep.subr.mxu0 0.0
        %1745 = vmatpush2.msra.mxu0 0.0
        %1746 = vmatprep.subr.mxu0 0.0
        %1747 = vmatpush2.msra.mxu0 0.0
        %1748 = vmatprep.subr.mxu0 0.0
        %1749 = vmatpush2.msra.mxu0 0.0
        %1750 = vmatprep.subr.mxu0 0.0
        %1751 = vmatpush2.msra.mxu0 0.0
        %1752 = vmatprep.subr.mxu0 0.0
        %1753 = vmatpush2.msra.mxu0 0.0
        %1754 = vmatprep.subr.mxu0 0.0
        %1755 = vmatpush2.msra.mxu0 0.0
        %1756 = vmatprep.subr.mxu0 0.0
        %1757 = vmatpush2.msra.mxu0 0.0
        %1758 = vmatprep.subr.mxu0 0.0
        %1759 = vmatpush2.msra.mxu0 0.0
        %1760 = vmatprep.subr.mxu0 0.0
        %1761 = vmatpush2.msra.mxu0 0.0
        %1762 = vmatprep.subr.mxu0 0.0
        %1763 = vmatpush2.msra.mxu0 0.0
        %1764 = vmatprep.subr.mxu0 0.0
        %1765 = vmatpush2.msra.mxu0 0.0
        %1766 = vmatprep.subr.mxu0 0.0
        %1767 = vmatpush2.msra.mxu0 0.0
        %1768 = vmatprep.subr.mxu0 0.0
        %1769 = vmatpush2.msra.mxu0 0.0
        %1770 = vmatprep.mubr.f32.mxu0 0.0
        %1771 = vmatmul.mubr.f32.gmra.mxu0 %v1702
        %v1772 = vpop.f32.mrf.mxu0
        %v1773 = vadd.f32 0.0, %v1772
        %v1774 = vpop.f32.mrf.mxu0
        %1775 = vmatprep.mubr.f32.mxu0 0.0
        %1776 = vmatmul.mubr.f32.gmra.mxu0 %v1704
        %v1777 = vpop.f32.mrf.mxu0
        %v1778 = vadd.f32 0.0, %v1777
        %v1779 = vpop.f32.mrf.mxu0
        %1780 = vdwg.mxu0
        %v1781 = vmul.f32 %v1773, %v362
        %v1782 = vmul.f32 %v1778, %v362
        %v1783 = vadd.f32 %v1700, %v1781
        %v1784 = vadd.f32 %v1701, %v1782
        %1786 = vrot.lane.b32.xlu0 %v1783, 120
        %v1787 = vpop.permute.xlu0 %1786
        %1788 = vrot.lane.b32.xlu0 %v1783, 112
        %v1789 = vpop.permute.xlu0 %1788
        %1790 = vrot.lane.b32.xlu0 %v1783, 104
        %v1791 = vpop.permute.xlu0 %1790
        %1793 = vrot.lane.b32.xlu0 %v1784, 120
        %v1794 = vpop.permute.xlu0 %1793
        %1795 = vrot.lane.b32.xlu0 %v1784, 112
        %v1796 = vpop.permute.xlu0 %1795
        %1797 = vrot.lane.b32.xlu0 %v1784, 104
        %v1798 = vpop.permute.xlu0 %1797
        %1799 = vrot.lane.b32.xlu0 %v1693, 120
        %v1800 = vpop.permute.xlu0 %1799
        %1801 = vrot.lane.b32.xlu0 %v1693, 112
        %v1802 = vpop.permute.xlu0 %1801
        %1803 = vrot.lane.b32.xlu0 %v1693, 104
        %v1804 = vpop.permute.xlu0 %1803
        %v1805 = vsel %vm656, %v1783, 0
        %v1807 = vsel %vm656, %v1784, 0
        %1809 = vmatprep.subr.mxu0 0.0
        %1810 = vmatpush1.xpose.msra.mxu0 0.0
        %1811 = vmatprep.subr.mxu0 0.0
        %1812 = vmatpush1.xpose.msra.mxu0 0.0
        %1813 = vmatprep.subr.mxu0 0.0
        %1814 = vmatpush1.xpose.msra.mxu0 0.0
        %1815 = vmatprep.subr.mxu0 0.0
        %1816 = vmatpush1.xpose.msra.mxu0 0.0
        %1817 = vmatprep.subr.mxu0 0.0
        %1818 = vmatpush1.xpose.msra.mxu0 0.0
        %1819 = vmatprep.subr.mxu0 0.0
        %1820 = vmatpush1.xpose.msra.mxu0 0.0
        %1821 = vmatprep.subr.mxu0 0.0
        %1822 = vmatpush1.xpose.msra.mxu0 0.0
        %1823 = vmatprep.subr.mxu0 0.0
        %1824 = vmatpush1.xpose.msra.mxu0 0.0
        %1825 = vmatprep.subr.mxu0 0.0
        %1826 = vmatpush1.xpose.msra.mxu0 0.0
        %1827 = vmatprep.subr.mxu0 0.0
        %1828 = vmatpush1.xpose.msra.mxu0 0.0
        %1829 = vmatprep.subr.mxu0 0.0
        %1830 = vmatpush1.xpose.msra.mxu0 0.0
        %1831 = vmatprep.subr.mxu0 0.0
        %1832 = vmatpush1.xpose.msra.mxu0 0.0
        %1833 = vmatprep.subr.mxu0 0.0
        %1834 = vmatpush1.xpose.msra.mxu0 0.0
        %1835 = vmatprep.subr.mxu0 0.0
        %1836 = vmatpush1.xpose.msra.mxu0 0.0
        %1837 = vmatprep.subr.mxu0 0.0
        %1838 = vmatpush1.xpose.msra.mxu0 0.0
        %1839 = vmatprep.subr.mxu0 0.0
        %1840 = vmatpush1.xpose.msra.mxu0 %v1807
        %1841 = vmatprep.subr.mxu0 0.0
        %1842 = vmatpush2.xpose.msra.mxu0 0.0
        %1843 = vmatprep.subr.mxu0 0.0
        %1844 = vmatpush2.xpose.msra.mxu0 0.0
        %1845 = vmatprep.subr.mxu0 0.0
        %1846 = vmatpush2.xpose.msra.mxu0 0.0
        %1847 = vmatprep.subr.mxu0 0.0
        %1848 = vmatpush2.xpose.msra.mxu0 0.0
        %1849 = vmatprep.subr.mxu0 0.0
        %1850 = vmatpush2.xpose.msra.mxu0 0.0
        %1851 = vmatprep.subr.mxu0 0.0
        %1852 = vmatpush2.xpose.msra.mxu0 0.0
        %1853 = vmatprep.subr.mxu0 0.0
        %1854 = vmatpush2.xpose.msra.mxu0 0.0
        %1855 = vmatprep.subr.mxu0 0.0
        %1856 = vmatpush2.xpose.msra.mxu0 0.0
        %1857 = vmatprep.subr.mxu0 0.0
        %1858 = vmatpush2.xpose.msra.mxu0 0.0
        %1859 = vmatprep.subr.mxu0 0.0
        %1860 = vmatpush2.xpose.msra.mxu0 0.0
        %1861 = vmatprep.subr.mxu0 0.0
        %1862 = vmatpush2.xpose.msra.mxu0 0.0
        %1863 = vmatprep.subr.mxu0 0.0
        %1864 = vmatpush2.xpose.msra.mxu0 0.0
        %1865 = vmatprep.subr.mxu0 0.0
        %1866 = vmatpush2.xpose.msra.mxu0 0.0
        %1867 = vmatprep.subr.mxu0 0.0
        %1868 = vmatpush2.xpose.msra.mxu0 0.0
        %1869 = vmatprep.subr.mxu0 0.0
        %1870 = vmatpush2.xpose.msra.mxu0 0.0
        %1871 = vmatprep.subr.mxu0 0.0
        %1872 = vmatpush2.xpose.msra.mxu0 0.0
        %1873 = vmatprep.mubr.f32.mxu0 0.0
        %1874 = vmatmul.mubr.f32.gmra.mxu0 %v1805
        %v1875 = vpop.f32.mrf.mxu0
        %v1876 = vadd.f32 0.0, %v1875
        %v1877 = vpop.f32.mrf.mxu0
        %1878 = vdwg.mxu0
        %v1879 = vsel %vm656, %v1787, 0
        %v1881 = vsel %vm656, %v1794, 0
        %1883 = vmatprep.subr.mxu0 0.0
        %1884 = vmatpush1.xpose.msra.mxu0 0.0
        %1885 = vmatprep.subr.mxu0 0.0
        %1886 = vmatpush1.xpose.msra.mxu0 0.0
        %1887 = vmatprep.subr.mxu0 0.0
        %1888 = vmatpush1.xpose.msra.mxu0 0.0
        %1889 = vmatprep.subr.mxu0 0.0
        %1890 = vmatpush1.xpose.msra.mxu0 0.0
        %1891 = vmatprep.subr.mxu0 0.0
        %1892 = vmatpush1.xpose.msra.mxu0 0.0
        %1893 = vmatprep.subr.mxu0 0.0
        %1894 = vmatpush1.xpose.msra.mxu0 0.0
        %1895 = vmatprep.subr.mxu0 0.0
        %1896 = vmatpush1.xpose.msra.mxu0 0.0
        %1897 = vmatprep.subr.mxu0 0.0
        %1898 = vmatpush1.xpose.msra.mxu0 0.0
        %1899 = vmatprep.subr.mxu0 0.0
        %1900 = vmatpush1.xpose.msra.mxu0 0.0
        %1901 = vmatprep.subr.mxu0 0.0
        %1902 = vmatpush1.xpose.msra.mxu0 0.0
        %1903 = vmatprep.subr.mxu0 0.0
        %1904 = vmatpush1.xpose.msra.mxu0 0.0
        %1905 = vmatprep.subr.mxu0 0.0
        %1906 = vmatpush1.xpose.msra.mxu0 0.0
        %1907 = vmatprep.subr.mxu0 0.0
        %1908 = vmatpush1.xpose.msra.mxu0 0.0
        %1909 = vmatprep.subr.mxu0 0.0
        %1910 = vmatpush1.xpose.msra.mxu0 0.0
        %1911 = vmatprep.subr.mxu0 0.0
        %1912 = vmatpush1.xpose.msra.mxu0 0.0
        %1913 = vmatprep.subr.mxu0 0.0
        %1914 = vmatpush1.xpose.msra.mxu0 %v1881
        %1915 = vmatprep.subr.mxu0 0.0
        %1916 = vmatpush2.xpose.msra.mxu0 0.0
        %1917 = vmatprep.subr.mxu0 0.0
        %1918 = vmatpush2.xpose.msra.mxu0 0.0
        %1919 = vmatprep.subr.mxu0 0.0
        %1920 = vmatpush2.xpose.msra.mxu0 0.0
        %1921 = vmatprep.subr.mxu0 0.0
        %1922 = vmatpush2.xpose.msra.mxu0 0.0
        %1923 = vmatprep.subr.mxu0 0.0
        %1924 = vmatpush2.xpose.msra.mxu0 0.0
        %1925 = vmatprep.subr.mxu0 0.0
        %1926 = vmatpush2.xpose.msra.mxu0 0.0
        %1927 = vmatprep.subr.mxu0 0.0
        %1928 = vmatpush2.xpose.msra.mxu0 0.0
        %1929 = vmatprep.subr.mxu0 0.0
        %1930 = vmatpush2.xpose.msra.mxu0 0.0
        %1931 = vmatprep.subr.mxu0 0.0
        %1932 = vmatpush2.xpose.msra.mxu0 0.0
        %1933 = vmatprep.subr.mxu0 0.0
        %1934 = vmatpush2.xpose.msra.mxu0 0.0
        %1935 = vmatprep.subr.mxu0 0.0
        %1936 = vmatpush2.xpose.msra.mxu0 0.0
        %1937 = vmatprep.subr.mxu0 0.0
        %1938 = vmatpush2.xpose.msra.mxu0 0.0
        %1939 = vmatprep.subr.mxu0 0.0
        %1940 = vmatpush2.xpose.msra.mxu0 0.0
        %1941 = vmatprep.subr.mxu0 0.0
        %1942 = vmatpush2.xpose.msra.mxu0 0.0
        %1943 = vmatprep.subr.mxu0 0.0
        %1944 = vmatpush2.xpose.msra.mxu0 0.0
        %1945 = vmatprep.subr.mxu0 0.0
        %1946 = vmatpush2.xpose.msra.mxu0 0.0
        %1947 = vmatprep.mubr.f32.mxu0 0.0
        %1948 = vmatmul.mubr.f32.gmra.mxu0 %v1879
        %v1949 = vpop.f32.mrf.mxu0
        %v1950 = vadd.f32 0.0, %v1949
        %v1951 = vpop.f32.mrf.mxu0
        %1952 = vdwg.mxu0
        %v1953 = vsel %vm656, %v1789, 0
        %v1955 = vsel %vm656, %v1796, 0
        %1957 = vmatprep.subr.mxu0 0.0
        %1958 = vmatpush1.xpose.msra.mxu0 0.0
        %1959 = vmatprep.subr.mxu0 0.0
        %1960 = vmatpush1.xpose.msra.mxu0 0.0
        %1961 = vmatprep.subr.mxu0 0.0
        %1962 = vmatpush1.xpose.msra.mxu0 0.0
        %1963 = vmatprep.subr.mxu0 0.0
        %1964 = vmatpush1.xpose.msra.mxu0 0.0
        %1965 = vmatprep.subr.mxu0 0.0
        %1966 = vmatpush1.xpose.msra.mxu0 0.0
        %1967 = vmatprep.subr.mxu0 0.0
        %1968 = vmatpush1.xpose.msra.mxu0 0.0
        %1969 = vmatprep.subr.mxu0 0.0
        %1970 = vmatpush1.xpose.msra.mxu0 0.0
        %1971 = vmatprep.subr.mxu0 0.0
        %1972 = vmatpush1.xpose.msra.mxu0 0.0
        %1973 = vmatprep.subr.mxu0 0.0
        %1974 = vmatpush1.xpose.msra.mxu0 0.0
        %1975 = vmatprep.subr.mxu0 0.0
        %1976 = vmatpush1.xpose.msra.mxu0 0.0
        %1977 = vmatprep.subr.mxu0 0.0
        %1978 = vmatpush1.xpose.msra.mxu0 0.0
        %1979 = vmatprep.subr.mxu0 0.0
        %1980 = vmatpush1.xpose.msra.mxu0 0.0
        %1981 = vmatprep.subr.mxu0 0.0
        %1982 = vmatpush1.xpose.msra.mxu0 0.0
        %1983 = vmatprep.subr.mxu0 0.0
        %1984 = vmatpush1.xpose.msra.mxu0 0.0
        %1985 = vmatprep.subr.mxu0 0.0
        %1986 = vmatpush1.xpose.msra.mxu0 0.0
        %1987 = vmatprep.subr.mxu0 0.0
        %1988 = vmatpush1.xpose.msra.mxu0 %v1955
        %1989 = vmatprep.subr.mxu0 0.0
        %1990 = vmatpush2.xpose.msra.mxu0 0.0
        %1991 = vmatprep.subr.mxu0 0.0
        %1992 = vmatpush2.xpose.msra.mxu0 0.0
        %1993 = vmatprep.subr.mxu0 0.0
        %1994 = vmatpush2.xpose.msra.mxu0 0.0
        %1995 = vmatprep.subr.mxu0 0.0
        %1996 = vmatpush2.xpose.msra.mxu0 0.0
        %1997 = vmatprep.subr.mxu0 0.0
        %1998 = vmatpush2.xpose.msra.mxu0 0.0
        %1999 = vmatprep.subr.mxu0 0.0
        %2000 = vmatpush2.xpose.msra.mxu0 0.0
        %2001 = vmatprep.subr.mxu0 0.0
        %2002 = vmatpush2.xpose.msra.mxu0 0.0
        %2003 = vmatprep.subr.mxu0 0.0
        %2004 = vmatpush2.xpose.msra.mxu0 0.0
        %2005 = vmatprep.subr.mxu0 0.0
        %2006 = vmatpush2.xpose.msra.mxu0 0.0
        %2007 = vmatprep.subr.mxu0 0.0
        %2008 = vmatpush2.xpose.msra.mxu0 0.0
        %2009 = vmatprep.subr.mxu0 0.0
        %2010 = vmatpush2.xpose.msra.mxu0 0.0
        %2011 = vmatprep.subr.mxu0 0.0
        %2012 = vmatpush2.xpose.msra.mxu0 0.0
        %2013 = vmatprep.subr.mxu0 0.0
        %2014 = vmatpush2.xpose.msra.mxu0 0.0
        %2015 = vmatprep.subr.mxu0 0.0
        %2016 = vmatpush2.xpose.msra.mxu0 0.0
        %2017 = vmatprep.subr.mxu0 0.0
        %2018 = vmatpush2.xpose.msra.mxu0 0.0
        %2019 = vmatprep.subr.mxu0 0.0
        %2020 = vmatpush2.xpose.msra.mxu0 0.0
        %2021 = vmatprep.mubr.f32.mxu0 0.0
        %2022 = vmatmul.mubr.f32.gmra.mxu0 %v1953
        %v2023 = vpop.f32.mrf.mxu0
        %v2024 = vadd.f32 0.0, %v2023
        %v2025 = vpop.f32.mrf.mxu0
        %2026 = vdwg.mxu0
        %v2027 = vsel %vm656, %v1791, 0
        %v2029 = vsel %vm656, %v1798, 0
        %2031 = vmatprep.subr.mxu0 0.0
        %2032 = vmatpush1.xpose.msra.mxu0 0.0
        %2033 = vmatprep.subr.mxu0 0.0
        %2034 = vmatpush1.xpose.msra.mxu0 0.0
        %2035 = vmatprep.subr.mxu0 0.0
        %2036 = vmatpush1.xpose.msra.mxu0 0.0
        %2037 = vmatprep.subr.mxu0 0.0
        %2038 = vmatpush1.xpose.msra.mxu0 0.0
        %2039 = vmatprep.subr.mxu0 0.0
        %2040 = vmatpush1.xpose.msra.mxu0 0.0
        %2041 = vmatprep.subr.mxu0 0.0
        %2042 = vmatpush1.xpose.msra.mxu0 0.0
        %2043 = vmatprep.subr.mxu0 0.0
        %2044 = vmatpush1.xpose.msra.mxu0 0.0
        %2045 = vmatprep.subr.mxu0 0.0
        %2046 = vmatpush1.xpose.msra.mxu0 0.0
        %2047 = vmatprep.subr.mxu0 0.0
        %2048 = vmatpush1.xpose.msra.mxu0 0.0
        %2049 = vmatprep.subr.mxu0 0.0
        %2050 = vmatpush1.xpose.msra.mxu0 0.0
        %2051 = vmatprep.subr.mxu0 0.0
        %2052 = vmatpush1.xpose.msra.mxu0 0.0
        %2053 = vmatprep.subr.mxu0 0.0
        %2054 = vmatpush1.xpose.msra.mxu0 0.0
        %2055 = vmatprep.subr.mxu0 0.0
        %2056 = vmatpush1.xpose.msra.mxu0 0.0
        %2057 = vmatprep.subr.mxu0 0.0
        %2058 = vmatpush1.xpose.msra.mxu0 0.0
        %2059 = vmatprep.subr.mxu0 0.0
        %2060 = vmatpush1.xpose.msra.mxu0 0.0
        %2061 = vmatprep.subr.mxu0 0.0
        %2062 = vmatpush1.xpose.msra.mxu0 %v2029
        %2063 = vmatprep.subr.mxu0 0.0
        %2064 = vmatpush2.xpose.msra.mxu0 0.0
        %2065 = vmatprep.subr.mxu0 0.0
        %2066 = vmatpush2.xpose.msra.mxu0 0.0
        %2067 = vmatprep.subr.mxu0 0.0
        %2068 = vmatpush2.xpose.msra.mxu0 0.0
        %2069 = vmatprep.subr.mxu0 0.0
        %2070 = vmatpush2.xpose.msra.mxu0 0.0
        %2071 = vmatprep.subr.mxu0 0.0
        %2072 = vmatpush2.xpose.msra.mxu0 0.0
        %2073 = vmatprep.subr.mxu0 0.0
        %2074 = vmatpush2.xpose.msra.mxu0 0.0
        %2075 = vmatprep.subr.mxu0 0.0
        %2076 = vmatpush2.xpose.msra.mxu0 0.0
        %2077 = vmatprep.subr.mxu0 0.0
        %2078 = vmatpush2.xpose.msra.mxu0 0.0
        %2079 = vmatprep.subr.mxu0 0.0
        %2080 = vmatpush2.xpose.msra.mxu0 0.0
        %2081 = vmatprep.subr.mxu0 0.0
        %2082 = vmatpush2.xpose.msra.mxu0 0.0
        %2083 = vmatprep.subr.mxu0 0.0
        %2084 = vmatpush2.xpose.msra.mxu0 0.0
        %2085 = vmatprep.subr.mxu0 0.0
        %2086 = vmatpush2.xpose.msra.mxu0 0.0
        %2087 = vmatprep.subr.mxu0 0.0
        %2088 = vmatpush2.xpose.msra.mxu0 0.0
        %2089 = vmatprep.subr.mxu0 0.0
        %2090 = vmatpush2.xpose.msra.mxu0 0.0
        %2091 = vmatprep.subr.mxu0 0.0
        %2092 = vmatpush2.xpose.msra.mxu0 0.0
        %2093 = vmatprep.subr.mxu0 0.0
        %2094 = vmatpush2.xpose.msra.mxu0 0.0
        %2095 = vmatprep.mubr.f32.mxu0 0.0
        %2096 = vmatmul.mubr.f32.gmra.mxu0 %v2027
        %v2097 = vpop.f32.mrf.mxu0
        %v2098 = vadd.f32 0.0, %v2097
        %v2099 = vpop.f32.mrf.mxu0
        %2100 = vdwg.mxu0
        %v2101 = vmul.f32 %v1876, 0.35355338
        %v2102 = vmul.f32 %v1950, 0.35355338
        %v2103 = vmul.f32 %v2024, 0.35355338
        %v2104 = vmul.f32 %v2098, 0.35355338
        %v2105 = vadd.f32 %v2101, %v961
        %v2106 = vadd.f32 %v2102, %v961
        %v2107 = vadd.f32 %v2103, %v961
        %v2108 = vadd.f32 %v2104, %v961
        %v2109 = vsel %vm656, %v2105, -inf
        %2110 = vmax.xlane.f32.xlu0 %v2109
        %v2111 = vpop.xlane.xlu0 %2110
        %v2112 = vsel %vm656, %v2106, -inf
        %2113 = vmax.xlane.f32.xlu0 %v2112
        %v2114 = vpop.xlane.xlu0 %2113
        %v2115 = vsel %vm656, %v2107, -inf
        %2116 = vmax.xlane.f32.xlu0 %v2115
        %v2117 = vpop.xlane.xlu0 %2116
        %v2118 = vsel %vm656, %v2108, -inf
        %2119 = vmax.xlane.f32.xlu0 %v2118
        %v2120 = vpop.xlane.xlu0 %2119
        %v2121 = vsub.f32 %v2105, %v2111
        %v2122 = vsub.f32 %v2106, %v2114
        %v2123 = vsub.f32 %v2107, %v2117
        %v2124 = vsub.f32 %v2108, %v2120
        %v2125 = vmul.f32 %v2121, 1.442695
        %v2126 = vpow.pop %v2125
        %v2127 = vmul.f32 %v2122, 1.442695
        %v2128 = vpow.pop %v2127
        %v2129 = vmul.f32 %v2123, 1.442695
        %v2130 = vpow.pop %v2129
        %v2131 = vmul.f32 %v2124, 1.442695
        %v2132 = vpow.pop %v2131
        %v2133 = vsel %vm656, %v2126, 0.0
        %2134 = vadd.xlane.f32.xlu0 %v2133
        %v2135 = vpop.xlane.xlu0 %2134
        %v2136 = vsel %vm656, %v2128, 0.0
        %2137 = vadd.xlane.f32.xlu0 %v2136
        %v2138 = vpop.xlane.xlu0 %2137
        %v2139 = vsel %vm656, %v2130, 0.0
        %2140 = vadd.xlane.f32.xlu0 %v2139
        %v2141 = vpop.xlane.xlu0 %2140
        %v2142 = vsel %vm656, %v2132, 0.0
        %2143 = vadd.xlane.f32.xlu0 %v2142
        %v2144 = vpop.xlane.xlu0 %2143
        %v2145 = vrcp.pop %v2135
        %v2146 = vrcp.pop %v2138
        %v2147 = vrcp.pop %v2141
        %v2148 = vrcp.pop %v2144
        %v2149 = vmul.f32 %v2126, %v2145
        %v2150 = vmul.f32 %v2128, %v2146
        %v2151 = vmul.f32 %v2130, %v2147
        %v2152 = vmul.f32 %v2132, %v2148
        %2153 = vrot.lane.b32.xlu0 %v1693, 64
        %v2154 = vpop.permute.xlu0 %2153
        %v2157 = vsel %vm656, %v2149, 0
        %2159 = vmatprep.subr.mxu0 0.0
        %2160 = vmatpush1.msra.mxu0 0.0
        %2161 = vmatprep.subr.mxu0 0.0
        %2162 = vmatpush1.msra.mxu0 0.0
        %2163 = vmatprep.subr.mxu0 0.0
        %2164 = vmatpush1.msra.mxu0 0.0
        %2165 = vmatprep.subr.mxu0 0.0
        %2166 = vmatpush1.msra.mxu0 0.0
        %2167 = vmatprep.subr.mxu0 0.0
        %2168 = vmatpush1.msra.mxu0 0.0
        %2169 = vmatprep.subr.mxu0 0.0
        %2170 = vmatpush1.msra.mxu0 0.0
        %2171 = vmatprep.subr.mxu0 0.0
        %2172 = vmatpush1.msra.mxu0 0.0
        %2173 = vmatprep.subr.mxu0 0.0
        %2174 = vmatpush1.msra.mxu0 0.0
        %2175 = vmatprep.subr.mxu0 0.0
        %2176 = vmatpush1.msra.mxu0 0.0
        %2177 = vmatprep.subr.mxu0 0.0
        %2178 = vmatpush1.msra.mxu0 0.0
        %2179 = vmatprep.subr.mxu0 0.0
        %2180 = vmatpush1.msra.mxu0 0.0
        %2181 = vmatprep.subr.mxu0 0.0
        %2182 = vmatpush1.msra.mxu0 0.0
        %2183 = vmatprep.subr.mxu0 0.0
        %2184 = vmatpush1.msra.mxu0 0.0
        %2185 = vmatprep.subr.mxu0 0.0
        %2186 = vmatpush1.msra.mxu0 0.0
        %2187 = vmatprep.subr.mxu0 0.0
        %2188 = vmatpush1.msra.mxu0 0.0
        %2189 = vmatprep.subr.mxu0 0.0
        %2190 = vmatpush1.msra.mxu0 %v2154
        %2191 = vmatprep.subr.mxu0 0.0
        %2192 = vmatpush2.msra.mxu0 0.0
        %2193 = vmatprep.subr.mxu0 0.0
        %2194 = vmatpush2.msra.mxu0 0.0
        %2195 = vmatprep.subr.mxu0 0.0
        %2196 = vmatpush2.msra.mxu0 0.0
        %2197 = vmatprep.subr.mxu0 0.0
        %2198 = vmatpush2.msra.mxu0 0.0
        %2199 = vmatprep.subr.mxu0 0.0
        %2200 = vmatpush2.msra.mxu0 0.0
        %2201 = vmatprep.subr.mxu0 0.0
        %2202 = vmatpush2.msra.mxu0 0.0
        %2203 = vmatprep.subr.mxu0 0.0
        %2204 = vmatpush2.msra.mxu0 0.0
        %2205 = vmatprep.subr.mxu0 0.0
        %2206 = vmatpush2.msra.mxu0 0.0
        %2207 = vmatprep.subr.mxu0 0.0
        %2208 = vmatpush2.msra.mxu0 0.0
        %2209 = vmatprep.subr.mxu0 0.0
        %2210 = vmatpush2.msra.mxu0 0.0
        %2211 = vmatprep.subr.mxu0 0.0
        %2212 = vmatpush2.msra.mxu0 0.0
        %2213 = vmatprep.subr.mxu0 0.0
        %2214 = vmatpush2.msra.mxu0 0.0
        %2215 = vmatprep.subr.mxu0 0.0
        %2216 = vmatpush2.msra.mxu0 0.0
        %2217 = vmatprep.subr.mxu0 0.0
        %2218 = vmatpush2.msra.mxu0 0.0
        %2219 = vmatprep.subr.mxu0 0.0
        %2220 = vmatpush2.msra.mxu0 0.0
        %2221 = vmatprep.subr.mxu0 0.0
        %2222 = vmatpush2.msra.mxu0 0.0
        %2223 = vmatprep.mubr.f32.mxu0 0.0
        %2224 = vmatmul.mubr.f32.gmra.mxu0 %v2157
        %v2225 = vpop.f32.mrf.mxu0
        %v2226 = vadd.f32 0.0, %v2225
        %v2227 = vpop.f32.mrf.mxu0
        %2228 = vdwg.mxu0
        %2229 = vrot.lane.b32.xlu0 %v1800, 64
        %v2230 = vpop.permute.xlu0 %2229
        %v2233 = vsel %vm656, %v2150, 0
        %2235 = vmatprep.subr.mxu0 0.0
        %2236 = vmatpush1.msra.mxu0 0.0
        %2237 = vmatprep.subr.mxu0 0.0
        %2238 = vmatpush1.msra.mxu0 0.0
        %2239 = vmatprep.subr.mxu0 0.0
        %2240 = vmatpush1.msra.mxu0 0.0
        %2241 = vmatprep.subr.mxu0 0.0
        %2242 = vmatpush1.msra.mxu0 0.0
        %2243 = vmatprep.subr.mxu0 0.0
        %2244 = vmatpush1.msra.mxu0 0.0
        %2245 = vmatprep.subr.mxu0 0.0
        %2246 = vmatpush1.msra.mxu0 0.0
        %2247 = vmatprep.subr.mxu0 0.0
        %2248 = vmatpush1.msra.mxu0 0.0
        %2249 = vmatprep.subr.mxu0 0.0
        %2250 = vmatpush1.msra.mxu0 0.0
        %2251 = vmatprep.subr.mxu0 0.0
        %2252 = vmatpush1.msra.mxu0 0.0
        %2253 = vmatprep.subr.mxu0 0.0
        %2254 = vmatpush1.msra.mxu0 0.0
        %2255 = vmatprep.subr.mxu0 0.0
        %2256 = vmatpush1.msra.mxu0 0.0
        %2257 = vmatprep.subr.mxu0 0.0
        %2258 = vmatpush1.msra.mxu0 0.0
        %2259 = vmatprep.subr.mxu0 0.0
        %2260 = vmatpush1.msra.mxu0 0.0
        %2261 = vmatprep.subr.mxu0 0.0
        %2262 = vmatpush1.msra.mxu0 0.0
        %2263 = vmatprep.subr.mxu0 0.0
        %2264 = vmatpush1.msra.mxu0 0.0
        %2265 = vmatprep.subr.mxu0 0.0
        %2266 = vmatpush1.msra.mxu0 %v2230
        %2267 = vmatprep.subr.mxu0 0.0
        %2268 = vmatpush2.msra.mxu0 0.0
        %2269 = vmatprep.subr.mxu0 0.0
        %2270 = vmatpush2.msra.mxu0 0.0
        %2271 = vmatprep.subr.mxu0 0.0
        %2272 = vmatpush2.msra.mxu0 0.0
        %2273 = vmatprep.subr.mxu0 0.0
        %2274 = vmatpush2.msra.mxu0 0.0
        %2275 = vmatprep.subr.mxu0 0.0
        %2276 = vmatpush2.msra.mxu0 0.0
        %2277 = vmatprep.subr.mxu0 0.0
        %2278 = vmatpush2.msra.mxu0 0.0
        %2279 = vmatprep.subr.mxu0 0.0
        %2280 = vmatpush2.msra.mxu0 0.0
        %2281 = vmatprep.subr.mxu0 0.0
        %2282 = vmatpush2.msra.mxu0 0.0
        %2283 = vmatprep.subr.mxu0 0.0
        %2284 = vmatpush2.msra.mxu0 0.0
        %2285 = vmatprep.subr.mxu0 0.0
        %2286 = vmatpush2.msra.mxu0 0.0
        %2287 = vmatprep.subr.mxu0 0.0
        %2288 = vmatpush2.msra.mxu0 0.0
        %2289 = vmatprep.subr.mxu0 0.0
        %2290 = vmatpush2.msra.mxu0 0.0
        %2291 = vmatprep.subr.mxu0 0.0
        %2292 = vmatpush2.msra.mxu0 0.0
        %2293 = vmatprep.subr.mxu0 0.0
        %2294 = vmatpush2.msra.mxu0 0.0
        %2295 = vmatprep.subr.mxu0 0.0
        %2296 = vmatpush2.msra.mxu0 0.0
        %2297 = vmatprep.subr.mxu0 0.0
        %2298 = vmatpush2.msra.mxu0 0.0
        %2299 = vmatprep.mubr.f32.mxu0 0.0
        %2300 = vmatmul.mubr.f32.gmra.mxu0 %v2233
        %v2301 = vpop.f32.mrf.mxu0
        %v2302 = vadd.f32 0.0, %v2301
        %v2303 = vpop.f32.mrf.mxu0
        %2304 = vdwg.mxu0
        %2305 = vrot.lane.b32.xlu0 %v1802, 64
        %v2306 = vpop.permute.xlu0 %2305
        %v2309 = vsel %vm656, %v2151, 0
        %2311 = vmatprep.subr.mxu0 0.0
        %2312 = vmatpush1.msra.mxu0 0.0
        %2313 = vmatprep.subr.mxu0 0.0
        %2314 = vmatpush1.msra.mxu0 0.0
        %2315 = vmatprep.subr.mxu0 0.0
        %2316 = vmatpush1.msra.mxu0 0.0
        %2317 = vmatprep.subr.mxu0 0.0
        %2318 = vmatpush1.msra.mxu0 0.0
        %2319 = vmatprep.subr.mxu0 0.0
        %2320 = vmatpush1.msra.mxu0 0.0
        %2321 = vmatprep.subr.mxu0 0.0
        %2322 = vmatpush1.msra.mxu0 0.0
        %2323 = vmatprep.subr.mxu0 0.0
        %2324 = vmatpush1.msra.mxu0 0.0
        %2325 = vmatprep.subr.mxu0 0.0
        %2326 = vmatpush1.msra.mxu0 0.0
        %2327 = vmatprep.subr.mxu0 0.0
        %2328 = vmatpush1.msra.mxu0 0.0
        %2329 = vmatprep.subr.mxu0 0.0
        %2330 = vmatpush1.msra.mxu0 0.0
        %2331 = vmatprep.subr.mxu0 0.0
        %2332 = vmatpush1.msra.mxu0 0.0
        %2333 = vmatprep.subr.mxu0 0.0
        %2334 = vmatpush1.msra.mxu0 0.0
        %2335 = vmatprep.subr.mxu0 0.0
        %2336 = vmatpush1.msra.mxu0 0.0
        %2337 = vmatprep.subr.mxu0 0.0
        %2338 = vmatpush1.msra.mxu0 0.0
        %2339 = vmatprep.subr.mxu0 0.0
        %2340 = vmatpush1.msra.mxu0 0.0
        %2341 = vmatprep.subr.mxu0 0.0
        %2342 = vmatpush1.msra.mxu0 %v2306
        %2343 = vmatprep.subr.mxu0 0.0
        %2344 = vmatpush2.msra.mxu0 0.0
        %2345 = vmatprep.subr.mxu0 0.0
        %2346 = vmatpush2.msra.mxu0 0.0
        %2347 = vmatprep.subr.mxu0 0.0
        %2348 = vmatpush2.msra.mxu0 0.0
        %2349 = vmatprep.subr.mxu0 0.0
        %2350 = vmatpush2.msra.mxu0 0.0
        %2351 = vmatprep.subr.mxu0 0.0
        %2352 = vmatpush2.msra.mxu0 0.0
        %2353 = vmatprep.subr.mxu0 0.0
        %2354 = vmatpush2.msra.mxu0 0.0
        %2355 = vmatprep.subr.mxu0 0.0
        %2356 = vmatpush2.msra.mxu0 0.0
        %2357 = vmatprep.subr.mxu0 0.0
        %2358 = vmatpush2.msra.mxu0 0.0
        %2359 = vmatprep.subr.mxu0 0.0
        %2360 = vmatpush2.msra.mxu0 0.0
        %2361 = vmatprep.subr.mxu0 0.0
        %2362 = vmatpush2.msra.mxu0 0.0
        %2363 = vmatprep.subr.mxu0 0.0
        %2364 = vmatpush2.msra.mxu0 0.0
        %2365 = vmatprep.subr.mxu0 0.0
        %2366 = vmatpush2.msra.mxu0 0.0
        %2367 = vmatprep.subr.mxu0 0.0
        %2368 = vmatpush2.msra.mxu0 0.0
        %2369 = vmatprep.subr.mxu0 0.0
        %2370 = vmatpush2.msra.mxu0 0.0
        %2371 = vmatprep.subr.mxu0 0.0
        %2372 = vmatpush2.msra.mxu0 0.0
        %2373 = vmatprep.subr.mxu0 0.0
        %2374 = vmatpush2.msra.mxu0 0.0
        %2375 = vmatprep.mubr.f32.mxu0 0.0
        %2376 = vmatmul.mubr.f32.gmra.mxu0 %v2309
        %v2377 = vpop.f32.mrf.mxu0
        %v2378 = vadd.f32 0.0, %v2377
        %v2379 = vpop.f32.mrf.mxu0
        %2380 = vdwg.mxu0
        %2381 = vrot.lane.b32.xlu0 %v1804, 64
        %v2382 = vpop.permute.xlu0 %2381
        %v2385 = vsel %vm656, %v2152, 0
        %2387 = vmatprep.subr.mxu0 0.0
        %2388 = vmatpush1.msra.mxu0 0.0
        %2389 = vmatprep.subr.mxu0 0.0
        %2390 = vmatpush1.msra.mxu0 0.0
        %2391 = vmatprep.subr.mxu0 0.0
        %2392 = vmatpush1.msra.mxu0 0.0
        %2393 = vmatprep.subr.mxu0 0.0
        %2394 = vmatpush1.msra.mxu0 0.0
        %2395 = vmatprep.subr.mxu0 0.0
        %2396 = vmatpush1.msra.mxu0 0.0
        %2397 = vmatprep.subr.mxu0 0.0
        %2398 = vmatpush1.msra.mxu0 0.0
        %2399 = vmatprep.subr.mxu0 0.0
        %2400 = vmatpush1.msra.mxu0 0.0
        %2401 = vmatprep.subr.mxu0 0.0
        %2402 = vmatpush1.msra.mxu0 0.0
        %2403 = vmatprep.subr.mxu0 0.0
        %2404 = vmatpush1.msra.mxu0 0.0
        %2405 = vmatprep.subr.mxu0 0.0
        %2406 = vmatpush1.msra.mxu0 0.0
        %2407 = vmatprep.subr.mxu0 0.0
        %2408 = vmatpush1.msra.mxu0 0.0
        %2409 = vmatprep.subr.mxu0 0.0
        %2410 = vmatpush1.msra.mxu0 0.0
        %2411 = vmatprep.subr.mxu0 0.0
        %2412 = vmatpush1.msra.mxu0 0.0
        %2413 = vmatprep.subr.mxu0 0.0
        %2414 = vmatpush1.msra.mxu0 0.0
        %2415 = vmatprep.subr.mxu0 0.0
        %2416 = vmatpush1.msra.mxu0 0.0
        %2417 = vmatprep.subr.mxu0 0.0
        %2418 = vmatpush1.msra.mxu0 %v2382
        %2419 = vmatprep.subr.mxu0 0.0
        %2420 = vmatpush2.msra.mxu0 0.0
        %2421 = vmatprep.subr.mxu0 0.0
        %2422 = vmatpush2.msra.mxu0 0.0
        %2423 = vmatprep.subr.mxu0 0.0
        %2424 = vmatpush2.msra.mxu0 0.0
        %2425 = vmatprep.subr.mxu0 0.0
        %2426 = vmatpush2.msra.mxu0 0.0
        %2427 = vmatprep.subr.mxu0 0.0
        %2428 = vmatpush2.msra.mxu0 0.0
        %2429 = vmatprep.subr.mxu0 0.0
        %2430 = vmatpush2.msra.mxu0 0.0
        %2431 = vmatprep.subr.mxu0 0.0
        %2432 = vmatpush2.msra.mxu0 0.0
        %2433 = vmatprep.subr.mxu0 0.0
        %2434 = vmatpush2.msra.mxu0 0.0
        %2435 = vmatprep.subr.mxu0 0.0
        %2436 = vmatpush2.msra.mxu0 0.0
        %2437 = vmatprep.subr.mxu0 0.0
        %2438 = vmatpush2.msra.mxu0 0.0
        %2439 = vmatprep.subr.mxu0 0.0
        %2440 = vmatpush2.msra.mxu0 0.0
        %2441 = vmatprep.subr.mxu0 0.0
        %2442 = vmatpush2.msra.mxu0 0.0
        %2443 = vmatprep.subr.mxu0 0.0
        %2444 = vmatpush2.msra.mxu0 0.0
        %2445 = vmatprep.subr.mxu0 0.0
        %2446 = vmatpush2.msra.mxu0 0.0
        %2447 = vmatprep.subr.mxu0 0.0
        %2448 = vmatpush2.msra.mxu0 0.0
        %2449 = vmatprep.subr.mxu0 0.0
        %2450 = vmatpush2.msra.mxu0 0.0
        %2451 = vmatprep.mubr.f32.mxu0 0.0
        %2452 = vmatmul.mubr.f32.gmra.mxu0 %v2385
        %v2453 = vpop.f32.mrf.mxu0
        %v2454 = vadd.f32 0.0, %v2453
        %v2455 = vpop.f32.mrf.mxu0
        %2456 = vdwg.mxu0
        %2458 = vrot.lane.b32.xlu0 %v2302, 8
        %v2459 = vpop.permute.xlu0 %2458
        %2462 = vrot.lane.b32.xlu0 %v2378, 16
        %v2463 = vpop.permute.xlu0 %2462
        %2466 = vrot.lane.b32.xlu0 %v2454, 24
        %v2467 = vpop.permute.xlu0 %2466
        %v2469 = vsel %vm656, %v2226, %v2459
        %v2470 = vsel %vm378, %v2469, %v2463
        %v2471 = vsel %vm1329, %v2470, %v2467
        %s2472 = scalar_lea.vmem %s4, 32
        %v2473 = vld [vmem:[%s2472] sm:$0xff]
        %v2474 = vld [vmem:[%s2472 + $0x8] sm:$0xff]
        %v2475 = vld [vmem:[%s2472 + $0x10] sm:$0xff]
        %v2476 = vld [vmem:[%s2472 + $0x18] sm:$0xff]
        %v2477 = vld [vmem:[%s8 + $0x5] sm:$0x1]
        %v2478 = vlaneseq
        %v2479 = vshrl.u32 %v2478, 7
        %v2480 = vsub.s32 0, %v2479
        %v2481 = vrot.slane %v2477, %v2480
        %v2483 = vsel %vm456, %v2471, 0
        %2485 = vmatprep.subr.mxu0 0.0
        %2486 = vmatpush1.msra.mxu0 0.0
        %2487 = vmatprep.subr.mxu0 0.0
        %2488 = vmatpush1.msra.mxu0 0.0
        %2489 = vmatprep.subr.mxu0 0.0
        %2490 = vmatpush1.msra.mxu0 0.0
        %2491 = vmatprep.subr.mxu0 0.0
        %2492 = vmatpush1.msra.mxu0 0.0
        %2493 = vmatprep.subr.mxu0 0.0
        %2494 = vmatpush1.msra.mxu0 0.0
        %2495 = vmatprep.subr.mxu0 0.0
        %2496 = vmatpush1.msra.mxu0 0.0
        %2497 = vmatprep.subr.mxu0 0.0
        %2498 = vmatpush1.msra.mxu0 0.0
        %2499 = vmatprep.subr.mxu0 0.0
        %2500 = vmatpush1.msra.mxu0 0.0
        %2501 = vmatprep.subr.mxu0 0.0
        %2502 = vmatpush1.msra.mxu0 0.0
        %2503 = vmatprep.subr.mxu0 0.0
        %2504 = vmatpush1.msra.mxu0 0.0
        %2505 = vmatprep.subr.mxu0 0.0
        %2506 = vmatpush1.msra.mxu0 0.0
        %2507 = vmatprep.subr.mxu0 0.0
        %2508 = vmatpush1.msra.mxu0 0.0
        %2509 = vmatprep.subr.mxu0 0.0
        %2510 = vmatpush1.msra.mxu0 %v2476
        %2511 = vmatprep.subr.mxu0 0.0
        %2512 = vmatpush1.msra.mxu0 %v2475
        %2513 = vmatprep.subr.mxu0 0.0
        %2514 = vmatpush1.msra.mxu0 %v2474
        %2515 = vmatprep.subr.mxu0 0.0
        %2516 = vmatpush1.msra.mxu0 %v2473
        %2517 = vmatprep.subr.mxu0 0.0
        %2518 = vmatpush2.msra.mxu0 0.0
        %2519 = vmatprep.subr.mxu0 0.0
        %2520 = vmatpush2.msra.mxu0 0.0
        %2521 = vmatprep.subr.mxu0 0.0
        %2522 = vmatpush2.msra.mxu0 0.0
        %2523 = vmatprep.subr.mxu0 0.0
        %2524 = vmatpush2.msra.mxu0 0.0
        %2525 = vmatprep.subr.mxu0 0.0
        %2526 = vmatpush2.msra.mxu0 0.0
        %2527 = vmatprep.subr.mxu0 0.0
        %2528 = vmatpush2.msra.mxu0 0.0
        %2529 = vmatprep.subr.mxu0 0.0
        %2530 = vmatpush2.msra.mxu0 0.0
        %2531 = vmatprep.subr.mxu0 0.0
        %2532 = vmatpush2.msra.mxu0 0.0
        %2533 = vmatprep.subr.mxu0 0.0
        %2534 = vmatpush2.msra.mxu0 0.0
        %2535 = vmatprep.subr.mxu0 0.0
        %2536 = vmatpush2.msra.mxu0 0.0
        %2537 = vmatprep.subr.mxu0 0.0
        %2538 = vmatpush2.msra.mxu0 0.0
        %2539 = vmatprep.subr.mxu0 0.0
        %2540 = vmatpush2.msra.mxu0 0.0
        %2541 = vmatprep.subr.mxu0 0.0
        %2542 = vmatpush2.msra.mxu0 0.0
        %2543 = vmatprep.subr.mxu0 0.0
        %2544 = vmatpush2.msra.mxu0 0.0
        %2545 = vmatprep.subr.mxu0 0.0
        %2546 = vmatpush2.msra.mxu0 0.0
        %2547 = vmatprep.subr.mxu0 0.0
        %2548 = vmatpush2.msra.mxu0 0.0
        %2549 = vmatprep.mubr.f32.mxu0 0.0
        %2550 = vmatmul.mubr.f32.gmra.mxu0 %v2483
        %v2551 = vpop.f32.mrf.mxu0
        %v2552 = vadd.f32 %v2481, %v2551
        %v2553 = vpop.f32.mrf.mxu0
        %2554 = vdwg.mxu0
        %v2555 = vadd.f32 %v1604, %v2552
        %v2556 = vmul.f32 %v2555, %v2555
        %v2557 = vsel %vm456, %v2556, 0.0
        %2558 = vadd.xlane.f32.xlu0 %v2557
        %v2559 = vpop.xlane.xlu0 %2558
        %v2560 = vmul.f32 %v2559, %v460
        %v2561 = vadd.f32 %v2560, 1e-08
        %v2562 = vrsqrt.pop %v2561
        %v2563 = vmul.f32 %v2555, %v2562
        %s2564 = scalar_lea.vmem %s5, 32
        %v2565 = vld [vmem:[%s2564] sm:$0xff]
        %v2566 = vld [vmem:[%s2564 + $0x8] sm:$0xff]
        %v2567 = vld [vmem:[%s2564 + $0x10] sm:$0xff]
        %v2568 = vld [vmem:[%s2564 + $0x18] sm:$0xff]
        %v2569 = vld [vmem:[%s8 + $0x6] sm:$0x1]
        %v2570 = vlaneseq
        %v2571 = vshrl.u32 %v2570, 7
        %v2572 = vsub.s32 0, %v2571
        %v2573 = vrot.slane %v2569, %v2572
        %v2575 = vsel %vm456, %v2563, 0
        %2577 = vmatprep.subr.mxu0 0.0
        %2578 = vmatpush1.msra.mxu0 0.0
        %2579 = vmatprep.subr.mxu0 0.0
        %2580 = vmatpush1.msra.mxu0 0.0
        %2581 = vmatprep.subr.mxu0 0.0
        %2582 = vmatpush1.msra.mxu0 0.0
        %2583 = vmatprep.subr.mxu0 0.0
        %2584 = vmatpush1.msra.mxu0 0.0
        %2585 = vmatprep.subr.mxu0 0.0
        %2586 = vmatpush1.msra.mxu0 0.0
        %2587 = vmatprep.subr.mxu0 0.0
        %2588 = vmatpush1.msra.mxu0 0.0
        %2589 = vmatprep.subr.mxu0 0.0
        %2590 = vmatpush1.msra.mxu0 0.0
        %2591 = vmatprep.subr.mxu0 0.0
        %2592 = vmatpush1.msra.mxu0 0.0
        %2593 = vmatprep.subr.mxu0 0.0
        %2594 = vmatpush1.msra.mxu0 0.0
        %2595 = vmatprep.subr.mxu0 0.0
        %2596 = vmatpush1.msra.mxu0 0.0
        %2597 = vmatprep.subr.mxu0 0.0
        %2598 = vmatpush1.msra.mxu0 0.0
        %2599 = vmatprep.subr.mxu0 0.0
        %2600 = vmatpush1.msra.mxu0 0.0
        %2601 = vmatprep.subr.mxu0 0.0
        %2602 = vmatpush1.msra.mxu0 %v2568
        %2603 = vmatprep.subr.mxu0 0.0
        %2604 = vmatpush1.msra.mxu0 %v2567
        %2605 = vmatprep.subr.mxu0 0.0
        %2606 = vmatpush1.msra.mxu0 %v2566
        %2607 = vmatprep.subr.mxu0 0.0
        %2608 = vmatpush1.msra.mxu0 %v2565
        %2609 = vmatprep.subr.mxu0 0.0
        %2610 = vmatpush2.msra.mxu0 0.0
        %2611 = vmatprep.subr.mxu0 0.0
        %2612 = vmatpush2.msra.mxu0 0.0
        %2613 = vmatprep.subr.mxu0 0.0
        %2614 = vmatpush2.msra.mxu0 0.0
        %2615 = vmatprep.subr.mxu0 0.0
        %2616 = vmatpush2.msra.mxu0 0.0
        %2617 = vmatprep.subr.mxu0 0.0
        %2618 = vmatpush2.msra.mxu0 0.0
        %2619 = vmatprep.subr.mxu0 0.0
        %2620 = vmatpush2.msra.mxu0 0.0
        %2621 = vmatprep.subr.mxu0 0.0
        %2622 = vmatpush2.msra.mxu0 0.0
        %2623 = vmatprep.subr.mxu0 0.0
        %2624 = vmatpush2.msra.mxu0 0.0
        %2625 = vmatprep.subr.mxu0 0.0
        %2626 = vmatpush2.msra.mxu0 0.0
        %2627 = vmatprep.subr.mxu0 0.0
        %2628 = vmatpush2.msra.mxu0 0.0
        %2629 = vmatprep.subr.mxu0 0.0
        %2630 = vmatpush2.msra.mxu0 0.0
        %2631 = vmatprep.subr.mxu0 0.0
        %2632 = vmatpush2.msra.mxu0 0.0
        %2633 = vmatprep.subr.mxu0 0.0
        %2634 = vmatpush2.msra.mxu0 0.0
        %2635 = vmatprep.subr.mxu0 0.0
        %2636 = vmatpush2.msra.mxu0 0.0
        %2637 = vmatprep.subr.mxu0 0.0
        %2638 = vmatpush2.msra.mxu0 0.0
        %2639 = vmatprep.subr.mxu0 0.0
        %2640 = vmatpush2.msra.mxu0 0.0
        %2641 = vmatprep.mubr.f32.mxu0 0.0
        %2642 = vmatmul.mubr.f32.gmra.mxu0 %v2575
        %v2643 = vpop.f32.mrf.mxu0
        %v2644 = vadd.f32 %v2573, %v2643
        %v2645 = vpop.f32.mrf.mxu0
        %2646 = vdwg.mxu0
        %v2647 = vmul.f32 %v2644, %v2644
        %v2648 = vmul.f32 %v2644, %v2647
        %v2649 = vmul.f32 %v2648, 0.044715
        %v2650 = vadd.f32 %v2644, %v2649
        %v2651 = vmul.f32 %v2650, 0.7978846
        %v2652 = vtanh.pop %v2651
        %v2653 = vadd.f32 %v2652, 1.0
        %v2654 = vmul.f32 %v2653, 0.5
        %v2655 = vmul.f32 %v2644, %v2654
        %s2656 = scalar_lea.vmem %s6, 128
        %v2657 = vld [vmem:[%s2656] sm:$0xff]
        %v2658 = vld [vmem:[%s2656 + $0x8] sm:$0xff]
        %v2659 = vld [vmem:[%s2656 + $0x10] sm:$0xff]
        %v2660 = vld [vmem:[%s2656 + $0x18] sm:$0xff]
        %v2661 = vld [vmem:[%s2656 + $0x20] sm:$0xff]
        %v2662 = vld [vmem:[%s2656 + $0x28] sm:$0xff]
        %v2663 = vld [vmem:[%s2656 + $0x30] sm:$0xff]
        %v2664 = vld [vmem:[%s2656 + $0x38] sm:$0xff]
        %v2665 = vld [vmem:[%s2656 + $0x40] sm:$0xff]
        %v2666 = vld [vmem:[%s2656 + $0x48] sm:$0xff]
        %v2667 = vld [vmem:[%s2656 + $0x50] sm:$0xff]
        %v2668 = vld [vmem:[%s2656 + $0x58] sm:$0xff]
        %v2669 = vld [vmem:[%s2656 + $0x60] sm:$0xff]
        %v2670 = vld [vmem:[%s2656 + $0x68] sm:$0xff]
        %v2671 = vld [vmem:[%s2656 + $0x70] sm:$0xff]
        %v2672 = vld [vmem:[%s2656 + $0x78] sm:$0xff]
        %v2673 = vld [vmem:[%s8 + $0x7] sm:$0x1]
        %v2674 = vlaneseq
        %v2675 = vshrl.u32 %v2674, 7
        %v2676 = vsub.s32 0, %v2675
        %v2677 = vrot.slane %v2673, %v2676
        %2678 = vmatprep.subr.mxu0 0.0
        %2679 = vmatpush1.msra.mxu0 %v2672
        %2680 = vmatprep.subr.mxu0 0.0
        %2681 = vmatpush1.msra.mxu0 %v2671
        %2682 = vmatprep.subr.mxu0 0.0
        %2683 = vmatpush1.msra.mxu0 %v2670
        %2684 = vmatprep.subr.mxu0 0.0
        %2685 = vmatpush1.msra.mxu0 %v2669
        %2686 = vmatprep.subr.mxu0 0.0
        %2687 = vmatpush1.msra.mxu0 %v2668
        %2688 = vmatprep.subr.mxu0 0.0
        %2689 = vmatpush1.msra.mxu0 %v2667
        %2690 = vmatprep.subr.mxu0 0.0
        %2691 = vmatpush1.msra.mxu0 %v2666
        %2692 = vmatprep.subr.mxu0 0.0
        %2693 = vmatpush1.msra.mxu0 %v2665
        %2694 = vmatprep.subr.mxu0 0.0
        %2695 = vmatpush1.msra.mxu0 %v2664
        %2696 = vmatprep.subr.mxu0 0.0
        %2697 = vmatpush1.msra.mxu0 %v2663
        %2698 = vmatprep.subr.mxu0 0.0
        %2699 = vmatpush1.msra.mxu0 %v2662
        %2700 = vmatprep.subr.mxu0 0.0
        %2701 = vmatpush1.msra.mxu0 %v2661
        %2702 = vmatprep.subr.mxu0 0.0
        %2703 = vmatpush1.msra.mxu0 %v2660
        %2704 = vmatprep.subr.mxu0 0.0
        %2705 = vmatpush1.msra.mxu0 %v2659
        %2706 = vmatprep.subr.mxu0 0.0
        %2707 = vmatpush1.msra.mxu0 %v2658
        %2708 = vmatprep.subr.mxu0 0.0
        %2709 = vmatpush1.msra.mxu0 %v2657
        %2710 = vmatprep.subr.mxu0 0.0
        %2711 = vmatpush2.msra.mxu0 0.0
        %2712 = vmatprep.subr.mxu0 0.0
        %2713 = vmatpush2.msra.mxu0 0.0
        %2714 = vmatprep.subr.mxu0 0.0
        %2715 = vmatpush2.msra.mxu0 0.0
        %2716 = vmatprep.subr.mxu0 0.0
        %2717 = vmatpush2.msra.mxu0 0.0
        %2718 = vmatprep.subr.mxu0 0.0
        %2719 = vmatpush2.msra.mxu0 0.0
        %2720 = vmatprep.subr.mxu0 0.0
        %2721 = vmatpush2.msra.mxu0 0.0
        %2722 = vmatprep.subr.mxu0 0.0
        %2723 = vmatpush2.msra.mxu0 0.0
        %2724 = vmatprep.subr.mxu0 0.0
        %2725 = vmatpush2.msra.mxu0 0.0
        %2726 = vmatprep.subr.mxu0 0.0
        %2727 = vmatpush2.msra.mxu0 0.0
        %2728 = vmatprep.subr.mxu0 0.0
        %2729 = vmatpush2.msra.mxu0 0.0
        %2730 = vmatprep.subr.mxu0 0.0
        %2731 = vmatpush2.msra.mxu0 0.0
        %2732 = vmatprep.subr.mxu0 0.0
        %2733 = vmatpush2.msra.mxu0 0.0
        %2734 = vmatprep.subr.mxu0 0.0
        %2735 = vmatpush2.msra.mxu0 0.0
        %2736 = vmatprep.subr.mxu0 0.0
        %2737 = vmatpush2.msra.mxu0 0.0
        %2738 = vmatprep.subr.mxu0 0.0
        %2739 = vmatpush2.msra.mxu0 0.0
        %2740 = vmatprep.subr.mxu0 0.0
        %2741 = vmatpush2.msra.mxu0 0.0
        %2742 = vmatprep.mubr.f32.mxu0 0.0
        %2743 = vmatmul.mubr.f32.gmra.mxu0 %v2655
        %v2744 = vpop.f32.mrf.mxu0
        %v2745 = vadd.f32 %v2677, %v2744
        %v2746 = vpop.f32.mrf.mxu0
        %2747 = vdwg.mxu0
        %v2748 = vadd.f32 %v2555, %v2745
        %v2749 = vmul.f32 %v2748, %v2748
        %v2750 = vsel %vm456, %v2749, 0.0
        %2751 = vadd.xlane.f32.xlu0 %v2750
        %v2752 = vpop.xlane.xlu0 %2751
        %v2753 = vmul.f32 %v2752, %v460
        %v2754 = vadd.f32 %v2753, 1e-08
        %v2755 = vrsqrt.pop %v2754
        %v2756 = vmul.f32 %v2748, %v2755
        %vm2757 = vcmask 57344
        %v2758 = vsel %vm2757, %v452, 0.0
        %2759 = vadd.xlane.f32.xlu0 %v2758
        %v2760 = vpop.xlane.xlu0 %2759
        %v2761 = vmax.f32 %v2760, 1.0
        %v2763 = vsel %vm656, %v452, 0
        %2765 = vmatprep.subr.mxu0 0.0
        %2766 = vmatpush1.msra.mxu0 0.0
        %2767 = vmatprep.subr.mxu0 0.0
        %2768 = vmatpush1.msra.mxu0 0.0
        %2769 = vmatprep.subr.mxu0 0.0
        %2770 = vmatpush1.msra.mxu0 0.0
        %2771 = vmatprep.subr.mxu0 0.0
        %2772 = vmatpush1.msra.mxu0 0.0
        %2773 = vmatprep.subr.mxu0 0.0
        %2774 = vmatpush1.msra.mxu0 0.0
        %2775 = vmatprep.subr.mxu0 0.0
        %2776 = vmatpush1.msra.mxu0 0.0
        %2777 = vmatprep.subr.mxu0 0.0
        %2778 = vmatpush1.msra.mxu0 0.0
        %2779 = vmatprep.subr.mxu0 0.0
        %2780 = vmatpush1.msra.mxu0 0.0
        %2781 = vmatprep.subr.mxu0 0.0
        %2782 = vmatpush1.msra.mxu0 0.0
        %2783 = vmatprep.subr.mxu0 0.0
        %2784 = vmatpush1.msra.mxu0 0.0
        %2785 = vmatprep.subr.mxu0 0.0
        %2786 = vmatpush1.msra.mxu0 0.0
        %2787 = vmatprep.subr.mxu0 0.0
        %2788 = vmatpush1.msra.mxu0 0.0
        %2789 = vmatprep.subr.mxu0 0.0
        %2790 = vmatpush1.msra.mxu0 0.0
        %2791 = vmatprep.subr.mxu0 0.0
        %2792 = vmatpush1.msra.mxu0 0.0
        %2793 = vmatprep.subr.mxu0 0.0
        %2794 = vmatpush1.msra.mxu0 0.0
        %2795 = vmatprep.subr.mxu0 0.0
        %2796 = vmatpush1.msra.mxu0 %v2756
        %2797 = vmatprep.subr.mxu0 0.0
        %2798 = vmatpush2.msra.mxu0 0.0
        %2799 = vmatprep.subr.mxu0 0.0
        %2800 = vmatpush2.msra.mxu0 0.0
        %2801 = vmatprep.subr.mxu0 0.0
        %2802 = vmatpush2.msra.mxu0 0.0
        %2803 = vmatprep.subr.mxu0 0.0
        %2804 = vmatpush2.msra.mxu0 0.0
        %2805 = vmatprep.subr.mxu0 0.0
        %2806 = vmatpush2.msra.mxu0 0.0
        %2807 = vmatprep.subr.mxu0 0.0
        %2808 = vmatpush2.msra.mxu0 0.0
        %2809 = vmatprep.subr.mxu0 0.0
        %2810 = vmatpush2.msra.mxu0 0.0
        %2811 = vmatprep.subr.mxu0 0.0
        %2812 = vmatpush2.msra.mxu0 0.0
        %2813 = vmatprep.subr.mxu0 0.0
        %2814 = vmatpush2.msra.mxu0 0.0
        %2815 = vmatprep.subr.mxu0 0.0
        %2816 = vmatpush2.msra.mxu0 0.0
        %2817 = vmatprep.subr.mxu0 0.0
        %2818 = vmatpush2.msra.mxu0 0.0
        %2819 = vmatprep.subr.mxu0 0.0
        %2820 = vmatpush2.msra.mxu0 0.0
        %2821 = vmatprep.subr.mxu0 0.0
        %2822 = vmatpush2.msra.mxu0 0.0
        %2823 = vmatprep.subr.mxu0 0.0
        %2824 = vmatpush2.msra.mxu0 0.0
        %2825 = vmatprep.subr.mxu0 0.0
        %2826 = vmatpush2.msra.mxu0 0.0
        %2827 = vmatprep.subr.mxu0 0.0
        %2828 = vmatpush2.msra.mxu0 0.0
        %2829 = vmatprep.mubr.f32.mxu0 0.0
        %2830 = vmatmul.mubr.f32.gmra.mxu0 %v2763
        %v2831 = vpop.f32.mrf.mxu0
        %v2832 = vadd.f32 0.0, %v2831
        %v2833 = vpop.f32.mrf.mxu0
        %2834 = vdwg.mxu0
        %v2835 = vrcp.pop %v2761
        %v2836 = vmul.f32 %v2832, %v2835
        %v2837 = vld [vmem:[%s360] sm:$0xff]
        %v2838 = vld [vmem:[%s360 + $0x8] sm:$0xff]
        %v2839 = vld [vmem:[%s7 + $0xe0] sm:$0xf]
        %v2840 = vld [vmem:[%s7 + $0xe4] sm:$0xf]
        %v2841 = vld [vmem:[%s7 + $0xe8] sm:$0xf]
        %vm2844 = vcmask 1040384
        %v2845 = vrot.slane %v2837, 7
        %v2846 = vrot.slane %v2838, 7
        %v2847 = vsel %vm2844, %v2845, %v2846
        %v2849 = vsel %vm2844, 0.0, %v2845
        %vm2850 = vcmask 31744
        %v2851 = vsel %vm2850, %v2837, 0
        %v2853 = vsel %vm2850, %v2838, 0
        %vm2855 = vcmask 1043456
        %v2857 = vsel %vm2855, %v2840, 0
        %2859 = vmatprep.subr.mxu0 0.0
        %2860 = vmatpush1.msra.mxu0 0.0
        %2861 = vmatprep.subr.mxu0 0.0
        %2862 = vmatpush1.msra.mxu0 0.0
        %2863 = vmatprep.subr.mxu0 0.0
        %2864 = vmatpush1.msra.mxu0 0.0
        %2865 = vmatprep.subr.mxu0 0.0
        %2866 = vmatpush1.msra.mxu0 0.0
        %2867 = vmatprep.subr.mxu0 0.0
        %2868 = vmatpush1.msra.mxu0 0.0
        %2869 = vmatprep.subr.mxu0 0.0
        %2870 = vmatpush1.msra.mxu0 0.0
        %2871 = vmatprep.subr.mxu0 0.0
        %2872 = vmatpush1.msra.mxu0 0.0
        %2873 = vmatprep.subr.mxu0 0.0
        %2874 = vmatpush1.msra.mxu0 0.0
        %2875 = vmatprep.subr.mxu0 0.0
        %2876 = vmatpush1.msra.mxu0 0.0
        %2877 = vmatprep.subr.mxu0 0.0
        %2878 = vmatpush1.msra.mxu0 0.0
        %2879 = vmatprep.subr.mxu0 0.0
        %2880 = vmatpush1.msra.mxu0 0.0
        %2881 = vmatprep.subr.mxu0 0.0
        %2882 = vmatpush1.msra.mxu0 0.0
        %2883 = vmatprep.subr.mxu0 0.0
        %2884 = vmatpush1.msra.mxu0 0.0
        %2885 = vmatprep.subr.mxu0 0.0
        %2886 = vmatpush1.msra.mxu0 0.0
        %2887 = vmatprep.subr.mxu0 0.0
        %2888 = vmatpush1.msra.mxu0 0.0
        %2889 = vmatprep.subr.mxu0 0.0
        %2890 = vmatpush1.msra.mxu0 %v2857
        %2891 = vmatprep.subr.mxu0 0.0
        %2892 = vmatpush2.msra.mxu0 0.0
        %2893 = vmatprep.subr.mxu0 0.0
        %2894 = vmatpush2.msra.mxu0 0.0
        %2895 = vmatprep.subr.mxu0 0.0
        %2896 = vmatpush2.msra.mxu0 0.0
        %2897 = vmatprep.subr.mxu0 0.0
        %2898 = vmatpush2.msra.mxu0 0.0
        %2899 = vmatprep.subr.mxu0 0.0
        %2900 = vmatpush2.msra.mxu0 0.0
        %2901 = vmatprep.subr.mxu0 0.0
        %2902 = vmatpush2.msra.mxu0 0.0
        %2903 = vmatprep.subr.mxu0 0.0
        %2904 = vmatpush2.msra.mxu0 0.0
        %2905 = vmatprep.subr.mxu0 0.0
        %2906 = vmatpush2.msra.mxu0 0.0
        %2907 = vmatprep.subr.mxu0 0.0
        %2908 = vmatpush2.msra.mxu0 0.0
        %2909 = vmatprep.subr.mxu0 0.0
        %2910 = vmatpush2.msra.mxu0 0.0
        %2911 = vmatprep.subr.mxu0 0.0
        %2912 = vmatpush2.msra.mxu0 0.0
        %2913 = vmatprep.subr.mxu0 0.0
        %2914 = vmatpush2.msra.mxu0 0.0
        %2915 = vmatprep.subr.mxu0 0.0
        %2916 = vmatpush2.msra.mxu0 0.0
        %2917 = vmatprep.subr.mxu0 0.0
        %2918 = vmatpush2.msra.mxu0 0.0
        %2919 = vmatprep.subr.mxu0 0.0
        %2920 = vmatpush2.msra.mxu0 0.0
        %2921 = vmatprep.subr.mxu0 0.0
        %2922 = vmatpush2.msra.mxu0 0.0
        %2923 = vmatprep.mubr.f32.mxu0 0.0
        %2924 = vmatmul.mubr.f32.gmra.mxu0 %v2851
        %v2925 = vpop.f32.mrf.mxu0
        %v2926 = vadd.f32 0.0, %v2925
        %v2927 = vpop.f32.mrf.mxu0
        %2928 = vmatprep.mubr.f32.mxu0 0.0
        %2929 = vmatmul.mubr.f32.gmra.mxu0 %v2853
        %v2930 = vpop.f32.mrf.mxu0
        %v2931 = vadd.f32 0.0, %v2930
        %v2932 = vpop.f32.mrf.mxu0
        %2933 = vdwg.mxu0
        %v2935 = vsel %vm2850, %v2849, 0
        %v2937 = vsel %vm2850, %v2847, 0
        %v2940 = vsel %vm2855, %v2839, 0
        %2942 = vmatprep.subr.mxu0 0.0
        %2943 = vmatpush1.msra.mxu0 0.0
        %2944 = vmatprep.subr.mxu0 0.0
        %2945 = vmatpush1.msra.mxu0 0.0
        %2946 = vmatprep.subr.mxu0 0.0
        %2947 = vmatpush1.msra.mxu0 0.0
        %2948 = vmatprep.subr.mxu0 0.0
        %2949 = vmatpush1.msra.mxu0 0.0
        %2950 = vmatprep.subr.mxu0 0.0
        %2951 = vmatpush1.msra.mxu0 0.0
        %2952 = vmatprep.subr.mxu0 0.0
        %2953 = vmatpush1.msra.mxu0 0.0
        %2954 = vmatprep.subr.mxu0 0.0
        %2955 = vmatpush1.msra.mxu0 0.0
        %2956 = vmatprep.subr.mxu0 0.0
        %2957 = vmatpush1.msra.mxu0 0.0
        %2958 = vmatprep.subr.mxu0 0.0
        %2959 = vmatpush1.msra.mxu0 0.0
        %2960 = vmatprep.subr.mxu0 0.0
        %2961 = vmatpush1.msra.mxu0 0.0
        %2962 = vmatprep.subr.mxu0 0.0
        %2963 = vmatpush1.msra.mxu0 0.0
        %2964 = vmatprep.subr.mxu0 0.0
        %2965 = vmatpush1.msra.mxu0 0.0
        %2966 = vmatprep.subr.mxu0 0.0
        %2967 = vmatpush1.msra.mxu0 0.0
        %2968 = vmatprep.subr.mxu0 0.0
        %2969 = vmatpush1.msra.mxu0 0.0
        %2970 = vmatprep.subr.mxu0 0.0
        %2971 = vmatpush1.msra.mxu0 0.0
        %2972 = vmatprep.subr.mxu0 0.0
        %2973 = vmatpush1.msra.mxu0 %v2940
        %2974 = vmatprep.subr.mxu0 0.0
        %2975 = vmatpush2.msra.mxu0 0.0
        %2976 = vmatprep.subr.mxu0 0.0
        %2977 = vmatpush2.msra.mxu0 0.0
        %2978 = vmatprep.subr.mxu0 0.0
        %2979 = vmatpush2.msra.mxu0 0.0
        %2980 = vmatprep.subr.mxu0 0.0
        %2981 = vmatpush2.msra.mxu0 0.0
        %2982 = vmatprep.subr.mxu0 0.0
        %2983 = vmatpush2.msra.mxu0 0.0
        %2984 = vmatprep.subr.mxu0 0.0
        %2985 = vmatpush2.msra.mxu0 0.0
        %2986 = vmatprep.subr.mxu0 0.0
        %2987 = vmatpush2.msra.mxu0 0.0
        %2988 = vmatprep.subr.mxu0 0.0
        %2989 = vmatpush2.msra.mxu0 0.0
        %2990 = vmatprep.subr.mxu0 0.0
        %2991 = vmatpush2.msra.mxu0 0.0
        %2992 = vmatprep.subr.mxu0 0.0
        %2993 = vmatpush2.msra.mxu0 0.0
        %2994 = vmatprep.subr.mxu0 0.0
        %2995 = vmatpush2.msra.mxu0 0.0
        %2996 = vmatprep.subr.mxu0 0.0
        %2997 = vmatpush2.msra.mxu0 0.0
        %2998 = vmatprep.subr.mxu0 0.0
        %2999 = vmatpush2.msra.mxu0 0.0
        %3000 = vmatprep.subr.mxu0 0.0
        %3001 = vmatpush2.msra.mxu0 0.0
        %3002 = vmatprep.subr.mxu0 0.0
        %3003 = vmatpush2.msra.mxu0 0.0
        %3004 = vmatprep.subr.mxu0 0.0
        %3005 = vmatpush2.msra.mxu0 0.0
        %3006 = vmatprep.mubr.f32.mxu0 0.0
        %3007 = vmatmul.mubr.f32.gmra.mxu0 %v2935
        %v3008 = vpop.f32.mrf.mxu0
        %v3009 = vadd.f32 %v2926, %v3008
        %v3010 = vpop.f32.mrf.mxu0
        %3011 = vmatprep.mubr.f32.mxu0 0.0
        %3012 = vmatmul.mubr.f32.gmra.mxu0 %v2937
        %v3013 = vpop.f32.mrf.mxu0
        %v3014 = vadd.f32 %v2931, %v3013
        %v3015 = vpop.f32.mrf.mxu0
        %3016 = vdwg.mxu0
        %vm3017 = vcmask 1046528
        %v3018 = vrot.slane %v2837, 1
        %v3019 = vrot.slane %v2838, 1
        %v3020 = vsel %vm3017, %v3018, %v3019
        %v3022 = vsel %vm3017, %v3019, 0.0
        %v3023 = vsel %vm2850, %v3020, 0
        %v3026 = vsel %vm2850, %v3022, 0
        %v3029 = vsel %vm2855, %v2841, 0
        %3031 = vmatprep.subr.mxu0 0.0
        %3032 = vmatpush1.msra.mxu0 0.0
        %3033 = vmatprep.subr.mxu0 0.0
        %3034 = vmatpush1.msra.mxu0 0.0
        %3035 = vmatprep.subr.mxu0 0.0
        %3036 = vmatpush1.msra.mxu0 0.0
        %3037 = vmatprep.subr.mxu0 0.0
        %3038 = vmatpush1.msra.mxu0 0.0
        %3039 = vmatprep.subr.mxu0 0.0
        %3040 = vmatpush1.msra.mxu0 0.0
        %3041 = vmatprep.subr.mxu0 0.0
        %3042 = vmatpush1.msra.mxu0 0.0
        %3043 = vmatprep.subr.mxu0 0.0
        %3044 = vmatpush1.msra.mxu0 0.0
        %3045 = vmatprep.subr.mxu0 0.0
        %3046 = vmatpush1.msra.mxu0 0.0
        %3047 = vmatprep.subr.mxu0 0.0
        %3048 = vmatpush1.msra.mxu0 0.0
        %3049 = vmatprep.subr.mxu0 0.0
        %3050 = vmatpush1.msra.mxu0 0.0
        %3051 = vmatprep.subr.mxu0 0.0
        %3052 = vmatpush1.msra.mxu0 0.0
        %3053 = vmatprep.subr.mxu0 0.0
        %3054 = vmatpush1.msra.mxu0 0.0
        %3055 = vmatprep.subr.mxu0 0.0
        %3056 = vmatpush1.msra.mxu0 0.0
        %3057 = vmatprep.subr.mxu0 0.0
        %3058 = vmatpush1.msra.mxu0 0.0
        %3059 = vmatprep.subr.mxu0 0.0
        %3060 = vmatpush1.msra.mxu0 0.0
        %3061 = vmatprep.subr.mxu0 0.0
        %3062 = vmatpush1.msra.mxu0 %v3029
        %3063 = vmatprep.subr.mxu0 0.0
        %3064 = vmatpush2.msra.mxu0 0.0
        %3065 = vmatprep.subr.mxu0 0.0
        %3066 = vmatpush2.msra.mxu0 0.0
        %3067 = vmatprep.subr.mxu0 0.0
        %3068 = vmatpush2.msra.mxu0 0.0
        %3069 = vmatprep.subr.mxu0 0.0
        %3070 = vmatpush2.msra.mxu0 0.0
        %3071 = vmatprep.subr.mxu0 0.0
        %3072 = vmatpush2.msra.mxu0 0.0
        %3073 = vmatprep.subr.mxu0 0.0
        %3074 = vmatpush2.msra.mxu0 0.0
        %3075 = vmatprep.subr.mxu0 0.0
        %3076 = vmatpush2.msra.mxu0 0.0
        %3077 = vmatprep.subr.mxu0 0.0
        %3078 = vmatpush2.msra.mxu0 0.0
        %3079 = vmatprep.subr.mxu0 0.0
        %3080 = vmatpush2.msra.mxu0 0.0
        %3081 = vmatprep.subr.mxu0 0.0
        %3082 = vmatpush2.msra.mxu0 0.0
        %3083 = vmatprep.subr.mxu0 0.0
        %3084 = vmatpush2.msra.mxu0 0.0
        %3085 = vmatprep.subr.mxu0 0.0
        %3086 = vmatpush2.msra.mxu0 0.0
        %3087 = vmatprep.subr.mxu0 0.0
        %3088 = vmatpush2.msra.mxu0 0.0
        %3089 = vmatprep.subr.mxu0 0.0
        %3090 = vmatpush2.msra.mxu0 0.0
        %3091 = vmatprep.subr.mxu0 0.0
        %3092 = vmatpush2.msra.mxu0 0.0
        %3093 = vmatprep.subr.mxu0 0.0
        %3094 = vmatpush2.msra.mxu0 0.0
        %3095 = vmatprep.mubr.f32.mxu0 0.0
        %3096 = vmatmul.mubr.f32.gmra.mxu0 %v3023
        %v3097 = vpop.f32.mrf.mxu0
        %v3098 = vadd.f32 0.0, %v3097
        %v3099 = vpop.f32.mrf.mxu0
        %3100 = vmatprep.mubr.f32.mxu0 0.0
        %3101 = vmatmul.mubr.f32.gmra.mxu0 %v3026
        %v3102 = vpop.f32.mrf.mxu0
        %v3103 = vadd.f32 0.0, %v3102
        %v3104 = vpop.f32.mrf.mxu0
        %3105 = vdwg.mxu0
        %v3106 = vadd.f32 %v3009, %v3098
        %v3107 = vadd.f32 %v3014, %v3103
        %v3108 = vld [vmem:[%s8 + $0x1c] sm:$0x1]
        %v3109 = vlaneseq
        %v3110 = vshrl.u32 %v3109, 7
        %v3111 = vsub.s32 0, %v3110
        %v3112 = vrot.slane %v3108, %v3111
        %v3113 = vadd.f32 %v3106, %v3112
        %v3114 = vadd.f32 %v3107, %v3112
        %v3115 = vld [vmem:[%s7 + $0x120] sm:$0xff]
        %v3116 = vld [vmem:[%s7 + $0x128] sm:$0xff]
        %v3117 = vld [vmem:[%s7 + $0x130] sm:$0xff]
        %v3119 = vsel %vm378, %v3113, 0
        %v3122 = vsel %vm378, %v3114, 0
        %3124 = vmatprep.subr.mxu0 0.0
        %3125 = vmatpush1.msra.mxu0 0.0
        %3126 = vmatprep.subr.mxu0 0.0
        %3127 = vmatpush1.msra.mxu0 0.0
        %3128 = vmatprep.subr.mxu0 0.0
        %3129 = vmatpush1.msra.mxu0 0.0
        %3130 = vmatprep.subr.mxu0 0.0
        %3131 = vmatpush1.msra.mxu0 0.0
        %3132 = vmatprep.subr.mxu0 0.0
        %3133 = vmatpush1.msra.mxu0 0.0
        %3134 = vmatprep.subr.mxu0 0.0
        %3135 = vmatpush1.msra.mxu0 0.0
        %3136 = vmatprep.subr.mxu0 0.0
        %3137 = vmatpush1.msra.mxu0 0.0
        %3138 = vmatprep.subr.mxu0 0.0
        %3139 = vmatpush1.msra.mxu0 0.0
        %3140 = vmatprep.subr.mxu0 0.0
        %3141 = vmatpush1.msra.mxu0 0.0
        %3142 = vmatprep.subr.mxu0 0.0
        %3143 = vmatpush1.msra.mxu0 0.0
        %3144 = vmatprep.subr.mxu0 0.0
        %3145 = vmatpush1.msra.mxu0 0.0
        %3146 = vmatprep.subr.mxu0 0.0
        %3147 = vmatpush1.msra.mxu0 0.0
        %3148 = vmatprep.subr.mxu0 0.0
        %3149 = vmatpush1.msra.mxu0 0.0
        %3150 = vmatprep.subr.mxu0 0.0
        %3151 = vmatpush1.msra.mxu0 0.0
        %3152 = vmatprep.subr.mxu0 0.0
        %3153 = vmatpush1.msra.mxu0 %v3116
        %3154 = vmatprep.subr.mxu0 0.0
        %3155 = vmatpush1.msra.mxu0 %v3115
        %3156 = vmatprep.subr.mxu0 0.0
        %3157 = vmatpush2.msra.mxu0 0.0
        %3158 = vmatprep.subr.mxu0 0.0
        %3159 = vmatpush2.msra.mxu0 0.0
        %3160 = vmatprep.subr.mxu0 0.0
        %3161 = vmatpush2.msra.mxu0 0.0
        %3162 = vmatprep.subr.mxu0 0.0
        %3163 = vmatpush2.msra.mxu0 0.0
        %3164 = vmatprep.subr.mxu0 0.0
        %3165 = vmatpush2.msra.mxu0 0.0
        %3166 = vmatprep.subr.mxu0 0.0
        %3167 = vmatpush2.msra.mxu0 0.0
        %3168 = vmatprep.subr.mxu0 0.0
        %3169 = vmatpush2.msra.mxu0 0.0
        %3170 = vmatprep.subr.mxu0 0.0
        %3171 = vmatpush2.msra.mxu0 0.0
        %3172 = vmatprep.subr.mxu0 0.0
        %3173 = vmatpush2.msra.mxu0 0.0
        %3174 = vmatprep.subr.mxu0 0.0
        %3175 = vmatpush2.msra.mxu0 0.0
        %3176 = vmatprep.subr.mxu0 0.0
        %3177 = vmatpush2.msra.mxu0 0.0
        %3178 = vmatprep.subr.mxu0 0.0
        %3179 = vmatpush2.msra.mxu0 0.0
        %3180 = vmatprep.subr.mxu0 0.0
        %3181 = vmatpush2.msra.mxu0 0.0
        %3182 = vmatprep.subr.mxu0 0.0
        %3183 = vmatpush2.msra.mxu0 0.0
        %3184 = vmatprep.subr.mxu0 0.0
        %3185 = vmatpush2.msra.mxu0 0.0
        %3186 = vmatprep.subr.mxu0 0.0
        %3187 = vmatpush2.msra.mxu0 0.0
        %3188 = vmatprep.mubr.f32.mxu0 0.0
        %3189 = vmatmul.mubr.f32.gmra.mxu0 %v3119
        %v3190 = vpop.f32.mrf.mxu0
        %v3191 = vadd.f32 0.0, %v3190
        %v3192 = vpop.f32.mrf.mxu0
        %3193 = vmatprep.mubr.f32.mxu0 0.0
        %3194 = vmatmul.mubr.f32.gmra.mxu0 %v3122
        %v3195 = vpop.f32.mrf.mxu0
        %v3196 = vadd.f32 0.0, %v3195
        %v3197 = vpop.f32.mrf.mxu0
        %3198 = vdwg.mxu0
        %v3199 = vsel %vm656, %v3191, 0.0
        %v3200 = vsel %vm656, %v3196, 0.0
        %v3201 = vadd.f32 %v3199, %v3200
        %v3202 = vrot.slane %v3201, 4
        %v3203 = vadd.f32 %v3201, %v3202
        %v3204 = vrot.slane %v3203, 2
        %v3205 = vadd.f32 %v3203, %v3204
        %v3206 = vrot.slane %v3205, 1
        %v3207 = vadd.f32 %v3205, %v3206
        %v3208 = vmul.f32 %v3207, 0.03125
        %v3210 = vsel %vm656, %v3208, 0
        %3212 = vmatprep.subr.mxu0 0.0
        %3213 = vmatpush1.msra.mxu0 0.0
        %3214 = vmatprep.subr.mxu0 0.0
        %3215 = vmatpush1.msra.mxu0 0.0
        %3216 = vmatprep.subr.mxu0 0.0
        %3217 = vmatpush1.msra.mxu0 0.0
        %3218 = vmatprep.subr.mxu0 0.0
        %3219 = vmatpush1.msra.mxu0 0.0
        %3220 = vmatprep.subr.mxu0 0.0
        %3221 = vmatpush1.msra.mxu0 0.0
        %3222 = vmatprep.subr.mxu0 0.0
        %3223 = vmatpush1.msra.mxu0 0.0
        %3224 = vmatprep.subr.mxu0 0.0
        %3225 = vmatpush1.msra.mxu0 0.0
        %3226 = vmatprep.subr.mxu0 0.0
        %3227 = vmatpush1.msra.mxu0 0.0
        %3228 = vmatprep.subr.mxu0 0.0
        %3229 = vmatpush1.msra.mxu0 0.0
        %3230 = vmatprep.subr.mxu0 0.0
        %3231 = vmatpush1.msra.mxu0 0.0
        %3232 = vmatprep.subr.mxu0 0.0
        %3233 = vmatpush1.msra.mxu0 0.0
        %3234 = vmatprep.subr.mxu0 0.0
        %3235 = vmatpush1.msra.mxu0 0.0
        %3236 = vmatprep.subr.mxu0 0.0
        %3237 = vmatpush1.msra.mxu0 0.0
        %3238 = vmatprep.subr.mxu0 0.0
        %3239 = vmatpush1.msra.mxu0 0.0
        %3240 = vmatprep.subr.mxu0 0.0
        %3241 = vmatpush1.msra.mxu0 0.0
        %3242 = vmatprep.subr.mxu0 0.0
        %3243 = vmatpush1.msra.mxu0 %v3117
        %3244 = vmatprep.subr.mxu0 0.0
        %3245 = vmatpush2.msra.mxu0 0.0
        %3246 = vmatprep.subr.mxu0 0.0
        %3247 = vmatpush2.msra.mxu0 0.0
        %3248 = vmatprep.subr.mxu0 0.0
        %3249 = vmatpush2.msra.mxu0 0.0
        %3250 = vmatprep.subr.mxu0 0.0
        %3251 = vmatpush2.msra.mxu0 0.0
        %3252 = vmatprep.subr.mxu0 0.0
        %3253 = vmatpush2.msra.mxu0 0.0
        %3254 = vmatprep.subr.mxu0 0.0
        %3255 = vmatpush2.msra.mxu0 0.0
        %3256 = vmatprep.subr.mxu0 0.0
        %3257 = vmatpush2.msra.mxu0 0.0
        %3258 = vmatprep.subr.mxu0 0.0
        %3259 = vmatpush2.msra.mxu0 0.0
        %3260 = vmatprep.subr.mxu0 0.0
        %3261 = vmatpush2.msra.mxu0 0.0
        %3262 = vmatprep.subr.mxu0 0.0
        %3263 = vmatpush2.msra.mxu0 0.0
        %3264 = vmatprep.subr.mxu0 0.0
        %3265 = vmatpush2.msra.mxu0 0.0
        %3266 = vmatprep.subr.mxu0 0.0
        %3267 = vmatpush2.msra.mxu0 0.0
        %3268 = vmatprep.subr.mxu0 0.0
        %3269 = vmatpush2.msra.mxu0 0.0
        %3270 = vmatprep.subr.mxu0 0.0
        %3271 = vmatpush2.msra.mxu0 0.0
        %3272 = vmatprep.subr.mxu0 0.0
        %3273 = vmatpush2.msra.mxu0 0.0
        %3274 = vmatprep.subr.mxu0 0.0
        %3275 = vmatpush2.msra.mxu0 0.0
        %3276 = vmatprep.mubr.f32.mxu0 0.0
        %3277 = vmatmul.mubr.f32.gmra.mxu0 %v3210
        %v3278 = vpop.f32.mrf.mxu0
        %v3279 = vadd.f32 0.0, %v3278
        %v3280 = vpop.f32.mrf.mxu0
        %3281 = vdwg.mxu0
        %v3282 = vlaneseq
        %v3283 = vshrl.u32 %v3282, 7
        %v3284 = vsub.s32 0, %v3283
        %v3285 = vrot.slane %v3279, %v3284
        %v3286 = vsub.f32 %v3113, %v3285
        %v3287 = vsub.f32 %v3114, %v3285
        %v3288 = vmul.f32 %v3286, %v3286
        %v3289 = vmul.f32 %v3287, %v3287
        %v3291 = vsel %vm378, %v3288, 0
        %v3294 = vsel %vm378, %v3289, 0
        %3296 = vmatprep.subr.mxu0 0.0
        %3297 = vmatpush1.msra.mxu0 0.0
        %3298 = vmatprep.subr.mxu0 0.0
        %3299 = vmatpush1.msra.mxu0 0.0
        %3300 = vmatprep.subr.mxu0 0.0
        %3301 = vmatpush1.msra.mxu0 0.0
        %3302 = vmatprep.subr.mxu0 0.0
        %3303 = vmatpush1.msra.mxu0 0.0
        %3304 = vmatprep.subr.mxu0 0.0
        %3305 = vmatpush1.msra.mxu0 0.0
        %3306 = vmatprep.subr.mxu0 0.0
        %3307 = vmatpush1.msra.mxu0 0.0
        %3308 = vmatprep.subr.mxu0 0.0
        %3309 = vmatpush1.msra.mxu0 0.0
        %3310 = vmatprep.subr.mxu0 0.0
        %3311 = vmatpush1.msra.mxu0 0.0
        %3312 = vmatprep.subr.mxu0 0.0
        %3313 = vmatpush1.msra.mxu0 0.0
        %3314 = vmatprep.subr.mxu0 0.0
        %3315 = vmatpush1.msra.mxu0 0.0
        %3316 = vmatprep.subr.mxu0 0.0
        %3317 = vmatpush1.msra.mxu0 0.0
        %3318 = vmatprep.subr.mxu0 0.0
        %3319 = vmatpush1.msra.mxu0 0.0
        %3320 = vmatprep.subr.mxu0 0.0
        %3321 = vmatpush1.msra.mxu0 0.0
        %3322 = vmatprep.subr.mxu0 0.0
        %3323 = vmatpush1.msra.mxu0 0.0
        %3324 = vmatprep.subr.mxu0 0.0
        %3325 = vmatpush1.msra.mxu0 %v3116
        %3326 = vmatprep.subr.mxu0 0.0
        %3327 = vmatpush1.msra.mxu0 %v3115
        %3328 = vmatprep.subr.mxu0 0.0
        %3329 = vmatpush2.msra.mxu0 0.0
        %3330 = vmatprep.subr.mxu0 0.0
        %3331 = vmatpush2.msra.mxu0 0.0
        %3332 = vmatprep.subr.mxu0 0.0
        %3333 = vmatpush2.msra.mxu0 0.0
        %3334 = vmatprep.subr.mxu0 0.0
        %3335 = vmatpush2.msra.mxu0 0.0
        %3336 = vmatprep.subr.mxu0 0.0
        %3337 = vmatpush2.msra.mxu0 0.0
        %3338 = vmatprep.subr.mxu0 0.0
        %3339 = vmatpush2.msra.mxu0 0.0
        %3340 = vmatprep.subr.mxu0 0.0
        %3341 = vmatpush2.msra.mxu0 0.0
        %3342 = vmatprep.subr.mxu0 0.0
        %3343 = vmatpush2.msra.mxu0 0.0
        %3344 = vmatprep.subr.mxu0 0.0
        %3345 = vmatpush2.msra.mxu0 0.0
        %3346 = vmatprep.subr.mxu0 0.0
        %3347 = vmatpush2.msra.mxu0 0.0
        %3348 = vmatprep.subr.mxu0 0.0
        %3349 = vmatpush2.msra.mxu0 0.0
        %3350 = vmatprep.subr.mxu0 0.0
        %3351 = vmatpush2.msra.mxu0 0.0
        %3352 = vmatprep.subr.mxu0 0.0
        %3353 = vmatpush2.msra.mxu0 0.0
        %3354 = vmatprep.subr.mxu0 0.0
        %3355 = vmatpush2.msra.mxu0 0.0
        %3356 = vmatprep.subr.mxu0 0.0
        %3357 = vmatpush2.msra.mxu0 0.0
        %3358 = vmatprep.subr.mxu0 0.0
        %3359 = vmatpush2.msra.mxu0 0.0
        %3360 = vmatprep.mubr.f32.mxu0 0.0
        %3361 = vmatmul.mubr.f32.gmra.mxu0 %v3291
        %v3362 = vpop.f32.mrf.mxu0
        %v3363 = vadd.f32 0.0, %v3362
        %v3364 = vpop.f32.mrf.mxu0
        %3365 = vmatprep.mubr.f32.mxu0 0.0
        %3366 = vmatmul.mubr.f32.gmra.mxu0 %v3294
        %v3367 = vpop.f32.mrf.mxu0
        %v3368 = vadd.f32 0.0, %v3367
        %v3369 = vpop.f32.mrf.mxu0
        %3370 = vdwg.mxu0
        %v3371 = vsel %vm656, %v3363, 0.0
        %v3372 = vsel %vm656, %v3368, 0.0
        %v3373 = vadd.f32 %v3371, %v3372
        %v3374 = vrot.slane %v3373, 4
        %v3375 = vadd.f32 %v3373, %v3374
        %v3376 = vrot.slane %v3375, 2
        %v3377 = vadd.f32 %v3375, %v3376
        %v3378 = vrot.slane %v3377, 1
        %v3379 = vadd.f32 %v3377, %v3378
        %v3380 = vmul.f32 %v3379, 0.03125
        %v3381 = vadd.f32 %v3380, 1e-05
        %v3382 = vrsqrt.pop %v3381
        %v3384 = vsel %vm656, %v3382, 0
        %3386 = vmatprep.subr.mxu0 0.0
        %3387 = vmatpush1.msra.mxu0 0.0
        %3388 = vmatprep.subr.mxu0 0.0
        %3389 = vmatpush1.msra.mxu0 0.0
        %3390 = vmatprep.subr.mxu0 0.0
        %3391 = vmatpush1.msra.mxu0 0.0
        %3392 = vmatprep.subr.mxu0 0.0
        %3393 = vmatpush1.msra.mxu0 0.0
        %3394 = vmatprep.subr.mxu0 0.0
        %3395 = vmatpush1.msra.mxu0 0.0
        %3396 = vmatprep.subr.mxu0 0.0
        %3397 = vmatpush1.msra.mxu0 0.0
        %3398 = vmatprep.subr.mxu0 0.0
        %3399 = vmatpush1.msra.mxu0 0.0
        %3400 = vmatprep.subr.mxu0 0.0
        %3401 = vmatpush1.msra.mxu0 0.0
        %3402 = vmatprep.subr.mxu0 0.0
        %3403 = vmatpush1.msra.mxu0 0.0
        %3404 = vmatprep.subr.mxu0 0.0
        %3405 = vmatpush1.msra.mxu0 0.0
        %3406 = vmatprep.subr.mxu0 0.0
        %3407 = vmatpush1.msra.mxu0 0.0
        %3408 = vmatprep.subr.mxu0 0.0
        %3409 = vmatpush1.msra.mxu0 0.0
        %3410 = vmatprep.subr.mxu0 0.0
        %3411 = vmatpush1.msra.mxu0 0.0
        %3412 = vmatprep.subr.mxu0 0.0
        %3413 = vmatpush1.msra.mxu0 0.0
        %3414 = vmatprep.subr.mxu0 0.0
        %3415 = vmatpush1.msra.mxu0 0.0
        %3416 = vmatprep.subr.mxu0 0.0
        %3417 = vmatpush1.msra.mxu0 %v3117
        %3418 = vmatprep.subr.mxu0 0.0
        %3419 = vmatpush2.msra.mxu0 0.0
        %3420 = vmatprep.subr.mxu0 0.0
        %3421 = vmatpush2.msra.mxu0 0.0
        %3422 = vmatprep.subr.mxu0 0.0
        %3423 = vmatpush2.msra.mxu0 0.0
        %3424 = vmatprep.subr.mxu0 0.0
        %3425 = vmatpush2.msra.mxu0 0.0
        %3426 = vmatprep.subr.mxu0 0.0
        %3427 = vmatpush2.msra.mxu0 0.0
        %3428 = vmatprep.subr.mxu0 0.0
        %3429 = vmatpush2.msra.mxu0 0.0
        %3430 = vmatprep.subr.mxu0 0.0
        %3431 = vmatpush2.msra.mxu0 0.0
        %3432 = vmatprep.subr.mxu0 0.0
        %3433 = vmatpush2.msra.mxu0 0.0
        %3434 = vmatprep.subr.mxu0 0.0
        %3435 = vmatpush2.msra.mxu0 0.0
        %3436 = vmatprep.subr.mxu0 0.0
        %3437 = vmatpush2.msra.mxu0 0.0
        %3438 = vmatprep.subr.mxu0 0.0
        %3439 = vmatpush2.msra.mxu0 0.0
        %3440 = vmatprep.subr.mxu0 0.0
        %3441 = vmatpush2.msra.mxu0 0.0
        %3442 = vmatprep.subr.mxu0 0.0
        %3443 = vmatpush2.msra.mxu0 0.0
        %3444 = vmatprep.subr.mxu0 0.0
        %3445 = vmatpush2.msra.mxu0 0.0
        %3446 = vmatprep.subr.mxu0 0.0
        %3447 = vmatpush2.msra.mxu0 0.0
        %3448 = vmatprep.subr.mxu0 0.0
        %3449 = vmatpush2.msra.mxu0 0.0
        %3450 = vmatprep.mubr.f32.mxu0 0.0
        %3451 = vmatmul.mubr.f32.gmra.mxu0 %v3384
        %v3452 = vpop.f32.mrf.mxu0
        %v3453 = vadd.f32 0.0, %v3452
        %v3454 = vpop.f32.mrf.mxu0
        %3455 = vdwg.mxu0
        %v3456 = vlaneseq
        %v3457 = vshrl.u32 %v3456, 7
        %v3458 = vsub.s32 0, %v3457
        %v3459 = vrot.slane %v3453, %v3458
        %v3460 = vmul.f32 %v3286, %v3459
        %v3461 = vmul.f32 %v3287, %v3459
        %v3462 = vld [vmem:[%s8 + $0x1d] sm:$0x1]
        %v3463 = vlaneseq
        %v3464 = vshrl.u32 %v3463, 7
        %v3465 = vsub.s32 0, %v3464
        %v3466 = vrot.slane %v3462, %v3465
        %v3467 = vmul.f32 %v3460, %v3466
        %v3468 = vmul.f32 %v3461, %v3466
        %v3469 = vld [vmem:[%s8 + $0x1e] sm:$0x1]
        %v3470 = vlaneseq
        %v3471 = vshrl.u32 %v3470, 7
        %v3472 = vsub.s32 0, %v3471
        %v3473 = vrot.slane %v3469, %v3472
        %v3474 = vadd.f32 %v3467, %v3473
        %v3475 = vadd.f32 %v3468, %v3473
        %vm3476 = vcmp.gt.f32.partialorder %v3474, 0.0
        %vm3477 = vcmp.gt.f32.partialorder %v3475, 0.0
        %v3478 = vmin.f32 %v3474, 0.0
        %v3479 = vmin.f32 %v3475, 0.0
        %v3480 = vmul.f32 %v3478, 1.442695
        %v3481 = vpow.pop %v3480
        %v3482 = vmul.f32 %v3479, 1.442695
        %v3483 = vpow.pop %v3482
        %v3484 = vsub.f32 %v3481, 1.0
        %v3485 = vsub.f32 %v3483, 1.0
        %v3486 = vsel %vm3476, %v3474, %v3484
        %v3487 = vsel %vm3477, %v3475, %v3485
        %v3488 = vld [vmem:[%s7 + $0xf0] sm:$0xff]
        %v3489 = vld [vmem:[%s7 + $0xf8] sm:$0xff]
        %v3490 = vld [vmem:[%s7 + $0x100] sm:$0xff]
        %v3491 = vld [vmem:[%s7 + $0x108] sm:$0xff]
        %v3492 = vld [vmem:[%s7 + $0x110] sm:$0xff]
        %v3493 = vld [vmem:[%s7 + $0x118] sm:$0xff]
        %v3496 = vrot.slane %v3486, 7
        %v3497 = vrot.slane %v3487, 7
        %v3498 = vsel %vm2844, %v3496, %v3497
        %v3500 = vsel %vm2844, 0.0, %v3496
        %v3501 = vsel %vm378, %v3486, 0
        %v3503 = vsel %vm378, %v3487, 0
        %3505 = vmatprep.subr.mxu0 0.0
        %3506 = vmatpush1.msra.mxu0 0.0
        %3507 = vmatprep.subr.mxu0 0.0
        %3508 = vmatpush1.msra.mxu0 0.0
        %3509 = vmatprep.subr.mxu0 0.0
        %3510 = vmatpush1.msra.mxu0 0.0
        %3511 = vmatprep.subr.mxu0 0.0
        %3512 = vmatpush1.msra.mxu0 0.0
        %3513 = vmatprep.subr.mxu0 0.0
        %3514 = vmatpush1.msra.mxu0 0.0
        %3515 = vmatprep.subr.mxu0 0.0
        %3516 = vmatpush1.msra.mxu0 0.0
        %3517 = vmatprep.subr.mxu0 0.0
        %3518 = vmatpush1.msra.mxu0 0.0
        %3519 = vmatprep.subr.mxu0 0.0
        %3520 = vmatpush1.msra.mxu0 0.0
        %3521 = vmatprep.subr.mxu0 0.0
        %3522 = vmatpush1.msra.mxu0 0.0
        %3523 = vmatprep.subr.mxu0 0.0
        %3524 = vmatpush1.msra.mxu0 0.0
        %3525 = vmatprep.subr.mxu0 0.0
        %3526 = vmatpush1.msra.mxu0 0.0
        %3527 = vmatprep.subr.mxu0 0.0
        %3528 = vmatpush1.msra.mxu0 0.0
        %3529 = vmatprep.subr.mxu0 0.0
        %3530 = vmatpush1.msra.mxu0 0.0
        %3531 = vmatprep.subr.mxu0 0.0
        %3532 = vmatpush1.msra.mxu0 0.0
        %3533 = vmatprep.subr.mxu0 0.0
        %3534 = vmatpush1.msra.mxu0 %v3491
        %3535 = vmatprep.subr.mxu0 0.0
        %3536 = vmatpush1.msra.mxu0 %v3490
        %3537 = vmatprep.subr.mxu0 0.0
        %3538 = vmatpush2.msra.mxu0 0.0
        %3539 = vmatprep.subr.mxu0 0.0
        %3540 = vmatpush2.msra.mxu0 0.0
        %3541 = vmatprep.subr.mxu0 0.0
        %3542 = vmatpush2.msra.mxu0 0.0
        %3543 = vmatprep.subr.mxu0 0.0
        %3544 = vmatpush2.msra.mxu0 0.0
        %3545 = vmatprep.subr.mxu0 0.0
        %3546 = vmatpush2.msra.mxu0 0.0
        %3547 = vmatprep.subr.mxu0 0.0
        %3548 = vmatpush2.msra.mxu0 0.0
        %3549 = vmatprep.subr.mxu0 0.0
        %3550 = vmatpush2.msra.mxu0 0.0
        %3551 = vmatprep.subr.mxu0 0.0
        %3552 = vmatpush2.msra.mxu0 0.0
        %3553 = vmatprep.subr.mxu0 0.0
        %3554 = vmatpush2.msra.mxu0 0.0
        %3555 = vmatprep.subr.mxu0 0.0
        %3556 = vmatpush2.msra.mxu0 0.0
        %3557 = vmatprep.subr.mxu0 0.0
        %3558 = vmatpush2.msra.mxu0 0.0
        %3559 = vmatprep.subr.mxu0 0.0
        %3560 = vmatpush2.msra.mxu0 0.0
        %3561 = vmatprep.subr.mxu0 0.0
        %3562 = vmatpush2.msra.mxu0 0.0
        %3563 = vmatprep.subr.mxu0 0.0
        %3564 = vmatpush2.msra.mxu0 0.0
        %3565 = vmatprep.subr.mxu0 0.0
        %3566 = vmatpush2.msra.mxu0 0.0
        %3567 = vmatprep.subr.mxu0 0.0
        %3568 = vmatpush2.msra.mxu0 0.0
        %3569 = vmatprep.mubr.f32.mxu0 0.0
        %3570 = vmatmul.mubr.f32.gmra.mxu0 %v3501
        %v3571 = vpop.f32.mrf.mxu0
        %v3572 = vadd.f32 0.0, %v3571
        %v3573 = vpop.f32.mrf.mxu0
        %3574 = vmatprep.mubr.f32.mxu0 0.0
        %3575 = vmatmul.mubr.f32.gmra.mxu0 %v3503
        %v3576 = vpop.f32.mrf.mxu0
        %v3577 = vadd.f32 0.0, %v3576
        %v3578 = vpop.f32.mrf.mxu0
        %3579 = vdwg.mxu0
        %v3581 = vsel %vm378, %v3500, 0
        %v3583 = vsel %vm378, %v3498, 0
        %3585 = vmatprep.subr.mxu0 0.0
        %3586 = vmatpush1.msra.mxu0 0.0
        %3587 = vmatprep.subr.mxu0 0.0
        %3588 = vmatpush1.msra.mxu0 0.0
        %3589 = vmatprep.subr.mxu0 0.0
        %3590 = vmatpush1.msra.mxu0 0.0
        %3591 = vmatprep.subr.mxu0 0.0
        %3592 = vmatpush1.msra.mxu0 0.0
        %3593 = vmatprep.subr.mxu0 0.0
        %3594 = vmatpush1.msra.mxu0 0.0
        %3595 = vmatprep.subr.mxu0 0.0
        %3596 = vmatpush1.msra.mxu0 0.0
        %3597 = vmatprep.subr.mxu0 0.0
        %3598 = vmatpush1.msra.mxu0 0.0
        %3599 = vmatprep.subr.mxu0 0.0
        %3600 = vmatpush1.msra.mxu0 0.0
        %3601 = vmatprep.subr.mxu0 0.0
        %3602 = vmatpush1.msra.mxu0 0.0
        %3603 = vmatprep.subr.mxu0 0.0
        %3604 = vmatpush1.msra.mxu0 0.0
        %3605 = vmatprep.subr.mxu0 0.0
        %3606 = vmatpush1.msra.mxu0 0.0
        %3607 = vmatprep.subr.mxu0 0.0
        %3608 = vmatpush1.msra.mxu0 0.0
        %3609 = vmatprep.subr.mxu0 0.0
        %3610 = vmatpush1.msra.mxu0 0.0
        %3611 = vmatprep.subr.mxu0 0.0
        %3612 = vmatpush1.msra.mxu0 0.0
        %3613 = vmatprep.subr.mxu0 0.0
        %3614 = vmatpush1.msra.mxu0 %v3489
        %3615 = vmatprep.subr.mxu0 0.0
        %3616 = vmatpush1.msra.mxu0 %v3488
        %3617 = vmatprep.subr.mxu0 0.0
        %3618 = vmatpush2.msra.mxu0 0.0
        %3619 = vmatprep.subr.mxu0 0.0
        %3620 = vmatpush2.msra.mxu0 0.0
        %3621 = vmatprep.subr.mxu0 0.0
        %3622 = vmatpush2.msra.mxu0 0.0
        %3623 = vmatprep.subr.mxu0 0.0
        %3624 = vmatpush2.msra.mxu0 0.0
        %3625 = vmatprep.subr.mxu0 0.0
        %3626 = vmatpush2.msra.mxu0 0.0
        %3627 = vmatprep.subr.mxu0 0.0
        %3628 = vmatpush2.msra.mxu0 0.0
        %3629 = vmatprep.subr.mxu0 0.0
        %3630 = vmatpush2.msra.mxu0 0.0
        %3631 = vmatprep.subr.mxu0 0.0
        %3632 = vmatpush2.msra.mxu0 0.0
        %3633 = vmatprep.subr.mxu0 0.0
        %3634 = vmatpush2.msra.mxu0 0.0
        %3635 = vmatprep.subr.mxu0 0.0
        %3636 = vmatpush2.msra.mxu0 0.0
        %3637 = vmatprep.subr.mxu0 0.0
        %3638 = vmatpush2.msra.mxu0 0.0
        %3639 = vmatprep.subr.mxu0 0.0
        %3640 = vmatpush2.msra.mxu0 0.0
        %3641 = vmatprep.subr.mxu0 0.0
        %3642 = vmatpush2.msra.mxu0 0.0
        %3643 = vmatprep.subr.mxu0 0.0
        %3644 = vmatpush2.msra.mxu0 0.0
        %3645 = vmatprep.subr.mxu0 0.0
        %3646 = vmatpush2.msra.mxu0 0.0
        %3647 = vmatprep.subr.mxu0 0.0
        %3648 = vmatpush2.msra.mxu0 0.0
        %3649 = vmatprep.mubr.f32.mxu0 0.0
        %3650 = vmatmul.mubr.f32.gmra.mxu0 %v3581
        %v3651 = vpop.f32.mrf.mxu0
        %v3652 = vadd.f32 %v3572, %v3651
        %v3653 = vpop.f32.mrf.mxu0
        %3654 = vmatprep.mubr.f32.mxu0 0.0
        %3655 = vmatmul.mubr.f32.gmra.mxu0 %v3583
        %v3656 = vpop.f32.mrf.mxu0
        %v3657 = vadd.f32 %v3577, %v3656
        %v3658 = vpop.f32.mrf.mxu0
        %3659 = vdwg.mxu0
        %v3660 = vrot.slane %v3486, 1
        %v3661 = vrot.slane %v3487, 1
        %v3662 = vsel %vm3017, %v3660, %v3661
        %v3664 = vsel %vm3017, %v3661, 0.0
        %v3665 = vsel %vm378, %v3662, 0
        %v3668 = vsel %vm378, %v3664, 0
        %3670 = vmatprep.subr.mxu0 0.0
        %3671 = vmatpush1.msra.mxu0 0.0
        %3672 = vmatprep.subr.mxu0 0.0
        %3673 = vmatpush1.msra.mxu0 0.0
        %3674 = vmatprep.subr.mxu0 0.0
        %3675 = vmatpush1.msra.mxu0 0.0
        %3676 = vmatprep.subr.mxu0 0.0
        %3677 = vmatpush1.msra.mxu0 0.0
        %3678 = vmatprep.subr.mxu0 0.0
        %3679 = vmatpush1.msra.mxu0 0.0
        %3680 = vmatprep.subr.mxu0 0.0
        %3681 = vmatpush1.msra.mxu0 0.0
        %3682 = vmatprep.subr.mxu0 0.0
        %3683 = vmatpush1.msra.mxu0 0.0
        %3684 = vmatprep.subr.mxu0 0.0
        %3685 = vmatpush1.msra.mxu0 0.0
        %3686 = vmatprep.subr.mxu0 0.0
        %3687 = vmatpush1.msra.mxu0 0.0
        %3688 = vmatprep.subr.mxu0 0.0
        %3689 = vmatpush1.msra.mxu0 0.0
        %3690 = vmatprep.subr.mxu0 0.0
        %3691 = vmatpush1.msra.mxu0 0.0
        %3692 = vmatprep.subr.mxu0 0.0
        %3693 = vmatpush1.msra.mxu0 0.0
        %3694 = vmatprep.subr.mxu0 0.0
        %3695 = vmatpush1.msra.mxu0 0.0
        %3696 = vmatprep.subr.mxu0 0.0
        %3697 = vmatpush1.msra.mxu0 0.0
        %3698 = vmatprep.subr.mxu0 0.0
        %3699 = vmatpush1.msra.mxu0 %v3493
        %3700 = vmatprep.subr.mxu0 0.0
        %3701 = vmatpush1.msra.mxu0 %v3492
        %3702 = vmatprep.subr.mxu0 0.0
        %3703 = vmatpush2.msra.mxu0 0.0
        %3704 = vmatprep.subr.mxu0 0.0
        %3705 = vmatpush2.msra.mxu0 0.0
        %3706 = vmatprep.subr.mxu0 0.0
        %3707 = vmatpush2.msra.mxu0 0.0
        %3708 = vmatprep.subr.mxu0 0.0
        %3709 = vmatpush2.msra.mxu0 0.0
        %3710 = vmatprep.subr.mxu0 0.0
        %3711 = vmatpush2.msra.mxu0 0.0
        %3712 = vmatprep.subr.mxu0 0.0
        %3713 = vmatpush2.msra.mxu0 0.0
        %3714 = vmatprep.subr.mxu0 0.0
        %3715 = vmatpush2.msra.mxu0 0.0
        %3716 = vmatprep.subr.mxu0 0.0
        %3717 = vmatpush2.msra.mxu0 0.0
        %3718 = vmatprep.subr.mxu0 0.0
        %3719 = vmatpush2.msra.mxu0 0.0
        %3720 = vmatprep.subr.mxu0 0.0
        %3721 = vmatpush2.msra.mxu0 0.0
        %3722 = vmatprep.subr.mxu0 0.0
        %3723 = vmatpush2.msra.mxu0 0.0
        %3724 = vmatprep.subr.mxu0 0.0
        %3725 = vmatpush2.msra.mxu0 0.0
        %3726 = vmatprep.subr.mxu0 0.0
        %3727 = vmatpush2.msra.mxu0 0.0
        %3728 = vmatprep.subr.mxu0 0.0
        %3729 = vmatpush2.msra.mxu0 0.0
        %3730 = vmatprep.subr.mxu0 0.0
        %3731 = vmatpush2.msra.mxu0 0.0
        %3732 = vmatprep.subr.mxu0 0.0
        %3733 = vmatpush2.msra.mxu0 0.0
        %3734 = vmatprep.mubr.f32.mxu0 0.0
        %3735 = vmatmul.mubr.f32.gmra.mxu0 %v3665
        %v3736 = vpop.f32.mrf.mxu0
        %v3737 = vadd.f32 0.0, %v3736
        %v3738 = vpop.f32.mrf.mxu0
        %3739 = vmatprep.mubr.f32.mxu0 0.0
        %3740 = vmatmul.mubr.f32.gmra.mxu0 %v3668
        %v3741 = vpop.f32.mrf.mxu0
        %v3742 = vadd.f32 0.0, %v3741
        %v3743 = vpop.f32.mrf.mxu0
        %3744 = vdwg.mxu0
        %v3745 = vadd.f32 %v3652, %v3737
        %v3746 = vadd.f32 %v3657, %v3742
        %v3747 = vld [vmem:[%s8 + $0x1f] sm:$0x1]
        %v3748 = vlaneseq
        %v3749 = vshrl.u32 %v3748, 7
        %v3750 = vsub.s32 0, %v3749
        %v3751 = vrot.slane %v3747, %v3750
        %v3752 = vadd.f32 %v3745, %v3751
        %v3753 = vadd.f32 %v3746, %v3751
        %v3754 = vld [vmem:[%s7 + $0x138] sm:$0xff]
        %v3755 = vld [vmem:[%s7 + $0x140] sm:$0xff]
        %v3756 = vld [vmem:[%s7 + $0x148] sm:$0xff]
        %v3757 = vld [vmem:[%s7 + $0x150] sm:$0xff]
        %v3758 = vld [vmem:[%s7 + $0x158] sm:$0xff]
        %v3759 = vld [vmem:[%s7 + $0x160] sm:$0xff]
        %v3761 = vsel %vm456, %v3752, 0
        %v3764 = vsel %vm456, %v3753, 0
        %3766 = vmatprep.subr.mxu0 0.0
        %3767 = vmatpush1.msra.mxu0 0.0
        %3768 = vmatprep.subr.mxu0 0.0
        %3769 = vmatpush1.msra.mxu0 0.0
        %3770 = vmatprep.subr.mxu0 0.0
        %3771 = vmatpush1.msra.mxu0 0.0
        %3772 = vmatprep.subr.mxu0 0.0
        %3773 = vmatpush1.msra.mxu0 0.0
        %3774 = vmatprep.subr.mxu0 0.0
        %3775 = vmatpush1.msra.mxu0 0.0
        %3776 = vmatprep.subr.mxu0 0.0
        %3777 = vmatpush1.msra.mxu0 0.0
        %3778 = vmatprep.subr.mxu0 0.0
        %3779 = vmatpush1.msra.mxu0 0.0
        %3780 = vmatprep.subr.mxu0 0.0
        %3781 = vmatpush1.msra.mxu0 0.0
        %3782 = vmatprep.subr.mxu0 0.0
        %3783 = vmatpush1.msra.mxu0 0.0
        %3784 = vmatprep.subr.mxu0 0.0
        %3785 = vmatpush1.msra.mxu0 0.0
        %3786 = vmatprep.subr.mxu0 0.0
        %3787 = vmatpush1.msra.mxu0 0.0
        %3788 = vmatprep.subr.mxu0 0.0
        %3789 = vmatpush1.msra.mxu0 0.0
        %3790 = vmatprep.subr.mxu0 0.0
        %3791 = vmatpush1.msra.mxu0 %v3757
        %3792 = vmatprep.subr.mxu0 0.0
        %3793 = vmatpush1.msra.mxu0 %v3756
        %3794 = vmatprep.subr.mxu0 0.0
        %3795 = vmatpush1.msra.mxu0 %v3755
        %3796 = vmatprep.subr.mxu0 0.0
        %3797 = vmatpush1.msra.mxu0 %v3754
        %3798 = vmatprep.subr.mxu0 0.0
        %3799 = vmatpush2.msra.mxu0 0.0
        %3800 = vmatprep.subr.mxu0 0.0
        %3801 = vmatpush2.msra.mxu0 0.0
        %3802 = vmatprep.subr.mxu0 0.0
        %3803 = vmatpush2.msra.mxu0 0.0
        %3804 = vmatprep.subr.mxu0 0.0
        %3805 = vmatpush2.msra.mxu0 0.0
        %3806 = vmatprep.subr.mxu0 0.0
        %3807 = vmatpush2.msra.mxu0 0.0
        %3808 = vmatprep.subr.mxu0 0.0
        %3809 = vmatpush2.msra.mxu0 0.0
        %3810 = vmatprep.subr.mxu0 0.0
        %3811 = vmatpush2.msra.mxu0 0.0
        %3812 = vmatprep.subr.mxu0 0.0
        %3813 = vmatpush2.msra.mxu0 0.0
        %3814 = vmatprep.subr.mxu0 0.0
        %3815 = vmatpush2.msra.mxu0 0.0
        %3816 = vmatprep.subr.mxu0 0.0
        %3817 = vmatpush2.msra.mxu0 0.0
        %3818 = vmatprep.subr.mxu0 0.0
        %3819 = vmatpush2.msra.mxu0 0.0
        %3820 = vmatprep.subr.mxu0 0.0
        %3821 = vmatpush2.msra.mxu0 0.0
        %3822 = vmatprep.subr.mxu0 0.0
        %3823 = vmatpush2.msra.mxu0 0.0
        %3824 = vmatprep.subr.mxu0 0.0
        %3825 = vmatpush2.msra.mxu0 0.0
        %3826 = vmatprep.subr.mxu0 0.0
        %3827 = vmatpush2.msra.mxu0 0.0
        %3828 = vmatprep.subr.mxu0 0.0
        %3829 = vmatpush2.msra.mxu0 0.0
        %3830 = vmatprep.mubr.f32.mxu0 0.0
        %3831 = vmatmul.mubr.f32.gmra.mxu0 %v3761
        %v3832 = vpop.f32.mrf.mxu0
        %v3833 = vadd.f32 0.0, %v3832
        %v3834 = vpop.f32.mrf.mxu0
        %3835 = vmatprep.mubr.f32.mxu0 0.0
        %3836 = vmatmul.mubr.f32.gmra.mxu0 %v3764
        %v3837 = vpop.f32.mrf.mxu0
        %v3838 = vadd.f32 0.0, %v3837
        %v3839 = vpop.f32.mrf.mxu0
        %3840 = vdwg.mxu0
        %v3841 = vsel %vm378, %v3833, 0.0
        %v3842 = vsel %vm378, %v3838, 0.0
        %v3843 = vadd.f32 %v3841, %v3842
        %v3844 = vrot.slane %v3843, 4
        %v3845 = vadd.f32 %v3843, %v3844
        %v3846 = vrot.slane %v3845, 2
        %v3847 = vadd.f32 %v3845, %v3846
        %v3848 = vrot.slane %v3847, 1
        %v3849 = vadd.f32 %v3847, %v3848
        %v3850 = vmul.f32 %v3849, 0.03125
        %v3852 = vsel %vm378, %v3850, 0
        %3854 = vmatprep.subr.mxu0 0.0
        %3855 = vmatpush1.msra.mxu0 0.0
        %3856 = vmatprep.subr.mxu0 0.0
        %3857 = vmatpush1.msra.mxu0 0.0
        %3858 = vmatprep.subr.mxu0 0.0
        %3859 = vmatpush1.msra.mxu0 0.0
        %3860 = vmatprep.subr.mxu0 0.0
        %3861 = vmatpush1.msra.mxu0 0.0
        %3862 = vmatprep.subr.mxu0 0.0
        %3863 = vmatpush1.msra.mxu0 0.0
        %3864 = vmatprep.subr.mxu0 0.0
        %3865 = vmatpush1.msra.mxu0 0.0
        %3866 = vmatprep.subr.mxu0 0.0
        %3867 = vmatpush1.msra.mxu0 0.0
        %3868 = vmatprep.subr.mxu0 0.0
        %3869 = vmatpush1.msra.mxu0 0.0
        %3870 = vmatprep.subr.mxu0 0.0
        %3871 = vmatpush1.msra.mxu0 0.0
        %3872 = vmatprep.subr.mxu0 0.0
        %3873 = vmatpush1.msra.mxu0 0.0
        %3874 = vmatprep.subr.mxu0 0.0
        %3875 = vmatpush1.msra.mxu0 0.0
        %3876 = vmatprep.subr.mxu0 0.0
        %3877 = vmatpush1.msra.mxu0 0.0
        %3878 = vmatprep.subr.mxu0 0.0
        %3879 = vmatpush1.msra.mxu0 0.0
        %3880 = vmatprep.subr.mxu0 0.0
        %3881 = vmatpush1.msra.mxu0 0.0
        %3882 = vmatprep.subr.mxu0 0.0
        %3883 = vmatpush1.msra.mxu0 %v3759
        %3884 = vmatprep.subr.mxu0 0.0
        %3885 = vmatpush1.msra.mxu0 %v3758
        %3886 = vmatprep.subr.mxu0 0.0
        %3887 = vmatpush2.msra.mxu0 0.0
        %3888 = vmatprep.subr.mxu0 0.0
        %3889 = vmatpush2.msra.mxu0 0.0
        %3890 = vmatprep.subr.mxu0 0.0
        %3891 = vmatpush2.msra.mxu0 0.0
        %3892 = vmatprep.subr.mxu0 0.0
        %3893 = vmatpush2.msra.mxu0 0.0
        %3894 = vmatprep.subr.mxu0 0.0
        %3895 = vmatpush2.msra.mxu0 0.0
        %3896 = vmatprep.subr.mxu0 0.0
        %3897 = vmatpush2.msra.mxu0 0.0
        %3898 = vmatprep.subr.mxu0 0.0
        %3899 = vmatpush2.msra.mxu0 0.0
        %3900 = vmatprep.subr.mxu0 0.0
        %3901 = vmatpush2.msra.mxu0 0.0
        %3902 = vmatprep.subr.mxu0 0.0
        %3903 = vmatpush2.msra.mxu0 0.0
        %3904 = vmatprep.subr.mxu0 0.0
        %3905 = vmatpush2.msra.mxu0 0.0
        %3906 = vmatprep.subr.mxu0 0.0
        %3907 = vmatpush2.msra.mxu0 0.0
        %3908 = vmatprep.subr.mxu0 0.0
        %3909 = vmatpush2.msra.mxu0 0.0
        %3910 = vmatprep.subr.mxu0 0.0
        %3911 = vmatpush2.msra.mxu0 0.0
        %3912 = vmatprep.subr.mxu0 0.0
        %3913 = vmatpush2.msra.mxu0 0.0
        %3914 = vmatprep.subr.mxu0 0.0
        %3915 = vmatpush2.msra.mxu0 0.0
        %3916 = vmatprep.subr.mxu0 0.0
        %3917 = vmatpush2.msra.mxu0 0.0
        %3918 = vmatprep.mubr.f32.mxu0 0.0
        %3919 = vmatmul.mubr.f32.gmra.mxu0 %v3852
        %v3920 = vpop.f32.mrf.mxu0
        %v3921 = vadd.f32 0.0, %v3920
        %v3922 = vpop.f32.mrf.mxu0
        %3923 = vdwg.mxu0
        %v3924 = vlaneseq
        %v3925 = vshrl.u32 %v3924, 7
        %v3926 = vsub.s32 0, %v3925
        %v3927 = vrot.slane %v3921, %v3926
        %v3928 = vsub.f32 %v3752, %v3927
        %v3929 = vsub.f32 %v3753, %v3927
        %v3930 = vmul.f32 %v3928, %v3928
        %v3931 = vmul.f32 %v3929, %v3929
        %v3933 = vsel %vm456, %v3930, 0
        %v3936 = vsel %vm456, %v3931, 0
        %3938 = vmatprep.subr.mxu0 0.0
        %3939 = vmatpush1.msra.mxu0 0.0
        %3940 = vmatprep.subr.mxu0 0.0
        %3941 = vmatpush1.msra.mxu0 0.0
        %3942 = vmatprep.subr.mxu0 0.0
        %3943 = vmatpush1.msra.mxu0 0.0
        %3944 = vmatprep.subr.mxu0 0.0
        %3945 = vmatpush1.msra.mxu0 0.0
        %3946 = vmatprep.subr.mxu0 0.0
        %3947 = vmatpush1.msra.mxu0 0.0
        %3948 = vmatprep.subr.mxu0 0.0
        %3949 = vmatpush1.msra.mxu0 0.0
        %3950 = vmatprep.subr.mxu0 0.0
        %3951 = vmatpush1.msra.mxu0 0.0
        %3952 = vmatprep.subr.mxu0 0.0
        %3953 = vmatpush1.msra.mxu0 0.0
        %3954 = vmatprep.subr.mxu0 0.0
        %3955 = vmatpush1.msra.mxu0 0.0
        %3956 = vmatprep.subr.mxu0 0.0
        %3957 = vmatpush1.msra.mxu0 0.0
        %3958 = vmatprep.subr.mxu0 0.0
        %3959 = vmatpush1.msra.mxu0 0.0
        %3960 = vmatprep.subr.mxu0 0.0
        %3961 = vmatpush1.msra.mxu0 0.0
        %3962 = vmatprep.subr.mxu0 0.0
        %3963 = vmatpush1.msra.mxu0 %v3757
        %3964 = vmatprep.subr.mxu0 0.0
        %3965 = vmatpush1.msra.mxu0 %v3756
        %3966 = vmatprep.subr.mxu0 0.0
        %3967 = vmatpush1.msra.mxu0 %v3755
        %3968 = vmatprep.subr.mxu0 0.0
        %3969 = vmatpush1.msra.mxu0 %v3754
        %3970 = vmatprep.subr.mxu0 0.0
        %3971 = vmatpush2.msra.mxu0 0.0
        %3972 = vmatprep.subr.mxu0 0.0
        %3973 = vmatpush2.msra.mxu0 0.0
        %3974 = vmatprep.subr.mxu0 0.0
        %3975 = vmatpush2.msra.mxu0 0.0
        %3976 = vmatprep.subr.mxu0 0.0
        %3977 = vmatpush2.msra.mxu0 0.0
        %3978 = vmatprep.subr.mxu0 0.0
        %3979 = vmatpush2.msra.mxu0 0.0
        %3980 = vmatprep.subr.mxu0 0.0
        %3981 = vmatpush2.msra.mxu0 0.0
        %3982 = vmatprep.subr.mxu0 0.0
        %3983 = vmatpush2.msra.mxu0 0.0
        %3984 = vmatprep.subr.mxu0 0.0
        %3985 = vmatpush2.msra.mxu0 0.0
        %3986 = vmatprep.subr.mxu0 0.0
        %3987 = vmatpush2.msra.mxu0 0.0
        %3988 = vmatprep.subr.mxu0 0.0
        %3989 = vmatpush2.msra.mxu0 0.0
        %3990 = vmatprep.subr.mxu0 0.0
        %3991 = vmatpush2.msra.mxu0 0.0
        %3992 = vmatprep.subr.mxu0 0.0
        %3993 = vmatpush2.msra.mxu0 0.0
        %3994 = vmatprep.subr.mxu0 0.0
        %3995 = vmatpush2.msra.mxu0 0.0
        %3996 = vmatprep.subr.mxu0 0.0
        %3997 = vmatpush2.msra.mxu0 0.0
        %3998 = vmatprep.subr.mxu0 0.0
        %3999 = vmatpush2.msra.mxu0 0.0
        %4000 = vmatprep.subr.mxu0 0.0
        %4001 = vmatpush2.msra.mxu0 0.0
        %4002 = vmatprep.mubr.f32.mxu0 0.0
        %4003 = vmatmul.mubr.f32.gmra.mxu0 %v3933
        %v4004 = vpop.f32.mrf.mxu0
        %v4005 = vadd.f32 0.0, %v4004
        %v4006 = vpop.f32.mrf.mxu0
        %4007 = vmatprep.mubr.f32.mxu0 0.0
        %4008 = vmatmul.mubr.f32.gmra.mxu0 %v3936
        %v4009 = vpop.f32.mrf.mxu0
        %v4010 = vadd.f32 0.0, %v4009
        %v4011 = vpop.f32.mrf.mxu0
        %4012 = vdwg.mxu0
        %v4013 = vsel %vm378, %v4005, 0.0
        %v4014 = vsel %vm378, %v4010, 0.0
        %v4015 = vadd.f32 %v4013, %v4014
        %v4016 = vrot.slane %v4015, 4
        %v4017 = vadd.f32 %v4015, %v4016
        %v4018 = vrot.slane %v4017, 2
        %v4019 = vadd.f32 %v4017, %v4018
        %v4020 = vrot.slane %v4019, 1
        %v4021 = vadd.f32 %v4019, %v4020
        %v4022 = vmul.f32 %v4021, 0.03125
        %v4023 = vadd.f32 %v4022, 1e-05
        %v4024 = vrsqrt.pop %v4023
        %v4026 = vsel %vm378, %v4024, 0
        %4028 = vmatprep.subr.mxu0 0.0
        %4029 = vmatpush1.msra.mxu0 0.0
        %4030 = vmatprep.subr.mxu0 0.0
        %4031 = vmatpush1.msra.mxu0 0.0
        %4032 = vmatprep.subr.mxu0 0.0
        %4033 = vmatpush1.msra.mxu0 0.0
        %4034 = vmatprep.subr.mxu0 0.0
        %4035 = vmatpush1.msra.mxu0 0.0
        %4036 = vmatprep.subr.mxu0 0.0
        %4037 = vmatpush1.msra.mxu0 0.0
        %4038 = vmatprep.subr.mxu0 0.0
        %4039 = vmatpush1.msra.mxu0 0.0
        %4040 = vmatprep.subr.mxu0 0.0
        %4041 = vmatpush1.msra.mxu0 0.0
        %4042 = vmatprep.subr.mxu0 0.0
        %4043 = vmatpush1.msra.mxu0 0.0
        %4044 = vmatprep.subr.mxu0 0.0
        %4045 = vmatpush1.msra.mxu0 0.0
        %4046 = vmatprep.subr.mxu0 0.0
        %4047 = vmatpush1.msra.mxu0 0.0
        %4048 = vmatprep.subr.mxu0 0.0
        %4049 = vmatpush1.msra.mxu0 0.0
        %4050 = vmatprep.subr.mxu0 0.0
        %4051 = vmatpush1.msra.mxu0 0.0
        %4052 = vmatprep.subr.mxu0 0.0
        %4053 = vmatpush1.msra.mxu0 0.0
        %4054 = vmatprep.subr.mxu0 0.0
        %4055 = vmatpush1.msra.mxu0 0.0
        %4056 = vmatprep.subr.mxu0 0.0
        %4057 = vmatpush1.msra.mxu0 %v3759
        %4058 = vmatprep.subr.mxu0 0.0
        %4059 = vmatpush1.msra.mxu0 %v3758
        %4060 = vmatprep.subr.mxu0 0.0
        %4061 = vmatpush2.msra.mxu0 0.0
        %4062 = vmatprep.subr.mxu0 0.0
        %4063 = vmatpush2.msra.mxu0 0.0
        %4064 = vmatprep.subr.mxu0 0.0
        %4065 = vmatpush2.msra.mxu0 0.0
        %4066 = vmatprep.subr.mxu0 0.0
        %4067 = vmatpush2.msra.mxu0 0.0
        %4068 = vmatprep.subr.mxu0 0.0
        %4069 = vmatpush2.msra.mxu0 0.0
        %4070 = vmatprep.subr.mxu0 0.0
        %4071 = vmatpush2.msra.mxu0 0.0
        %4072 = vmatprep.subr.mxu0 0.0
        %4073 = vmatpush2.msra.mxu0 0.0
        %4074 = vmatprep.subr.mxu0 0.0
        %4075 = vmatpush2.msra.mxu0 0.0
        %4076 = vmatprep.subr.mxu0 0.0
        %4077 = vmatpush2.msra.mxu0 0.0
        %4078 = vmatprep.subr.mxu0 0.0
        %4079 = vmatpush2.msra.mxu0 0.0
        %4080 = vmatprep.subr.mxu0 0.0
        %4081 = vmatpush2.msra.mxu0 0.0
        %4082 = vmatprep.subr.mxu0 0.0
        %4083 = vmatpush2.msra.mxu0 0.0
        %4084 = vmatprep.subr.mxu0 0.0
        %4085 = vmatpush2.msra.mxu0 0.0
        %4086 = vmatprep.subr.mxu0 0.0
        %4087 = vmatpush2.msra.mxu0 0.0
        %4088 = vmatprep.subr.mxu0 0.0
        %4089 = vmatpush2.msra.mxu0 0.0
        %4090 = vmatprep.subr.mxu0 0.0
        %4091 = vmatpush2.msra.mxu0 0.0
        %4092 = vmatprep.mubr.f32.mxu0 0.0
        %4093 = vmatmul.mubr.f32.gmra.mxu0 %v4026
        %v4094 = vpop.f32.mrf.mxu0
        %v4095 = vadd.f32 0.0, %v4094
        %v4096 = vpop.f32.mrf.mxu0
        %4097 = vdwg.mxu0
        %v4098 = vlaneseq
        %v4099 = vshrl.u32 %v4098, 7
        %v4100 = vsub.s32 0, %v4099
        %v4101 = vrot.slane %v4095, %v4100
        %v4102 = vmul.f32 %v3928, %v4101
        %v4103 = vmul.f32 %v3929, %v4101
        %v4104 = vld [vmem:[%s8 + $0x20] sm:$0x1]
        %v4105 = vlaneseq
        %v4106 = vshrl.u32 %v4105, 7
        %v4107 = vsub.s32 0, %v4106
        %v4108 = vrot.slane %v4104, %v4107
        %v4109 = vmul.f32 %v4102, %v4108
        %v4110 = vmul.f32 %v4103, %v4108
        %v4111 = vld [vmem:[%s8 + $0x21] sm:$0x1]
        %v4112 = vlaneseq
        %v4113 = vshrl.u32 %v4112, 7
        %v4114 = vsub.s32 0, %v4113
        %v4115 = vrot.slane %v4111, %v4114
        %v4116 = vadd.f32 %v4109, %v4115
        %v4117 = vadd.f32 %v4110, %v4115
        %vm4118 = vcmp.gt.f32.partialorder %v4116, 0.0
        %vm4119 = vcmp.gt.f32.partialorder %v4117, 0.0
        %v4120 = vmin.f32 %v4116, 0.0
        %v4121 = vmin.f32 %v4117, 0.0
        %v4122 = vmul.f32 %v4120, 1.442695
        %v4123 = vpow.pop %v4122
        %v4124 = vmul.f32 %v4121, 1.442695
        %v4125 = vpow.pop %v4124
        %v4126 = vsub.f32 %v4123, 1.0
        %v4127 = vsub.f32 %v4125, 1.0
        %v4128 = vsel %vm4118, %v4116, %v4126
        %v4129 = vsel %vm4119, %v4117, %v4127
        %v4130 = vld [vmem:[%s7 + $0x168] sm:$0xff]
        %v4132 = vsel %vm378, %v4130, 0
        %4134 = vmatprep.subr.mxu0 0.0
        %4135 = vmatpush1.msra.mxu0 0.0
        %4136 = vmatprep.subr.mxu0 0.0
        %4137 = vmatpush1.msra.mxu0 0.0
        %4138 = vmatprep.subr.mxu0 0.0
        %4139 = vmatpush1.msra.mxu0 0.0
        %4140 = vmatprep.subr.mxu0 0.0
        %4141 = vmatpush1.msra.mxu0 0.0
        %4142 = vmatprep.subr.mxu0 0.0
        %4143 = vmatpush1.msra.mxu0 0.0
        %4144 = vmatprep.subr.mxu0 0.0
        %4145 = vmatpush1.msra.mxu0 0.0
        %4146 = vmatprep.subr.mxu0 0.0
        %4147 = vmatpush1.msra.mxu0 0.0
        %4148 = vmatprep.subr.mxu0 0.0
        %4149 = vmatpush1.msra.mxu0 0.0
        %4150 = vmatprep.subr.mxu0 0.0
        %4151 = vmatpush1.msra.mxu0 0.0
        %4152 = vmatprep.subr.mxu0 0.0
        %4153 = vmatpush1.msra.mxu0 0.0
        %4154 = vmatprep.subr.mxu0 0.0
        %4155 = vmatpush1.msra.mxu0 0.0
        %4156 = vmatprep.subr.mxu0 0.0
        %4157 = vmatpush1.msra.mxu0 0.0
        %4158 = vmatprep.subr.mxu0 0.0
        %4159 = vmatpush1.msra.mxu0 0.0
        %4160 = vmatprep.subr.mxu0 0.0
        %4161 = vmatpush1.msra.mxu0 0.0
        %4162 = vmatprep.subr.mxu0 0.0
        %4163 = vmatpush1.msra.mxu0 %v4129
        %4164 = vmatprep.subr.mxu0 0.0
        %4165 = vmatpush1.msra.mxu0 %v4128
        %4166 = vmatprep.subr.mxu0 0.0
        %4167 = vmatpush2.msra.mxu0 0.0
        %4168 = vmatprep.subr.mxu0 0.0
        %4169 = vmatpush2.msra.mxu0 0.0
        %4170 = vmatprep.subr.mxu0 0.0
        %4171 = vmatpush2.msra.mxu0 0.0
        %4172 = vmatprep.subr.mxu0 0.0
        %4173 = vmatpush2.msra.mxu0 0.0
        %4174 = vmatprep.subr.mxu0 0.0
        %4175 = vmatpush2.msra.mxu0 0.0
        %4176 = vmatprep.subr.mxu0 0.0
        %4177 = vmatpush2.msra.mxu0 0.0
        %4178 = vmatprep.subr.mxu0 0.0
        %4179 = vmatpush2.msra.mxu0 0.0
        %4180 = vmatprep.subr.mxu0 0.0
        %4181 = vmatpush2.msra.mxu0 0.0
        %4182 = vmatprep.subr.mxu0 0.0
        %4183 = vmatpush2.msra.mxu0 0.0
        %4184 = vmatprep.subr.mxu0 0.0
        %4185 = vmatpush2.msra.mxu0 0.0
        %4186 = vmatprep.subr.mxu0 0.0
        %4187 = vmatpush2.msra.mxu0 0.0
        %4188 = vmatprep.subr.mxu0 0.0
        %4189 = vmatpush2.msra.mxu0 0.0
        %4190 = vmatprep.subr.mxu0 0.0
        %4191 = vmatpush2.msra.mxu0 0.0
        %4192 = vmatprep.subr.mxu0 0.0
        %4193 = vmatpush2.msra.mxu0 0.0
        %4194 = vmatprep.subr.mxu0 0.0
        %4195 = vmatpush2.msra.mxu0 0.0
        %4196 = vmatprep.subr.mxu0 0.0
        %4197 = vmatpush2.msra.mxu0 0.0
        %4198 = vmatprep.mubr.f32.mxu0 0.0
        %4199 = vmatmul.mubr.f32.gmra.mxu0 %v4132
        %v4200 = vpop.f32.mrf.mxu0
        %v4201 = vadd.f32 0.0, %v4200
        %v4202 = vpop.f32.mrf.mxu0
        %4203 = vdwg.mxu0
        %v4204 = vld [vmem:[%s7 + $0x10] sm:$0xff]
        %v4205 = vld [vmem:[%s7 + $0x18] sm:$0xff]
        %v4206 = vld [vmem:[%s7 + $0x20] sm:$0xff]
        %v4207 = vld [vmem:[%s7 + $0x28] sm:$0xff]
        %v4208 = vld [vmem:[%s8 + $0x8] sm:$0x1]
        %v4209 = vlaneseq
        %v4210 = vshrl.u32 %v4209, 7
        %v4211 = vsub.s32 0, %v4210
        %v4212 = vrot.slane %v4208, %v4211
        %v4214 = vsel %vm456, %v4201, 0
        %4216 = vmatprep.subr.mxu0 0.0
        %4217 = vmatpush1.msra.mxu0 0.0
        %4218 = vmatprep.subr.mxu0 0.0
        %4219 = vmatpush1.msra.mxu0 0.0
        %4220 = vmatprep.subr.mxu0 0.0
        %4221 = vmatpush1.msra.mxu0 0.0
        %4222 = vmatprep.subr.mxu0 0.0
        %4223 = vmatpush1.msra.mxu0 0.0
        %4224 = vmatprep.subr.mxu0 0.0
        %4225 = vmatpush1.msra.mxu0 0.0
        %4226 = vmatprep.subr.mxu0 0.0
        %4227 = vmatpush1.msra.mxu0 0.0
        %4228 = vmatprep.subr.mxu0 0.0
        %4229 = vmatpush1.msra.mxu0 0.0
        %4230 = vmatprep.subr.mxu0 0.0
        %4231 = vmatpush1.msra.mxu0 0.0
        %4232 = vmatprep.subr.mxu0 0.0
        %4233 = vmatpush1.msra.mxu0 0.0
        %4234 = vmatprep.subr.mxu0 0.0
        %4235 = vmatpush1.msra.mxu0 0.0
        %4236 = vmatprep.subr.mxu0 0.0
        %4237 = vmatpush1.msra.mxu0 0.0
        %4238 = vmatprep.subr.mxu0 0.0
        %4239 = vmatpush1.msra.mxu0 0.0
        %4240 = vmatprep.subr.mxu0 0.0
        %4241 = vmatpush1.msra.mxu0 %v4207
        %4242 = vmatprep.subr.mxu0 0.0
        %4243 = vmatpush1.msra.mxu0 %v4206
        %4244 = vmatprep.subr.mxu0 0.0
        %4245 = vmatpush1.msra.mxu0 %v4205
        %4246 = vmatprep.subr.mxu0 0.0
        %4247 = vmatpush1.msra.mxu0 %v4204
        %4248 = vmatprep.subr.mxu0 0.0
        %4249 = vmatpush2.msra.mxu0 0.0
        %4250 = vmatprep.subr.mxu0 0.0
        %4251 = vmatpush2.msra.mxu0 0.0
        %4252 = vmatprep.subr.mxu0 0.0
        %4253 = vmatpush2.msra.mxu0 0.0
        %4254 = vmatprep.subr.mxu0 0.0
        %4255 = vmatpush2.msra.mxu0 0.0
        %4256 = vmatprep.subr.mxu0 0.0
        %4257 = vmatpush2.msra.mxu0 0.0
        %4258 = vmatprep.subr.mxu0 0.0
        %4259 = vmatpush2.msra.mxu0 0.0
        %4260 = vmatprep.subr.mxu0 0.0
        %4261 = vmatpush2.msra.mxu0 0.0
        %4262 = vmatprep.subr.mxu0 0.0
        %4263 = vmatpush2.msra.mxu0 0.0
        %4264 = vmatprep.subr.mxu0 0.0
        %4265 = vmatpush2.msra.mxu0 0.0
        %4266 = vmatprep.subr.mxu0 0.0
        %4267 = vmatpush2.msra.mxu0 0.0
        %4268 = vmatprep.subr.mxu0 0.0
        %4269 = vmatpush2.msra.mxu0 0.0
        %4270 = vmatprep.subr.mxu0 0.0
        %4271 = vmatpush2.msra.mxu0 0.0
        %4272 = vmatprep.subr.mxu0 0.0
        %4273 = vmatpush2.msra.mxu0 0.0
        %4274 = vmatprep.subr.mxu0 0.0
        %4275 = vmatpush2.msra.mxu0 0.0
        %4276 = vmatprep.subr.mxu0 0.0
        %4277 = vmatpush2.msra.mxu0 0.0
        %4278 = vmatprep.subr.mxu0 0.0
        %4279 = vmatpush2.msra.mxu0 0.0
        %4280 = vmatprep.mubr.f32.mxu0 0.0
        %4281 = vmatmul.mubr.f32.gmra.mxu0 %v4214
        %v4282 = vpop.f32.mrf.mxu0
        %v4283 = vadd.f32 %v4212, %v4282
        %v4284 = vpop.f32.mrf.mxu0
        %4285 = vdwg.mxu0
        %v4286 = vld [vmem:[%s8 + $0xc] sm:$0x1]
        %v4287 = vld [vmem:[%s8 + $0xd] sm:$0x1]
        %v4288 = vsel %vm456, %v4283, 0.0
        %4289 = vadd.xlane.f32.xlu0 %v4288
        %v4290 = vpop.xlane.xlu0 %4289
        %v4291 = vmul.f32 %v4290, %v460
        %v4292 = vsub.f32 %v4283, %v4291
        %v4293 = vmul.f32 %v4292, %v4292
        %v4294 = vsel %vm456, %v4293, 0.0
        %4295 = vadd.xlane.f32.xlu0 %v4294
        %v4296 = vpop.xlane.xlu0 %4295
        %v4297 = vmul.f32 %v4296, %v460
        %v4298 = vadd.f32 %v4297, 1e-05
        %v4299 = vrsqrt.pop %v4298
        %v4300 = vmul.f32 %v4292, %v4299
        %v4301 = vlaneseq
        %v4302 = vshrl.u32 %v4301, 7
        %v4303 = vsub.s32 0, %v4302
        %v4304 = vrot.slane %v4286, %v4303
        %v4305 = vmul.f32 %v4300, %v4304
        %v4306 = vlaneseq
        %v4307 = vshrl.u32 %v4306, 7
        %v4308 = vsub.s32 0, %v4307
        %v4309 = vrot.slane %v4287, %v4308
        %v4310 = vadd.f32 %v4305, %v4309
        %s4311 = scalar_lea.vmem %s3, 64
        %v4312 = vld [vmem:[%s4311] sm:$0xff]
        %v4313 = vld [vmem:[%s4311 + $0x8] sm:$0xff]
        %v4314 = vld [vmem:[%s4311 + $0x10] sm:$0xff]
        %v4315 = vld [vmem:[%s4311 + $0x18] sm:$0xff]
        %v4316 = vld [vmem:[%s8 + $0x10] sm:$0x1]
        %v4317 = vlaneseq
        %v4318 = vshrl.u32 %v4317, 7
        %v4319 = vsub.s32 0, %v4318
        %v4320 = vrot.slane %v4316, %v4319
        %v4322 = vsel %vm456, %v4310, 0
        %4324 = vmatprep.subr.mxu0 0.0
        %4325 = vmatpush1.msra.mxu0 0.0
        %4326 = vmatprep.subr.mxu0 0.0
        %4327 = vmatpush1.msra.mxu0 0.0
        %4328 = vmatprep.subr.mxu0 0.0
        %4329 = vmatpush1.msra.mxu0 0.0
        %4330 = vmatprep.subr.mxu0 0.0
        %4331 = vmatpush1.msra.mxu0 0.0
        %4332 = vmatprep.subr.mxu0 0.0
        %4333 = vmatpush1.msra.mxu0 0.0
        %4334 = vmatprep.subr.mxu0 0.0
        %4335 = vmatpush1.msra.mxu0 0.0
        %4336 = vmatprep.subr.mxu0 0.0
        %4337 = vmatpush1.msra.mxu0 0.0
        %4338 = vmatprep.subr.mxu0 0.0
        %4339 = vmatpush1.msra.mxu0 0.0
        %4340 = vmatprep.subr.mxu0 0.0
        %4341 = vmatpush1.msra.mxu0 0.0
        %4342 = vmatprep.subr.mxu0 0.0
        %4343 = vmatpush1.msra.mxu0 0.0
        %4344 = vmatprep.subr.mxu0 0.0
        %4345 = vmatpush1.msra.mxu0 0.0
        %4346 = vmatprep.subr.mxu0 0.0
        %4347 = vmatpush1.msra.mxu0 0.0
        %4348 = vmatprep.subr.mxu0 0.0
        %4349 = vmatpush1.msra.mxu0 %v4315
        %4350 = vmatprep.subr.mxu0 0.0
        %4351 = vmatpush1.msra.mxu0 %v4314
        %4352 = vmatprep.subr.mxu0 0.0
        %4353 = vmatpush1.msra.mxu0 %v4313
        %4354 = vmatprep.subr.mxu0 0.0
        %4355 = vmatpush1.msra.mxu0 %v4312
        %4356 = vmatprep.subr.mxu0 0.0
        %4357 = vmatpush2.msra.mxu0 0.0
        %4358 = vmatprep.subr.mxu0 0.0
        %4359 = vmatpush2.msra.mxu0 0.0
        %4360 = vmatprep.subr.mxu0 0.0
        %4361 = vmatpush2.msra.mxu0 0.0
        %4362 = vmatprep.subr.mxu0 0.0
        %4363 = vmatpush2.msra.mxu0 0.0
        %4364 = vmatprep.subr.mxu0 0.0
        %4365 = vmatpush2.msra.mxu0 0.0
        %4366 = vmatprep.subr.mxu0 0.0
        %4367 = vmatpush2.msra.mxu0 0.0
        %4368 = vmatprep.subr.mxu0 0.0
        %4369 = vmatpush2.msra.mxu0 0.0
        %4370 = vmatprep.subr.mxu0 0.0
        %4371 = vmatpush2.msra.mxu0 0.0
        %4372 = vmatprep.subr.mxu0 0.0
        %4373 = vmatpush2.msra.mxu0 0.0
        %4374 = vmatprep.subr.mxu0 0.0
        %4375 = vmatpush2.msra.mxu0 0.0
        %4376 = vmatprep.subr.mxu0 0.0
        %4377 = vmatpush2.msra.mxu0 0.0
        %4378 = vmatprep.subr.mxu0 0.0
        %4379 = vmatpush2.msra.mxu0 0.0
        %4380 = vmatprep.subr.mxu0 0.0
        %4381 = vmatpush2.msra.mxu0 0.0
        %4382 = vmatprep.subr.mxu0 0.0
        %4383 = vmatpush2.msra.mxu0 0.0
        %4384 = vmatprep.subr.mxu0 0.0
        %4385 = vmatpush2.msra.mxu0 0.0
        %4386 = vmatprep.subr.mxu0 0.0
        %4387 = vmatpush2.msra.mxu0 0.0
        %4388 = vmatprep.mubr.f32.mxu0 0.0
        %4389 = vmatmul.mubr.f32.gmra.mxu0 %v4322
        %v4390 = vpop.f32.mrf.mxu0
        %v4391 = vadd.f32 %v4320, %v4390
        %v4392 = vpop.f32.mrf.mxu0
        %4393 = vdwg.mxu0
        %4395 = vrot.lane.b32.xlu0 %v4391, 96
        %v4396 = vpop.permute.xlu0 %4395
        %v4398 = vmul.f32 %v4391, %v361
        %v4399 = vmul.f32 %v4396, %v361
        %v4400 = vsel %vm456, %v4391, 0
        %v4402 = vsel %vm456, %v4396, 0
        %4404 = vmatprep.subr.mxu0 0.0
        %4405 = vmatpush1.msra.mxu0 0.0
        %4406 = vmatprep.subr.mxu0 0.0
        %4407 = vmatpush1.msra.mxu0 0.0
        %4408 = vmatprep.subr.mxu0 0.0
        %4409 = vmatpush1.msra.mxu0 0.0
        %4410 = vmatprep.subr.mxu0 0.0
        %4411 = vmatpush1.msra.mxu0 0.0
        %4412 = vmatprep.subr.mxu0 0.0
        %4413 = vmatpush1.msra.mxu0 0.0
        %4414 = vmatprep.subr.mxu0 0.0
        %4415 = vmatpush1.msra.mxu0 0.0
        %4416 = vmatprep.subr.mxu0 0.0
        %4417 = vmatpush1.msra.mxu0 0.0
        %4418 = vmatprep.subr.mxu0 0.0
        %4419 = vmatpush1.msra.mxu0 0.0
        %4420 = vmatprep.subr.mxu0 0.0
        %4421 = vmatpush1.msra.mxu0 0.0
        %4422 = vmatprep.subr.mxu0 0.0
        %4423 = vmatpush1.msra.mxu0 0.0
        %4424 = vmatprep.subr.mxu0 0.0
        %4425 = vmatpush1.msra.mxu0 0.0
        %4426 = vmatprep.subr.mxu0 0.0
        %4427 = vmatpush1.msra.mxu0 0.0
        %4428 = vmatprep.subr.mxu0 0.0
        %4429 = vmatpush1.msra.mxu0 %v366
        %4430 = vmatprep.subr.mxu0 0.0
        %4431 = vmatpush1.msra.mxu0 %v365
        %4432 = vmatprep.subr.mxu0 0.0
        %4433 = vmatpush1.msra.mxu0 %v364
        %4434 = vmatprep.subr.mxu0 0.0
        %4435 = vmatpush1.msra.mxu0 %v363
        %4436 = vmatprep.subr.mxu0 0.0
        %4437 = vmatpush2.msra.mxu0 0.0
        %4438 = vmatprep.subr.mxu0 0.0
        %4439 = vmatpush2.msra.mxu0 0.0
        %4440 = vmatprep.subr.mxu0 0.0
        %4441 = vmatpush2.msra.mxu0 0.0
        %4442 = vmatprep.subr.mxu0 0.0
        %4443 = vmatpush2.msra.mxu0 0.0
        %4444 = vmatprep.subr.mxu0 0.0
        %4445 = vmatpush2.msra.mxu0 0.0
        %4446 = vmatprep.subr.mxu0 0.0
        %4447 = vmatpush2.msra.mxu0 0.0
        %4448 = vmatprep.subr.mxu0 0.0
        %4449 = vmatpush2.msra.mxu0 0.0
        %4450 = vmatprep.subr.mxu0 0.0
        %4451 = vmatpush2.msra.mxu0 0.0
        %4452 = vmatprep.subr.mxu0 0.0
        %4453 = vmatpush2.msra.mxu0 0.0
        %4454 = vmatprep.subr.mxu0 0.0
        %4455 = vmatpush2.msra.mxu0 0.0
        %4456 = vmatprep.subr.mxu0 0.0
        %4457 = vmatpush2.msra.mxu0 0.0
        %4458 = vmatprep.subr.mxu0 0.0
        %4459 = vmatpush2.msra.mxu0 0.0
        %4460 = vmatprep.subr.mxu0 0.0
        %4461 = vmatpush2.msra.mxu0 0.0
        %4462 = vmatprep.subr.mxu0 0.0
        %4463 = vmatpush2.msra.mxu0 0.0
        %4464 = vmatprep.subr.mxu0 0.0
        %4465 = vmatpush2.msra.mxu0 0.0
        %4466 = vmatprep.subr.mxu0 0.0
        %4467 = vmatpush2.msra.mxu0 0.0
        %4468 = vmatprep.mubr.f32.mxu0 0.0
        %4469 = vmatmul.mubr.f32.gmra.mxu0 %v4400
        %v4470 = vpop.f32.mrf.mxu0
        %v4471 = vadd.f32 0.0, %v4470
        %v4472 = vpop.f32.mrf.mxu0
        %4473 = vmatprep.mubr.f32.mxu0 0.0
        %4474 = vmatmul.mubr.f32.gmra.mxu0 %v4402
        %v4475 = vpop.f32.mrf.mxu0
        %v4476 = vadd.f32 0.0, %v4475
        %v4477 = vpop.f32.mrf.mxu0
        %4478 = vdwg.mxu0
        %v4479 = vmul.f32 %v4471, %v362
        %v4480 = vmul.f32 %v4476, %v362
        %v4481 = vadd.f32 %v4398, %v4479
        %v4482 = vadd.f32 %v4399, %v4480
        %4484 = vrot.lane.b32.xlu0 %v4481, 120
        %v4485 = vpop.permute.xlu0 %4484
        %4486 = vrot.lane.b32.xlu0 %v4481, 112
        %v4487 = vpop.permute.xlu0 %4486
        %4488 = vrot.lane.b32.xlu0 %v4481, 104
        %v4489 = vpop.permute.xlu0 %4488
        %4491 = vrot.lane.b32.xlu0 %v4482, 120
        %v4492 = vpop.permute.xlu0 %4491
        %4493 = vrot.lane.b32.xlu0 %v4482, 112
        %v4494 = vpop.permute.xlu0 %4493
        %4495 = vrot.lane.b32.xlu0 %v4482, 104
        %v4496 = vpop.permute.xlu0 %4495
        %4497 = vrot.lane.b32.xlu0 %v4391, 120
        %v4498 = vpop.permute.xlu0 %4497
        %4499 = vrot.lane.b32.xlu0 %v4391, 112
        %v4500 = vpop.permute.xlu0 %4499
        %4501 = vrot.lane.b32.xlu0 %v4391, 104
        %v4502 = vpop.permute.xlu0 %4501
        %v4503 = vsel %vm656, %v4481, 0
        %v4505 = vsel %vm656, %v4482, 0
        %4507 = vmatprep.subr.mxu0 0.0
        %4508 = vmatpush1.xpose.msra.mxu0 0.0
        %4509 = vmatprep.subr.mxu0 0.0
        %4510 = vmatpush1.xpose.msra.mxu0 0.0
        %4511 = vmatprep.subr.mxu0 0.0
        %4512 = vmatpush1.xpose.msra.mxu0 0.0
        %4513 = vmatprep.subr.mxu0 0.0
        %4514 = vmatpush1.xpose.msra.mxu0 0.0
        %4515 = vmatprep.subr.mxu0 0.0
        %4516 = vmatpush1.xpose.msra.mxu0 0.0
        %4517 = vmatprep.subr.mxu0 0.0
        %4518 = vmatpush1.xpose.msra.mxu0 0.0
        %4519 = vmatprep.subr.mxu0 0.0
        %4520 = vmatpush1.xpose.msra.mxu0 0.0
        %4521 = vmatprep.subr.mxu0 0.0
        %4522 = vmatpush1.xpose.msra.mxu0 0.0
        %4523 = vmatprep.subr.mxu0 0.0
        %4524 = vmatpush1.xpose.msra.mxu0 0.0
        %4525 = vmatprep.subr.mxu0 0.0
        %4526 = vmatpush1.xpose.msra.mxu0 0.0
        %4527 = vmatprep.subr.mxu0 0.0
        %4528 = vmatpush1.xpose.msra.mxu0 0.0
        %4529 = vmatprep.subr.mxu0 0.0
        %4530 = vmatpush1.xpose.msra.mxu0 0.0
        %4531 = vmatprep.subr.mxu0 0.0
        %4532 = vmatpush1.xpose.msra.mxu0 0.0
        %4533 = vmatprep.subr.mxu0 0.0
        %4534 = vmatpush1.xpose.msra.mxu0 0.0
        %4535 = vmatprep.subr.mxu0 0.0
        %4536 = vmatpush1.xpose.msra.mxu0 0.0
        %4537 = vmatprep.subr.mxu0 0.0
        %4538 = vmatpush1.xpose.msra.mxu0 %v4505
        %4539 = vmatprep.subr.mxu0 0.0
        %4540 = vmatpush2.xpose.msra.mxu0 0.0
        %4541 = vmatprep.subr.mxu0 0.0
        %4542 = vmatpush2.xpose.msra.mxu0 0.0
        %4543 = vmatprep.subr.mxu0 0.0
        %4544 = vmatpush2.xpose.msra.mxu0 0.0
        %4545 = vmatprep.subr.mxu0 0.0
        %4546 = vmatpush2.xpose.msra.mxu0 0.0
        %4547 = vmatprep.subr.mxu0 0.0
        %4548 = vmatpush2.xpose.msra.mxu0 0.0
        %4549 = vmatprep.subr.mxu0 0.0
        %4550 = vmatpush2.xpose.msra.mxu0 0.0
        %4551 = vmatprep.subr.mxu0 0.0
        %4552 = vmatpush2.xpose.msra.mxu0 0.0
        %4553 = vmatprep.subr.mxu0 0.0
        %4554 = vmatpush2.xpose.msra.mxu0 0.0
        %4555 = vmatprep.subr.mxu0 0.0
        %4556 = vmatpush2.xpose.msra.mxu0 0.0
        %4557 = vmatprep.subr.mxu0 0.0
        %4558 = vmatpush2.xpose.msra.mxu0 0.0
        %4559 = vmatprep.subr.mxu0 0.0
        %4560 = vmatpush2.xpose.msra.mxu0 0.0
        %4561 = vmatprep.subr.mxu0 0.0
        %4562 = vmatpush2.xpose.msra.mxu0 0.0
        %4563 = vmatprep.subr.mxu0 0.0
        %4564 = vmatpush2.xpose.msra.mxu0 0.0
        %4565 = vmatprep.subr.mxu0 0.0
        %4566 = vmatpush2.xpose.msra.mxu0 0.0
        %4567 = vmatprep.subr.mxu0 0.0
        %4568 = vmatpush2.xpose.msra.mxu0 0.0
        %4569 = vmatprep.subr.mxu0 0.0
        %4570 = vmatpush2.xpose.msra.mxu0 0.0
        %4571 = vmatprep.mubr.f32.mxu0 0.0
        %4572 = vmatmul.mubr.f32.gmra.mxu0 %v4503
        %v4573 = vpop.f32.mrf.mxu0
        %v4574 = vadd.f32 0.0, %v4573
        %v4575 = vpop.f32.mrf.mxu0
        %4576 = vdwg.mxu0
        %v4577 = vsel %vm656, %v4485, 0
        %v4579 = vsel %vm656, %v4492, 0
        %4581 = vmatprep.subr.mxu0 0.0
        %4582 = vmatpush1.xpose.msra.mxu0 0.0
        %4583 = vmatprep.subr.mxu0 0.0
        %4584 = vmatpush1.xpose.msra.mxu0 0.0
        %4585 = vmatprep.subr.mxu0 0.0
        %4586 = vmatpush1.xpose.msra.mxu0 0.0
        %4587 = vmatprep.subr.mxu0 0.0
        %4588 = vmatpush1.xpose.msra.mxu0 0.0
        %4589 = vmatprep.subr.mxu0 0.0
        %4590 = vmatpush1.xpose.msra.mxu0 0.0
        %4591 = vmatprep.subr.mxu0 0.0
        %4592 = vmatpush1.xpose.msra.mxu0 0.0
        %4593 = vmatprep.subr.mxu0 0.0
        %4594 = vmatpush1.xpose.msra.mxu0 0.0
        %4595 = vmatprep.subr.mxu0 0.0
        %4596 = vmatpush1.xpose.msra.mxu0 0.0
        %4597 = vmatprep.subr.mxu0 0.0
        %4598 = vmatpush1.xpose.msra.mxu0 0.0
        %4599 = vmatprep.subr.mxu0 0.0
        %4600 = vmatpush1.xpose.msra.mxu0 0.0
        %4601 = vmatprep.subr.mxu0 0.0
        %4602 = vmatpush1.xpose.msra.mxu0 0.0
        %4603 = vmatprep.subr.mxu0 0.0
        %4604 = vmatpush1.xpose.msra.mxu0 0.0
        %4605 = vmatprep.subr.mxu0 0.0
        %4606 = vmatpush1.xpose.msra.mxu0 0.0
        %4607 = vmatprep.subr.mxu0 0.0
        %4608 = vmatpush1.xpose.msra.mxu0 0.0
        %4609 = vmatprep.subr.mxu0 0.0
        %4610 = vmatpush1.xpose.msra.mxu0 0.0
        %4611 = vmatprep.subr.mxu0 0.0
        %4612 = vmatpush1.xpose.msra.mxu0 %v4579
        %4613 = vmatprep.subr.mxu0 0.0
        %4614 = vmatpush2.xpose.msra.mxu0 0.0
        %4615 = vmatprep.subr.mxu0 0.0
        %4616 = vmatpush2.xpose.msra.mxu0 0.0
        %4617 = vmatprep.subr.mxu0 0.0
        %4618 = vmatpush2.xpose.msra.mxu0 0.0
        %4619 = vmatprep.subr.mxu0 0.0
        %4620 = vmatpush2.xpose.msra.mxu0 0.0
        %4621 = vmatprep.subr.mxu0 0.0
        %4622 = vmatpush2.xpose.msra.mxu0 0.0
        %4623 = vmatprep.subr.mxu0 0.0
        %4624 = vmatpush2.xpose.msra.mxu0 0.0
        %4625 = vmatprep.subr.mxu0 0.0
        %4626 = vmatpush2.xpose.msra.mxu0 0.0
        %4627 = vmatprep.subr.mxu0 0.0
        %4628 = vmatpush2.xpose.msra.mxu0 0.0
        %4629 = vmatprep.subr.mxu0 0.0
        %4630 = vmatpush2.xpose.msra.mxu0 0.0
        %4631 = vmatprep.subr.mxu0 0.0
        %4632 = vmatpush2.xpose.msra.mxu0 0.0
        %4633 = vmatprep.subr.mxu0 0.0
        %4634 = vmatpush2.xpose.msra.mxu0 0.0
        %4635 = vmatprep.subr.mxu0 0.0
        %4636 = vmatpush2.xpose.msra.mxu0 0.0
        %4637 = vmatprep.subr.mxu0 0.0
        %4638 = vmatpush2.xpose.msra.mxu0 0.0
        %4639 = vmatprep.subr.mxu0 0.0
        %4640 = vmatpush2.xpose.msra.mxu0 0.0
        %4641 = vmatprep.subr.mxu0 0.0
        %4642 = vmatpush2.xpose.msra.mxu0 0.0
        %4643 = vmatprep.subr.mxu0 0.0
        %4644 = vmatpush2.xpose.msra.mxu0 0.0
        %4645 = vmatprep.mubr.f32.mxu0 0.0
        %4646 = vmatmul.mubr.f32.gmra.mxu0 %v4577
        %v4647 = vpop.f32.mrf.mxu0
        %v4648 = vadd.f32 0.0, %v4647
        %v4649 = vpop.f32.mrf.mxu0
        %4650 = vdwg.mxu0
        %v4651 = vsel %vm656, %v4487, 0
        %v4653 = vsel %vm656, %v4494, 0
        %4655 = vmatprep.subr.mxu0 0.0
        %4656 = vmatpush1.xpose.msra.mxu0 0.0
        %4657 = vmatprep.subr.mxu0 0.0
        %4658 = vmatpush1.xpose.msra.mxu0 0.0
        %4659 = vmatprep.subr.mxu0 0.0
        %4660 = vmatpush1.xpose.msra.mxu0 0.0
        %4661 = vmatprep.subr.mxu0 0.0
        %4662 = vmatpush1.xpose.msra.mxu0 0.0
        %4663 = vmatprep.subr.mxu0 0.0
        %4664 = vmatpush1.xpose.msra.mxu0 0.0
        %4665 = vmatprep.subr.mxu0 0.0
        %4666 = vmatpush1.xpose.msra.mxu0 0.0
        %4667 = vmatprep.subr.mxu0 0.0
        %4668 = vmatpush1.xpose.msra.mxu0 0.0
        %4669 = vmatprep.subr.mxu0 0.0
        %4670 = vmatpush1.xpose.msra.mxu0 0.0
        %4671 = vmatprep.subr.mxu0 0.0
        %4672 = vmatpush1.xpose.msra.mxu0 0.0
        %4673 = vmatprep.subr.mxu0 0.0
        %4674 = vmatpush1.xpose.msra.mxu0 0.0
        %4675 = vmatprep.subr.mxu0 0.0
        %4676 = vmatpush1.xpose.msra.mxu0 0.0
        %4677 = vmatprep.subr.mxu0 0.0
        %4678 = vmatpush1.xpose.msra.mxu0 0.0
        %4679 = vmatprep.subr.mxu0 0.0
        %4680 = vmatpush1.xpose.msra.mxu0 0.0
        %4681 = vmatprep.subr.mxu0 0.0
        %4682 = vmatpush1.xpose.msra.mxu0 0.0
        %4683 = vmatprep.subr.mxu0 0.0
        %4684 = vmatpush1.xpose.msra.mxu0 0.0
        %4685 = vmatprep.subr.mxu0 0.0
        %4686 = vmatpush1.xpose.msra.mxu0 %v4653
        %4687 = vmatprep.subr.mxu0 0.0
        %4688 = vmatpush2.xpose.msra.mxu0 0.0
        %4689 = vmatprep.subr.mxu0 0.0
        %4690 = vmatpush2.xpose.msra.mxu0 0.0
        %4691 = vmatprep.subr.mxu0 0.0
        %4692 = vmatpush2.xpose.msra.mxu0 0.0
        %4693 = vmatprep.subr.mxu0 0.0
        %4694 = vmatpush2.xpose.msra.mxu0 0.0
        %4695 = vmatprep.subr.mxu0 0.0
        %4696 = vmatpush2.xpose.msra.mxu0 0.0
        %4697 = vmatprep.subr.mxu0 0.0
        %4698 = vmatpush2.xpose.msra.mxu0 0.0
        %4699 = vmatprep.subr.mxu0 0.0
        %4700 = vmatpush2.xpose.msra.mxu0 0.0
        %4701 = vmatprep.subr.mxu0 0.0
        %4702 = vmatpush2.xpose.msra.mxu0 0.0
        %4703 = vmatprep.subr.mxu0 0.0
        %4704 = vmatpush2.xpose.msra.mxu0 0.0
        %4705 = vmatprep.subr.mxu0 0.0
        %4706 = vmatpush2.xpose.msra.mxu0 0.0
        %4707 = vmatprep.subr.mxu0 0.0
        %4708 = vmatpush2.xpose.msra.mxu0 0.0
        %4709 = vmatprep.subr.mxu0 0.0
        %4710 = vmatpush2.xpose.msra.mxu0 0.0
        %4711 = vmatprep.subr.mxu0 0.0
        %4712 = vmatpush2.xpose.msra.mxu0 0.0
        %4713 = vmatprep.subr.mxu0 0.0
        %4714 = vmatpush2.xpose.msra.mxu0 0.0
        %4715 = vmatprep.subr.mxu0 0.0
        %4716 = vmatpush2.xpose.msra.mxu0 0.0
        %4717 = vmatprep.subr.mxu0 0.0
        %4718 = vmatpush2.xpose.msra.mxu0 0.0
        %4719 = vmatprep.mubr.f32.mxu0 0.0
        %4720 = vmatmul.mubr.f32.gmra.mxu0 %v4651
        %v4721 = vpop.f32.mrf.mxu0
        %v4722 = vadd.f32 0.0, %v4721
        %v4723 = vpop.f32.mrf.mxu0
        %4724 = vdwg.mxu0
        %v4725 = vsel %vm656, %v4489, 0
        %v4727 = vsel %vm656, %v4496, 0
        %4729 = vmatprep.subr.mxu0 0.0
        %4730 = vmatpush1.xpose.msra.mxu0 0.0
        %4731 = vmatprep.subr.mxu0 0.0
        %4732 = vmatpush1.xpose.msra.mxu0 0.0
        %4733 = vmatprep.subr.mxu0 0.0
        %4734 = vmatpush1.xpose.msra.mxu0 0.0
        %4735 = vmatprep.subr.mxu0 0.0
        %4736 = vmatpush1.xpose.msra.mxu0 0.0
        %4737 = vmatprep.subr.mxu0 0.0
        %4738 = vmatpush1.xpose.msra.mxu0 0.0
        %4739 = vmatprep.subr.mxu0 0.0
        %4740 = vmatpush1.xpose.msra.mxu0 0.0
        %4741 = vmatprep.subr.mxu0 0.0
        %4742 = vmatpush1.xpose.msra.mxu0 0.0
        %4743 = vmatprep.subr.mxu0 0.0
        %4744 = vmatpush1.xpose.msra.mxu0 0.0
        %4745 = vmatprep.subr.mxu0 0.0
        %4746 = vmatpush1.xpose.msra.mxu0 0.0
        %4747 = vmatprep.subr.mxu0 0.0
        %4748 = vmatpush1.xpose.msra.mxu0 0.0
        %4749 = vmatprep.subr.mxu0 0.0
        %4750 = vmatpush1.xpose.msra.mxu0 0.0
        %4751 = vmatprep.subr.mxu0 0.0
        %4752 = vmatpush1.xpose.msra.mxu0 0.0
        %4753 = vmatprep.subr.mxu0 0.0
        %4754 = vmatpush1.xpose.msra.mxu0 0.0
        %4755 = vmatprep.subr.mxu0 0.0
        %4756 = vmatpush1.xpose.msra.mxu0 0.0
        %4757 = vmatprep.subr.mxu0 0.0
        %4758 = vmatpush1.xpose.msra.mxu0 0.0
        %4759 = vmatprep.subr.mxu0 0.0
        %4760 = vmatpush1.xpose.msra.mxu0 %v4727
        %4761 = vmatprep.subr.mxu0 0.0
        %4762 = vmatpush2.xpose.msra.mxu0 0.0
        %4763 = vmatprep.subr.mxu0 0.0
        %4764 = vmatpush2.xpose.msra.mxu0 0.0
        %4765 = vmatprep.subr.mxu0 0.0
        %4766 = vmatpush2.xpose.msra.mxu0 0.0
        %4767 = vmatprep.subr.mxu0 0.0
        %4768 = vmatpush2.xpose.msra.mxu0 0.0
        %4769 = vmatprep.subr.mxu0 0.0
        %4770 = vmatpush2.xpose.msra.mxu0 0.0
        %4771 = vmatprep.subr.mxu0 0.0
        %4772 = vmatpush2.xpose.msra.mxu0 0.0
        %4773 = vmatprep.subr.mxu0 0.0
        %4774 = vmatpush2.xpose.msra.mxu0 0.0
        %4775 = vmatprep.subr.mxu0 0.0
        %4776 = vmatpush2.xpose.msra.mxu0 0.0
        %4777 = vmatprep.subr.mxu0 0.0
        %4778 = vmatpush2.xpose.msra.mxu0 0.0
        %4779 = vmatprep.subr.mxu0 0.0
        %4780 = vmatpush2.xpose.msra.mxu0 0.0
        %4781 = vmatprep.subr.mxu0 0.0
        %4782 = vmatpush2.xpose.msra.mxu0 0.0
        %4783 = vmatprep.subr.mxu0 0.0
        %4784 = vmatpush2.xpose.msra.mxu0 0.0
        %4785 = vmatprep.subr.mxu0 0.0
        %4786 = vmatpush2.xpose.msra.mxu0 0.0
        %4787 = vmatprep.subr.mxu0 0.0
        %4788 = vmatpush2.xpose.msra.mxu0 0.0
        %4789 = vmatprep.subr.mxu0 0.0
        %4790 = vmatpush2.xpose.msra.mxu0 0.0
        %4791 = vmatprep.subr.mxu0 0.0
        %4792 = vmatpush2.xpose.msra.mxu0 0.0
        %4793 = vmatprep.mubr.f32.mxu0 0.0
        %4794 = vmatmul.mubr.f32.gmra.mxu0 %v4725
        %v4795 = vpop.f32.mrf.mxu0
        %v4796 = vadd.f32 0.0, %v4795
        %v4797 = vpop.f32.mrf.mxu0
        %4798 = vdwg.mxu0
        %v4799 = vmul.f32 %v4574, 0.35355338
        %v4800 = vmul.f32 %v4648, 0.35355338
        %v4801 = vmul.f32 %v4722, 0.35355338
        %v4802 = vmul.f32 %v4796, 0.35355338
        %v4803 = vsel %vm656, %v4799, -inf
        %4804 = vmax.xlane.f32.xlu0 %v4803
        %v4805 = vpop.xlane.xlu0 %4804
        %v4806 = vsel %vm656, %v4800, -inf
        %4807 = vmax.xlane.f32.xlu0 %v4806
        %v4808 = vpop.xlane.xlu0 %4807
        %v4809 = vsel %vm656, %v4801, -inf
        %4810 = vmax.xlane.f32.xlu0 %v4809
        %v4811 = vpop.xlane.xlu0 %4810
        %v4812 = vsel %vm656, %v4802, -inf
        %4813 = vmax.xlane.f32.xlu0 %v4812
        %v4814 = vpop.xlane.xlu0 %4813
        %v4815 = vsub.f32 %v4799, %v4805
        %v4816 = vsub.f32 %v4800, %v4808
        %v4817 = vsub.f32 %v4801, %v4811
        %v4818 = vsub.f32 %v4802, %v4814
        %v4819 = vmul.f32 %v4815, 1.442695
        %v4820 = vpow.pop %v4819
        %v4821 = vmul.f32 %v4816, 1.442695
        %v4822 = vpow.pop %v4821
        %v4823 = vmul.f32 %v4817, 1.442695
        %v4824 = vpow.pop %v4823
        %v4825 = vmul.f32 %v4818, 1.442695
        %v4826 = vpow.pop %v4825
        %v4827 = vsel %vm656, %v4820, 0.0
        %4828 = vadd.xlane.f32.xlu0 %v4827
        %v4829 = vpop.xlane.xlu0 %4828
        %v4830 = vsel %vm656, %v4822, 0.0
        %4831 = vadd.xlane.f32.xlu0 %v4830
        %v4832 = vpop.xlane.xlu0 %4831
        %v4833 = vsel %vm656, %v4824, 0.0
        %4834 = vadd.xlane.f32.xlu0 %v4833
        %v4835 = vpop.xlane.xlu0 %4834
        %v4836 = vsel %vm656, %v4826, 0.0
        %4837 = vadd.xlane.f32.xlu0 %v4836
        %v4838 = vpop.xlane.xlu0 %4837
        %v4839 = vrcp.pop %v4829
        %v4840 = vrcp.pop %v4832
        %v4841 = vrcp.pop %v4835
        %v4842 = vrcp.pop %v4838
        %v4843 = vmul.f32 %v4820, %v4839
        %v4844 = vmul.f32 %v4822, %v4840
        %v4845 = vmul.f32 %v4824, %v4841
        %v4846 = vmul.f32 %v4826, %v4842
        %4847 = vrot.lane.b32.xlu0 %v4391, 64
        %v4848 = vpop.permute.xlu0 %4847
        %v4851 = vsel %vm656, %v4843, 0
        %4853 = vmatprep.subr.mxu0 0.0
        %4854 = vmatpush1.msra.mxu0 0.0
        %4855 = vmatprep.subr.mxu0 0.0
        %4856 = vmatpush1.msra.mxu0 0.0
        %4857 = vmatprep.subr.mxu0 0.0
        %4858 = vmatpush1.msra.mxu0 0.0
        %4859 = vmatprep.subr.mxu0 0.0
        %4860 = vmatpush1.msra.mxu0 0.0
        %4861 = vmatprep.subr.mxu0 0.0
        %4862 = vmatpush1.msra.mxu0 0.0
        %4863 = vmatprep.subr.mxu0 0.0
        %4864 = vmatpush1.msra.mxu0 0.0
        %4865 = vmatprep.subr.mxu0 0.0
        %4866 = vmatpush1.msra.mxu0 0.0
        %4867 = vmatprep.subr.mxu0 0.0
        %4868 = vmatpush1.msra.mxu0 0.0
        %4869 = vmatprep.subr.mxu0 0.0
        %4870 = vmatpush1.msra.mxu0 0.0
        %4871 = vmatprep.subr.mxu0 0.0
        %4872 = vmatpush1.msra.mxu0 0.0
        %4873 = vmatprep.subr.mxu0 0.0
        %4874 = vmatpush1.msra.mxu0 0.0
        %4875 = vmatprep.subr.mxu0 0.0
        %4876 = vmatpush1.msra.mxu0 0.0
        %4877 = vmatprep.subr.mxu0 0.0
        %4878 = vmatpush1.msra.mxu0 0.0
        %4879 = vmatprep.subr.mxu0 0.0
        %4880 = vmatpush1.msra.mxu0 0.0
        %4881 = vmatprep.subr.mxu0 0.0
        %4882 = vmatpush1.msra.mxu0 0.0
        %4883 = vmatprep.subr.mxu0 0.0
        %4884 = vmatpush1.msra.mxu0 %v4848
        %4885 = vmatprep.subr.mxu0 0.0
        %4886 = vmatpush2.msra.mxu0 0.0
        %4887 = vmatprep.subr.mxu0 0.0
        %4888 = vmatpush2.msra.mxu0 0.0
        %4889 = vmatprep.subr.mxu0 0.0
        %4890 = vmatpush2.msra.mxu0 0.0
        %4891 = vmatprep.subr.mxu0 0.0
        %4892 = vmatpush2.msra.mxu0 0.0
        %4893 = vmatprep.subr.mxu0 0.0
        %4894 = vmatpush2.msra.mxu0 0.0
        %4895 = vmatprep.subr.mxu0 0.0
        %4896 = vmatpush2.msra.mxu0 0.0
        %4897 = vmatprep.subr.mxu0 0.0
        %4898 = vmatpush2.msra.mxu0 0.0
        %4899 = vmatprep.subr.mxu0 0.0
        %4900 = vmatpush2.msra.mxu0 0.0
        %4901 = vmatprep.subr.mxu0 0.0
        %4902 = vmatpush2.msra.mxu0 0.0
        %4903 = vmatprep.subr.mxu0 0.0
        %4904 = vmatpush2.msra.mxu0 0.0
        %4905 = vmatprep.subr.mxu0 0.0
        %4906 = vmatpush2.msra.mxu0 0.0
        %4907 = vmatprep.subr.mxu0 0.0
        %4908 = vmatpush2.msra.mxu0 0.0
        %4909 = vmatprep.subr.mxu0 0.0
        %4910 = vmatpush2.msra.mxu0 0.0
        %4911 = vmatprep.subr.mxu0 0.0
        %4912 = vmatpush2.msra.mxu0 0.0
        %4913 = vmatprep.subr.mxu0 0.0
        %4914 = vmatpush2.msra.mxu0 0.0
        %4915 = vmatprep.subr.mxu0 0.0
        %4916 = vmatpush2.msra.mxu0 0.0
        %4917 = vmatprep.mubr.f32.mxu0 0.0
        %4918 = vmatmul.mubr.f32.gmra.mxu0 %v4851
        %v4919 = vpop.f32.mrf.mxu0
        %v4920 = vadd.f32 0.0, %v4919
        %v4921 = vpop.f32.mrf.mxu0
        %4922 = vdwg.mxu0
        %4923 = vrot.lane.b32.xlu0 %v4498, 64
        %v4924 = vpop.permute.xlu0 %4923
        %v4927 = vsel %vm656, %v4844, 0
        %4929 = vmatprep.subr.mxu0 0.0
        %4930 = vmatpush1.msra.mxu0 0.0
        %4931 = vmatprep.subr.mxu0 0.0
        %4932 = vmatpush1.msra.mxu0 0.0
        %4933 = vmatprep.subr.mxu0 0.0
        %4934 = vmatpush1.msra.mxu0 0.0
        %4935 = vmatprep.subr.mxu0 0.0
        %4936 = vmatpush1.msra.mxu0 0.0
        %4937 = vmatprep.subr.mxu0 0.0
        %4938 = vmatpush1.msra.mxu0 0.0
        %4939 = vmatprep.subr.mxu0 0.0
        %4940 = vmatpush1.msra.mxu0 0.0
        %4941 = vmatprep.subr.mxu0 0.0
        %4942 = vmatpush1.msra.mxu0 0.0
        %4943 = vmatprep.subr.mxu0 0.0
        %4944 = vmatpush1.msra.mxu0 0.0
        %4945 = vmatprep.subr.mxu0 0.0
        %4946 = vmatpush1.msra.mxu0 0.0
        %4947 = vmatprep.subr.mxu0 0.0
        %4948 = vmatpush1.msra.mxu0 0.0
        %4949 = vmatprep.subr.mxu0 0.0
        %4950 = vmatpush1.msra.mxu0 0.0
        %4951 = vmatprep.subr.mxu0 0.0
        %4952 = vmatpush1.msra.mxu0 0.0
        %4953 = vmatprep.subr.mxu0 0.0
        %4954 = vmatpush1.msra.mxu0 0.0
        %4955 = vmatprep.subr.mxu0 0.0
        %4956 = vmatpush1.msra.mxu0 0.0
        %4957 = vmatprep.subr.mxu0 0.0
        %4958 = vmatpush1.msra.mxu0 0.0
        %4959 = vmatprep.subr.mxu0 0.0
        %4960 = vmatpush1.msra.mxu0 %v4924
        %4961 = vmatprep.subr.mxu0 0.0
        %4962 = vmatpush2.msra.mxu0 0.0
        %4963 = vmatprep.subr.mxu0 0.0
        %4964 = vmatpush2.msra.mxu0 0.0
        %4965 = vmatprep.subr.mxu0 0.0
        %4966 = vmatpush2.msra.mxu0 0.0
        %4967 = vmatprep.subr.mxu0 0.0
        %4968 = vmatpush2.msra.mxu0 0.0
        %4969 = vmatprep.subr.mxu0 0.0
        %4970 = vmatpush2.msra.mxu0 0.0
        %4971 = vmatprep.subr.mxu0 0.0
        %4972 = vmatpush2.msra.mxu0 0.0
        %4973 = vmatprep.subr.mxu0 0.0
        %4974 = vmatpush2.msra.mxu0 0.0
        %4975 = vmatprep.subr.mxu0 0.0
        %4976 = vmatpush2.msra.mxu0 0.0
        %4977 = vmatprep.subr.mxu0 0.0
        %4978 = vmatpush2.msra.mxu0 0.0
        %4979 = vmatprep.subr.mxu0 0.0
        %4980 = vmatpush2.msra.mxu0 0.0
        %4981 = vmatprep.subr.mxu0 0.0
        %4982 = vmatpush2.msra.mxu0 0.0
        %4983 = vmatprep.subr.mxu0 0.0
        %4984 = vmatpush2.msra.mxu0 0.0
        %4985 = vmatprep.subr.mxu0 0.0
        %4986 = vmatpush2.msra.mxu0 0.0
        %4987 = vmatprep.subr.mxu0 0.0
        %4988 = vmatpush2.msra.mxu0 0.0
        %4989 = vmatprep.subr.mxu0 0.0
        %4990 = vmatpush2.msra.mxu0 0.0
        %4991 = vmatprep.subr.mxu0 0.0
        %4992 = vmatpush2.msra.mxu0 0.0
        %4993 = vmatprep.mubr.f32.mxu0 0.0
        %4994 = vmatmul.mubr.f32.gmra.mxu0 %v4927
        %v4995 = vpop.f32.mrf.mxu0
        %v4996 = vadd.f32 0.0, %v4995
        %v4997 = vpop.f32.mrf.mxu0
        %4998 = vdwg.mxu0
        %4999 = vrot.lane.b32.xlu0 %v4500, 64
        %v5000 = vpop.permute.xlu0 %4999
        %v5003 = vsel %vm656, %v4845, 0
        %5005 = vmatprep.subr.mxu0 0.0
        %5006 = vmatpush1.msra.mxu0 0.0
        %5007 = vmatprep.subr.mxu0 0.0
        %5008 = vmatpush1.msra.mxu0 0.0
        %5009 = vmatprep.subr.mxu0 0.0
        %5010 = vmatpush1.msra.mxu0 0.0
        %5011 = vmatprep.subr.mxu0 0.0
        %5012 = vmatpush1.msra.mxu0 0.0
        %5013 = vmatprep.subr.mxu0 0.0
        %5014 = vmatpush1.msra.mxu0 0.0
        %5015 = vmatprep.subr.mxu0 0.0
        %5016 = vmatpush1.msra.mxu0 0.0
        %5017 = vmatprep.subr.mxu0 0.0
        %5018 = vmatpush1.msra.mxu0 0.0
        %5019 = vmatprep.subr.mxu0 0.0
        %5020 = vmatpush1.msra.mxu0 0.0
        %5021 = vmatprep.subr.mxu0 0.0
        %5022 = vmatpush1.msra.mxu0 0.0
        %5023 = vmatprep.subr.mxu0 0.0
        %5024 = vmatpush1.msra.mxu0 0.0
        %5025 = vmatprep.subr.mxu0 0.0
        %5026 = vmatpush1.msra.mxu0 0.0
        %5027 = vmatprep.subr.mxu0 0.0
        %5028 = vmatpush1.msra.mxu0 0.0
        %5029 = vmatprep.subr.mxu0 0.0
        %5030 = vmatpush1.msra.mxu0 0.0
        %5031 = vmatprep.subr.mxu0 0.0
        %5032 = vmatpush1.msra.mxu0 0.0
        %5033 = vmatprep.subr.mxu0 0.0
        %5034 = vmatpush1.msra.mxu0 0.0
        %5035 = vmatprep.subr.mxu0 0.0
        %5036 = vmatpush1.msra.mxu0 %v5000
        %5037 = vmatprep.subr.mxu0 0.0
        %5038 = vmatpush2.msra.mxu0 0.0
        %5039 = vmatprep.subr.mxu0 0.0
        %5040 = vmatpush2.msra.mxu0 0.0
        %5041 = vmatprep.subr.mxu0 0.0
        %5042 = vmatpush2.msra.mxu0 0.0
        %5043 = vmatprep.subr.mxu0 0.0
        %5044 = vmatpush2.msra.mxu0 0.0
        %5045 = vmatprep.subr.mxu0 0.0
        %5046 = vmatpush2.msra.mxu0 0.0
        %5047 = vmatprep.subr.mxu0 0.0
        %5048 = vmatpush2.msra.mxu0 0.0
        %5049 = vmatprep.subr.mxu0 0.0
        %5050 = vmatpush2.msra.mxu0 0.0
        %5051 = vmatprep.subr.mxu0 0.0
        %5052 = vmatpush2.msra.mxu0 0.0
        %5053 = vmatprep.subr.mxu0 0.0
        %5054 = vmatpush2.msra.mxu0 0.0
        %5055 = vmatprep.subr.mxu0 0.0
        %5056 = vmatpush2.msra.mxu0 0.0
        %5057 = vmatprep.subr.mxu0 0.0
        %5058 = vmatpush2.msra.mxu0 0.0
        %5059 = vmatprep.subr.mxu0 0.0
        %5060 = vmatpush2.msra.mxu0 0.0
        %5061 = vmatprep.subr.mxu0 0.0
        %5062 = vmatpush2.msra.mxu0 0.0
        %5063 = vmatprep.subr.mxu0 0.0
        %5064 = vmatpush2.msra.mxu0 0.0
        %5065 = vmatprep.subr.mxu0 0.0
        %5066 = vmatpush2.msra.mxu0 0.0
        %5067 = vmatprep.subr.mxu0 0.0
        %5068 = vmatpush2.msra.mxu0 0.0
        %5069 = vmatprep.mubr.f32.mxu0 0.0
        %5070 = vmatmul.mubr.f32.gmra.mxu0 %v5003
        %v5071 = vpop.f32.mrf.mxu0
        %v5072 = vadd.f32 0.0, %v5071
        %v5073 = vpop.f32.mrf.mxu0
        %5074 = vdwg.mxu0
        %5075 = vrot.lane.b32.xlu0 %v4502, 64
        %v5076 = vpop.permute.xlu0 %5075
        %v5079 = vsel %vm656, %v4846, 0
        %5081 = vmatprep.subr.mxu0 0.0
        %5082 = vmatpush1.msra.mxu0 0.0
        %5083 = vmatprep.subr.mxu0 0.0
        %5084 = vmatpush1.msra.mxu0 0.0
        %5085 = vmatprep.subr.mxu0 0.0
        %5086 = vmatpush1.msra.mxu0 0.0
        %5087 = vmatprep.subr.mxu0 0.0
        %5088 = vmatpush1.msra.mxu0 0.0
        %5089 = vmatprep.subr.mxu0 0.0
        %5090 = vmatpush1.msra.mxu0 0.0
        %5091 = vmatprep.subr.mxu0 0.0
        %5092 = vmatpush1.msra.mxu0 0.0
        %5093 = vmatprep.subr.mxu0 0.0
        %5094 = vmatpush1.msra.mxu0 0.0
        %5095 = vmatprep.subr.mxu0 0.0
        %5096 = vmatpush1.msra.mxu0 0.0
        %5097 = vmatprep.subr.mxu0 0.0
        %5098 = vmatpush1.msra.mxu0 0.0
        %5099 = vmatprep.subr.mxu0 0.0
        %5100 = vmatpush1.msra.mxu0 0.0
        %5101 = vmatprep.subr.mxu0 0.0
        %5102 = vmatpush1.msra.mxu0 0.0
        %5103 = vmatprep.subr.mxu0 0.0
        %5104 = vmatpush1.msra.mxu0 0.0
        %5105 = vmatprep.subr.mxu0 0.0
        %5106 = vmatpush1.msra.mxu0 0.0
        %5107 = vmatprep.subr.mxu0 0.0
        %5108 = vmatpush1.msra.mxu0 0.0
        %5109 = vmatprep.subr.mxu0 0.0
        %5110 = vmatpush1.msra.mxu0 0.0
        %5111 = vmatprep.subr.mxu0 0.0
        %5112 = vmatpush1.msra.mxu0 %v5076
        %5113 = vmatprep.subr.mxu0 0.0
        %5114 = vmatpush2.msra.mxu0 0.0
        %5115 = vmatprep.subr.mxu0 0.0
        %5116 = vmatpush2.msra.mxu0 0.0
        %5117 = vmatprep.subr.mxu0 0.0
        %5118 = vmatpush2.msra.mxu0 0.0
        %5119 = vmatprep.subr.mxu0 0.0
        %5120 = vmatpush2.msra.mxu0 0.0
        %5121 = vmatprep.subr.mxu0 0.0
        %5122 = vmatpush2.msra.mxu0 0.0
        %5123 = vmatprep.subr.mxu0 0.0
        %5124 = vmatpush2.msra.mxu0 0.0
        %5125 = vmatprep.subr.mxu0 0.0
        %5126 = vmatpush2.msra.mxu0 0.0
        %5127 = vmatprep.subr.mxu0 0.0
        %5128 = vmatpush2.msra.mxu0 0.0
        %5129 = vmatprep.subr.mxu0 0.0
        %5130 = vmatpush2.msra.mxu0 0.0
        %5131 = vmatprep.subr.mxu0 0.0
        %5132 = vmatpush2.msra.mxu0 0.0
        %5133 = vmatprep.subr.mxu0 0.0
        %5134 = vmatpush2.msra.mxu0 0.0
        %5135 = vmatprep.subr.mxu0 0.0
        %5136 = vmatpush2.msra.mxu0 0.0
        %5137 = vmatprep.subr.mxu0 0.0
        %5138 = vmatpush2.msra.mxu0 0.0
        %5139 = vmatprep.subr.mxu0 0.0
        %5140 = vmatpush2.msra.mxu0 0.0
        %5141 = vmatprep.subr.mxu0 0.0
        %5142 = vmatpush2.msra.mxu0 0.0
        %5143 = vmatprep.subr.mxu0 0.0
        %5144 = vmatpush2.msra.mxu0 0.0
        %5145 = vmatprep.mubr.f32.mxu0 0.0
        %5146 = vmatmul.mubr.f32.gmra.mxu0 %v5079
        %v5147 = vpop.f32.mrf.mxu0
        %v5148 = vadd.f32 0.0, %v5147
        %v5149 = vpop.f32.mrf.mxu0
        %5150 = vdwg.mxu0
        %5152 = vrot.lane.b32.xlu0 %v4996, 8
        %v5153 = vpop.permute.xlu0 %5152
        %5156 = vrot.lane.b32.xlu0 %v5072, 16
        %v5157 = vpop.permute.xlu0 %5156
        %5160 = vrot.lane.b32.xlu0 %v5148, 24
        %v5161 = vpop.permute.xlu0 %5160
        %v5163 = vsel %vm656, %v4920, %v5153
        %v5164 = vsel %vm378, %v5163, %v5157
        %v5165 = vsel %vm1329, %v5164, %v5161
        %s5166 = scalar_lea.vmem %s4, 64
        %v5167 = vld [vmem:[%s5166] sm:$0xff]
        %v5168 = vld [vmem:[%s5166 + $0x8] sm:$0xff]
        %v5169 = vld [vmem:[%s5166 + $0x10] sm:$0xff]
        %v5170 = vld [vmem:[%s5166 + $0x18] sm:$0xff]
        %v5171 = vld [vmem:[%s8 + $0x11] sm:$0x1]
        %v5172 = vlaneseq
        %v5173 = vshrl.u32 %v5172, 7
        %v5174 = vsub.s32 0, %v5173
        %v5175 = vrot.slane %v5171, %v5174
        %v5177 = vsel %vm456, %v5165, 0
        %5179 = vmatprep.subr.mxu0 0.0
        %5180 = vmatpush1.msra.mxu0 0.0
        %5181 = vmatprep.subr.mxu0 0.0
        %5182 = vmatpush1.msra.mxu0 0.0
        %5183 = vmatprep.subr.mxu0 0.0
        %5184 = vmatpush1.msra.mxu0 0.0
        %5185 = vmatprep.subr.mxu0 0.0
        %5186 = vmatpush1.msra.mxu0 0.0
        %5187 = vmatprep.subr.mxu0 0.0
        %5188 = vmatpush1.msra.mxu0 0.0
        %5189 = vmatprep.subr.mxu0 0.0
        %5190 = vmatpush1.msra.mxu0 0.0
        %5191 = vmatprep.subr.mxu0 0.0
        %5192 = vmatpush1.msra.mxu0 0.0
        %5193 = vmatprep.subr.mxu0 0.0
        %5194 = vmatpush1.msra.mxu0 0.0
        %5195 = vmatprep.subr.mxu0 0.0
        %5196 = vmatpush1.msra.mxu0 0.0
        %5197 = vmatprep.subr.mxu0 0.0
        %5198 = vmatpush1.msra.mxu0 0.0
        %5199 = vmatprep.subr.mxu0 0.0
        %5200 = vmatpush1.msra.mxu0 0.0
        %5201 = vmatprep.subr.mxu0 0.0
        %5202 = vmatpush1.msra.mxu0 0.0
        %5203 = vmatprep.subr.mxu0 0.0
        %5204 = vmatpush1.msra.mxu0 %v5170
        %5205 = vmatprep.subr.mxu0 0.0
        %5206 = vmatpush1.msra.mxu0 %v5169
        %5207 = vmatprep.subr.mxu0 0.0
        %5208 = vmatpush1.msra.mxu0 %v5168
        %5209 = vmatprep.subr.mxu0 0.0
        %5210 = vmatpush1.msra.mxu0 %v5167
        %5211 = vmatprep.subr.mxu0 0.0
        %5212 = vmatpush2.msra.mxu0 0.0
        %5213 = vmatprep.subr.mxu0 0.0
        %5214 = vmatpush2.msra.mxu0 0.0
        %5215 = vmatprep.subr.mxu0 0.0
        %5216 = vmatpush2.msra.mxu0 0.0
        %5217 = vmatprep.subr.mxu0 0.0
        %5218 = vmatpush2.msra.mxu0 0.0
        %5219 = vmatprep.subr.mxu0 0.0
        %5220 = vmatpush2.msra.mxu0 0.0
        %5221 = vmatprep.subr.mxu0 0.0
        %5222 = vmatpush2.msra.mxu0 0.0
        %5223 = vmatprep.subr.mxu0 0.0
        %5224 = vmatpush2.msra.mxu0 0.0
        %5225 = vmatprep.subr.mxu0 0.0
        %5226 = vmatpush2.msra.mxu0 0.0
        %5227 = vmatprep.subr.mxu0 0.0
        %5228 = vmatpush2.msra.mxu0 0.0
        %5229 = vmatprep.subr.mxu0 0.0
        %5230 = vmatpush2.msra.mxu0 0.0
        %5231 = vmatprep.subr.mxu0 0.0
        %5232 = vmatpush2.msra.mxu0 0.0
        %5233 = vmatprep.subr.mxu0 0.0
        %5234 = vmatpush2.msra.mxu0 0.0
        %5235 = vmatprep.subr.mxu0 0.0
        %5236 = vmatpush2.msra.mxu0 0.0
        %5237 = vmatprep.subr.mxu0 0.0
        %5238 = vmatpush2.msra.mxu0 0.0
        %5239 = vmatprep.subr.mxu0 0.0
        %5240 = vmatpush2.msra.mxu0 0.0
        %5241 = vmatprep.subr.mxu0 0.0
        %5242 = vmatpush2.msra.mxu0 0.0
        %5243 = vmatprep.mubr.f32.mxu0 0.0
        %5244 = vmatmul.mubr.f32.gmra.mxu0 %v5177
        %v5245 = vpop.f32.mrf.mxu0
        %v5246 = vadd.f32 %v5175, %v5245
        %v5247 = vpop.f32.mrf.mxu0
        %5248 = vdwg.mxu0
        %v5249 = vadd.f32 %v4283, %v5246
        %v5250 = vld [vmem:[%s8 + $0xe] sm:$0x1]
        %v5251 = vld [vmem:[%s8 + $0xf] sm:$0x1]
        %v5252 = vsel %vm456, %v5249, 0.0
        %5253 = vadd.xlane.f32.xlu0 %v5252
        %v5254 = vpop.xlane.xlu0 %5253
        %v5255 = vmul.f32 %v5254, %v460
        %v5256 = vsub.f32 %v5249, %v5255
        %v5257 = vmul.f32 %v5256, %v5256
        %v5258 = vsel %vm456, %v5257, 0.0
        %5259 = vadd.xlane.f32.xlu0 %v5258
        %v5260 = vpop.xlane.xlu0 %5259
        %v5261 = vmul.f32 %v5260, %v460
        %v5262 = vadd.f32 %v5261, 1e-05
        %v5263 = vrsqrt.pop %v5262
        %v5264 = vmul.f32 %v5256, %v5263
        %v5265 = vlaneseq
        %v5266 = vshrl.u32 %v5265, 7
        %v5267 = vsub.s32 0, %v5266
        %v5268 = vrot.slane %v5250, %v5267
        %v5269 = vmul.f32 %v5264, %v5268
        %v5270 = vlaneseq
        %v5271 = vshrl.u32 %v5270, 7
        %v5272 = vsub.s32 0, %v5271
        %v5273 = vrot.slane %v5251, %v5272
        %v5274 = vadd.f32 %v5269, %v5273
        %s5275 = scalar_lea.vmem %s5, 64
        %v5276 = vld [vmem:[%s5275] sm:$0xff]
        %v5277 = vld [vmem:[%s5275 + $0x8] sm:$0xff]
        %v5278 = vld [vmem:[%s5275 + $0x10] sm:$0xff]
        %v5279 = vld [vmem:[%s5275 + $0x18] sm:$0xff]
        %v5280 = vld [vmem:[%s8 + $0x12] sm:$0x1]
        %v5281 = vlaneseq
        %v5282 = vshrl.u32 %v5281, 7
        %v5283 = vsub.s32 0, %v5282
        %v5284 = vrot.slane %v5280, %v5283
        %v5286 = vsel %vm456, %v5274, 0
        %5288 = vmatprep.subr.mxu0 0.0
        %5289 = vmatpush1.msra.mxu0 0.0
        %5290 = vmatprep.subr.mxu0 0.0
        %5291 = vmatpush1.msra.mxu0 0.0
        %5292 = vmatprep.subr.mxu0 0.0
        %5293 = vmatpush1.msra.mxu0 0.0
        %5294 = vmatprep.subr.mxu0 0.0
        %5295 = vmatpush1.msra.mxu0 0.0
        %5296 = vmatprep.subr.mxu0 0.0
        %5297 = vmatpush1.msra.mxu0 0.0
        %5298 = vmatprep.subr.mxu0 0.0
        %5299 = vmatpush1.msra.mxu0 0.0
        %5300 = vmatprep.subr.mxu0 0.0
        %5301 = vmatpush1.msra.mxu0 0.0
        %5302 = vmatprep.subr.mxu0 0.0
        %5303 = vmatpush1.msra.mxu0 0.0
        %5304 = vmatprep.subr.mxu0 0.0
        %5305 = vmatpush1.msra.mxu0 0.0
        %5306 = vmatprep.subr.mxu0 0.0
        %5307 = vmatpush1.msra.mxu0 0.0
        %5308 = vmatprep.subr.mxu0 0.0
        %5309 = vmatpush1.msra.mxu0 0.0
        %5310 = vmatprep.subr.mxu0 0.0
        %5311 = vmatpush1.msra.mxu0 0.0
        %5312 = vmatprep.subr.mxu0 0.0
        %5313 = vmatpush1.msra.mxu0 %v5279
        %5314 = vmatprep.subr.mxu0 0.0
        %5315 = vmatpush1.msra.mxu0 %v5278
        %5316 = vmatprep.subr.mxu0 0.0
        %5317 = vmatpush1.msra.mxu0 %v5277
        %5318 = vmatprep.subr.mxu0 0.0
        %5319 = vmatpush1.msra.mxu0 %v5276
        %5320 = vmatprep.subr.mxu0 0.0
        %5321 = vmatpush2.msra.mxu0 0.0
        %5322 = vmatprep.subr.mxu0 0.0
        %5323 = vmatpush2.msra.mxu0 0.0
        %5324 = vmatprep.subr.mxu0 0.0
        %5325 = vmatpush2.msra.mxu0 0.0
        %5326 = vmatprep.subr.mxu0 0.0
        %5327 = vmatpush2.msra.mxu0 0.0
        %5328 = vmatprep.subr.mxu0 0.0
        %5329 = vmatpush2.msra.mxu0 0.0
        %5330 = vmatprep.subr.mxu0 0.0
        %5331 = vmatpush2.msra.mxu0 0.0
        %5332 = vmatprep.subr.mxu0 0.0
        %5333 = vmatpush2.msra.mxu0 0.0
        %5334 = vmatprep.subr.mxu0 0.0
        %5335 = vmatpush2.msra.mxu0 0.0
        %5336 = vmatprep.subr.mxu0 0.0
        %5337 = vmatpush2.msra.mxu0 0.0
        %5338 = vmatprep.subr.mxu0 0.0
        %5339 = vmatpush2.msra.mxu0 0.0
        %5340 = vmatprep.subr.mxu0 0.0
        %5341 = vmatpush2.msra.mxu0 0.0
        %5342 = vmatprep.subr.mxu0 0.0
        %5343 = vmatpush2.msra.mxu0 0.0
        %5344 = vmatprep.subr.mxu0 0.0
        %5345 = vmatpush2.msra.mxu0 0.0
        %5346 = vmatprep.subr.mxu0 0.0
        %5347 = vmatpush2.msra.mxu0 0.0
        %5348 = vmatprep.subr.mxu0 0.0
        %5349 = vmatpush2.msra.mxu0 0.0
        %5350 = vmatprep.subr.mxu0 0.0
        %5351 = vmatpush2.msra.mxu0 0.0
        %5352 = vmatprep.mubr.f32.mxu0 0.0
        %5353 = vmatmul.mubr.f32.gmra.mxu0 %v5286
        %v5354 = vpop.f32.mrf.mxu0
        %v5355 = vadd.f32 %v5284, %v5354
        %v5356 = vpop.f32.mrf.mxu0
        %5357 = vdwg.mxu0
        %v5358 = vmul.f32 %v5355, %v5355
        %v5359 = vmul.f32 %v5355, %v5358
        %v5360 = vmul.f32 %v5359, 0.044715
        %v5361 = vadd.f32 %v5355, %v5360
        %v5362 = vmul.f32 %v5361, 0.7978846
        %v5363 = vtanh.pop %v5362
        %v5364 = vadd.f32 %v5363, 1.0
        %v5365 = vmul.f32 %v5364, 0.5
        %v5366 = vmul.f32 %v5355, %v5365
        %s5367 = scalar_lea.vmem %s6, 256
        %v5368 = vld [vmem:[%s5367] sm:$0xff]
        %v5369 = vld [vmem:[%s5367 + $0x8] sm:$0xff]
        %v5370 = vld [vmem:[%s5367 + $0x10] sm:$0xff]
        %v5371 = vld [vmem:[%s5367 + $0x18] sm:$0xff]
        %v5372 = vld [vmem:[%s5367 + $0x20] sm:$0xff]
        %v5373 = vld [vmem:[%s5367 + $0x28] sm:$0xff]
        %v5374 = vld [vmem:[%s5367 + $0x30] sm:$0xff]
        %v5375 = vld [vmem:[%s5367 + $0x38] sm:$0xff]
        %v5376 = vld [vmem:[%s5367 + $0x40] sm:$0xff]
        %v5377 = vld [vmem:[%s5367 + $0x48] sm:$0xff]
        %v5378 = vld [vmem:[%s5367 + $0x50] sm:$0xff]
        %v5379 = vld [vmem:[%s5367 + $0x58] sm:$0xff]
        %v5380 = vld [vmem:[%s5367 + $0x60] sm:$0xff]
        %v5381 = vld [vmem:[%s5367 + $0x68] sm:$0xff]
        %v5382 = vld [vmem:[%s5367 + $0x70] sm:$0xff]
        %v5383 = vld [vmem:[%s5367 + $0x78] sm:$0xff]
        %v5384 = vld [vmem:[%s8 + $0x13] sm:$0x1]
        %v5385 = vlaneseq
        %v5386 = vshrl.u32 %v5385, 7
        %v5387 = vsub.s32 0, %v5386
        %v5388 = vrot.slane %v5384, %v5387
        %5389 = vmatprep.subr.mxu0 0.0
        %5390 = vmatpush1.msra.mxu0 %v5383
        %5391 = vmatprep.subr.mxu0 0.0
        %5392 = vmatpush1.msra.mxu0 %v5382
        %5393 = vmatprep.subr.mxu0 0.0
        %5394 = vmatpush1.msra.mxu0 %v5381
        %5395 = vmatprep.subr.mxu0 0.0
        %5396 = vmatpush1.msra.mxu0 %v5380
        %5397 = vmatprep.subr.mxu0 0.0
        %5398 = vmatpush1.msra.mxu0 %v5379
        %5399 = vmatprep.subr.mxu0 0.0
        %5400 = vmatpush1.msra.mxu0 %v5378
        %5401 = vmatprep.subr.mxu0 0.0
        %5402 = vmatpush1.msra.mxu0 %v5377
        %5403 = vmatprep.subr.mxu0 0.0
        %5404 = vmatpush1.msra.mxu0 %v5376
        %5405 = vmatprep.subr.mxu0 0.0
        %5406 = vmatpush1.msra.mxu0 %v5375
        %5407 = vmatprep.subr.mxu0 0.0
        %5408 = vmatpush1.msra.mxu0 %v5374
        %5409 = vmatprep.subr.mxu0 0.0
        %5410 = vmatpush1.msra.mxu0 %v5373
        %5411 = vmatprep.subr.mxu0 0.0
        %5412 = vmatpush1.msra.mxu0 %v5372
        %5413 = vmatprep.subr.mxu0 0.0
        %5414 = vmatpush1.msra.mxu0 %v5371
        %5415 = vmatprep.subr.mxu0 0.0
        %5416 = vmatpush1.msra.mxu0 %v5370
        %5417 = vmatprep.subr.mxu0 0.0
        %5418 = vmatpush1.msra.mxu0 %v5369
        %5419 = vmatprep.subr.mxu0 0.0
        %5420 = vmatpush1.msra.mxu0 %v5368
        %5421 = vmatprep.subr.mxu0 0.0
        %5422 = vmatpush2.msra.mxu0 0.0
        %5423 = vmatprep.subr.mxu0 0.0
        %5424 = vmatpush2.msra.mxu0 0.0
        %5425 = vmatprep.subr.mxu0 0.0
        %5426 = vmatpush2.msra.mxu0 0.0
        %5427 = vmatprep.subr.mxu0 0.0
        %5428 = vmatpush2.msra.mxu0 0.0
        %5429 = vmatprep.subr.mxu0 0.0
        %5430 = vmatpush2.msra.mxu0 0.0
        %5431 = vmatprep.subr.mxu0 0.0
        %5432 = vmatpush2.msra.mxu0 0.0
        %5433 = vmatprep.subr.mxu0 0.0
        %5434 = vmatpush2.msra.mxu0 0.0
        %5435 = vmatprep.subr.mxu0 0.0
        %5436 = vmatpush2.msra.mxu0 0.0
        %5437 = vmatprep.subr.mxu0 0.0
        %5438 = vmatpush2.msra.mxu0 0.0
        %5439 = vmatprep.subr.mxu0 0.0
        %5440 = vmatpush2.msra.mxu0 0.0
        %5441 = vmatprep.subr.mxu0 0.0
        %5442 = vmatpush2.msra.mxu0 0.0
        %5443 = vmatprep.subr.mxu0 0.0
        %5444 = vmatpush2.msra.mxu0 0.0
        %5445 = vmatprep.subr.mxu0 0.0
        %5446 = vmatpush2.msra.mxu0 0.0
        %5447 = vmatprep.subr.mxu0 0.0
        %5448 = vmatpush2.msra.mxu0 0.0
        %5449 = vmatprep.subr.mxu0 0.0
        %5450 = vmatpush2.msra.mxu0 0.0
        %5451 = vmatprep.subr.mxu0 0.0
        %5452 = vmatpush2.msra.mxu0 0.0
        %5453 = vmatprep.mubr.f32.mxu0 0.0
        %5454 = vmatmul.mubr.f32.gmra.mxu0 %v5366
        %v5455 = vpop.f32.mrf.mxu0
        %v5456 = vadd.f32 %v5388, %v5455
        %v5457 = vpop.f32.mrf.mxu0
        %5458 = vdwg.mxu0
        %v5459 = vadd.f32 %v5249, %v5456
        %v5460 = vld [vmem:[%s8 + $0x14] sm:$0x1]
        %v5461 = vld [vmem:[%s8 + $0x15] sm:$0x1]
        %v5462 = vsel %vm456, %v5459, 0.0
        %5463 = vadd.xlane.f32.xlu0 %v5462
        %v5464 = vpop.xlane.xlu0 %5463
        %v5465 = vmul.f32 %v5464, %v460
        %v5466 = vsub.f32 %v5459, %v5465
        %v5467 = vmul.f32 %v5466, %v5466
        %v5468 = vsel %vm456, %v5467, 0.0
        %5469 = vadd.xlane.f32.xlu0 %v5468
        %v5470 = vpop.xlane.xlu0 %5469
        %v5471 = vmul.f32 %v5470, %v460
        %v5472 = vadd.f32 %v5471, 1e-05
        %v5473 = vrsqrt.pop %v5472
        %v5474 = vmul.f32 %v5466, %v5473
        %v5475 = vlaneseq
        %v5476 = vshrl.u32 %v5475, 7
        %v5477 = vsub.s32 0, %v5476
        %v5478 = vrot.slane %v5460, %v5477
        %v5479 = vmul.f32 %v5474, %v5478
        %v5480 = vlaneseq
        %v5481 = vshrl.u32 %v5480, 7
        %v5482 = vsub.s32 0, %v5481
        %v5483 = vrot.slane %v5461, %v5482
        %v5484 = vadd.f32 %v5479, %v5483
        %s5485 = scalar_lea.vmem %s3, 96
        %v5486 = vld [vmem:[%s5485] sm:$0xff]
        %v5487 = vld [vmem:[%s5485 + $0x8] sm:$0xff]
        %v5488 = vld [vmem:[%s5485 + $0x10] sm:$0xff]
        %v5489 = vld [vmem:[%s5485 + $0x18] sm:$0xff]
        %v5490 = vld [vmem:[%s8 + $0x18] sm:$0x1]
        %v5491 = vlaneseq
        %v5492 = vshrl.u32 %v5491, 7
        %v5493 = vsub.s32 0, %v5492
        %v5494 = vrot.slane %v5490, %v5493
        %v5496 = vsel %vm456, %v5484, 0
        %5498 = vmatprep.subr.mxu0 0.0
        %5499 = vmatpush1.msra.mxu0 0.0
        %5500 = vmatprep.subr.mxu0 0.0
        %5501 = vmatpush1.msra.mxu0 0.0
        %5502 = vmatprep.subr.mxu0 0.0
        %5503 = vmatpush1.msra.mxu0 0.0
        %5504 = vmatprep.subr.mxu0 0.0
        %5505 = vmatpush1.msra.mxu0 0.0
        %5506 = vmatprep.subr.mxu0 0.0
        %5507 = vmatpush1.msra.mxu0 0.0
        %5508 = vmatprep.subr.mxu0 0.0
        %5509 = vmatpush1.msra.mxu0 0.0
        %5510 = vmatprep.subr.mxu0 0.0
        %5511 = vmatpush1.msra.mxu0 0.0
        %5512 = vmatprep.subr.mxu0 0.0
        %5513 = vmatpush1.msra.mxu0 0.0
        %5514 = vmatprep.subr.mxu0 0.0
        %5515 = vmatpush1.msra.mxu0 0.0
        %5516 = vmatprep.subr.mxu0 0.0
        %5517 = vmatpush1.msra.mxu0 0.0
        %5518 = vmatprep.subr.mxu0 0.0
        %5519 = vmatpush1.msra.mxu0 0.0
        %5520 = vmatprep.subr.mxu0 0.0
        %5521 = vmatpush1.msra.mxu0 0.0
        %5522 = vmatprep.subr.mxu0 0.0
        %5523 = vmatpush1.msra.mxu0 %v5489
        %5524 = vmatprep.subr.mxu0 0.0
        %5525 = vmatpush1.msra.mxu0 %v5488
        %5526 = vmatprep.subr.mxu0 0.0
        %5527 = vmatpush1.msra.mxu0 %v5487
        %5528 = vmatprep.subr.mxu0 0.0
        %5529 = vmatpush1.msra.mxu0 %v5486
        %5530 = vmatprep.subr.mxu0 0.0
        %5531 = vmatpush2.msra.mxu0 0.0
        %5532 = vmatprep.subr.mxu0 0.0
        %5533 = vmatpush2.msra.mxu0 0.0
        %5534 = vmatprep.subr.mxu0 0.0
        %5535 = vmatpush2.msra.mxu0 0.0
        %5536 = vmatprep.subr.mxu0 0.0
        %5537 = vmatpush2.msra.mxu0 0.0
        %5538 = vmatprep.subr.mxu0 0.0
        %5539 = vmatpush2.msra.mxu0 0.0
        %5540 = vmatprep.subr.mxu0 0.0
        %5541 = vmatpush2.msra.mxu0 0.0
        %5542 = vmatprep.subr.mxu0 0.0
        %5543 = vmatpush2.msra.mxu0 0.0
        %5544 = vmatprep.subr.mxu0 0.0
        %5545 = vmatpush2.msra.mxu0 0.0
        %5546 = vmatprep.subr.mxu0 0.0
        %5547 = vmatpush2.msra.mxu0 0.0
        %5548 = vmatprep.subr.mxu0 0.0
        %5549 = vmatpush2.msra.mxu0 0.0
        %5550 = vmatprep.subr.mxu0 0.0
        %5551 = vmatpush2.msra.mxu0 0.0
        %5552 = vmatprep.subr.mxu0 0.0
        %5553 = vmatpush2.msra.mxu0 0.0
        %5554 = vmatprep.subr.mxu0 0.0
        %5555 = vmatpush2.msra.mxu0 0.0
        %5556 = vmatprep.subr.mxu0 0.0
        %5557 = vmatpush2.msra.mxu0 0.0
        %5558 = vmatprep.subr.mxu0 0.0
        %5559 = vmatpush2.msra.mxu0 0.0
        %5560 = vmatprep.subr.mxu0 0.0
        %5561 = vmatpush2.msra.mxu0 0.0
        %5562 = vmatprep.mubr.f32.mxu0 0.0
        %5563 = vmatmul.mubr.f32.gmra.mxu0 %v5496
        %v5564 = vpop.f32.mrf.mxu0
        %v5565 = vadd.f32 %v5494, %v5564
        %v5566 = vpop.f32.mrf.mxu0
        %5567 = vdwg.mxu0
        %5569 = vrot.lane.b32.xlu0 %v5565, 96
        %v5570 = vpop.permute.xlu0 %5569
        %v5572 = vmul.f32 %v5565, %v361
        %v5573 = vmul.f32 %v5570, %v361
        %v5574 = vsel %vm456, %v5565, 0
        %v5576 = vsel %vm456, %v5570, 0
        %5578 = vmatprep.subr.mxu0 0.0
        %5579 = vmatpush1.msra.mxu0 0.0
        %5580 = vmatprep.subr.mxu0 0.0
        %5581 = vmatpush1.msra.mxu0 0.0
        %5582 = vmatprep.subr.mxu0 0.0
        %5583 = vmatpush1.msra.mxu0 0.0
        %5584 = vmatprep.subr.mxu0 0.0
        %5585 = vmatpush1.msra.mxu0 0.0
        %5586 = vmatprep.subr.mxu0 0.0
        %5587 = vmatpush1.msra.mxu0 0.0
        %5588 = vmatprep.subr.mxu0 0.0
        %5589 = vmatpush1.msra.mxu0 0.0
        %5590 = vmatprep.subr.mxu0 0.0
        %5591 = vmatpush1.msra.mxu0 0.0
        %5592 = vmatprep.subr.mxu0 0.0
        %5593 = vmatpush1.msra.mxu0 0.0
        %5594 = vmatprep.subr.mxu0 0.0
        %5595 = vmatpush1.msra.mxu0 0.0
        %5596 = vmatprep.subr.mxu0 0.0
        %5597 = vmatpush1.msra.mxu0 0.0
        %5598 = vmatprep.subr.mxu0 0.0
        %5599 = vmatpush1.msra.mxu0 0.0
        %5600 = vmatprep.subr.mxu0 0.0
        %5601 = vmatpush1.msra.mxu0 0.0
        %5602 = vmatprep.subr.mxu0 0.0
        %5603 = vmatpush1.msra.mxu0 %v366
        %5604 = vmatprep.subr.mxu0 0.0
        %5605 = vmatpush1.msra.mxu0 %v365
        %5606 = vmatprep.subr.mxu0 0.0
        %5607 = vmatpush1.msra.mxu0 %v364
        %5608 = vmatprep.subr.mxu0 0.0
        %5609 = vmatpush1.msra.mxu0 %v363
        %5610 = vmatprep.subr.mxu0 0.0
        %5611 = vmatpush2.msra.mxu0 0.0
        %5612 = vmatprep.subr.mxu0 0.0
        %5613 = vmatpush2.msra.mxu0 0.0
        %5614 = vmatprep.subr.mxu0 0.0
        %5615 = vmatpush2.msra.mxu0 0.0
        %5616 = vmatprep.subr.mxu0 0.0
        %5617 = vmatpush2.msra.mxu0 0.0
        %5618 = vmatprep.subr.mxu0 0.0
        %5619 = vmatpush2.msra.mxu0 0.0
        %5620 = vmatprep.subr.mxu0 0.0
        %5621 = vmatpush2.msra.mxu0 0.0
        %5622 = vmatprep.subr.mxu0 0.0
        %5623 = vmatpush2.msra.mxu0 0.0
        %5624 = vmatprep.subr.mxu0 0.0
        %5625 = vmatpush2.msra.mxu0 0.0
        %5626 = vmatprep.subr.mxu0 0.0
        %5627 = vmatpush2.msra.mxu0 0.0
        %5628 = vmatprep.subr.mxu0 0.0
        %5629 = vmatpush2.msra.mxu0 0.0
        %5630 = vmatprep.subr.mxu0 0.0
        %5631 = vmatpush2.msra.mxu0 0.0
        %5632 = vmatprep.subr.mxu0 0.0
        %5633 = vmatpush2.msra.mxu0 0.0
        %5634 = vmatprep.subr.mxu0 0.0
        %5635 = vmatpush2.msra.mxu0 0.0
        %5636 = vmatprep.subr.mxu0 0.0
        %5637 = vmatpush2.msra.mxu0 0.0
        %5638 = vmatprep.subr.mxu0 0.0
        %5639 = vmatpush2.msra.mxu0 0.0
        %5640 = vmatprep.subr.mxu0 0.0
        %5641 = vmatpush2.msra.mxu0 0.0
        %5642 = vmatprep.mubr.f32.mxu0 0.0
        %5643 = vmatmul.mubr.f32.gmra.mxu0 %v5574
        %v5644 = vpop.f32.mrf.mxu0
        %v5645 = vadd.f32 0.0, %v5644
        %v5646 = vpop.f32.mrf.mxu0
        %5647 = vmatprep.mubr.f32.mxu0 0.0
        %5648 = vmatmul.mubr.f32.gmra.mxu0 %v5576
        %v5649 = vpop.f32.mrf.mxu0
        %v5650 = vadd.f32 0.0, %v5649
        %v5651 = vpop.f32.mrf.mxu0
        %5652 = vdwg.mxu0
        %v5653 = vmul.f32 %v5645, %v362
        %v5654 = vmul.f32 %v5650, %v362
        %v5655 = vadd.f32 %v5572, %v5653
        %v5656 = vadd.f32 %v5573, %v5654
        %5658 = vrot.lane.b32.xlu0 %v5655, 120
        %v5659 = vpop.permute.xlu0 %5658
        %5660 = vrot.lane.b32.xlu0 %v5655, 112
        %v5661 = vpop.permute.xlu0 %5660
        %5662 = vrot.lane.b32.xlu0 %v5655, 104
        %v5663 = vpop.permute.xlu0 %5662
        %5665 = vrot.lane.b32.xlu0 %v5656, 120
        %v5666 = vpop.permute.xlu0 %5665
        %5667 = vrot.lane.b32.xlu0 %v5656, 112
        %v5668 = vpop.permute.xlu0 %5667
        %5669 = vrot.lane.b32.xlu0 %v5656, 104
        %v5670 = vpop.permute.xlu0 %5669
        %5671 = vrot.lane.b32.xlu0 %v5565, 120
        %v5672 = vpop.permute.xlu0 %5671
        %5673 = vrot.lane.b32.xlu0 %v5565, 112
        %v5674 = vpop.permute.xlu0 %5673
        %5675 = vrot.lane.b32.xlu0 %v5565, 104
        %v5676 = vpop.permute.xlu0 %5675
        %v5677 = vsel %vm656, %v5655, 0
        %v5679 = vsel %vm656, %v5656, 0
        %5681 = vmatprep.subr.mxu0 0.0
        %5682 = vmatpush1.xpose.msra.mxu0 0.0
        %5683 = vmatprep.subr.mxu0 0.0
        %5684 = vmatpush1.xpose.msra.mxu0 0.0
        %5685 = vmatprep.subr.mxu0 0.0
        %5686 = vmatpush1.xpose.msra.mxu0 0.0
        %5687 = vmatprep.subr.mxu0 0.0
        %5688 = vmatpush1.xpose.msra.mxu0 0.0
        %5689 = vmatprep.subr.mxu0 0.0
        %5690 = vmatpush1.xpose.msra.mxu0 0.0
        %5691 = vmatprep.subr.mxu0 0.0
        %5692 = vmatpush1.xpose.msra.mxu0 0.0
        %5693 = vmatprep.subr.mxu0 0.0
        %5694 = vmatpush1.xpose.msra.mxu0 0.0
        %5695 = vmatprep.subr.mxu0 0.0
        %5696 = vmatpush1.xpose.msra.mxu0 0.0
        %5697 = vmatprep.subr.mxu0 0.0
        %5698 = vmatpush1.xpose.msra.mxu0 0.0
        %5699 = vmatprep.subr.mxu0 0.0
        %5700 = vmatpush1.xpose.msra.mxu0 0.0
        %5701 = vmatprep.subr.mxu0 0.0
        %5702 = vmatpush1.xpose.msra.mxu0 0.0
        %5703 = vmatprep.subr.mxu0 0.0
        %5704 = vmatpush1.xpose.msra.mxu0 0.0
        %5705 = vmatprep.subr.mxu0 0.0
        %5706 = vmatpush1.xpose.msra.mxu0 0.0
        %5707 = vmatprep.subr.mxu0 0.0
        %5708 = vmatpush1.xpose.msra.mxu0 0.0
        %5709 = vmatprep.subr.mxu0 0.0
        %5710 = vmatpush1.xpose.msra.mxu0 0.0
        %5711 = vmatprep.subr.mxu0 0.0
        %5712 = vmatpush1.xpose.msra.mxu0 %v5679
        %5713 = vmatprep.subr.mxu0 0.0
        %5714 = vmatpush2.xpose.msra.mxu0 0.0
        %5715 = vmatprep.subr.mxu0 0.0
        %5716 = vmatpush2.xpose.msra.mxu0 0.0
        %5717 = vmatprep.subr.mxu0 0.0
        %5718 = vmatpush2.xpose.msra.mxu0 0.0
        %5719 = vmatprep.subr.mxu0 0.0
        %5720 = vmatpush2.xpose.msra.mxu0 0.0
        %5721 = vmatprep.subr.mxu0 0.0
        %5722 = vmatpush2.xpose.msra.mxu0 0.0
        %5723 = vmatprep.subr.mxu0 0.0
        %5724 = vmatpush2.xpose.msra.mxu0 0.0
        %5725 = vmatprep.subr.mxu0 0.0
        %5726 = vmatpush2.xpose.msra.mxu0 0.0
        %5727 = vmatprep.subr.mxu0 0.0
        %5728 = vmatpush2.xpose.msra.mxu0 0.0
        %5729 = vmatprep.subr.mxu0 0.0
        %5730 = vmatpush2.xpose.msra.mxu0 0.0
        %5731 = vmatprep.subr.mxu0 0.0
        %5732 = vmatpush2.xpose.msra.mxu0 0.0
        %5733 = vmatprep.subr.mxu0 0.0
        %5734 = vmatpush2.xpose.msra.mxu0 0.0
        %5735 = vmatprep.subr.mxu0 0.0
        %5736 = vmatpush2.xpose.msra.mxu0 0.0
        %5737 = vmatprep.subr.mxu0 0.0
        %5738 = vmatpush2.xpose.msra.mxu0 0.0
        %5739 = vmatprep.subr.mxu0 0.0
        %5740 = vmatpush2.xpose.msra.mxu0 0.0
        %5741 = vmatprep.subr.mxu0 0.0
        %5742 = vmatpush2.xpose.msra.mxu0 0.0
        %5743 = vmatprep.subr.mxu0 0.0
        %5744 = vmatpush2.xpose.msra.mxu0 0.0
        %5745 = vmatprep.mubr.f32.mxu0 0.0
        %5746 = vmatmul.mubr.f32.gmra.mxu0 %v5677
        %v5747 = vpop.f32.mrf.mxu0
        %v5748 = vadd.f32 0.0, %v5747
        %v5749 = vpop.f32.mrf.mxu0
        %5750 = vdwg.mxu0
        %v5751 = vsel %vm656, %v5659, 0
        %v5753 = vsel %vm656, %v5666, 0
        %5755 = vmatprep.subr.mxu0 0.0
        %5756 = vmatpush1.xpose.msra.mxu0 0.0
        %5757 = vmatprep.subr.mxu0 0.0
        %5758 = vmatpush1.xpose.msra.mxu0 0.0
        %5759 = vmatprep.subr.mxu0 0.0
        %5760 = vmatpush1.xpose.msra.mxu0 0.0
        %5761 = vmatprep.subr.mxu0 0.0
        %5762 = vmatpush1.xpose.msra.mxu0 0.0
        %5763 = vmatprep.subr.mxu0 0.0
        %5764 = vmatpush1.xpose.msra.mxu0 0.0
        %5765 = vmatprep.subr.mxu0 0.0
        %5766 = vmatpush1.xpose.msra.mxu0 0.0
        %5767 = vmatprep.subr.mxu0 0.0
        %5768 = vmatpush1.xpose.msra.mxu0 0.0
        %5769 = vmatprep.subr.mxu0 0.0
        %5770 = vmatpush1.xpose.msra.mxu0 0.0
        %5771 = vmatprep.subr.mxu0 0.0
        %5772 = vmatpush1.xpose.msra.mxu0 0.0
        %5773 = vmatprep.subr.mxu0 0.0
        %5774 = vmatpush1.xpose.msra.mxu0 0.0
        %5775 = vmatprep.subr.mxu0 0.0
        %5776 = vmatpush1.xpose.msra.mxu0 0.0
        %5777 = vmatprep.subr.mxu0 0.0
        %5778 = vmatpush1.xpose.msra.mxu0 0.0
        %5779 = vmatprep.subr.mxu0 0.0
        %5780 = vmatpush1.xpose.msra.mxu0 0.0
        %5781 = vmatprep.subr.mxu0 0.0
        %5782 = vmatpush1.xpose.msra.mxu0 0.0
        %5783 = vmatprep.subr.mxu0 0.0
        %5784 = vmatpush1.xpose.msra.mxu0 0.0
        %5785 = vmatprep.subr.mxu0 0.0
        %5786 = vmatpush1.xpose.msra.mxu0 %v5753
        %5787 = vmatprep.subr.mxu0 0.0
        %5788 = vmatpush2.xpose.msra.mxu0 0.0
        %5789 = vmatprep.subr.mxu0 0.0
        %5790 = vmatpush2.xpose.msra.mxu0 0.0
        %5791 = vmatprep.subr.mxu0 0.0
        %5792 = vmatpush2.xpose.msra.mxu0 0.0
        %5793 = vmatprep.subr.mxu0 0.0
        %5794 = vmatpush2.xpose.msra.mxu0 0.0
        %5795 = vmatprep.subr.mxu0 0.0
        %5796 = vmatpush2.xpose.msra.mxu0 0.0
        %5797 = vmatprep.subr.mxu0 0.0
        %5798 = vmatpush2.xpose.msra.mxu0 0.0
        %5799 = vmatprep.subr.mxu0 0.0
        %5800 = vmatpush2.xpose.msra.mxu0 0.0
        %5801 = vmatprep.subr.mxu0 0.0
        %5802 = vmatpush2.xpose.msra.mxu0 0.0
        %5803 = vmatprep.subr.mxu0 0.0
        %5804 = vmatpush2.xpose.msra.mxu0 0.0
        %5805 = vmatprep.subr.mxu0 0.0
        %5806 = vmatpush2.xpose.msra.mxu0 0.0
        %5807 = vmatprep.subr.mxu0 0.0
        %5808 = vmatpush2.xpose.msra.mxu0 0.0
        %5809 = vmatprep.subr.mxu0 0.0
        %5810 = vmatpush2.xpose.msra.mxu0 0.0
        %5811 = vmatprep.subr.mxu0 0.0
        %5812 = vmatpush2.xpose.msra.mxu0 0.0
        %5813 = vmatprep.subr.mxu0 0.0
        %5814 = vmatpush2.xpose.msra.mxu0 0.0
        %5815 = vmatprep.subr.mxu0 0.0
        %5816 = vmatpush2.xpose.msra.mxu0 0.0
        %5817 = vmatprep.subr.mxu0 0.0
        %5818 = vmatpush2.xpose.msra.mxu0 0.0
        %5819 = vmatprep.mubr.f32.mxu0 0.0
        %5820 = vmatmul.mubr.f32.gmra.mxu0 %v5751
        %v5821 = vpop.f32.mrf.mxu0
        %v5822 = vadd.f32 0.0, %v5821
        %v5823 = vpop.f32.mrf.mxu0
        %5824 = vdwg.mxu0
        %v5825 = vsel %vm656, %v5661, 0
        %v5827 = vsel %vm656, %v5668, 0
        %5829 = vmatprep.subr.mxu0 0.0
        %5830 = vmatpush1.xpose.msra.mxu0 0.0
        %5831 = vmatprep.subr.mxu0 0.0
        %5832 = vmatpush1.xpose.msra.mxu0 0.0
        %5833 = vmatprep.subr.mxu0 0.0
        %5834 = vmatpush1.xpose.msra.mxu0 0.0
        %5835 = vmatprep.subr.mxu0 0.0
        %5836 = vmatpush1.xpose.msra.mxu0 0.0
        %5837 = vmatprep.subr.mxu0 0.0
        %5838 = vmatpush1.xpose.msra.mxu0 0.0
        %5839 = vmatprep.subr.mxu0 0.0
        %5840 = vmatpush1.xpose.msra.mxu0 0.0
        %5841 = vmatprep.subr.mxu0 0.0
        %5842 = vmatpush1.xpose.msra.mxu0 0.0
        %5843 = vmatprep.subr.mxu0 0.0
        %5844 = vmatpush1.xpose.msra.mxu0 0.0
        %5845 = vmatprep.subr.mxu0 0.0
        %5846 = vmatpush1.xpose.msra.mxu0 0.0
        %5847 = vmatprep.subr.mxu0 0.0
        %5848 = vmatpush1.xpose.msra.mxu0 0.0
        %5849 = vmatprep.subr.mxu0 0.0
        %5850 = vmatpush1.xpose.msra.mxu0 0.0
        %5851 = vmatprep.subr.mxu0 0.0
        %5852 = vmatpush1.xpose.msra.mxu0 0.0
        %5853 = vmatprep.subr.mxu0 0.0
        %5854 = vmatpush1.xpose.msra.mxu0 0.0
        %5855 = vmatprep.subr.mxu0 0.0
        %5856 = vmatpush1.xpose.msra.mxu0 0.0
        %5857 = vmatprep.subr.mxu0 0.0
        %5858 = vmatpush1.xpose.msra.mxu0 0.0
        %5859 = vmatprep.subr.mxu0 0.0
        %5860 = vmatpush1.xpose.msra.mxu0 %v5827
        %5861 = vmatprep.subr.mxu0 0.0
        %5862 = vmatpush2.xpose.msra.mxu0 0.0
        %5863 = vmatprep.subr.mxu0 0.0
        %5864 = vmatpush2.xpose.msra.mxu0 0.0
        %5865 = vmatprep.subr.mxu0 0.0
        %5866 = vmatpush2.xpose.msra.mxu0 0.0
        %5867 = vmatprep.subr.mxu0 0.0
        %5868 = vmatpush2.xpose.msra.mxu0 0.0
        %5869 = vmatprep.subr.mxu0 0.0
        %5870 = vmatpush2.xpose.msra.mxu0 0.0
        %5871 = vmatprep.subr.mxu0 0.0
        %5872 = vmatpush2.xpose.msra.mxu0 0.0
        %5873 = vmatprep.subr.mxu0 0.0
        %5874 = vmatpush2.xpose.msra.mxu0 0.0
        %5875 = vmatprep.subr.mxu0 0.0
        %5876 = vmatpush2.xpose.msra.mxu0 0.0
        %5877 = vmatprep.subr.mxu0 0.0
        %5878 = vmatpush2.xpose.msra.mxu0 0.0
        %5879 = vmatprep.subr.mxu0 0.0
        %5880 = vmatpush2.xpose.msra.mxu0 0.0
        %5881 = vmatprep.subr.mxu0 0.0
        %5882 = vmatpush2.xpose.msra.mxu0 0.0
        %5883 = vmatprep.subr.mxu0 0.0
        %5884 = vmatpush2.xpose.msra.mxu0 0.0
        %5885 = vmatprep.subr.mxu0 0.0
        %5886 = vmatpush2.xpose.msra.mxu0 0.0
        %5887 = vmatprep.subr.mxu0 0.0
        %5888 = vmatpush2.xpose.msra.mxu0 0.0
        %5889 = vmatprep.subr.mxu0 0.0
        %5890 = vmatpush2.xpose.msra.mxu0 0.0
        %5891 = vmatprep.subr.mxu0 0.0
        %5892 = vmatpush2.xpose.msra.mxu0 0.0
        %5893 = vmatprep.mubr.f32.mxu0 0.0
        %5894 = vmatmul.mubr.f32.gmra.mxu0 %v5825
        %v5895 = vpop.f32.mrf.mxu0
        %v5896 = vadd.f32 0.0, %v5895
        %v5897 = vpop.f32.mrf.mxu0
        %5898 = vdwg.mxu0
        %v5899 = vsel %vm656, %v5663, 0
        %v5901 = vsel %vm656, %v5670, 0
        %5903 = vmatprep.subr.mxu0 0.0
        %5904 = vmatpush1.xpose.msra.mxu0 0.0
        %5905 = vmatprep.subr.mxu0 0.0
        %5906 = vmatpush1.xpose.msra.mxu0 0.0
        %5907 = vmatprep.subr.mxu0 0.0
        %5908 = vmatpush1.xpose.msra.mxu0 0.0
        %5909 = vmatprep.subr.mxu0 0.0
        %5910 = vmatpush1.xpose.msra.mxu0 0.0
        %5911 = vmatprep.subr.mxu0 0.0
        %5912 = vmatpush1.xpose.msra.mxu0 0.0
        %5913 = vmatprep.subr.mxu0 0.0
        %5914 = vmatpush1.xpose.msra.mxu0 0.0
        %5915 = vmatprep.subr.mxu0 0.0
        %5916 = vmatpush1.xpose.msra.mxu0 0.0
        %5917 = vmatprep.subr.mxu0 0.0
        %5918 = vmatpush1.xpose.msra.mxu0 0.0
        %5919 = vmatprep.subr.mxu0 0.0
        %5920 = vmatpush1.xpose.msra.mxu0 0.0
        %5921 = vmatprep.subr.mxu0 0.0
        %5922 = vmatpush1.xpose.msra.mxu0 0.0
        %5923 = vmatprep.subr.mxu0 0.0
        %5924 = vmatpush1.xpose.msra.mxu0 0.0
        %5925 = vmatprep.subr.mxu0 0.0
        %5926 = vmatpush1.xpose.msra.mxu0 0.0
        %5927 = vmatprep.subr.mxu0 0.0
        %5928 = vmatpush1.xpose.msra.mxu0 0.0
        %5929 = vmatprep.subr.mxu0 0.0
        %5930 = vmatpush1.xpose.msra.mxu0 0.0
        %5931 = vmatprep.subr.mxu0 0.0
        %5932 = vmatpush1.xpose.msra.mxu0 0.0
        %5933 = vmatprep.subr.mxu0 0.0
        %5934 = vmatpush1.xpose.msra.mxu0 %v5901
        %5935 = vmatprep.subr.mxu0 0.0
        %5936 = vmatpush2.xpose.msra.mxu0 0.0
        %5937 = vmatprep.subr.mxu0 0.0
        %5938 = vmatpush2.xpose.msra.mxu0 0.0
        %5939 = vmatprep.subr.mxu0 0.0
        %5940 = vmatpush2.xpose.msra.mxu0 0.0
        %5941 = vmatprep.subr.mxu0 0.0
        %5942 = vmatpush2.xpose.msra.mxu0 0.0
        %5943 = vmatprep.subr.mxu0 0.0
        %5944 = vmatpush2.xpose.msra.mxu0 0.0
        %5945 = vmatprep.subr.mxu0 0.0
        %5946 = vmatpush2.xpose.msra.mxu0 0.0
        %5947 = vmatprep.subr.mxu0 0.0
        %5948 = vmatpush2.xpose.msra.mxu0 0.0
        %5949 = vmatprep.subr.mxu0 0.0
        %5950 = vmatpush2.xpose.msra.mxu0 0.0
        %5951 = vmatprep.subr.mxu0 0.0
        %5952 = vmatpush2.xpose.msra.mxu0 0.0
        %5953 = vmatprep.subr.mxu0 0.0
        %5954 = vmatpush2.xpose.msra.mxu0 0.0
        %5955 = vmatprep.subr.mxu0 0.0
        %5956 = vmatpush2.xpose.msra.mxu0 0.0
        %5957 = vmatprep.subr.mxu0 0.0
        %5958 = vmatpush2.xpose.msra.mxu0 0.0
        %5959 = vmatprep.subr.mxu0 0.0
        %5960 = vmatpush2.xpose.msra.mxu0 0.0
        %5961 = vmatprep.subr.mxu0 0.0
        %5962 = vmatpush2.xpose.msra.mxu0 0.0
        %5963 = vmatprep.subr.mxu0 0.0
        %5964 = vmatpush2.xpose.msra.mxu0 0.0
        %5965 = vmatprep.subr.mxu0 0.0
        %5966 = vmatpush2.xpose.msra.mxu0 0.0
        %5967 = vmatprep.mubr.f32.mxu0 0.0
        %5968 = vmatmul.mubr.f32.gmra.mxu0 %v5899
        %v5969 = vpop.f32.mrf.mxu0
        %v5970 = vadd.f32 0.0, %v5969
        %v5971 = vpop.f32.mrf.mxu0
        %5972 = vdwg.mxu0
        %v5973 = vmul.f32 %v5748, 0.35355338
        %v5974 = vmul.f32 %v5822, 0.35355338
        %v5975 = vmul.f32 %v5896, 0.35355338
        %v5976 = vmul.f32 %v5970, 0.35355338
        %v5977 = vsel %vm656, %v5973, -inf
        %5978 = vmax.xlane.f32.xlu0 %v5977
        %v5979 = vpop.xlane.xlu0 %5978
        %v5980 = vsel %vm656, %v5974, -inf
        %5981 = vmax.xlane.f32.xlu0 %v5980
        %v5982 = vpop.xlane.xlu0 %5981
        %v5983 = vsel %vm656, %v5975, -inf
        %5984 = vmax.xlane.f32.xlu0 %v5983
        %v5985 = vpop.xlane.xlu0 %5984
        %v5986 = vsel %vm656, %v5976, -inf
        %5987 = vmax.xlane.f32.xlu0 %v5986
        %v5988 = vpop.xlane.xlu0 %5987
        %v5989 = vsub.f32 %v5973, %v5979
        %v5990 = vsub.f32 %v5974, %v5982
        %v5991 = vsub.f32 %v5975, %v5985
        %v5992 = vsub.f32 %v5976, %v5988
        %v5993 = vmul.f32 %v5989, 1.442695
        %v5994 = vpow.pop %v5993
        %v5995 = vmul.f32 %v5990, 1.442695
        %v5996 = vpow.pop %v5995
        %v5997 = vmul.f32 %v5991, 1.442695
        %v5998 = vpow.pop %v5997
        %v5999 = vmul.f32 %v5992, 1.442695
        %v6000 = vpow.pop %v5999
        %v6001 = vsel %vm656, %v5994, 0.0
        %6002 = vadd.xlane.f32.xlu0 %v6001
        %v6003 = vpop.xlane.xlu0 %6002
        %v6004 = vsel %vm656, %v5996, 0.0
        %6005 = vadd.xlane.f32.xlu0 %v6004
        %v6006 = vpop.xlane.xlu0 %6005
        %v6007 = vsel %vm656, %v5998, 0.0
        %6008 = vadd.xlane.f32.xlu0 %v6007
        %v6009 = vpop.xlane.xlu0 %6008
        %v6010 = vsel %vm656, %v6000, 0.0
        %6011 = vadd.xlane.f32.xlu0 %v6010
        %v6012 = vpop.xlane.xlu0 %6011
        %v6013 = vrcp.pop %v6003
        %v6014 = vrcp.pop %v6006
        %v6015 = vrcp.pop %v6009
        %v6016 = vrcp.pop %v6012
        %v6017 = vmul.f32 %v5994, %v6013
        %v6018 = vmul.f32 %v5996, %v6014
        %v6019 = vmul.f32 %v5998, %v6015
        %v6020 = vmul.f32 %v6000, %v6016
        %6021 = vrot.lane.b32.xlu0 %v5565, 64
        %v6022 = vpop.permute.xlu0 %6021
        %v6025 = vsel %vm656, %v6017, 0
        %6027 = vmatprep.subr.mxu0 0.0
        %6028 = vmatpush1.msra.mxu0 0.0
        %6029 = vmatprep.subr.mxu0 0.0
        %6030 = vmatpush1.msra.mxu0 0.0
        %6031 = vmatprep.subr.mxu0 0.0
        %6032 = vmatpush1.msra.mxu0 0.0
        %6033 = vmatprep.subr.mxu0 0.0
        %6034 = vmatpush1.msra.mxu0 0.0
        %6035 = vmatprep.subr.mxu0 0.0
        %6036 = vmatpush1.msra.mxu0 0.0
        %6037 = vmatprep.subr.mxu0 0.0
        %6038 = vmatpush1.msra.mxu0 0.0
        %6039 = vmatprep.subr.mxu0 0.0
        %6040 = vmatpush1.msra.mxu0 0.0
        %6041 = vmatprep.subr.mxu0 0.0
        %6042 = vmatpush1.msra.mxu0 0.0
        %6043 = vmatprep.subr.mxu0 0.0
        %6044 = vmatpush1.msra.mxu0 0.0
        %6045 = vmatprep.subr.mxu0 0.0
        %6046 = vmatpush1.msra.mxu0 0.0
        %6047 = vmatprep.subr.mxu0 0.0
        %6048 = vmatpush1.msra.mxu0 0.0
        %6049 = vmatprep.subr.mxu0 0.0
        %6050 = vmatpush1.msra.mxu0 0.0
        %6051 = vmatprep.subr.mxu0 0.0
        %6052 = vmatpush1.msra.mxu0 0.0
        %6053 = vmatprep.subr.mxu0 0.0
        %6054 = vmatpush1.msra.mxu0 0.0
        %6055 = vmatprep.subr.mxu0 0.0
        %6056 = vmatpush1.msra.mxu0 0.0
        %6057 = vmatprep.subr.mxu0 0.0
        %6058 = vmatpush1.msra.mxu0 %v6022
        %6059 = vmatprep.subr.mxu0 0.0
        %6060 = vmatpush2.msra.mxu0 0.0
        %6061 = vmatprep.subr.mxu0 0.0
        %6062 = vmatpush2.msra.mxu0 0.0
        %6063 = vmatprep.subr.mxu0 0.0
        %6064 = vmatpush2.msra.mxu0 0.0
        %6065 = vmatprep.subr.mxu0 0.0
        %6066 = vmatpush2.msra.mxu0 0.0
        %6067 = vmatprep.subr.mxu0 0.0
        %6068 = vmatpush2.msra.mxu0 0.0
        %6069 = vmatprep.subr.mxu0 0.0
        %6070 = vmatpush2.msra.mxu0 0.0
        %6071 = vmatprep.subr.mxu0 0.0
        %6072 = vmatpush2.msra.mxu0 0.0
        %6073 = vmatprep.subr.mxu0 0.0
        %6074 = vmatpush2.msra.mxu0 0.0
        %6075 = vmatprep.subr.mxu0 0.0
        %6076 = vmatpush2.msra.mxu0 0.0
        %6077 = vmatprep.subr.mxu0 0.0
        %6078 = vmatpush2.msra.mxu0 0.0
        %6079 = vmatprep.subr.mxu0 0.0
        %6080 = vmatpush2.msra.mxu0 0.0
        %6081 = vmatprep.subr.mxu0 0.0
        %6082 = vmatpush2.msra.mxu0 0.0
        %6083 = vmatprep.subr.mxu0 0.0
        %6084 = vmatpush2.msra.mxu0 0.0
        %6085 = vmatprep.subr.mxu0 0.0
        %6086 = vmatpush2.msra.mxu0 0.0
        %6087 = vmatprep.subr.mxu0 0.0
        %6088 = vmatpush2.msra.mxu0 0.0
        %6089 = vmatprep.subr.mxu0 0.0
        %6090 = vmatpush2.msra.mxu0 0.0
        %6091 = vmatprep.mubr.f32.mxu0 0.0
        %6092 = vmatmul.mubr.f32.gmra.mxu0 %v6025
        %v6093 = vpop.f32.mrf.mxu0
        %v6094 = vadd.f32 0.0, %v6093
        %v6095 = vpop.f32.mrf.mxu0
        %6096 = vdwg.mxu0
        %6097 = vrot.lane.b32.xlu0 %v5672, 64
        %v6098 = vpop.permute.xlu0 %6097
        %v6101 = vsel %vm656, %v6018, 0
        %6103 = vmatprep.subr.mxu0 0.0
        %6104 = vmatpush1.msra.mxu0 0.0
        %6105 = vmatprep.subr.mxu0 0.0
        %6106 = vmatpush1.msra.mxu0 0.0
        %6107 = vmatprep.subr.mxu0 0.0
        %6108 = vmatpush1.msra.mxu0 0.0
        %6109 = vmatprep.subr.mxu0 0.0
        %6110 = vmatpush1.msra.mxu0 0.0
        %6111 = vmatprep.subr.mxu0 0.0
        %6112 = vmatpush1.msra.mxu0 0.0
        %6113 = vmatprep.subr.mxu0 0.0
        %6114 = vmatpush1.msra.mxu0 0.0
        %6115 = vmatprep.subr.mxu0 0.0
        %6116 = vmatpush1.msra.mxu0 0.0
        %6117 = vmatprep.subr.mxu0 0.0
        %6118 = vmatpush1.msra.mxu0 0.0
        %6119 = vmatprep.subr.mxu0 0.0
        %6120 = vmatpush1.msra.mxu0 0.0
        %6121 = vmatprep.subr.mxu0 0.0
        %6122 = vmatpush1.msra.mxu0 0.0
        %6123 = vmatprep.subr.mxu0 0.0
        %6124 = vmatpush1.msra.mxu0 0.0
        %6125 = vmatprep.subr.mxu0 0.0
        %6126 = vmatpush1.msra.mxu0 0.0
        %6127 = vmatprep.subr.mxu0 0.0
        %6128 = vmatpush1.msra.mxu0 0.0
        %6129 = vmatprep.subr.mxu0 0.0
        %6130 = vmatpush1.msra.mxu0 0.0
        %6131 = vmatprep.subr.mxu0 0.0
        %6132 = vmatpush1.msra.mxu0 0.0
        %6133 = vmatprep.subr.mxu0 0.0
        %6134 = vmatpush1.msra.mxu0 %v6098
        %6135 = vmatprep.subr.mxu0 0.0
        %6136 = vmatpush2.msra.mxu0 0.0
        %6137 = vmatprep.subr.mxu0 0.0
        %6138 = vmatpush2.msra.mxu0 0.0
        %6139 = vmatprep.subr.mxu0 0.0
        %6140 = vmatpush2.msra.mxu0 0.0
        %6141 = vmatprep.subr.mxu0 0.0
        %6142 = vmatpush2.msra.mxu0 0.0
        %6143 = vmatprep.subr.mxu0 0.0
        %6144 = vmatpush2.msra.mxu0 0.0
        %6145 = vmatprep.subr.mxu0 0.0
        %6146 = vmatpush2.msra.mxu0 0.0
        %6147 = vmatprep.subr.mxu0 0.0
        %6148 = vmatpush2.msra.mxu0 0.0
        %6149 = vmatprep.subr.mxu0 0.0
        %6150 = vmatpush2.msra.mxu0 0.0
        %6151 = vmatprep.subr.mxu0 0.0
        %6152 = vmatpush2.msra.mxu0 0.0
        %6153 = vmatprep.subr.mxu0 0.0
        %6154 = vmatpush2.msra.mxu0 0.0
        %6155 = vmatprep.subr.mxu0 0.0
        %6156 = vmatpush2.msra.mxu0 0.0
        %6157 = vmatprep.subr.mxu0 0.0
        %6158 = vmatpush2.msra.mxu0 0.0
        %6159 = vmatprep.subr.mxu0 0.0
        %6160 = vmatpush2.msra.mxu0 0.0
        %6161 = vmatprep.subr.mxu0 0.0
        %6162 = vmatpush2.msra.mxu0 0.0
        %6163 = vmatprep.subr.mxu0 0.0
        %6164 = vmatpush2.msra.mxu0 0.0
        %6165 = vmatprep.subr.mxu0 0.0
        %6166 = vmatpush2.msra.mxu0 0.0
        %6167 = vmatprep.mubr.f32.mxu0 0.0
        %6168 = vmatmul.mubr.f32.gmra.mxu0 %v6101
        %v6169 = vpop.f32.mrf.mxu0
        %v6170 = vadd.f32 0.0, %v6169
        %v6171 = vpop.f32.mrf.mxu0
        %6172 = vdwg.mxu0
        %6173 = vrot.lane.b32.xlu0 %v5674, 64
        %v6174 = vpop.permute.xlu0 %6173
        %v6177 = vsel %vm656, %v6019, 0
        %6179 = vmatprep.subr.mxu0 0.0
        %6180 = vmatpush1.msra.mxu0 0.0
        %6181 = vmatprep.subr.mxu0 0.0
        %6182 = vmatpush1.msra.mxu0 0.0
        %6183 = vmatprep.subr.mxu0 0.0
        %6184 = vmatpush1.msra.mxu0 0.0
        %6185 = vmatprep.subr.mxu0 0.0
        %6186 = vmatpush1.msra.mxu0 0.0
        %6187 = vmatprep.subr.mxu0 0.0
        %6188 = vmatpush1.msra.mxu0 0.0
        %6189 = vmatprep.subr.mxu0 0.0
        %6190 = vmatpush1.msra.mxu0 0.0
        %6191 = vmatprep.subr.mxu0 0.0
        %6192 = vmatpush1.msra.mxu0 0.0
        %6193 = vmatprep.subr.mxu0 0.0
        %6194 = vmatpush1.msra.mxu0 0.0
        %6195 = vmatprep.subr.mxu0 0.0
        %6196 = vmatpush1.msra.mxu0 0.0
        %6197 = vmatprep.subr.mxu0 0.0
        %6198 = vmatpush1.msra.mxu0 0.0
        %6199 = vmatprep.subr.mxu0 0.0
        %6200 = vmatpush1.msra.mxu0 0.0
        %6201 = vmatprep.subr.mxu0 0.0
        %6202 = vmatpush1.msra.mxu0 0.0
        %6203 = vmatprep.subr.mxu0 0.0
        %6204 = vmatpush1.msra.mxu0 0.0
        %6205 = vmatprep.subr.mxu0 0.0
        %6206 = vmatpush1.msra.mxu0 0.0
        %6207 = vmatprep.subr.mxu0 0.0
        %6208 = vmatpush1.msra.mxu0 0.0
        %6209 = vmatprep.subr.mxu0 0.0
        %6210 = vmatpush1.msra.mxu0 %v6174
        %6211 = vmatprep.subr.mxu0 0.0
        %6212 = vmatpush2.msra.mxu0 0.0
        %6213 = vmatprep.subr.mxu0 0.0
        %6214 = vmatpush2.msra.mxu0 0.0
        %6215 = vmatprep.subr.mxu0 0.0
        %6216 = vmatpush2.msra.mxu0 0.0
        %6217 = vmatprep.subr.mxu0 0.0
        %6218 = vmatpush2.msra.mxu0 0.0
        %6219 = vmatprep.subr.mxu0 0.0
        %6220 = vmatpush2.msra.mxu0 0.0
        %6221 = vmatprep.subr.mxu0 0.0
        %6222 = vmatpush2.msra.mxu0 0.0
        %6223 = vmatprep.subr.mxu0 0.0
        %6224 = vmatpush2.msra.mxu0 0.0
        %6225 = vmatprep.subr.mxu0 0.0
        %6226 = vmatpush2.msra.mxu0 0.0
        %6227 = vmatprep.subr.mxu0 0.0
        %6228 = vmatpush2.msra.mxu0 0.0
        %6229 = vmatprep.subr.mxu0 0.0
        %6230 = vmatpush2.msra.mxu0 0.0
        %6231 = vmatprep.subr.mxu0 0.0
        %6232 = vmatpush2.msra.mxu0 0.0
        %6233 = vmatprep.subr.mxu0 0.0
        %6234 = vmatpush2.msra.mxu0 0.0
        %6235 = vmatprep.subr.mxu0 0.0
        %6236 = vmatpush2.msra.mxu0 0.0
        %6237 = vmatprep.subr.mxu0 0.0
        %6238 = vmatpush2.msra.mxu0 0.0
        %6239 = vmatprep.subr.mxu0 0.0
        %6240 = vmatpush2.msra.mxu0 0.0
        %6241 = vmatprep.subr.mxu0 0.0
        %6242 = vmatpush2.msra.mxu0 0.0
        %6243 = vmatprep.mubr.f32.mxu0 0.0
        %6244 = vmatmul.mubr.f32.gmra.mxu0 %v6177
        %v6245 = vpop.f32.mrf.mxu0
        %v6246 = vadd.f32 0.0, %v6245
        %v6247 = vpop.f32.mrf.mxu0
        %6248 = vdwg.mxu0
        %6249 = vrot.lane.b32.xlu0 %v5676, 64
        %v6250 = vpop.permute.xlu0 %6249
        %v6253 = vsel %vm656, %v6020, 0
        %6255 = vmatprep.subr.mxu0 0.0
        %6256 = vmatpush1.msra.mxu0 0.0
        %6257 = vmatprep.subr.mxu0 0.0
        %6258 = vmatpush1.msra.mxu0 0.0
        %6259 = vmatprep.subr.mxu0 0.0
        %6260 = vmatpush1.msra.mxu0 0.0
        %6261 = vmatprep.subr.mxu0 0.0
        %6262 = vmatpush1.msra.mxu0 0.0
        %6263 = vmatprep.subr.mxu0 0.0
        %6264 = vmatpush1.msra.mxu0 0.0
        %6265 = vmatprep.subr.mxu0 0.0
        %6266 = vmatpush1.msra.mxu0 0.0
        %6267 = vmatprep.subr.mxu0 0.0
        %6268 = vmatpush1.msra.mxu0 0.0
        %6269 = vmatprep.subr.mxu0 0.0
        %6270 = vmatpush1.msra.mxu0 0.0
        %6271 = vmatprep.subr.mxu0 0.0
        %6272 = vmatpush1.msra.mxu0 0.0
        %6273 = vmatprep.subr.mxu0 0.0
        %6274 = vmatpush1.msra.mxu0 0.0
        %6275 = vmatprep.subr.mxu0 0.0
        %6276 = vmatpush1.msra.mxu0 0.0
        %6277 = vmatprep.subr.mxu0 0.0
        %6278 = vmatpush1.msra.mxu0 0.0
        %6279 = vmatprep.subr.mxu0 0.0
        %6280 = vmatpush1.msra.mxu0 0.0
        %6281 = vmatprep.subr.mxu0 0.0
        %6282 = vmatpush1.msra.mxu0 0.0
        %6283 = vmatprep.subr.mxu0 0.0
        %6284 = vmatpush1.msra.mxu0 0.0
        %6285 = vmatprep.subr.mxu0 0.0
        %6286 = vmatpush1.msra.mxu0 %v6250
        %6287 = vmatprep.subr.mxu0 0.0
        %6288 = vmatpush2.msra.mxu0 0.0
        %6289 = vmatprep.subr.mxu0 0.0
        %6290 = vmatpush2.msra.mxu0 0.0
        %6291 = vmatprep.subr.mxu0 0.0
        %6292 = vmatpush2.msra.mxu0 0.0
        %6293 = vmatprep.subr.mxu0 0.0
        %6294 = vmatpush2.msra.mxu0 0.0
        %6295 = vmatprep.subr.mxu0 0.0
        %6296 = vmatpush2.msra.mxu0 0.0
        %6297 = vmatprep.subr.mxu0 0.0
        %6298 = vmatpush2.msra.mxu0 0.0
        %6299 = vmatprep.subr.mxu0 0.0
        %6300 = vmatpush2.msra.mxu0 0.0
        %6301 = vmatprep.subr.mxu0 0.0
        %6302 = vmatpush2.msra.mxu0 0.0
        %6303 = vmatprep.subr.mxu0 0.0
        %6304 = vmatpush2.msra.mxu0 0.0
        %6305 = vmatprep.subr.mxu0 0.0
        %6306 = vmatpush2.msra.mxu0 0.0
        %6307 = vmatprep.subr.mxu0 0.0
        %6308 = vmatpush2.msra.mxu0 0.0
        %6309 = vmatprep.subr.mxu0 0.0
        %6310 = vmatpush2.msra.mxu0 0.0
        %6311 = vmatprep.subr.mxu0 0.0
        %6312 = vmatpush2.msra.mxu0 0.0
        %6313 = vmatprep.subr.mxu0 0.0
        %6314 = vmatpush2.msra.mxu0 0.0
        %6315 = vmatprep.subr.mxu0 0.0
        %6316 = vmatpush2.msra.mxu0 0.0
        %6317 = vmatprep.subr.mxu0 0.0
        %6318 = vmatpush2.msra.mxu0 0.0
        %6319 = vmatprep.mubr.f32.mxu0 0.0
        %6320 = vmatmul.mubr.f32.gmra.mxu0 %v6253
        %v6321 = vpop.f32.mrf.mxu0
        %v6322 = vadd.f32 0.0, %v6321
        %v6323 = vpop.f32.mrf.mxu0
        %6324 = vdwg.mxu0
        %6326 = vrot.lane.b32.xlu0 %v6170, 8
        %v6327 = vpop.permute.xlu0 %6326
        %6330 = vrot.lane.b32.xlu0 %v6246, 16
        %v6331 = vpop.permute.xlu0 %6330
        %6334 = vrot.lane.b32.xlu0 %v6322, 24
        %v6335 = vpop.permute.xlu0 %6334
        %v6337 = vsel %vm656, %v6094, %v6327
        %v6338 = vsel %vm378, %v6337, %v6331
        %v6339 = vsel %vm1329, %v6338, %v6335
        %s6340 = scalar_lea.vmem %s4, 96
        %v6341 = vld [vmem:[%s6340] sm:$0xff]
        %v6342 = vld [vmem:[%s6340 + $0x8] sm:$0xff]
        %v6343 = vld [vmem:[%s6340 + $0x10] sm:$0xff]
        %v6344 = vld [vmem:[%s6340 + $0x18] sm:$0xff]
        %v6345 = vld [vmem:[%s8 + $0x19] sm:$0x1]
        %v6346 = vlaneseq
        %v6347 = vshrl.u32 %v6346, 7
        %v6348 = vsub.s32 0, %v6347
        %v6349 = vrot.slane %v6345, %v6348
        %v6351 = vsel %vm456, %v6339, 0
        %6353 = vmatprep.subr.mxu0 0.0
        %6354 = vmatpush1.msra.mxu0 0.0
        %6355 = vmatprep.subr.mxu0 0.0
        %6356 = vmatpush1.msra.mxu0 0.0
        %6357 = vmatprep.subr.mxu0 0.0
        %6358 = vmatpush1.msra.mxu0 0.0
        %6359 = vmatprep.subr.mxu0 0.0
        %6360 = vmatpush1.msra.mxu0 0.0
        %6361 = vmatprep.subr.mxu0 0.0
        %6362 = vmatpush1.msra.mxu0 0.0
        %6363 = vmatprep.subr.mxu0 0.0
        %6364 = vmatpush1.msra.mxu0 0.0
        %6365 = vmatprep.subr.mxu0 0.0
        %6366 = vmatpush1.msra.mxu0 0.0
        %6367 = vmatprep.subr.mxu0 0.0
        %6368 = vmatpush1.msra.mxu0 0.0
        %6369 = vmatprep.subr.mxu0 0.0
        %6370 = vmatpush1.msra.mxu0 0.0
        %6371 = vmatprep.subr.mxu0 0.0
        %6372 = vmatpush1.msra.mxu0 0.0
        %6373 = vmatprep.subr.mxu0 0.0
        %6374 = vmatpush1.msra.mxu0 0.0
        %6375 = vmatprep.subr.mxu0 0.0
        %6376 = vmatpush1.msra.mxu0 0.0
        %6377 = vmatprep.subr.mxu0 0.0
        %6378 = vmatpush1.msra.mxu0 %v6344
        %6379 = vmatprep.subr.mxu0 0.0
        %6380 = vmatpush1.msra.mxu0 %v6343
        %6381 = vmatprep.subr.mxu0 0.0
        %6382 = vmatpush1.msra.mxu0 %v6342
        %6383 = vmatprep.subr.mxu0 0.0
        %6384 = vmatpush1.msra.mxu0 %v6341
        %6385 = vmatprep.subr.mxu0 0.0
        %6386 = vmatpush2.msra.mxu0 0.0
        %6387 = vmatprep.subr.mxu0 0.0
        %6388 = vmatpush2.msra.mxu0 0.0
        %6389 = vmatprep.subr.mxu0 0.0
        %6390 = vmatpush2.msra.mxu0 0.0
        %6391 = vmatprep.subr.mxu0 0.0
        %6392 = vmatpush2.msra.mxu0 0.0
        %6393 = vmatprep.subr.mxu0 0.0
        %6394 = vmatpush2.msra.mxu0 0.0
        %6395 = vmatprep.subr.mxu0 0.0
        %6396 = vmatpush2.msra.mxu0 0.0
        %6397 = vmatprep.subr.mxu0 0.0
        %6398 = vmatpush2.msra.mxu0 0.0
        %6399 = vmatprep.subr.mxu0 0.0
        %6400 = vmatpush2.msra.mxu0 0.0
        %6401 = vmatprep.subr.mxu0 0.0
        %6402 = vmatpush2.msra.mxu0 0.0
        %6403 = vmatprep.subr.mxu0 0.0
        %6404 = vmatpush2.msra.mxu0 0.0
        %6405 = vmatprep.subr.mxu0 0.0
        %6406 = vmatpush2.msra.mxu0 0.0
        %6407 = vmatprep.subr.mxu0 0.0
        %6408 = vmatpush2.msra.mxu0 0.0
        %6409 = vmatprep.subr.mxu0 0.0
        %6410 = vmatpush2.msra.mxu0 0.0
        %6411 = vmatprep.subr.mxu0 0.0
        %6412 = vmatpush2.msra.mxu0 0.0
        %6413 = vmatprep.subr.mxu0 0.0
        %6414 = vmatpush2.msra.mxu0 0.0
        %6415 = vmatprep.subr.mxu0 0.0
        %6416 = vmatpush2.msra.mxu0 0.0
        %6417 = vmatprep.mubr.f32.mxu0 0.0
        %6418 = vmatmul.mubr.f32.gmra.mxu0 %v6351
        %v6419 = vpop.f32.mrf.mxu0
        %v6420 = vadd.f32 %v6349, %v6419
        %v6421 = vpop.f32.mrf.mxu0
        %6422 = vdwg.mxu0
        %v6423 = vadd.f32 %v5459, %v6420
        %v6424 = vld [vmem:[%s8 + $0x16] sm:$0x1]
        %v6425 = vld [vmem:[%s8 + $0x17] sm:$0x1]
        %v6426 = vsel %vm456, %v6423, 0.0
        %6427 = vadd.xlane.f32.xlu0 %v6426
        %v6428 = vpop.xlane.xlu0 %6427
        %v6429 = vmul.f32 %v6428, %v460
        %v6430 = vsub.f32 %v6423, %v6429
        %v6431 = vmul.f32 %v6430, %v6430
        %v6432 = vsel %vm456, %v6431, 0.0
        %6433 = vadd.xlane.f32.xlu0 %v6432
        %v6434 = vpop.xlane.xlu0 %6433
        %v6435 = vmul.f32 %v6434, %v460
        %v6436 = vadd.f32 %v6435, 1e-05
        %v6437 = vrsqrt.pop %v6436
        %v6438 = vmul.f32 %v6430, %v6437
        %v6439 = vlaneseq
        %v6440 = vshrl.u32 %v6439, 7
        %v6441 = vsub.s32 0, %v6440
        %v6442 = vrot.slane %v6424, %v6441
        %v6443 = vmul.f32 %v6438, %v6442
        %v6444 = vlaneseq
        %v6445 = vshrl.u32 %v6444, 7
        %v6446 = vsub.s32 0, %v6445
        %v6447 = vrot.slane %v6425, %v6446
        %v6448 = vadd.f32 %v6443, %v6447
        %s6449 = scalar_lea.vmem %s5, 96
        %v6450 = vld [vmem:[%s6449] sm:$0xff]
        %v6451 = vld [vmem:[%s6449 + $0x8] sm:$0xff]
        %v6452 = vld [vmem:[%s6449 + $0x10] sm:$0xff]
        %v6453 = vld [vmem:[%s6449 + $0x18] sm:$0xff]
        %v6454 = vld [vmem:[%s8 + $0x1a] sm:$0x1]
        %v6455 = vlaneseq
        %v6456 = vshrl.u32 %v6455, 7
        %v6457 = vsub.s32 0, %v6456
        %v6458 = vrot.slane %v6454, %v6457
        %v6460 = vsel %vm456, %v6448, 0
        %6462 = vmatprep.subr.mxu0 0.0
        %6463 = vmatpush1.msra.mxu0 0.0
        %6464 = vmatprep.subr.mxu0 0.0
        %6465 = vmatpush1.msra.mxu0 0.0
        %6466 = vmatprep.subr.mxu0 0.0
        %6467 = vmatpush1.msra.mxu0 0.0
        %6468 = vmatprep.subr.mxu0 0.0
        %6469 = vmatpush1.msra.mxu0 0.0
        %6470 = vmatprep.subr.mxu0 0.0
        %6471 = vmatpush1.msra.mxu0 0.0
        %6472 = vmatprep.subr.mxu0 0.0
        %6473 = vmatpush1.msra.mxu0 0.0
        %6474 = vmatprep.subr.mxu0 0.0
        %6475 = vmatpush1.msra.mxu0 0.0
        %6476 = vmatprep.subr.mxu0 0.0
        %6477 = vmatpush1.msra.mxu0 0.0
        %6478 = vmatprep.subr.mxu0 0.0
        %6479 = vmatpush1.msra.mxu0 0.0
        %6480 = vmatprep.subr.mxu0 0.0
        %6481 = vmatpush1.msra.mxu0 0.0
        %6482 = vmatprep.subr.mxu0 0.0
        %6483 = vmatpush1.msra.mxu0 0.0
        %6484 = vmatprep.subr.mxu0 0.0
        %6485 = vmatpush1.msra.mxu0 0.0
        %6486 = vmatprep.subr.mxu0 0.0
        %6487 = vmatpush1.msra.mxu0 %v6453
        %6488 = vmatprep.subr.mxu0 0.0
        %6489 = vmatpush1.msra.mxu0 %v6452
        %6490 = vmatprep.subr.mxu0 0.0
        %6491 = vmatpush1.msra.mxu0 %v6451
        %6492 = vmatprep.subr.mxu0 0.0
        %6493 = vmatpush1.msra.mxu0 %v6450
        %6494 = vmatprep.subr.mxu0 0.0
        %6495 = vmatpush2.msra.mxu0 0.0
        %6496 = vmatprep.subr.mxu0 0.0
        %6497 = vmatpush2.msra.mxu0 0.0
        %6498 = vmatprep.subr.mxu0 0.0
        %6499 = vmatpush2.msra.mxu0 0.0
        %6500 = vmatprep.subr.mxu0 0.0
        %6501 = vmatpush2.msra.mxu0 0.0
        %6502 = vmatprep.subr.mxu0 0.0
        %6503 = vmatpush2.msra.mxu0 0.0
        %6504 = vmatprep.subr.mxu0 0.0
        %6505 = vmatpush2.msra.mxu0 0.0
        %6506 = vmatprep.subr.mxu0 0.0
        %6507 = vmatpush2.msra.mxu0 0.0
        %6508 = vmatprep.subr.mxu0 0.0
        %6509 = vmatpush2.msra.mxu0 0.0
        %6510 = vmatprep.subr.mxu0 0.0
        %6511 = vmatpush2.msra.mxu0 0.0
        %6512 = vmatprep.subr.mxu0 0.0
        %6513 = vmatpush2.msra.mxu0 0.0
        %6514 = vmatprep.subr.mxu0 0.0
        %6515 = vmatpush2.msra.mxu0 0.0
        %6516 = vmatprep.subr.mxu0 0.0
        %6517 = vmatpush2.msra.mxu0 0.0
        %6518 = vmatprep.subr.mxu0 0.0
        %6519 = vmatpush2.msra.mxu0 0.0
        %6520 = vmatprep.subr.mxu0 0.0
        %6521 = vmatpush2.msra.mxu0 0.0
        %6522 = vmatprep.subr.mxu0 0.0
        %6523 = vmatpush2.msra.mxu0 0.0
        %6524 = vmatprep.subr.mxu0 0.0
        %6525 = vmatpush2.msra.mxu0 0.0
        %6526 = vmatprep.mubr.f32.mxu0 0.0
        %6527 = vmatmul.mubr.f32.gmra.mxu0 %v6460
        %v6528 = vpop.f32.mrf.mxu0
        %v6529 = vadd.f32 %v6458, %v6528
        %v6530 = vpop.f32.mrf.mxu0
        %6531 = vdwg.mxu0
        %v6532 = vmul.f32 %v6529, %v6529
        %v6533 = vmul.f32 %v6529, %v6532
        %v6534 = vmul.f32 %v6533, 0.044715
        %v6535 = vadd.f32 %v6529, %v6534
        %v6536 = vmul.f32 %v6535, 0.7978846
        %v6537 = vtanh.pop %v6536
        %v6538 = vadd.f32 %v6537, 1.0
        %v6539 = vmul.f32 %v6538, 0.5
        %v6540 = vmul.f32 %v6529, %v6539
        %s6541 = scalar_lea.vmem %s6, 384
        %v6542 = vld [vmem:[%s6541] sm:$0xff]
        %v6543 = vld [vmem:[%s6541 + $0x8] sm:$0xff]
        %v6544 = vld [vmem:[%s6541 + $0x10] sm:$0xff]
        %v6545 = vld [vmem:[%s6541 + $0x18] sm:$0xff]
        %v6546 = vld [vmem:[%s6541 + $0x20] sm:$0xff]
        %v6547 = vld [vmem:[%s6541 + $0x28] sm:$0xff]
        %v6548 = vld [vmem:[%s6541 + $0x30] sm:$0xff]
        %v6549 = vld [vmem:[%s6541 + $0x38] sm:$0xff]
        %v6550 = vld [vmem:[%s6541 + $0x40] sm:$0xff]
        %v6551 = vld [vmem:[%s6541 + $0x48] sm:$0xff]
        %v6552 = vld [vmem:[%s6541 + $0x50] sm:$0xff]
        %v6553 = vld [vmem:[%s6541 + $0x58] sm:$0xff]
        %v6554 = vld [vmem:[%s6541 + $0x60] sm:$0xff]
        %v6555 = vld [vmem:[%s6541 + $0x68] sm:$0xff]
        %v6556 = vld [vmem:[%s6541 + $0x70] sm:$0xff]
        %v6557 = vld [vmem:[%s6541 + $0x78] sm:$0xff]
        %v6558 = vld [vmem:[%s8 + $0x1b] sm:$0x1]
        %v6559 = vlaneseq
        %v6560 = vshrl.u32 %v6559, 7
        %v6561 = vsub.s32 0, %v6560
        %v6562 = vrot.slane %v6558, %v6561
        %6563 = vmatprep.subr.mxu0 0.0
        %6564 = vmatpush1.msra.mxu0 %v6557
        %6565 = vmatprep.subr.mxu0 0.0
        %6566 = vmatpush1.msra.mxu0 %v6556
        %6567 = vmatprep.subr.mxu0 0.0
        %6568 = vmatpush1.msra.mxu0 %v6555
        %6569 = vmatprep.subr.mxu0 0.0
        %6570 = vmatpush1.msra.mxu0 %v6554
        %6571 = vmatprep.subr.mxu0 0.0
        %6572 = vmatpush1.msra.mxu0 %v6553
        %6573 = vmatprep.subr.mxu0 0.0
        %6574 = vmatpush1.msra.mxu0 %v6552
        %6575 = vmatprep.subr.mxu0 0.0
        %6576 = vmatpush1.msra.mxu0 %v6551
        %6577 = vmatprep.subr.mxu0 0.0
        %6578 = vmatpush1.msra.mxu0 %v6550
        %6579 = vmatprep.subr.mxu0 0.0
        %6580 = vmatpush1.msra.mxu0 %v6549
        %6581 = vmatprep.subr.mxu0 0.0
        %6582 = vmatpush1.msra.mxu0 %v6548
        %6583 = vmatprep.subr.mxu0 0.0
        %6584 = vmatpush1.msra.mxu0 %v6547
        %6585 = vmatprep.subr.mxu0 0.0
        %6586 = vmatpush1.msra.mxu0 %v6546
        %6587 = vmatprep.subr.mxu0 0.0
        %6588 = vmatpush1.msra.mxu0 %v6545
        %6589 = vmatprep.subr.mxu0 0.0
        %6590 = vmatpush1.msra.mxu0 %v6544
        %6591 = vmatprep.subr.mxu0 0.0
        %6592 = vmatpush1.msra.mxu0 %v6543
        %6593 = vmatprep.subr.mxu0 0.0
        %6594 = vmatpush1.msra.mxu0 %v6542
        %6595 = vmatprep.subr.mxu0 0.0
        %6596 = vmatpush2.msra.mxu0 0.0
        %6597 = vmatprep.subr.mxu0 0.0
        %6598 = vmatpush2.msra.mxu0 0.0
        %6599 = vmatprep.subr.mxu0 0.0
        %6600 = vmatpush2.msra.mxu0 0.0
        %6601 = vmatprep.subr.mxu0 0.0
        %6602 = vmatpush2.msra.mxu0 0.0
        %6603 = vmatprep.subr.mxu0 0.0
        %6604 = vmatpush2.msra.mxu0 0.0
        %6605 = vmatprep.subr.mxu0 0.0
        %6606 = vmatpush2.msra.mxu0 0.0
        %6607 = vmatprep.subr.mxu0 0.0
        %6608 = vmatpush2.msra.mxu0 0.0
        %6609 = vmatprep.subr.mxu0 0.0
        %6610 = vmatpush2.msra.mxu0 0.0
        %6611 = vmatprep.subr.mxu0 0.0
        %6612 = vmatpush2.msra.mxu0 0.0
        %6613 = vmatprep.subr.mxu0 0.0
        %6614 = vmatpush2.msra.mxu0 0.0
        %6615 = vmatprep.subr.mxu0 0.0
        %6616 = vmatpush2.msra.mxu0 0.0
        %6617 = vmatprep.subr.mxu0 0.0
        %6618 = vmatpush2.msra.mxu0 0.0
        %6619 = vmatprep.subr.mxu0 0.0
        %6620 = vmatpush2.msra.mxu0 0.0
        %6621 = vmatprep.subr.mxu0 0.0
        %6622 = vmatpush2.msra.mxu0 0.0
        %6623 = vmatprep.subr.mxu0 0.0
        %6624 = vmatpush2.msra.mxu0 0.0
        %6625 = vmatprep.subr.mxu0 0.0
        %6626 = vmatpush2.msra.mxu0 0.0
        %6627 = vmatprep.mubr.f32.mxu0 0.0
        %6628 = vmatmul.mubr.f32.gmra.mxu0 %v6540
        %v6629 = vpop.f32.mrf.mxu0
        %v6630 = vadd.f32 %v6562, %v6629
        %v6631 = vpop.f32.mrf.mxu0
        %6632 = vdwg.mxu0
        %v6633 = vadd.f32 %v6423, %v6630
        %v6634 = vld [vmem:[%s8 + $0xa] sm:$0x1]
        %v6635 = vld [vmem:[%s8 + $0xb] sm:$0x1]
        %v6636 = vsel %vm456, %v6633, 0.0
        %6637 = vadd.xlane.f32.xlu0 %v6636
        %v6638 = vpop.xlane.xlu0 %6637
        %v6639 = vmul.f32 %v6638, %v460
        %v6640 = vsub.f32 %v6633, %v6639
        %v6641 = vmul.f32 %v6640, %v6640
        %v6642 = vsel %vm456, %v6641, 0.0
        %6643 = vadd.xlane.f32.xlu0 %v6642
        %v6644 = vpop.xlane.xlu0 %6643
        %v6645 = vmul.f32 %v6644, %v460
        %v6646 = vadd.f32 %v6645, 1e-05
        %v6647 = vrsqrt.pop %v6646
        %v6648 = vmul.f32 %v6640, %v6647
        %v6649 = vlaneseq
        %v6650 = vshrl.u32 %v6649, 7
        %v6651 = vsub.s32 0, %v6650
        %v6652 = vrot.slane %v6634, %v6651
        %v6653 = vmul.f32 %v6648, %v6652
        %v6654 = vlaneseq
        %v6655 = vshrl.u32 %v6654, 7
        %v6656 = vsub.s32 0, %v6655
        %v6657 = vrot.slane %v6635, %v6656
        %v6658 = vadd.f32 %v6653, %v6657
        %v6659 = vld [vmem:[%s7 + $0x30] sm:$0xff]
        %v6660 = vld [vmem:[%s7 + $0x38] sm:$0xff]
        %v6661 = vld [vmem:[%s7 + $0x40] sm:$0xff]
        %v6662 = vld [vmem:[%s7 + $0x48] sm:$0xff]
        %v6663 = vld [vmem:[%s8 + $0x9] sm:$0x1]
        %v6664 = vlaneseq
        %v6665 = vshrl.u32 %v6664, 7
        %v6666 = vsub.s32 0, %v6665
        %v6667 = vrot.slane %v6663, %v6666
        %v6669 = vsel %vm456, %v6658, 0
        %6671 = vmatprep.subr.mxu0 0.0
        %6672 = vmatpush1.msra.mxu0 0.0
        %6673 = vmatprep.subr.mxu0 0.0
        %6674 = vmatpush1.msra.mxu0 0.0
        %6675 = vmatprep.subr.mxu0 0.0
        %6676 = vmatpush1.msra.mxu0 0.0
        %6677 = vmatprep.subr.mxu0 0.0
        %6678 = vmatpush1.msra.mxu0 0.0
        %6679 = vmatprep.subr.mxu0 0.0
        %6680 = vmatpush1.msra.mxu0 0.0
        %6681 = vmatprep.subr.mxu0 0.0
        %6682 = vmatpush1.msra.mxu0 0.0
        %6683 = vmatprep.subr.mxu0 0.0
        %6684 = vmatpush1.msra.mxu0 0.0
        %6685 = vmatprep.subr.mxu0 0.0
        %6686 = vmatpush1.msra.mxu0 0.0
        %6687 = vmatprep.subr.mxu0 0.0
        %6688 = vmatpush1.msra.mxu0 0.0
        %6689 = vmatprep.subr.mxu0 0.0
        %6690 = vmatpush1.msra.mxu0 0.0
        %6691 = vmatprep.subr.mxu0 0.0
        %6692 = vmatpush1.msra.mxu0 0.0
        %6693 = vmatprep.subr.mxu0 0.0
        %6694 = vmatpush1.msra.mxu0 0.0
        %6695 = vmatprep.subr.mxu0 0.0
        %6696 = vmatpush1.msra.mxu0 %v6662
        %6697 = vmatprep.subr.mxu0 0.0
        %6698 = vmatpush1.msra.mxu0 %v6661
        %6699 = vmatprep.subr.mxu0 0.0
        %6700 = vmatpush1.msra.mxu0 %v6660
        %6701 = vmatprep.subr.mxu0 0.0
        %6702 = vmatpush1.msra.mxu0 %v6659
        %6703 = vmatprep.subr.mxu0 0.0
        %6704 = vmatpush2.msra.mxu0 0.0
        %6705 = vmatprep.subr.mxu0 0.0
        %6706 = vmatpush2.msra.mxu0 0.0
        %6707 = vmatprep.subr.mxu0 0.0
        %6708 = vmatpush2.msra.mxu0 0.0
        %6709 = vmatprep.subr.mxu0 0.0
        %6710 = vmatpush2.msra.mxu0 0.0
        %6711 = vmatprep.subr.mxu0 0.0
        %6712 = vmatpush2.msra.mxu0 0.0
        %6713 = vmatprep.subr.mxu0 0.0
        %6714 = vmatpush2.msra.mxu0 0.0
        %6715 = vmatprep.subr.mxu0 0.0
        %6716 = vmatpush2.msra.mxu0 0.0
        %6717 = vmatprep.subr.mxu0 0.0
        %6718 = vmatpush2.msra.mxu0 0.0
        %6719 = vmatprep.subr.mxu0 0.0
        %6720 = vmatpush2.msra.mxu0 0.0
        %6721 = vmatprep.subr.mxu0 0.0
        %6722 = vmatpush2.msra.mxu0 0.0
        %6723 = vmatprep.subr.mxu0 0.0
        %6724 = vmatpush2.msra.mxu0 0.0
        %6725 = vmatprep.subr.mxu0 0.0
        %6726 = vmatpush2.msra.mxu0 0.0
        %6727 = vmatprep.subr.mxu0 0.0
        %6728 = vmatpush2.msra.mxu0 0.0
        %6729 = vmatprep.subr.mxu0 0.0
        %6730 = vmatpush2.msra.mxu0 0.0
        %6731 = vmatprep.subr.mxu0 0.0
        %6732 = vmatpush2.msra.mxu0 0.0
        %6733 = vmatprep.subr.mxu0 0.0
        %6734 = vmatpush2.msra.mxu0 0.0
        %6735 = vmatprep.mubr.f32.mxu0 0.0
        %6736 = vmatmul.mubr.f32.gmra.mxu0 %v6669
        %v6737 = vpop.f32.mrf.mxu0
        %v6738 = vadd.f32 %v6667, %v6737
        %v6739 = vpop.f32.mrf.mxu0
        %6740 = vdwg.mxu0
        %v6741 = vsel %vm456, %v6738, 0.0
        %v6742 = vrot.slane %v6741, 4
        %v6743 = vadd.f32 %v6741, %v6742
        %v6744 = vrot.slane %v6743, 2
        %v6745 = vadd.f32 %v6743, %v6744
        %v6746 = vrot.slane %v6745, 1
        %v6747 = vadd.f32 %v6745, %v6746
        %v6748 = vmul.f32 %v6747, 0.125
        %6750 = vrot.lane.b32.xlu0 %v6748, 32
        %v6751 = vpop.permute.xlu0 %6750
        %v6753 = vsel %vm456, %v2836, %v6751
        %v6754 = vld [vmem:[%s7 + $0x50] sm:$0xff]
        %v6755 = vld [vmem:[%s7 + $0x58] sm:$0xff]
        %v6756 = vld [vmem:[%s7 + $0x60] sm:$0xff]
        %v6757 = vld [vmem:[%s7 + $0x68] sm:$0xff]
        %v6758 = vld [vmem:[%s7 + $0x70] sm:$0xff]
        %v6759 = vld [vmem:[%s7 + $0x78] sm:$0xff]
        %v6760 = vld [vmem:[%s7 + $0x80] sm:$0xff]
        %v6761 = vld [vmem:[%s7 + $0x88] sm:$0xff]
        %v6762 = vld [vmem:[%s8 + $0x22] sm:$0x1]
        %vm6763 = vcmask 523264
        %v6765 = vsel %vm6763, %v6753, 0
        %6767 = vmatprep.subr.mxu0 0.0
        %6768 = vmatpush1.msra.mxu0 0.0
        %6769 = vmatprep.subr.mxu0 0.0
        %6770 = vmatpush1.msra.mxu0 0.0
        %6771 = vmatprep.subr.mxu0 0.0
        %6772 = vmatpush1.msra.mxu0 0.0
        %6773 = vmatprep.subr.mxu0 0.0
        %6774 = vmatpush1.msra.mxu0 0.0
        %6775 = vmatprep.subr.mxu0 0.0
        %6776 = vmatpush1.msra.mxu0 0.0
        %6777 = vmatprep.subr.mxu0 0.0
        %6778 = vmatpush1.msra.mxu0 0.0
        %6779 = vmatprep.subr.mxu0 0.0
        %6780 = vmatpush1.msra.mxu0 0.0
        %6781 = vmatprep.subr.mxu0 0.0
        %6782 = vmatpush1.msra.mxu0 0.0
        %6783 = vmatprep.subr.mxu0 0.0
        %6784 = vmatpush1.msra.mxu0 %v6761
        %6785 = vmatprep.subr.mxu0 0.0
        %6786 = vmatpush1.msra.mxu0 %v6760
        %6787 = vmatprep.subr.mxu0 0.0
        %6788 = vmatpush1.msra.mxu0 %v6759
        %6789 = vmatprep.subr.mxu0 0.0
        %6790 = vmatpush1.msra.mxu0 %v6758
        %6791 = vmatprep.subr.mxu0 0.0
        %6792 = vmatpush1.msra.mxu0 %v6757
        %6793 = vmatprep.subr.mxu0 0.0
        %6794 = vmatpush1.msra.mxu0 %v6756
        %6795 = vmatprep.subr.mxu0 0.0
        %6796 = vmatpush1.msra.mxu0 %v6755
        %6797 = vmatprep.subr.mxu0 0.0
        %6798 = vmatpush1.msra.mxu0 %v6754
        %6799 = vmatprep.subr.mxu0 0.0
        %6800 = vmatpush2.msra.mxu0 0.0
        %6801 = vmatprep.subr.mxu0 0.0
        %6802 = vmatpush2.msra.mxu0 0.0
        %6803 = vmatprep.subr.mxu0 0.0
        %6804 = vmatpush2.msra.mxu0 0.0
        %6805 = vmatprep.subr.mxu0 0.0
        %6806 = vmatpush2.msra.mxu0 0.0
        %6807 = vmatprep.subr.mxu0 0.0
        %6808 = vmatpush2.msra.mxu0 0.0
        %6809 = vmatprep.subr.mxu0 0.0
        %6810 = vmatpush2.msra.mxu0 0.0
        %6811 = vmatprep.subr.mxu0 0.0
        %6812 = vmatpush2.msra.mxu0 0.0
        %6813 = vmatprep.subr.mxu0 0.0
        %6814 = vmatpush2.msra.mxu0 0.0
        %6815 = vmatprep.subr.mxu0 0.0
        %6816 = vmatpush2.msra.mxu0 0.0
        %6817 = vmatprep.subr.mxu0 0.0
        %6818 = vmatpush2.msra.mxu0 0.0
        %6819 = vmatprep.subr.mxu0 0.0
        %6820 = vmatpush2.msra.mxu0 0.0
        %6821 = vmatprep.subr.mxu0 0.0
        %6822 = vmatpush2.msra.mxu0 0.0
        %6823 = vmatprep.subr.mxu0 0.0
        %6824 = vmatpush2.msra.mxu0 0.0
        %6825 = vmatprep.subr.mxu0 0.0
        %6826 = vmatpush2.msra.mxu0 0.0
        %6827 = vmatprep.subr.mxu0 0.0
        %6828 = vmatpush2.msra.mxu0 0.0
        %6829 = vmatprep.subr.mxu0 0.0
        %6830 = vmatpush2.msra.mxu0 0.0
        %6831 = vmatprep.mubr.f32.mxu0 0.0
        %6832 = vmatmul.mubr.f32.gmra.mxu0 %v6765
        %v6833 = vpop.f32.mrf.mxu0
        %v6834 = vadd.f32 %v6762, %v6833
        %v6835 = vpop.f32.mrf.mxu0
        %6836 = vdwg.mxu0
        %vm6837 = vcmp.gt.f32.partialorder %v6834, 0.0
        %v6838 = vmin.f32 %v6834, 0.0
        %v6839 = vmul.f32 %v6838, 1.442695
        %v6840 = vpow.pop %v6839
        %v6841 = vsub.f32 %v6840, 1.0
        %v6842 = vsel %vm6837, %v6834, %v6841
        %v6843 = vld [vmem:[%s7 + $0x90] sm:$0xff]
        %v6844 = vld [vmem:[%s7 + $0x98] sm:$0xff]
        %v6845 = vld [vmem:[%s7 + $0xa0] sm:$0xff]
        %v6846 = vld [vmem:[%s7 + $0xa8] sm:$0xff]
        %v6847 = vld [vmem:[%s8 + $0x23] sm:$0x1]
        %v6849 = vsel %vm456, %v6842, 0
        %6851 = vmatprep.subr.mxu0 0.0
        %6852 = vmatpush1.msra.mxu0 0.0
        %6853 = vmatprep.subr.mxu0 0.0
        %6854 = vmatpush1.msra.mxu0 0.0
        %6855 = vmatprep.subr.mxu0 0.0
        %6856 = vmatpush1.msra.mxu0 0.0
        %6857 = vmatprep.subr.mxu0 0.0
        %6858 = vmatpush1.msra.mxu0 0.0
        %6859 = vmatprep.subr.mxu0 0.0
        %6860 = vmatpush1.msra.mxu0 0.0
        %6861 = vmatprep.subr.mxu0 0.0
        %6862 = vmatpush1.msra.mxu0 0.0
        %6863 = vmatprep.subr.mxu0 0.0
        %6864 = vmatpush1.msra.mxu0 0.0
        %6865 = vmatprep.subr.mxu0 0.0
        %6866 = vmatpush1.msra.mxu0 0.0
        %6867 = vmatprep.subr.mxu0 0.0
        %6868 = vmatpush1.msra.mxu0 0.0
        %6869 = vmatprep.subr.mxu0 0.0
        %6870 = vmatpush1.msra.mxu0 0.0
        %6871 = vmatprep.subr.mxu0 0.0
        %6872 = vmatpush1.msra.mxu0 0.0
        %6873 = vmatprep.subr.mxu0 0.0
        %6874 = vmatpush1.msra.mxu0 0.0
        %6875 = vmatprep.subr.mxu0 0.0
        %6876 = vmatpush1.msra.mxu0 %v6846
        %6877 = vmatprep.subr.mxu0 0.0
        %6878 = vmatpush1.msra.mxu0 %v6845
        %6879 = vmatprep.subr.mxu0 0.0
        %6880 = vmatpush1.msra.mxu0 %v6844
        %6881 = vmatprep.subr.mxu0 0.0
        %6882 = vmatpush1.msra.mxu0 %v6843
        %6883 = vmatprep.subr.mxu0 0.0
        %6884 = vmatpush2.msra.mxu0 0.0
        %6885 = vmatprep.subr.mxu0 0.0
        %6886 = vmatpush2.msra.mxu0 0.0
        %6887 = vmatprep.subr.mxu0 0.0
        %6888 = vmatpush2.msra.mxu0 0.0
        %6889 = vmatprep.subr.mxu0 0.0
        %6890 = vmatpush2.msra.mxu0 0.0
        %6891 = vmatprep.subr.mxu0 0.0
        %6892 = vmatpush2.msra.mxu0 0.0
        %6893 = vmatprep.subr.mxu0 0.0
        %6894 = vmatpush2.msra.mxu0 0.0
        %6895 = vmatprep.subr.mxu0 0.0
        %6896 = vmatpush2.msra.mxu0 0.0
        %6897 = vmatprep.subr.mxu0 0.0
        %6898 = vmatpush2.msra.mxu0 0.0
        %6899 = vmatprep.subr.mxu0 0.0
        %6900 = vmatpush2.msra.mxu0 0.0
        %6901 = vmatprep.subr.mxu0 0.0
        %6902 = vmatpush2.msra.mxu0 0.0
        %6903 = vmatprep.subr.mxu0 0.0
        %6904 = vmatpush2.msra.mxu0 0.0
        %6905 = vmatprep.subr.mxu0 0.0
        %6906 = vmatpush2.msra.mxu0 0.0
        %6907 = vmatprep.subr.mxu0 0.0
        %6908 = vmatpush2.msra.mxu0 0.0
        %6909 = vmatprep.subr.mxu0 0.0
        %6910 = vmatpush2.msra.mxu0 0.0
        %6911 = vmatprep.subr.mxu0 0.0
        %6912 = vmatpush2.msra.mxu0 0.0
        %6913 = vmatprep.subr.mxu0 0.0
        %6914 = vmatpush2.msra.mxu0 0.0
        %6915 = vmatprep.mubr.f32.mxu0 0.0
        %6916 = vmatmul.mubr.f32.gmra.mxu0 %v6849
        %v6917 = vpop.f32.mrf.mxu0
        %v6918 = vadd.f32 %v6847, %v6917
        %v6919 = vpop.f32.mrf.mxu0
        %6920 = vdwg.mxu0
        %vm6921 = vcmask 253952
        %6922 = vst.msk [vmem:[%s348] sm:$0x1] %vm6921, %v6918
        %s6923 = sand.u32 %s235, 1
        %s6924 = scalar_lea.sflag [#allocation3], %s6923
        %s6925 = sand.u32 %s235, 1
        %s6926 = scalar_lea.vmem [#allocation2], %s6925
        // Predicated region
        $region57: #{representation_forward.1} parent=55 // pred_check
          %p6927 = pneg %p245
        $region58: #{representation_forward.1} parent=55 // pred_check_branch
          %6929 = sbr.rel (%p6927) target = $region60
        $region59: #{representation_forward.1} parent=55 // pred_region
          %s6931 = ssub.s32 16, 16
          %6932 = vsyncadd %s6924, %s6931
          %s6933 = smul.addr %s23, 16
          %s6934 = scalar_lea.hbm %s9, %s6933
          %s6936 = sshll.u32 %s6926, 4
          %s6937 = int_to_ptr.vmem [resolvable:$true] %s6936
          %6939 = dma.vmem_to_hbm [thread:$0]  %s6937, 16, %s6934, %s6924
        $region60: #{representation_forward.1} parent=55 // pred_fallthru
          _
      $region56: #{representation_forward.1} parent=5 // pred_fallthru
        _
      %p6940 = scmp.le.s32.totalorder 2, %s18
      // Predicated region
      $region61: #{representation_forward.1} parent=5 // pred_check
        %p6941 = pneg %p6940
      $region62: #{representation_forward.1} parent=5 // pred_check_branch
        %6943 = sbr.rel (%p6941) target = $region64
      $region63: #{representation_forward.1} parent=5 // pred_region
        %s6944 = ssub.s32 %s18, 2
        // Predicated region
        $region65: #{representation_forward.1} parent=63 // pred_check
          %p6945 = pneg %p251
        $region66: #{representation_forward.1} parent=63 // pred_check_branch
          %6947 = sbr.rel (%p6945) target = $region68
        $region67: #{representation_forward.1} parent=63 // pred_region
          %s6948 = sand.u32 %s236, 1
          %s6949 = scalar_lea.sflag [#allocation3], %s6948
          %s6950 = sand.u32 %s236, 1
          %s6951 = scalar_lea.vmem [#allocation2], %s6950
          %6952 = dma.done %s6949, 16
        $region68: #{representation_forward.1} parent=63 // pred_fallthru
          _
      $region64: #{representation_forward.1} parent=5 // pred_fallthru
        _
    $region6: #{representation_forward.1} parent=1 // loop_footer
      %s22 = sadd.s32 1, %s18
    $region7: #{representation_forward.1} parent=1 // loop_footer_branch
      %17 = sbr.rel target = $region3
    $region8: #{representation_forward.1} parent=1 // loop_exit
      _
    %6953 = vsyncpa [#allocation3], 1
    %s6954 = scalar_lea.sflag [#allocation3], 1
    %6955 = vsyncpa %s6954, 1

</llo_original>
